<compile_context>
chip_gen: v6e
topology: v6e:2x2x1
jax: 0.10.0
libtpu: 0.0.40
codegen_flags: <defaults>
</compile_context>

<pallas_src>
import jax
import jax.numpy as jnp
from jax import lax
from jax.experimental import pallas as pl
from jax.experimental.pallas import tpu as pltpu

K_NEIGHBORS = 20      # neighborhood_size=20 in the module
NEWTON_ITERS = 12     # Newton steps for the smallest eigenvalue of the 3x3 cov


# ----------------------------------------------------------------------------
# Covariance invariants + eigenvalue product, on lane-dense (2, N) arrays.
# ----------------------------------------------------------------------------
def _kg_from_moments(mom_p, mom_g, k):
    """mom_p/mom_g: (16, N) rows = [Sx,Sy,Sz,Sxx,Syy,Szz,Sxy,Sxz,Syz, pad...]
    (sums over the K selected neighbours).  Returns kg: (2, N) = lam1*lam2 of
    the per-point 3x3 covariance for [pred, gt]."""

    def row(r):
        return jnp.stack([mom_p[r], mom_g[r]], axis=0)        # (2, N)

    inv_k = 1.0 / float(k)
    sx = row(0) * inv_k
    sy = row(1) * inv_k
    sz = row(2) * inv_k
    cxx = row(3) * inv_k - sx * sx
    cyy = row(4) * inv_k - sy * sy
    czz = row(5) * inv_k - sz * sz
    cxy = row(6) * inv_k - sx * sy
    cxz = row(7) * inv_k - sx * sz
    cyz = row(8) * inv_k - sy * sz

    # Invariants of the symmetric PSD 3x3 covariance.
    tr = cxx + cyy + czz
    m2 = (cxx * cyy + cxx * czz + cyy * czz
          - cxy * cxy - cxz * cxz - cyz * cyz)
    det = (cxx * (cyy * czz - cyz * cyz)
           - cxy * (cxy * czz - cyz * cxz)
           + cxz * (cxy * cyz - cyy * cxz))

    # Normalize so eigenvalues are O(1): A' = A / (tr/3) has trace 3.
    s = tr * (1.0 / 3.0)
    valid = s > 1e-30
    s_safe = jnp.where(valid, s, 1.0)
    inv_s = 1.0 / s_safe
    m2n = m2 * inv_s * inv_s
    detn = det * inv_s * inv_s * inv_s

    # Smallest root of f(x) = x^3 - 3x^2 + m2n*x - detn via monotone Newton
    # from x=0 (all roots real, in [0,3]; the smallest is in [0,1]).  The
    # divide goes to the EUP (approx reciprocal) — Newton self-corrects it.
    x = jnp.zeros_like(tr)
    for _ in range(NEWTON_ITERS):
        fx = ((x - 3.0) * x + m2n) * x - detn
        fpx = (3.0 * x - 6.0) * x + m2n
        fpx = jnp.where(jnp.abs(fpx) > 1e-12, fpx,
                        jnp.where(fpx >= 0.0, 1e-12, -1e-12))
        x = jnp.clip(x - fx * pl.reciprocal(fpx, approx=True), 0.0, 1.0)
    lam0n = x

    # lam1*lam2 = M2 - lam0*(trace - lam0); un-normalize by s^2.
    kgn = m2n - lam0n * (3.0 - lam0n)
    kg = kgn * s_safe * s_safe
    return jnp.where(valid, kg, 0.0)


# ----------------------------------------------------------------------------
# Fused kernel: distances -> KNN mask -> moments -> KG -> per-batch loss term
# ----------------------------------------------------------------------------
def _curv_loss_kernel(x_nd_ref, x_dn_ref, out_ref):
    # x_nd_ref: (2, N, 3)   points, point index on sublanes (for row broadcasts)
    # x_dn_ref: (2, 3, N)   points, point index on lanes    (for col broadcasts)
    # out_ref:  (1, 1)      per-batch partial sum of (KG_pred - KG_gt)^2
    n = x_dn_ref.shape[2]
    iota_j = lax.broadcasted_iota(jnp.int32, (n, n), 0).astype(jnp.float32)

    moms = []
    for s in range(2):                                    # 0 = preds, 1 = gts
        x_nd = x_nd_ref[s]                                # (N, 3)
        x_dn = x_dn_ref[s]                                # (3, N)

        # --- pairwise squared distances D[j, i] on the VPU (exact, symmetric)
        d = jnp.zeros((n, n), jnp.float32)
        for c in range(3):
            diff = x_nd[:, c:c + 1] - x_dn[c:c + 1, :]    # (N,1)-(1,N) -> (N,N)
            d = d + diff * diff

        # --- fused K-NN: iterative min-extraction builds a 0/1 neighbour mask
        #     (exactly one candidate j per query column i per pass; ties broken
        #      by the lowest index, like top_k).
        mask = jnp.zeros((n, n), jnp.float32)
        for _ in range(K_NEIGHBORS):
            mcol = jnp.min(d, axis=0, keepdims=True)                 # (1, N)
            cand = jnp.where(d == mcol, iota_j, jnp.float32(n))      # (N, N)
            amin = jnp.min(cand, axis=0, keepdims=True)              # (1, N)
            sel = iota_j == amin                                     # (N, N)
            mask = mask + sel.astype(jnp.float32)
            d = jnp.where(sel, jnp.float32(1e30), d)

        # --- neighbourhood moments on the (otherwise idle) MXU:
        #     mom[c, i] = sum_j feat_c(x_j) * mask[j, i], contraction over N.
        fx, fy, fz = x_dn[0], x_dn[1], x_dn[2]                       # (N,)
        zero = jnp.zeros_like(fx)
        feat = jnp.stack(
            [fx, fy, fz, fx * fx, fy * fy, fz * fz, fx * fy, fx * fz, fy * fz,
             zero, zero, zero, zero, zero, zero, zero], axis=0)      # (16, N)
        moms.append(jnp.dot(feat, mask,
                            preferred_element_type=jnp.float32))     # (16, N)

    kg = _kg_from_moments(moms[0], moms[1], K_NEIGHBORS)             # (2, N)
    diff = kg[0] - kg[1]
    out_ref[...] = jnp.reshape(jnp.sum(diff * diff), (1, 1))


def _curvature_partial_sums(pts_nd, pts_dn):
    """pts_nd: (B, 2, N, 3), pts_dn: (B, 2, 3, N) -> (B, 1, 1) partial sums."""
    B, _, N, _ = pts_nd.shape
    return pl.pallas_call(
        _curv_loss_kernel,
        out_shape=jax.ShapeDtypeStruct((B, 1, 1), jnp.float32),
        grid_spec=pltpu.PrefetchScalarGridSpec(
            num_scalar_prefetch=0,
            grid=(B,),
            in_specs=[
                pl.BlockSpec((None, 2, N, 3), lambda b: (b, 0, 0, 0)),
                pl.BlockSpec((None, 2, 3, N), lambda b: (b, 0, 0, 0)),
            ],
            out_specs=pl.BlockSpec((None, 1, 1), lambda b: (b, 0, 0)),
        ),
        compiler_params=pltpu.CompilerParams(
            dimension_semantics=("parallel",)),
    )(pts_nd, pts_dn)


# ----------------------------------------------------------------------------
# Public entry point (matches CurvatureDistance.forward)
# ----------------------------------------------------------------------------
@jax.jit
def curvature_distance(preds, gts):
    """preds: [B, N, 3], gts: [B, N, 3] -> scalar loss."""
    preds = preds.astype(jnp.float32)
    gts = gts.astype(jnp.float32)
    assert preds.shape == gts.shape and preds.shape[1] >= K_NEIGHBORS
    pts = jnp.stack([preds, gts], axis=1)                   # (B, 2, N, 3)
    # pytorch3d removes the per-cloud mean before KNN/covariance for numerical
    # stability; KNN and the covariance are translation invariant.
    pts = pts - jnp.mean(pts, axis=2, keepdims=True)
    pts_dn = jnp.transpose(pts, (0, 1, 3, 2))               # (B, 2, 3, N)
    partial = _curvature_partial_sums(pts, pts_dn)          # (B, 1, 1)
    return jnp.sqrt(jnp.sum(partial))


if __name__ == "__main__":
    key = jax.random.PRNGKey(0)
    kp, kg = jax.random.split(key)
    B, N = 2, 128                                           # N >= K_NEIGHBORS
    preds = jax.random.uniform(kp, (B, N, 3), dtype=jnp.float32)
    gts = jax.random.uniform(kg, (B, N, 3), dtype=jnp.float32)

    out = curvature_distance(preds, gts)
    jax.block_until_ready(out)
    assert out.shape == () and bool(jnp.isfinite(out))
    print("KERNEL_OK")
</pallas_src>

<mosaic_0001>
module attributes {stable_mosaic.version = 11 : i64} {
  func.func @_curv_loss_kernel(%arg0: i32, %arg1: memref<1x2x128x3xf32, #tpu.memory_space<vmem>>, %arg2: memref<1x2x3x128xf32, #tpu.memory_space<vmem>>, %arg3: memref<1x1x1xf32, #tpu.memory_space<vmem>>) attributes {dimension_semantics = [#tpu.dimension_semantics<parallel>], iteration_bounds = array<i64: 2>, scalar_prefetch = 0 : i64, scratch_operands = 0 : i64, tpu.core_type = #tpu.core_type<tc>, window_params = [{transform_indices = @transform_0, window_bounds = array<i64: 1, 2, 128, 3>}, {transform_indices = @transform_1, window_bounds = array<i64: 1, 2, 3, 128>}, {transform_indices = @transform_2, window_bounds = array<i64: 1, 1, 1>}]} {
    %0 = tpu.iota {dimensions = array<i32: 0>} : vector<128x128xi32>
    %1 = arith.sitofp %0 : vector<128x128xi32> to vector<128x128xf32>
    %c0 = arith.constant 0 : index
    %c0_0 = arith.constant 0 : index
    %c0_1 = arith.constant 0 : index
    %c0_2 = arith.constant 0 : index
    %2 = vector.load %arg1[%c0, %c0_0, %c0_1, %c0_2] : memref<1x2x128x3xf32, #tpu.memory_space<vmem>>, vector<1x1x128x3xf32>
    %3 = vector.shape_cast %2 : vector<1x1x128x3xf32> to vector<128x3xf32>
    %c0_3 = arith.constant 0 : index
    %c0_4 = arith.constant 0 : index
    %c0_5 = arith.constant 0 : index
    %c0_6 = arith.constant 0 : index
    %4 = vector.load %arg2[%c0_3, %c0_4, %c0_5, %c0_6] : memref<1x2x3x128xf32, #tpu.memory_space<vmem>>, vector<1x1x3x128xf32>
    %5 = vector.shape_cast %4 : vector<1x1x3x128xf32> to vector<3x128xf32>
    %cst = arith.constant 0.000000e+00 : f32
    %6 = vector.broadcast %cst : f32 to vector<128x128xf32>
    %7 = vector.extract_strided_slice %3 {offsets = [0, 0], sizes = [128, 1], strides = [1, 1]} : vector<128x3xf32> to vector<128x1xf32>
    %8 = vector.extract_strided_slice %5 {offsets = [0, 0], sizes = [1, 128], strides = [1, 1]} : vector<3x128xf32> to vector<1x128xf32>
    %9 = vector.broadcast %7 : vector<128x1xf32> to vector<128x128xf32>
    %10 = vector.broadcast %8 : vector<1x128xf32> to vector<128x128xf32>
    %11 = arith.subf %9, %10 : vector<128x128xf32>
    %12 = arith.mulf %11, %11 : vector<128x128xf32>
    %13 = arith.addf %6, %12 : vector<128x128xf32>
    %14 = vector.extract_strided_slice %3 {offsets = [0, 1], sizes = [128, 1], strides = [1, 1]} : vector<128x3xf32> to vector<128x1xf32>
    %15 = vector.extract_strided_slice %5 {offsets = [1, 0], sizes = [1, 128], strides = [1, 1]} : vector<3x128xf32> to vector<1x128xf32>
    %16 = vector.broadcast %14 : vector<128x1xf32> to vector<128x128xf32>
    %17 = vector.broadcast %15 : vector<1x128xf32> to vector<128x128xf32>
    %18 = arith.subf %16, %17 : vector<128x128xf32>
    %19 = arith.mulf %18, %18 : vector<128x128xf32>
    %20 = arith.addf %13, %19 : vector<128x128xf32>
    %21 = vector.extract_strided_slice %3 {offsets = [0, 2], sizes = [128, 1], strides = [1, 1]} : vector<128x3xf32> to vector<128x1xf32>
    %22 = vector.extract_strided_slice %5 {offsets = [2, 0], sizes = [1, 128], strides = [1, 1]} : vector<3x128xf32> to vector<1x128xf32>
    %23 = vector.broadcast %21 : vector<128x1xf32> to vector<128x128xf32>
    %24 = vector.broadcast %22 : vector<1x128xf32> to vector<128x128xf32>
    %25 = arith.subf %23, %24 : vector<128x128xf32>
    %26 = arith.mulf %25, %25 : vector<128x128xf32>
    %27 = arith.addf %20, %26 : vector<128x128xf32>
    %cst_7 = arith.constant 0.000000e+00 : f32
    %28 = vector.broadcast %cst_7 : f32 to vector<128x128xf32>
    %cst_8 = arith.constant dense<0x7F800000> : vector<128xf32>
    %29 = vector.multi_reduction <minimumf>, %27, %cst_8 [0] : vector<128x128xf32> to vector<128xf32>
    %30 = vector.shape_cast %29 : vector<128xf32> to vector<1x128xf32>
    %31 = vector.broadcast %30 : vector<1x128xf32> to vector<128x128xf32>
    %32 = arith.cmpf oeq, %27, %31 : vector<128x128xf32>
    %cst_9 = arith.constant 1.280000e+02 : f32
    %33 = vector.broadcast %cst_9 : f32 to vector<128x128xf32>
    %34 = arith.select %32, %1, %33 : vector<128x128xi1>, vector<128x128xf32>
    %cst_10 = arith.constant dense<0x7F800000> : vector<128xf32>
    %35 = vector.multi_reduction <minimumf>, %34, %cst_10 [0] : vector<128x128xf32> to vector<128xf32>
    %36 = vector.shape_cast %35 : vector<128xf32> to vector<1x128xf32>
    %37 = vector.broadcast %36 : vector<1x128xf32> to vector<128x128xf32>
    %38 = arith.cmpf oeq, %1, %37 : vector<128x128xf32>
    %39 = arith.extui %38 : vector<128x128xi1> to vector<128x128xi32>
    %40 = arith.sitofp %39 : vector<128x128xi32> to vector<128x128xf32>
    %41 = arith.addf %28, %40 : vector<128x128xf32>
    %cst_11 = arith.constant 1.000000e+30 : f32
    %42 = vector.broadcast %cst_11 : f32 to vector<128x128xf32>
    %43 = arith.select %38, %42, %27 : vector<128x128xi1>, vector<128x128xf32>
    %cst_12 = arith.constant dense<0x7F800000> : vector<128xf32>
    %44 = vector.multi_reduction <minimumf>, %43, %cst_12 [0] : vector<128x128xf32> to vector<128xf32>
    %45 = vector.shape_cast %44 : vector<128xf32> to vector<1x128xf32>
    %46 = vector.broadcast %45 : vector<1x128xf32> to vector<128x128xf32>
    %47 = arith.cmpf oeq, %43, %46 : vector<128x128xf32>
    %cst_13 = arith.constant 1.280000e+02 : f32
    %48 = vector.broadcast %cst_13 : f32 to vector<128x128xf32>
    %49 = arith.select %47, %1, %48 : vector<128x128xi1>, vector<128x128xf32>
    %cst_14 = arith.constant dense<0x7F800000> : vector<128xf32>
    %50 = vector.multi_reduction <minimumf>, %49, %cst_14 [0] : vector<128x128xf32> to vector<128xf32>
    %51 = vector.shape_cast %50 : vector<128xf32> to vector<1x128xf32>
    %52 = vector.broadcast %51 : vector<1x128xf32> to vector<128x128xf32>
    %53 = arith.cmpf oeq, %1, %52 : vector<128x128xf32>
    %54 = arith.extui %53 : vector<128x128xi1> to vector<128x128xi32>
    %55 = arith.sitofp %54 : vector<128x128xi32> to vector<128x128xf32>
    %56 = arith.addf %41, %55 : vector<128x128xf32>
    %cst_15 = arith.constant 1.000000e+30 : f32
    %57 = vector.broadcast %cst_15 : f32 to vector<128x128xf32>
    %58 = arith.select %53, %57, %43 : vector<128x128xi1>, vector<128x128xf32>
    %cst_16 = arith.constant dense<0x7F800000> : vector<128xf32>
    %59 = vector.multi_reduction <minimumf>, %58, %cst_16 [0] : vector<128x128xf32> to vector<128xf32>
    %60 = vector.shape_cast %59 : vector<128xf32> to vector<1x128xf32>
    %61 = vector.broadcast %60 : vector<1x128xf32> to vector<128x128xf32>
    %62 = arith.cmpf oeq, %58, %61 : vector<128x128xf32>
    %cst_17 = arith.constant 1.280000e+02 : f32
    %63 = vector.broadcast %cst_17 : f32 to vector<128x128xf32>
    %64 = arith.select %62, %1, %63 : vector<128x128xi1>, vector<128x128xf32>
    %cst_18 = arith.constant dense<0x7F800000> : vector<128xf32>
    %65 = vector.multi_reduction <minimumf>, %64, %cst_18 [0] : vector<128x128xf32> to vector<128xf32>
    %66 = vector.shape_cast %65 : vector<128xf32> to vector<1x128xf32>
    %67 = vector.broadcast %66 : vector<1x128xf32> to vector<128x128xf32>
    %68 = arith.cmpf oeq, %1, %67 : vector<128x128xf32>
    %69 = arith.extui %68 : vector<128x128xi1> to vector<128x128xi32>
    %70 = arith.sitofp %69 : vector<128x128xi32> to vector<128x128xf32>
    %71 = arith.addf %56, %70 : vector<128x128xf32>
    %cst_19 = arith.constant 1.000000e+30 : f32
    %72 = vector.broadcast %cst_19 : f32 to vector<128x128xf32>
    %73 = arith.select %68, %72, %58 : vector<128x128xi1>, vector<128x128xf32>
    %cst_20 = arith.constant dense<0x7F800000> : vector<128xf32>
    %74 = vector.multi_reduction <minimumf>, %73, %cst_20 [0] : vector<128x128xf32> to vector<128xf32>
    %75 = vector.shape_cast %74 : vector<128xf32> to vector<1x128xf32>
    %76 = vector.broadcast %75 : vector<1x128xf32> to vector<128x128xf32>
    %77 = arith.cmpf oeq, %73, %76 : vector<128x128xf32>
    %cst_21 = arith.constant 1.280000e+02 : f32
    %78 = vector.broadcast %cst_21 : f32 to vector<128x128xf32>
    %79 = arith.select %77, %1, %78 : vector<128x128xi1>, vector<128x128xf32>
    %cst_22 = arith.constant dense<0x7F800000> : vector<128xf32>
    %80 = vector.multi_reduction <minimumf>, %79, %cst_22 [0] : vector<128x128xf32> to vector<128xf32>
    %81 = vector.shape_cast %80 : vector<128xf32> to vector<1x128xf32>
    %82 = vector.broadcast %81 : vector<1x128xf32> to vector<128x128xf32>
    %83 = arith.cmpf oeq, %1, %82 : vector<128x128xf32>
    %84 = arith.extui %83 : vector<128x128xi1> to vector<128x128xi32>
    %85 = arith.sitofp %84 : vector<128x128xi32> to vector<128x128xf32>
    %86 = arith.addf %71, %85 : vector<128x128xf32>
    %cst_23 = arith.constant 1.000000e+30 : f32
    %87 = vector.broadcast %cst_23 : f32 to vector<128x128xf32>
    %88 = arith.select %83, %87, %73 : vector<128x128xi1>, vector<128x128xf32>
    %cst_24 = arith.constant dense<0x7F800000> : vector<128xf32>
    %89 = vector.multi_reduction <minimumf>, %88, %cst_24 [0] : vector<128x128xf32> to vector<128xf32>
    %90 = vector.shape_cast %89 : vector<128xf32> to vector<1x128xf32>
    %91 = vector.broadcast %90 : vector<1x128xf32> to vector<128x128xf32>
    %92 = arith.cmpf oeq, %88, %91 : vector<128x128xf32>
    %cst_25 = arith.constant 1.280000e+02 : f32
    %93 = vector.broadcast %cst_25 : f32 to vector<128x128xf32>
    %94 = arith.select %92, %1, %93 : vector<128x128xi1>, vector<128x128xf32>
    %cst_26 = arith.constant dense<0x7F800000> : vector<128xf32>
    %95 = vector.multi_reduction <minimumf>, %94, %cst_26 [0] : vector<128x128xf32> to vector<128xf32>
    %96 = vector.shape_cast %95 : vector<128xf32> to vector<1x128xf32>
    %97 = vector.broadcast %96 : vector<1x128xf32> to vector<128x128xf32>
    %98 = arith.cmpf oeq, %1, %97 : vector<128x128xf32>
    %99 = arith.extui %98 : vector<128x128xi1> to vector<128x128xi32>
    %100 = arith.sitofp %99 : vector<128x128xi32> to vector<128x128xf32>
    %101 = arith.addf %86, %100 : vector<128x128xf32>
    %cst_27 = arith.constant 1.000000e+30 : f32
    %102 = vector.broadcast %cst_27 : f32 to vector<128x128xf32>
    %103 = arith.select %98, %102, %88 : vector<128x128xi1>, vector<128x128xf32>
    %cst_28 = arith.constant dense<0x7F800000> : vector<128xf32>
    %104 = vector.multi_reduction <minimumf>, %103, %cst_28 [0] : vector<128x128xf32> to vector<128xf32>
    %105 = vector.shape_cast %104 : vector<128xf32> to vector<1x128xf32>
    %106 = vector.broadcast %105 : vector<1x128xf32> to vector<128x128xf32>
    %107 = arith.cmpf oeq, %103, %106 : vector<128x128xf32>
    %cst_29 = arith.constant 1.280000e+02 : f32
    %108 = vector.broadcast %cst_29 : f32 to vector<128x128xf32>
    %109 = arith.select %107, %1, %108 : vector<128x128xi1>, vector<128x128xf32>
    %cst_30 = arith.constant dense<0x7F800000> : vector<128xf32>
    %110 = vector.multi_reduction <minimumf>, %109, %cst_30 [0] : vector<128x128xf32> to vector<128xf32>
    %111 = vector.shape_cast %110 : vector<128xf32> to vector<1x128xf32>
    %112 = vector.broadcast %111 : vector<1x128xf32> to vector<128x128xf32>
    %113 = arith.cmpf oeq, %1, %112 : vector<128x128xf32>
    %114 = arith.extui %113 : vector<128x128xi1> to vector<128x128xi32>
    %115 = arith.sitofp %114 : vector<128x128xi32> to vector<128x128xf32>
    %116 = arith.addf %101, %115 : vector<128x128xf32>
    %cst_31 = arith.constant 1.000000e+30 : f32
    %117 = vector.broadcast %cst_31 : f32 to vector<128x128xf32>
    %118 = arith.select %113, %117, %103 : vector<128x128xi1>, vector<128x128xf32>
    %cst_32 = arith.constant dense<0x7F800000> : vector<128xf32>
    %119 = vector.multi_reduction <minimumf>, %118, %cst_32 [0] : vector<128x128xf32> to vector<128xf32>
    %120 = vector.shape_cast %119 : vector<128xf32> to vector<1x128xf32>
    %121 = vector.broadcast %120 : vector<1x128xf32> to vector<128x128xf32>
    %122 = arith.cmpf oeq, %118, %121 : vector<128x128xf32>
    %cst_33 = arith.constant 1.280000e+02 : f32
    %123 = vector.broadcast %cst_33 : f32 to vector<128x128xf32>
    %124 = arith.select %122, %1, %123 : vector<128x128xi1>, vector<128x128xf32>
    %cst_34 = arith.constant dense<0x7F800000> : vector<128xf32>
    %125 = vector.multi_reduction <minimumf>, %124, %cst_34 [0] : vector<128x128xf32> to vector<128xf32>
    %126 = vector.shape_cast %125 : vector<128xf32> to vector<1x128xf32>
    %127 = vector.broadcast %126 : vector<1x128xf32> to vector<128x128xf32>
    %128 = arith.cmpf oeq, %1, %127 : vector<128x128xf32>
    %129 = arith.extui %128 : vector<128x128xi1> to vector<128x128xi32>
    %130 = arith.sitofp %129 : vector<128x128xi32> to vector<128x128xf32>
    %131 = arith.addf %116, %130 : vector<128x128xf32>
    %cst_35 = arith.constant 1.000000e+30 : f32
    %132 = vector.broadcast %cst_35 : f32 to vector<128x128xf32>
    %133 = arith.select %128, %132, %118 : vector<128x128xi1>, vector<128x128xf32>
    %cst_36 = arith.constant dense<0x7F800000> : vector<128xf32>
    %134 = vector.multi_reduction <minimumf>, %133, %cst_36 [0] : vector<128x128xf32> to vector<128xf32>
    %135 = vector.shape_cast %134 : vector<128xf32> to vector<1x128xf32>
    %136 = vector.broadcast %135 : vector<1x128xf32> to vector<128x128xf32>
    %137 = arith.cmpf oeq, %133, %136 : vector<128x128xf32>
    %cst_37 = arith.constant 1.280000e+02 : f32
    %138 = vector.broadcast %cst_37 : f32 to vector<128x128xf32>
    %139 = arith.select %137, %1, %138 : vector<128x128xi1>, vector<128x128xf32>
    %cst_38 = arith.constant dense<0x7F800000> : vector<128xf32>
    %140 = vector.multi_reduction <minimumf>, %139, %cst_38 [0] : vector<128x128xf32> to vector<128xf32>
    %141 = vector.shape_cast %140 : vector<128xf32> to vector<1x128xf32>
    %142 = vector.broadcast %141 : vector<1x128xf32> to vector<128x128xf32>
    %143 = arith.cmpf oeq, %1, %142 : vector<128x128xf32>
    %144 = arith.extui %143 : vector<128x128xi1> to vector<128x128xi32>
    %145 = arith.sitofp %144 : vector<128x128xi32> to vector<128x128xf32>
    %146 = arith.addf %131, %145 : vector<128x128xf32>
    %cst_39 = arith.constant 1.000000e+30 : f32
    %147 = vector.broadcast %cst_39 : f32 to vector<128x128xf32>
    %148 = arith.select %143, %147, %133 : vector<128x128xi1>, vector<128x128xf32>
    %cst_40 = arith.constant dense<0x7F800000> : vector<128xf32>
    %149 = vector.multi_reduction <minimumf>, %148, %cst_40 [0] : vector<128x128xf32> to vector<128xf32>
    %150 = vector.shape_cast %149 : vector<128xf32> to vector<1x128xf32>
    %151 = vector.broadcast %150 : vector<1x128xf32> to vector<128x128xf32>
    %152 = arith.cmpf oeq, %148, %151 : vector<128x128xf32>
    %cst_41 = arith.constant 1.280000e+02 : f32
    %153 = vector.broadcast %cst_41 : f32 to vector<128x128xf32>
    %154 = arith.select %152, %1, %153 : vector<128x128xi1>, vector<128x128xf32>
    %cst_42 = arith.constant dense<0x7F800000> : vector<128xf32>
    %155 = vector.multi_reduction <minimumf>, %154, %cst_42 [0] : vector<128x128xf32> to vector<128xf32>
    %156 = vector.shape_cast %155 : vector<128xf32> to vector<1x128xf32>
    %157 = vector.broadcast %156 : vector<1x128xf32> to vector<128x128xf32>
    %158 = arith.cmpf oeq, %1, %157 : vector<128x128xf32>
    %159 = arith.extui %158 : vector<128x128xi1> to vector<128x128xi32>
    %160 = arith.sitofp %159 : vector<128x128xi32> to vector<128x128xf32>
    %161 = arith.addf %146, %160 : vector<128x128xf32>
    %cst_43 = arith.constant 1.000000e+30 : f32
    %162 = vector.broadcast %cst_43 : f32 to vector<128x128xf32>
    %163 = arith.select %158, %162, %148 : vector<128x128xi1>, vector<128x128xf32>
    %cst_44 = arith.constant dense<0x7F800000> : vector<128xf32>
    %164 = vector.multi_reduction <minimumf>, %163, %cst_44 [0] : vector<128x128xf32> to vector<128xf32>
    %165 = vector.shape_cast %164 : vector<128xf32> to vector<1x128xf32>
    %166 = vector.broadcast %165 : vector<1x128xf32> to vector<128x128xf32>
    %167 = arith.cmpf oeq, %163, %166 : vector<128x128xf32>
    %cst_45 = arith.constant 1.280000e+02 : f32
    %168 = vector.broadcast %cst_45 : f32 to vector<128x128xf32>
    %169 = arith.select %167, %1, %168 : vector<128x128xi1>, vector<128x128xf32>
    %cst_46 = arith.constant dense<0x7F800000> : vector<128xf32>
    %170 = vector.multi_reduction <minimumf>, %169, %cst_46 [0] : vector<128x128xf32> to vector<128xf32>
    %171 = vector.shape_cast %170 : vector<128xf32> to vector<1x128xf32>
    %172 = vector.broadcast %171 : vector<1x128xf32> to vector<128x128xf32>
    %173 = arith.cmpf oeq, %1, %172 : vector<128x128xf32>
    %174 = arith.extui %173 : vector<128x128xi1> to vector<128x128xi32>
    %175 = arith.sitofp %174 : vector<128x128xi32> to vector<128x128xf32>
    %176 = arith.addf %161, %175 : vector<128x128xf32>
    %cst_47 = arith.constant 1.000000e+30 : f32
    %177 = vector.broadcast %cst_47 : f32 to vector<128x128xf32>
    %178 = arith.select %173, %177, %163 : vector<128x128xi1>, vector<128x128xf32>
    %cst_48 = arith.constant dense<0x7F800000> : vector<128xf32>
    %179 = vector.multi_reduction <minimumf>, %178, %cst_48 [0] : vector<128x128xf32> to vector<128xf32>
    %180 = vector.shape_cast %179 : vector<128xf32> to vector<1x128xf32>
    %181 = vector.broadcast %180 : vector<1x128xf32> to vector<128x128xf32>
    %182 = arith.cmpf oeq, %178, %181 : vector<128x128xf32>
    %cst_49 = arith.constant 1.280000e+02 : f32
    %183 = vector.broadcast %cst_49 : f32 to vector<128x128xf32>
    %184 = arith.select %182, %1, %183 : vector<128x128xi1>, vector<128x128xf32>
    %cst_50 = arith.constant dense<0x7F800000> : vector<128xf32>
    %185 = vector.multi_reduction <minimumf>, %184, %cst_50 [0] : vector<128x128xf32> to vector<128xf32>
    %186 = vector.shape_cast %185 : vector<128xf32> to vector<1x128xf32>
    %187 = vector.broadcast %186 : vector<1x128xf32> to vector<128x128xf32>
    %188 = arith.cmpf oeq, %1, %187 : vector<128x128xf32>
    %189 = arith.extui %188 : vector<128x128xi1> to vector<128x128xi32>
    %190 = arith.sitofp %189 : vector<128x128xi32> to vector<128x128xf32>
    %191 = arith.addf %176, %190 : vector<128x128xf32>
    %cst_51 = arith.constant 1.000000e+30 : f32
    %192 = vector.broadcast %cst_51 : f32 to vector<128x128xf32>
    %193 = arith.select %188, %192, %178 : vector<128x128xi1>, vector<128x128xf32>
    %cst_52 = arith.constant dense<0x7F800000> : vector<128xf32>
    %194 = vector.multi_reduction <minimumf>, %193, %cst_52 [0] : vector<128x128xf32> to vector<128xf32>
    %195 = vector.shape_cast %194 : vector<128xf32> to vector<1x128xf32>
    %196 = vector.broadcast %195 : vector<1x128xf32> to vector<128x128xf32>
    %197 = arith.cmpf oeq, %193, %196 : vector<128x128xf32>
    %cst_53 = arith.constant 1.280000e+02 : f32
    %198 = vector.broadcast %cst_53 : f32 to vector<128x128xf32>
    %199 = arith.select %197, %1, %198 : vector<128x128xi1>, vector<128x128xf32>
    %cst_54 = arith.constant dense<0x7F800000> : vector<128xf32>
    %200 = vector.multi_reduction <minimumf>, %199, %cst_54 [0] : vector<128x128xf32> to vector<128xf32>
    %201 = vector.shape_cast %200 : vector<128xf32> to vector<1x128xf32>
    %202 = vector.broadcast %201 : vector<1x128xf32> to vector<128x128xf32>
    %203 = arith.cmpf oeq, %1, %202 : vector<128x128xf32>
    %204 = arith.extui %203 : vector<128x128xi1> to vector<128x128xi32>
    %205 = arith.sitofp %204 : vector<128x128xi32> to vector<128x128xf32>
    %206 = arith.addf %191, %205 : vector<128x128xf32>
    %cst_55 = arith.constant 1.000000e+30 : f32
    %207 = vector.broadcast %cst_55 : f32 to vector<128x128xf32>
    %208 = arith.select %203, %207, %193 : vector<128x128xi1>, vector<128x128xf32>
    %cst_56 = arith.constant dense<0x7F800000> : vector<128xf32>
    %209 = vector.multi_reduction <minimumf>, %208, %cst_56 [0] : vector<128x128xf32> to vector<128xf32>
    %210 = vector.shape_cast %209 : vector<128xf32> to vector<1x128xf32>
    %211 = vector.broadcast %210 : vector<1x128xf32> to vector<128x128xf32>
    %212 = arith.cmpf oeq, %208, %211 : vector<128x128xf32>
    %cst_57 = arith.constant 1.280000e+02 : f32
    %213 = vector.broadcast %cst_57 : f32 to vector<128x128xf32>
    %214 = arith.select %212, %1, %213 : vector<128x128xi1>, vector<128x128xf32>
    %cst_58 = arith.constant dense<0x7F800000> : vector<128xf32>
    %215 = vector.multi_reduction <minimumf>, %214, %cst_58 [0] : vector<128x128xf32> to vector<128xf32>
    %216 = vector.shape_cast %215 : vector<128xf32> to vector<1x128xf32>
    %217 = vector.broadcast %216 : vector<1x128xf32> to vector<128x128xf32>
    %218 = arith.cmpf oeq, %1, %217 : vector<128x128xf32>
    %219 = arith.extui %218 : vector<128x128xi1> to vector<128x128xi32>
    %220 = arith.sitofp %219 : vector<128x128xi32> to vector<128x128xf32>
    %221 = arith.addf %206, %220 : vector<128x128xf32>
    %cst_59 = arith.constant 1.000000e+30 : f32
    %222 = vector.broadcast %cst_59 : f32 to vector<128x128xf32>
    %223 = arith.select %218, %222, %208 : vector<128x128xi1>, vector<128x128xf32>
    %cst_60 = arith.constant dense<0x7F800000> : vector<128xf32>
    %224 = vector.multi_reduction <minimumf>, %223, %cst_60 [0] : vector<128x128xf32> to vector<128xf32>
    %225 = vector.shape_cast %224 : vector<128xf32> to vector<1x128xf32>
    %226 = vector.broadcast %225 : vector<1x128xf32> to vector<128x128xf32>
    %227 = arith.cmpf oeq, %223, %226 : vector<128x128xf32>
    %cst_61 = arith.constant 1.280000e+02 : f32
    %228 = vector.broadcast %cst_61 : f32 to vector<128x128xf32>
    %229 = arith.select %227, %1, %228 : vector<128x128xi1>, vector<128x128xf32>
    %cst_62 = arith.constant dense<0x7F800000> : vector<128xf32>
    %230 = vector.multi_reduction <minimumf>, %229, %cst_62 [0] : vector<128x128xf32> to vector<128xf32>
    %231 = vector.shape_cast %230 : vector<128xf32> to vector<1x128xf32>
    %232 = vector.broadcast %231 : vector<1x128xf32> to vector<128x128xf32>
    %233 = arith.cmpf oeq, %1, %232 : vector<128x128xf32>
    %234 = arith.extui %233 : vector<128x128xi1> to vector<128x128xi32>
    %235 = arith.sitofp %234 : vector<128x128xi32> to vector<128x128xf32>
    %236 = arith.addf %221, %235 : vector<128x128xf32>
    %cst_63 = arith.constant 1.000000e+30 : f32
    %237 = vector.broadcast %cst_63 : f32 to vector<128x128xf32>
    %238 = arith.select %233, %237, %223 : vector<128x128xi1>, vector<128x128xf32>
    %cst_64 = arith.constant dense<0x7F800000> : vector<128xf32>
    %239 = vector.multi_reduction <minimumf>, %238, %cst_64 [0] : vector<128x128xf32> to vector<128xf32>
    %240 = vector.shape_cast %239 : vector<128xf32> to vector<1x128xf32>
    %241 = vector.broadcast %240 : vector<1x128xf32> to vector<128x128xf32>
    %242 = arith.cmpf oeq, %238, %241 : vector<128x128xf32>
    %cst_65 = arith.constant 1.280000e+02 : f32
    %243 = vector.broadcast %cst_65 : f32 to vector<128x128xf32>
    %244 = arith.select %242, %1, %243 : vector<128x128xi1>, vector<128x128xf32>
    %cst_66 = arith.constant dense<0x7F800000> : vector<128xf32>
    %245 = vector.multi_reduction <minimumf>, %244, %cst_66 [0] : vector<128x128xf32> to vector<128xf32>
    %246 = vector.shape_cast %245 : vector<128xf32> to vector<1x128xf32>
    %247 = vector.broadcast %246 : vector<1x128xf32> to vector<128x128xf32>
    %248 = arith.cmpf oeq, %1, %247 : vector<128x128xf32>
    %249 = arith.extui %248 : vector<128x128xi1> to vector<128x128xi32>
    %250 = arith.sitofp %249 : vector<128x128xi32> to vector<128x128xf32>
    %251 = arith.addf %236, %250 : vector<128x128xf32>
    %cst_67 = arith.constant 1.000000e+30 : f32
    %252 = vector.broadcast %cst_67 : f32 to vector<128x128xf32>
    %253 = arith.select %248, %252, %238 : vector<128x128xi1>, vector<128x128xf32>
    %cst_68 = arith.constant dense<0x7F800000> : vector<128xf32>
    %254 = vector.multi_reduction <minimumf>, %253, %cst_68 [0] : vector<128x128xf32> to vector<128xf32>
    %255 = vector.shape_cast %254 : vector<128xf32> to vector<1x128xf32>
    %256 = vector.broadcast %255 : vector<1x128xf32> to vector<128x128xf32>
    %257 = arith.cmpf oeq, %253, %256 : vector<128x128xf32>
    %cst_69 = arith.constant 1.280000e+02 : f32
    %258 = vector.broadcast %cst_69 : f32 to vector<128x128xf32>
    %259 = arith.select %257, %1, %258 : vector<128x128xi1>, vector<128x128xf32>
    %cst_70 = arith.constant dense<0x7F800000> : vector<128xf32>
    %260 = vector.multi_reduction <minimumf>, %259, %cst_70 [0] : vector<128x128xf32> to vector<128xf32>
    %261 = vector.shape_cast %260 : vector<128xf32> to vector<1x128xf32>
    %262 = vector.broadcast %261 : vector<1x128xf32> to vector<128x128xf32>
    %263 = arith.cmpf oeq, %1, %262 : vector<128x128xf32>
    %264 = arith.extui %263 : vector<128x128xi1> to vector<128x128xi32>
    %265 = arith.sitofp %264 : vector<128x128xi32> to vector<128x128xf32>
    %266 = arith.addf %251, %265 : vector<128x128xf32>
    %cst_71 = arith.constant 1.000000e+30 : f32
    %267 = vector.broadcast %cst_71 : f32 to vector<128x128xf32>
    %268 = arith.select %263, %267, %253 : vector<128x128xi1>, vector<128x128xf32>
    %cst_72 = arith.constant dense<0x7F800000> : vector<128xf32>
    %269 = vector.multi_reduction <minimumf>, %268, %cst_72 [0] : vector<128x128xf32> to vector<128xf32>
    %270 = vector.shape_cast %269 : vector<128xf32> to vector<1x128xf32>
    %271 = vector.broadcast %270 : vector<1x128xf32> to vector<128x128xf32>
    %272 = arith.cmpf oeq, %268, %271 : vector<128x128xf32>
    %cst_73 = arith.constant 1.280000e+02 : f32
    %273 = vector.broadcast %cst_73 : f32 to vector<128x128xf32>
    %274 = arith.select %272, %1, %273 : vector<128x128xi1>, vector<128x128xf32>
    %cst_74 = arith.constant dense<0x7F800000> : vector<128xf32>
    %275 = vector.multi_reduction <minimumf>, %274, %cst_74 [0] : vector<128x128xf32> to vector<128xf32>
    %276 = vector.shape_cast %275 : vector<128xf32> to vector<1x128xf32>
    %277 = vector.broadcast %276 : vector<1x128xf32> to vector<128x128xf32>
    %278 = arith.cmpf oeq, %1, %277 : vector<128x128xf32>
    %279 = arith.extui %278 : vector<128x128xi1> to vector<128x128xi32>
    %280 = arith.sitofp %279 : vector<128x128xi32> to vector<128x128xf32>
    %281 = arith.addf %266, %280 : vector<128x128xf32>
    %cst_75 = arith.constant 1.000000e+30 : f32
    %282 = vector.broadcast %cst_75 : f32 to vector<128x128xf32>
    %283 = arith.select %278, %282, %268 : vector<128x128xi1>, vector<128x128xf32>
    %cst_76 = arith.constant dense<0x7F800000> : vector<128xf32>
    %284 = vector.multi_reduction <minimumf>, %283, %cst_76 [0] : vector<128x128xf32> to vector<128xf32>
    %285 = vector.shape_cast %284 : vector<128xf32> to vector<1x128xf32>
    %286 = vector.broadcast %285 : vector<1x128xf32> to vector<128x128xf32>
    %287 = arith.cmpf oeq, %283, %286 : vector<128x128xf32>
    %cst_77 = arith.constant 1.280000e+02 : f32
    %288 = vector.broadcast %cst_77 : f32 to vector<128x128xf32>
    %289 = arith.select %287, %1, %288 : vector<128x128xi1>, vector<128x128xf32>
    %cst_78 = arith.constant dense<0x7F800000> : vector<128xf32>
    %290 = vector.multi_reduction <minimumf>, %289, %cst_78 [0] : vector<128x128xf32> to vector<128xf32>
    %291 = vector.shape_cast %290 : vector<128xf32> to vector<1x128xf32>
    %292 = vector.broadcast %291 : vector<1x128xf32> to vector<128x128xf32>
    %293 = arith.cmpf oeq, %1, %292 : vector<128x128xf32>
    %294 = arith.extui %293 : vector<128x128xi1> to vector<128x128xi32>
    %295 = arith.sitofp %294 : vector<128x128xi32> to vector<128x128xf32>
    %296 = arith.addf %281, %295 : vector<128x128xf32>
    %cst_79 = arith.constant 1.000000e+30 : f32
    %297 = vector.broadcast %cst_79 : f32 to vector<128x128xf32>
    %298 = arith.select %293, %297, %283 : vector<128x128xi1>, vector<128x128xf32>
    %cst_80 = arith.constant dense<0x7F800000> : vector<128xf32>
    %299 = vector.multi_reduction <minimumf>, %298, %cst_80 [0] : vector<128x128xf32> to vector<128xf32>
    %300 = vector.shape_cast %299 : vector<128xf32> to vector<1x128xf32>
    %301 = vector.broadcast %300 : vector<1x128xf32> to vector<128x128xf32>
    %302 = arith.cmpf oeq, %298, %301 : vector<128x128xf32>
    %cst_81 = arith.constant 1.280000e+02 : f32
    %303 = vector.broadcast %cst_81 : f32 to vector<128x128xf32>
    %304 = arith.select %302, %1, %303 : vector<128x128xi1>, vector<128x128xf32>
    %cst_82 = arith.constant dense<0x7F800000> : vector<128xf32>
    %305 = vector.multi_reduction <minimumf>, %304, %cst_82 [0] : vector<128x128xf32> to vector<128xf32>
    %306 = vector.shape_cast %305 : vector<128xf32> to vector<1x128xf32>
    %307 = vector.broadcast %306 : vector<1x128xf32> to vector<128x128xf32>
    %308 = arith.cmpf oeq, %1, %307 : vector<128x128xf32>
    %309 = arith.extui %308 : vector<128x128xi1> to vector<128x128xi32>
    %310 = arith.sitofp %309 : vector<128x128xi32> to vector<128x128xf32>
    %311 = arith.addf %296, %310 : vector<128x128xf32>
    %cst_83 = arith.constant 1.000000e+30 : f32
    %312 = vector.broadcast %cst_83 : f32 to vector<128x128xf32>
    %313 = arith.select %308, %312, %298 : vector<128x128xi1>, vector<128x128xf32>
    %cst_84 = arith.constant dense<0x7F800000> : vector<128xf32>
    %314 = vector.multi_reduction <minimumf>, %313, %cst_84 [0] : vector<128x128xf32> to vector<128xf32>
    %315 = vector.shape_cast %314 : vector<128xf32> to vector<1x128xf32>
    %316 = vector.broadcast %315 : vector<1x128xf32> to vector<128x128xf32>
    %317 = arith.cmpf oeq, %313, %316 : vector<128x128xf32>
    %cst_85 = arith.constant 1.280000e+02 : f32
    %318 = vector.broadcast %cst_85 : f32 to vector<128x128xf32>
    %319 = arith.select %317, %1, %318 : vector<128x128xi1>, vector<128x128xf32>
    %cst_86 = arith.constant dense<0x7F800000> : vector<128xf32>
    %320 = vector.multi_reduction <minimumf>, %319, %cst_86 [0] : vector<128x128xf32> to vector<128xf32>
    %321 = vector.shape_cast %320 : vector<128xf32> to vector<1x128xf32>
    %322 = vector.broadcast %321 : vector<1x128xf32> to vector<128x128xf32>
    %323 = arith.cmpf oeq, %1, %322 : vector<128x128xf32>
    %324 = arith.extui %323 : vector<128x128xi1> to vector<128x128xi32>
    %325 = arith.sitofp %324 : vector<128x128xi32> to vector<128x128xf32>
    %326 = arith.addf %311, %325 : vector<128x128xf32>
    %327 = vector.extract_strided_slice %5 {offsets = [0, 0], sizes = [1, 128], strides = [1, 1]} : vector<3x128xf32> to vector<1x128xf32>
    %328 = vector.shape_cast %327 : vector<1x128xf32> to vector<128xf32>
    %329 = vector.extract_strided_slice %5 {offsets = [1, 0], sizes = [1, 128], strides = [1, 1]} : vector<3x128xf32> to vector<1x128xf32>
    %330 = vector.shape_cast %329 : vector<1x128xf32> to vector<128xf32>
    %331 = vector.extract_strided_slice %5 {offsets = [2, 0], sizes = [1, 128], strides = [1, 1]} : vector<3x128xf32> to vector<1x128xf32>
    %332 = vector.shape_cast %331 : vector<1x128xf32> to vector<128xf32>
    %cst_87 = arith.constant 0.000000e+00 : f32
    %333 = vector.broadcast %cst_87 : f32 to vector<128xf32>
    %334 = arith.mulf %328, %328 : vector<128xf32>
    %335 = arith.mulf %330, %330 : vector<128xf32>
    %336 = arith.mulf %332, %332 : vector<128xf32>
    %337 = arith.mulf %328, %330 : vector<128xf32>
    %338 = arith.mulf %328, %332 : vector<128xf32>
    %339 = arith.mulf %330, %332 : vector<128xf32>
    %340 = vector.shape_cast %328 : vector<128xf32> to vector<1x128xf32>
    %341 = vector.shape_cast %330 : vector<128xf32> to vector<1x128xf32>
    %342 = vector.shape_cast %332 : vector<128xf32> to vector<1x128xf32>
    %343 = vector.shape_cast %334 : vector<128xf32> to vector<1x128xf32>
    %344 = vector.shape_cast %335 : vector<128xf32> to vector<1x128xf32>
    %345 = vector.shape_cast %336 : vector<128xf32> to vector<1x128xf32>
    %346 = vector.shape_cast %337 : vector<128xf32> to vector<1x128xf32>
    %347 = vector.shape_cast %338 : vector<128xf32> to vector<1x128xf32>
    %348 = vector.shape_cast %339 : vector<128xf32> to vector<1x128xf32>
    %349 = vector.shape_cast %333 : vector<128xf32> to vector<1x128xf32>
    %350 = vector.shape_cast %333 : vector<128xf32> to vector<1x128xf32>
    %351 = vector.shape_cast %333 : vector<128xf32> to vector<1x128xf32>
    %352 = vector.shape_cast %333 : vector<128xf32> to vector<1x128xf32>
    %353 = vector.shape_cast %333 : vector<128xf32> to vector<1x128xf32>
    %354 = vector.shape_cast %333 : vector<128xf32> to vector<1x128xf32>
    %355 = vector.shape_cast %333 : vector<128xf32> to vector<1x128xf32>
    %356 = tpu.concatenate %340, %341, %342, %343, %344, %345, %346, %347, %348, %349, %350, %351, %352, %353, %354, %355 in 0 : vector<1x128xf32>, vector<1x128xf32>, vector<1x128xf32>, vector<1x128xf32>, vector<1x128xf32>, vector<1x128xf32>, vector<1x128xf32>, vector<1x128xf32>, vector<1x128xf32>, vector<1x128xf32>, vector<1x128xf32>, vector<1x128xf32>, vector<1x128xf32>, vector<1x128xf32>, vector<1x128xf32>, vector<1x128xf32> -> vector<16x128xf32>
    %cst_88 = arith.constant dense<0.000000e+00> : vector<16x128xf32>
    %357 = tpu.matmul %356, %326, %cst_88 {dimension_numbers = #tpu.dot_dimension_numbers<[1], [0], [0], [1], [0, 0, 1, 1], [], []>} : vector<16x128xf32>, vector<128x128xf32>, vector<16x128xf32> -> vector<16x128xf32>
    %c0_89 = arith.constant 0 : index
    %c1 = arith.constant 1 : index
    %c0_90 = arith.constant 0 : index
    %c0_91 = arith.constant 0 : index
    %358 = vector.load %arg1[%c0_89, %c1, %c0_90, %c0_91] : memref<1x2x128x3xf32, #tpu.memory_space<vmem>>, vector<1x1x128x3xf32>
    %359 = vector.shape_cast %358 : vector<1x1x128x3xf32> to vector<128x3xf32>
    %c0_92 = arith.constant 0 : index
    %c1_93 = arith.constant 1 : index
    %c0_94 = arith.constant 0 : index
    %c0_95 = arith.constant 0 : index
    %360 = vector.load %arg2[%c0_92, %c1_93, %c0_94, %c0_95] : memref<1x2x3x128xf32, #tpu.memory_space<vmem>>, vector<1x1x3x128xf32>
    %361 = vector.shape_cast %360 : vector<1x1x3x128xf32> to vector<3x128xf32>
    %cst_96 = arith.constant 0.000000e+00 : f32
    %362 = vector.broadcast %cst_96 : f32 to vector<128x128xf32>
    %363 = vector.extract_strided_slice %359 {offsets = [0, 0], sizes = [128, 1], strides = [1, 1]} : vector<128x3xf32> to vector<128x1xf32>
    %364 = vector.extract_strided_slice %361 {offsets = [0, 0], sizes = [1, 128], strides = [1, 1]} : vector<3x128xf32> to vector<1x128xf32>
    %365 = vector.broadcast %363 : vector<128x1xf32> to vector<128x128xf32>
    %366 = vector.broadcast %364 : vector<1x128xf32> to vector<128x128xf32>
    %367 = arith.subf %365, %366 : vector<128x128xf32>
    %368 = arith.mulf %367, %367 : vector<128x128xf32>
    %369 = arith.addf %362, %368 : vector<128x128xf32>
    %370 = vector.extract_strided_slice %359 {offsets = [0, 1], sizes = [128, 1], strides = [1, 1]} : vector<128x3xf32> to vector<128x1xf32>
    %371 = vector.extract_strided_slice %361 {offsets = [1, 0], sizes = [1, 128], strides = [1, 1]} : vector<3x128xf32> to vector<1x128xf32>
    %372 = vector.broadcast %370 : vector<128x1xf32> to vector<128x128xf32>
    %373 = vector.broadcast %371 : vector<1x128xf32> to vector<128x128xf32>
    %374 = arith.subf %372, %373 : vector<128x128xf32>
    %375 = arith.mulf %374, %374 : vector<128x128xf32>
    %376 = arith.addf %369, %375 : vector<128x128xf32>
    %377 = vector.extract_strided_slice %359 {offsets = [0, 2], sizes = [128, 1], strides = [1, 1]} : vector<128x3xf32> to vector<128x1xf32>
    %378 = vector.extract_strided_slice %361 {offsets = [2, 0], sizes = [1, 128], strides = [1, 1]} : vector<3x128xf32> to vector<1x128xf32>
    %379 = vector.broadcast %377 : vector<128x1xf32> to vector<128x128xf32>
    %380 = vector.broadcast %378 : vector<1x128xf32> to vector<128x128xf32>
    %381 = arith.subf %379, %380 : vector<128x128xf32>
    %382 = arith.mulf %381, %381 : vector<128x128xf32>
    %383 = arith.addf %376, %382 : vector<128x128xf32>
    %cst_97 = arith.constant 0.000000e+00 : f32
    %384 = vector.broadcast %cst_97 : f32 to vector<128x128xf32>
    %cst_98 = arith.constant dense<0x7F800000> : vector<128xf32>
    %385 = vector.multi_reduction <minimumf>, %383, %cst_98 [0] : vector<128x128xf32> to vector<128xf32>
    %386 = vector.shape_cast %385 : vector<128xf32> to vector<1x128xf32>
    %387 = vector.broadcast %386 : vector<1x128xf32> to vector<128x128xf32>
    %388 = arith.cmpf oeq, %383, %387 : vector<128x128xf32>
    %cst_99 = arith.constant 1.280000e+02 : f32
    %389 = vector.broadcast %cst_99 : f32 to vector<128x128xf32>
    %390 = arith.select %388, %1, %389 : vector<128x128xi1>, vector<128x128xf32>
    %cst_100 = arith.constant dense<0x7F800000> : vector<128xf32>
    %391 = vector.multi_reduction <minimumf>, %390, %cst_100 [0] : vector<128x128xf32> to vector<128xf32>
    %392 = vector.shape_cast %391 : vector<128xf32> to vector<1x128xf32>
    %393 = vector.broadcast %392 : vector<1x128xf32> to vector<128x128xf32>
    %394 = arith.cmpf oeq, %1, %393 : vector<128x128xf32>
    %395 = arith.extui %394 : vector<128x128xi1> to vector<128x128xi32>
    %396 = arith.sitofp %395 : vector<128x128xi32> to vector<128x128xf32>
    %397 = arith.addf %384, %396 : vector<128x128xf32>
    %cst_101 = arith.constant 1.000000e+30 : f32
    %398 = vector.broadcast %cst_101 : f32 to vector<128x128xf32>
    %399 = arith.select %394, %398, %383 : vector<128x128xi1>, vector<128x128xf32>
    %cst_102 = arith.constant dense<0x7F800000> : vector<128xf32>
    %400 = vector.multi_reduction <minimumf>, %399, %cst_102 [0] : vector<128x128xf32> to vector<128xf32>
    %401 = vector.shape_cast %400 : vector<128xf32> to vector<1x128xf32>
    %402 = vector.broadcast %401 : vector<1x128xf32> to vector<128x128xf32>
    %403 = arith.cmpf oeq, %399, %402 : vector<128x128xf32>
    %cst_103 = arith.constant 1.280000e+02 : f32
    %404 = vector.broadcast %cst_103 : f32 to vector<128x128xf32>
    %405 = arith.select %403, %1, %404 : vector<128x128xi1>, vector<128x128xf32>
    %cst_104 = arith.constant dense<0x7F800000> : vector<128xf32>
    %406 = vector.multi_reduction <minimumf>, %405, %cst_104 [0] : vector<128x128xf32> to vector<128xf32>
    %407 = vector.shape_cast %406 : vector<128xf32> to vector<1x128xf32>
    %408 = vector.broadcast %407 : vector<1x128xf32> to vector<128x128xf32>
    %409 = arith.cmpf oeq, %1, %408 : vector<128x128xf32>
    %410 = arith.extui %409 : vector<128x128xi1> to vector<128x128xi32>
    %411 = arith.sitofp %410 : vector<128x128xi32> to vector<128x128xf32>
    %412 = arith.addf %397, %411 : vector<128x128xf32>
    %cst_105 = arith.constant 1.000000e+30 : f32
    %413 = vector.broadcast %cst_105 : f32 to vector<128x128xf32>
    %414 = arith.select %409, %413, %399 : vector<128x128xi1>, vector<128x128xf32>
    %cst_106 = arith.constant dense<0x7F800000> : vector<128xf32>
    %415 = vector.multi_reduction <minimumf>, %414, %cst_106 [0] : vector<128x128xf32> to vector<128xf32>
    %416 = vector.shape_cast %415 : vector<128xf32> to vector<1x128xf32>
    %417 = vector.broadcast %416 : vector<1x128xf32> to vector<128x128xf32>
    %418 = arith.cmpf oeq, %414, %417 : vector<128x128xf32>
    %cst_107 = arith.constant 1.280000e+02 : f32
    %419 = vector.broadcast %cst_107 : f32 to vector<128x128xf32>
    %420 = arith.select %418, %1, %419 : vector<128x128xi1>, vector<128x128xf32>
    %cst_108 = arith.constant dense<0x7F800000> : vector<128xf32>
    %421 = vector.multi_reduction <minimumf>, %420, %cst_108 [0] : vector<128x128xf32> to vector<128xf32>
    %422 = vector.shape_cast %421 : vector<128xf32> to vector<1x128xf32>
    %423 = vector.broadcast %422 : vector<1x128xf32> to vector<128x128xf32>
    %424 = arith.cmpf oeq, %1, %423 : vector<128x128xf32>
    %425 = arith.extui %424 : vector<128x128xi1> to vector<128x128xi32>
    %426 = arith.sitofp %425 : vector<128x128xi32> to vector<128x128xf32>
    %427 = arith.addf %412, %426 : vector<128x128xf32>
    %cst_109 = arith.constant 1.000000e+30 : f32
    %428 = vector.broadcast %cst_109 : f32 to vector<128x128xf32>
    %429 = arith.select %424, %428, %414 : vector<128x128xi1>, vector<128x128xf32>
    %cst_110 = arith.constant dense<0x7F800000> : vector<128xf32>
    %430 = vector.multi_reduction <minimumf>, %429, %cst_110 [0] : vector<128x128xf32> to vector<128xf32>
    %431 = vector.shape_cast %430 : vector<128xf32> to vector<1x128xf32>
    %432 = vector.broadcast %431 : vector<1x128xf32> to vector<128x128xf32>
    %433 = arith.cmpf oeq, %429, %432 : vector<128x128xf32>
    %cst_111 = arith.constant 1.280000e+02 : f32
    %434 = vector.broadcast %cst_111 : f32 to vector<128x128xf32>
    %435 = arith.select %433, %1, %434 : vector<128x128xi1>, vector<128x128xf32>
    %cst_112 = arith.constant dense<0x7F800000> : vector<128xf32>
    %436 = vector.multi_reduction <minimumf>, %435, %cst_112 [0] : vector<128x128xf32> to vector<128xf32>
    %437 = vector.shape_cast %436 : vector<128xf32> to vector<1x128xf32>
    %438 = vector.broadcast %437 : vector<1x128xf32> to vector<128x128xf32>
    %439 = arith.cmpf oeq, %1, %438 : vector<128x128xf32>
    %440 = arith.extui %439 : vector<128x128xi1> to vector<128x128xi32>
    %441 = arith.sitofp %440 : vector<128x128xi32> to vector<128x128xf32>
    %442 = arith.addf %427, %441 : vector<128x128xf32>
    %cst_113 = arith.constant 1.000000e+30 : f32
    %443 = vector.broadcast %cst_113 : f32 to vector<128x128xf32>
    %444 = arith.select %439, %443, %429 : vector<128x128xi1>, vector<128x128xf32>
    %cst_114 = arith.constant dense<0x7F800000> : vector<128xf32>
    %445 = vector.multi_reduction <minimumf>, %444, %cst_114 [0] : vector<128x128xf32> to vector<128xf32>
    %446 = vector.shape_cast %445 : vector<128xf32> to vector<1x128xf32>
    %447 = vector.broadcast %446 : vector<1x128xf32> to vector<128x128xf32>
    %448 = arith.cmpf oeq, %444, %447 : vector<128x128xf32>
    %cst_115 = arith.constant 1.280000e+02 : f32
    %449 = vector.broadcast %cst_115 : f32 to vector<128x128xf32>
    %450 = arith.select %448, %1, %449 : vector<128x128xi1>, vector<128x128xf32>
    %cst_116 = arith.constant dense<0x7F800000> : vector<128xf32>
    %451 = vector.multi_reduction <minimumf>, %450, %cst_116 [0] : vector<128x128xf32> to vector<128xf32>
    %452 = vector.shape_cast %451 : vector<128xf32> to vector<1x128xf32>
    %453 = vector.broadcast %452 : vector<1x128xf32> to vector<128x128xf32>
    %454 = arith.cmpf oeq, %1, %453 : vector<128x128xf32>
    %455 = arith.extui %454 : vector<128x128xi1> to vector<128x128xi32>
    %456 = arith.sitofp %455 : vector<128x128xi32> to vector<128x128xf32>
    %457 = arith.addf %442, %456 : vector<128x128xf32>
    %cst_117 = arith.constant 1.000000e+30 : f32
    %458 = vector.broadcast %cst_117 : f32 to vector<128x128xf32>
    %459 = arith.select %454, %458, %444 : vector<128x128xi1>, vector<128x128xf32>
    %cst_118 = arith.constant dense<0x7F800000> : vector<128xf32>
    %460 = vector.multi_reduction <minimumf>, %459, %cst_118 [0] : vector<128x128xf32> to vector<128xf32>
    %461 = vector.shape_cast %460 : vector<128xf32> to vector<1x128xf32>
    %462 = vector.broadcast %461 : vector<1x128xf32> to vector<128x128xf32>
    %463 = arith.cmpf oeq, %459, %462 : vector<128x128xf32>
    %cst_119 = arith.constant 1.280000e+02 : f32
    %464 = vector.broadcast %cst_119 : f32 to vector<128x128xf32>
    %465 = arith.select %463, %1, %464 : vector<128x128xi1>, vector<128x128xf32>
    %cst_120 = arith.constant dense<0x7F800000> : vector<128xf32>
    %466 = vector.multi_reduction <minimumf>, %465, %cst_120 [0] : vector<128x128xf32> to vector<128xf32>
    %467 = vector.shape_cast %466 : vector<128xf32> to vector<1x128xf32>
    %468 = vector.broadcast %467 : vector<1x128xf32> to vector<128x128xf32>
    %469 = arith.cmpf oeq, %1, %468 : vector<128x128xf32>
    %470 = arith.extui %469 : vector<128x128xi1> to vector<128x128xi32>
    %471 = arith.sitofp %470 : vector<128x128xi32> to vector<128x128xf32>
    %472 = arith.addf %457, %471 : vector<128x128xf32>
    %cst_121 = arith.constant 1.000000e+30 : f32
    %473 = vector.broadcast %cst_121 : f32 to vector<128x128xf32>
    %474 = arith.select %469, %473, %459 : vector<128x128xi1>, vector<128x128xf32>
    %cst_122 = arith.constant dense<0x7F800000> : vector<128xf32>
    %475 = vector.multi_reduction <minimumf>, %474, %cst_122 [0] : vector<128x128xf32> to vector<128xf32>
    %476 = vector.shape_cast %475 : vector<128xf32> to vector<1x128xf32>
    %477 = vector.broadcast %476 : vector<1x128xf32> to vector<128x128xf32>
    %478 = arith.cmpf oeq, %474, %477 : vector<128x128xf32>
    %cst_123 = arith.constant 1.280000e+02 : f32
    %479 = vector.broadcast %cst_123 : f32 to vector<128x128xf32>
    %480 = arith.select %478, %1, %479 : vector<128x128xi1>, vector<128x128xf32>
    %cst_124 = arith.constant dense<0x7F800000> : vector<128xf32>
    %481 = vector.multi_reduction <minimumf>, %480, %cst_124 [0] : vector<128x128xf32> to vector<128xf32>
    %482 = vector.shape_cast %481 : vector<128xf32> to vector<1x128xf32>
    %483 = vector.broadcast %482 : vector<1x128xf32> to vector<128x128xf32>
    %484 = arith.cmpf oeq, %1, %483 : vector<128x128xf32>
    %485 = arith.extui %484 : vector<128x128xi1> to vector<128x128xi32>
    %486 = arith.sitofp %485 : vector<128x128xi32> to vector<128x128xf32>
    %487 = arith.addf %472, %486 : vector<128x128xf32>
    %cst_125 = arith.constant 1.000000e+30 : f32
    %488 = vector.broadcast %cst_125 : f32 to vector<128x128xf32>
    %489 = arith.select %484, %488, %474 : vector<128x128xi1>, vector<128x128xf32>
    %cst_126 = arith.constant dense<0x7F800000> : vector<128xf32>
    %490 = vector.multi_reduction <minimumf>, %489, %cst_126 [0] : vector<128x128xf32> to vector<128xf32>
    %491 = vector.shape_cast %490 : vector<128xf32> to vector<1x128xf32>
    %492 = vector.broadcast %491 : vector<1x128xf32> to vector<128x128xf32>
    %493 = arith.cmpf oeq, %489, %492 : vector<128x128xf32>
    %cst_127 = arith.constant 1.280000e+02 : f32
    %494 = vector.broadcast %cst_127 : f32 to vector<128x128xf32>
    %495 = arith.select %493, %1, %494 : vector<128x128xi1>, vector<128x128xf32>
    %cst_128 = arith.constant dense<0x7F800000> : vector<128xf32>
    %496 = vector.multi_reduction <minimumf>, %495, %cst_128 [0] : vector<128x128xf32> to vector<128xf32>
    %497 = vector.shape_cast %496 : vector<128xf32> to vector<1x128xf32>
    %498 = vector.broadcast %497 : vector<1x128xf32> to vector<128x128xf32>
    %499 = arith.cmpf oeq, %1, %498 : vector<128x128xf32>
    %500 = arith.extui %499 : vector<128x128xi1> to vector<128x128xi32>
    %501 = arith.sitofp %500 : vector<128x128xi32> to vector<128x128xf32>
    %502 = arith.addf %487, %501 : vector<128x128xf32>
    %cst_129 = arith.constant 1.000000e+30 : f32
    %503 = vector.broadcast %cst_129 : f32 to vector<128x128xf32>
    %504 = arith.select %499, %503, %489 : vector<128x128xi1>, vector<128x128xf32>
    %cst_130 = arith.constant dense<0x7F800000> : vector<128xf32>
    %505 = vector.multi_reduction <minimumf>, %504, %cst_130 [0] : vector<128x128xf32> to vector<128xf32>
    %506 = vector.shape_cast %505 : vector<128xf32> to vector<1x128xf32>
    %507 = vector.broadcast %506 : vector<1x128xf32> to vector<128x128xf32>
    %508 = arith.cmpf oeq, %504, %507 : vector<128x128xf32>
    %cst_131 = arith.constant 1.280000e+02 : f32
    %509 = vector.broadcast %cst_131 : f32 to vector<128x128xf32>
    %510 = arith.select %508, %1, %509 : vector<128x128xi1>, vector<128x128xf32>
    %cst_132 = arith.constant dense<0x7F800000> : vector<128xf32>
    %511 = vector.multi_reduction <minimumf>, %510, %cst_132 [0] : vector<128x128xf32> to vector<128xf32>
    %512 = vector.shape_cast %511 : vector<128xf32> to vector<1x128xf32>
    %513 = vector.broadcast %512 : vector<1x128xf32> to vector<128x128xf32>
    %514 = arith.cmpf oeq, %1, %513 : vector<128x128xf32>
    %515 = arith.extui %514 : vector<128x128xi1> to vector<128x128xi32>
    %516 = arith.sitofp %515 : vector<128x128xi32> to vector<128x128xf32>
    %517 = arith.addf %502, %516 : vector<128x128xf32>
    %cst_133 = arith.constant 1.000000e+30 : f32
    %518 = vector.broadcast %cst_133 : f32 to vector<128x128xf32>
    %519 = arith.select %514, %518, %504 : vector<128x128xi1>, vector<128x128xf32>
    %cst_134 = arith.constant dense<0x7F800000> : vector<128xf32>
    %520 = vector.multi_reduction <minimumf>, %519, %cst_134 [0] : vector<128x128xf32> to vector<128xf32>
    %521 = vector.shape_cast %520 : vector<128xf32> to vector<1x128xf32>
    %522 = vector.broadcast %521 : vector<1x128xf32> to vector<128x128xf32>
    %523 = arith.cmpf oeq, %519, %522 : vector<128x128xf32>
    %cst_135 = arith.constant 1.280000e+02 : f32
    %524 = vector.broadcast %cst_135 : f32 to vector<128x128xf32>
    %525 = arith.select %523, %1, %524 : vector<128x128xi1>, vector<128x128xf32>
    %cst_136 = arith.constant dense<0x7F800000> : vector<128xf32>
    %526 = vector.multi_reduction <minimumf>, %525, %cst_136 [0] : vector<128x128xf32> to vector<128xf32>
    %527 = vector.shape_cast %526 : vector<128xf32> to vector<1x128xf32>
    %528 = vector.broadcast %527 : vector<1x128xf32> to vector<128x128xf32>
    %529 = arith.cmpf oeq, %1, %528 : vector<128x128xf32>
    %530 = arith.extui %529 : vector<128x128xi1> to vector<128x128xi32>
    %531 = arith.sitofp %530 : vector<128x128xi32> to vector<128x128xf32>
    %532 = arith.addf %517, %531 : vector<128x128xf32>
    %cst_137 = arith.constant 1.000000e+30 : f32
    %533 = vector.broadcast %cst_137 : f32 to vector<128x128xf32>
    %534 = arith.select %529, %533, %519 : vector<128x128xi1>, vector<128x128xf32>
    %cst_138 = arith.constant dense<0x7F800000> : vector<128xf32>
    %535 = vector.multi_reduction <minimumf>, %534, %cst_138 [0] : vector<128x128xf32> to vector<128xf32>
    %536 = vector.shape_cast %535 : vector<128xf32> to vector<1x128xf32>
    %537 = vector.broadcast %536 : vector<1x128xf32> to vector<128x128xf32>
    %538 = arith.cmpf oeq, %534, %537 : vector<128x128xf32>
    %cst_139 = arith.constant 1.280000e+02 : f32
    %539 = vector.broadcast %cst_139 : f32 to vector<128x128xf32>
    %540 = arith.select %538, %1, %539 : vector<128x128xi1>, vector<128x128xf32>
    %cst_140 = arith.constant dense<0x7F800000> : vector<128xf32>
    %541 = vector.multi_reduction <minimumf>, %540, %cst_140 [0] : vector<128x128xf32> to vector<128xf32>
    %542 = vector.shape_cast %541 : vector<128xf32> to vector<1x128xf32>
    %543 = vector.broadcast %542 : vector<1x128xf32> to vector<128x128xf32>
    %544 = arith.cmpf oeq, %1, %543 : vector<128x128xf32>
    %545 = arith.extui %544 : vector<128x128xi1> to vector<128x128xi32>
    %546 = arith.sitofp %545 : vector<128x128xi32> to vector<128x128xf32>
    %547 = arith.addf %532, %546 : vector<128x128xf32>
    %cst_141 = arith.constant 1.000000e+30 : f32
    %548 = vector.broadcast %cst_141 : f32 to vector<128x128xf32>
    %549 = arith.select %544, %548, %534 : vector<128x128xi1>, vector<128x128xf32>
    %cst_142 = arith.constant dense<0x7F800000> : vector<128xf32>
    %550 = vector.multi_reduction <minimumf>, %549, %cst_142 [0] : vector<128x128xf32> to vector<128xf32>
    %551 = vector.shape_cast %550 : vector<128xf32> to vector<1x128xf32>
    %552 = vector.broadcast %551 : vector<1x128xf32> to vector<128x128xf32>
    %553 = arith.cmpf oeq, %549, %552 : vector<128x128xf32>
    %cst_143 = arith.constant 1.280000e+02 : f32
    %554 = vector.broadcast %cst_143 : f32 to vector<128x128xf32>
    %555 = arith.select %553, %1, %554 : vector<128x128xi1>, vector<128x128xf32>
    %cst_144 = arith.constant dense<0x7F800000> : vector<128xf32>
    %556 = vector.multi_reduction <minimumf>, %555, %cst_144 [0] : vector<128x128xf32> to vector<128xf32>
    %557 = vector.shape_cast %556 : vector<128xf32> to vector<1x128xf32>
    %558 = vector.broadcast %557 : vector<1x128xf32> to vector<128x128xf32>
    %559 = arith.cmpf oeq, %1, %558 : vector<128x128xf32>
    %560 = arith.extui %559 : vector<128x128xi1> to vector<128x128xi32>
    %561 = arith.sitofp %560 : vector<128x128xi32> to vector<128x128xf32>
    %562 = arith.addf %547, %561 : vector<128x128xf32>
    %cst_145 = arith.constant 1.000000e+30 : f32
    %563 = vector.broadcast %cst_145 : f32 to vector<128x128xf32>
    %564 = arith.select %559, %563, %549 : vector<128x128xi1>, vector<128x128xf32>
    %cst_146 = arith.constant dense<0x7F800000> : vector<128xf32>
    %565 = vector.multi_reduction <minimumf>, %564, %cst_146 [0] : vector<128x128xf32> to vector<128xf32>
    %566 = vector.shape_cast %565 : vector<128xf32> to vector<1x128xf32>
    %567 = vector.broadcast %566 : vector<1x128xf32> to vector<128x128xf32>
    %568 = arith.cmpf oeq, %564, %567 : vector<128x128xf32>
    %cst_147 = arith.constant 1.280000e+02 : f32
    %569 = vector.broadcast %cst_147 : f32 to vector<128x128xf32>
    %570 = arith.select %568, %1, %569 : vector<128x128xi1>, vector<128x128xf32>
    %cst_148 = arith.constant dense<0x7F800000> : vector<128xf32>
    %571 = vector.multi_reduction <minimumf>, %570, %cst_148 [0] : vector<128x128xf32> to vector<128xf32>
    %572 = vector.shape_cast %571 : vector<128xf32> to vector<1x128xf32>
    %573 = vector.broadcast %572 : vector<1x128xf32> to vector<128x128xf32>
    %574 = arith.cmpf oeq, %1, %573 : vector<128x128xf32>
    %575 = arith.extui %574 : vector<128x128xi1> to vector<128x128xi32>
    %576 = arith.sitofp %575 : vector<128x128xi32> to vector<128x128xf32>
    %577 = arith.addf %562, %576 : vector<128x128xf32>
    %cst_149 = arith.constant 1.000000e+30 : f32
    %578 = vector.broadcast %cst_149 : f32 to vector<128x128xf32>
    %579 = arith.select %574, %578, %564 : vector<128x128xi1>, vector<128x128xf32>
    %cst_150 = arith.constant dense<0x7F800000> : vector<128xf32>
    %580 = vector.multi_reduction <minimumf>, %579, %cst_150 [0] : vector<128x128xf32> to vector<128xf32>
    %581 = vector.shape_cast %580 : vector<128xf32> to vector<1x128xf32>
    %582 = vector.broadcast %581 : vector<1x128xf32> to vector<128x128xf32>
    %583 = arith.cmpf oeq, %579, %582 : vector<128x128xf32>
    %cst_151 = arith.constant 1.280000e+02 : f32
    %584 = vector.broadcast %cst_151 : f32 to vector<128x128xf32>
    %585 = arith.select %583, %1, %584 : vector<128x128xi1>, vector<128x128xf32>
    %cst_152 = arith.constant dense<0x7F800000> : vector<128xf32>
    %586 = vector.multi_reduction <minimumf>, %585, %cst_152 [0] : vector<128x128xf32> to vector<128xf32>
    %587 = vector.shape_cast %586 : vector<128xf32> to vector<1x128xf32>
    %588 = vector.broadcast %587 : vector<1x128xf32> to vector<128x128xf32>
    %589 = arith.cmpf oeq, %1, %588 : vector<128x128xf32>
    %590 = arith.extui %589 : vector<128x128xi1> to vector<128x128xi32>
    %591 = arith.sitofp %590 : vector<128x128xi32> to vector<128x128xf32>
    %592 = arith.addf %577, %591 : vector<128x128xf32>
    %cst_153 = arith.constant 1.000000e+30 : f32
    %593 = vector.broadcast %cst_153 : f32 to vector<128x128xf32>
    %594 = arith.select %589, %593, %579 : vector<128x128xi1>, vector<128x128xf32>
    %cst_154 = arith.constant dense<0x7F800000> : vector<128xf32>
    %595 = vector.multi_reduction <minimumf>, %594, %cst_154 [0] : vector<128x128xf32> to vector<128xf32>
    %596 = vector.shape_cast %595 : vector<128xf32> to vector<1x128xf32>
    %597 = vector.broadcast %596 : vector<1x128xf32> to vector<128x128xf32>
    %598 = arith.cmpf oeq, %594, %597 : vector<128x128xf32>
    %cst_155 = arith.constant 1.280000e+02 : f32
    %599 = vector.broadcast %cst_155 : f32 to vector<128x128xf32>
    %600 = arith.select %598, %1, %599 : vector<128x128xi1>, vector<128x128xf32>
    %cst_156 = arith.constant dense<0x7F800000> : vector<128xf32>
    %601 = vector.multi_reduction <minimumf>, %600, %cst_156 [0] : vector<128x128xf32> to vector<128xf32>
    %602 = vector.shape_cast %601 : vector<128xf32> to vector<1x128xf32>
    %603 = vector.broadcast %602 : vector<1x128xf32> to vector<128x128xf32>
    %604 = arith.cmpf oeq, %1, %603 : vector<128x128xf32>
    %605 = arith.extui %604 : vector<128x128xi1> to vector<128x128xi32>
    %606 = arith.sitofp %605 : vector<128x128xi32> to vector<128x128xf32>
    %607 = arith.addf %592, %606 : vector<128x128xf32>
    %cst_157 = arith.constant 1.000000e+30 : f32
    %608 = vector.broadcast %cst_157 : f32 to vector<128x128xf32>
    %609 = arith.select %604, %608, %594 : vector<128x128xi1>, vector<128x128xf32>
    %cst_158 = arith.constant dense<0x7F800000> : vector<128xf32>
    %610 = vector.multi_reduction <minimumf>, %609, %cst_158 [0] : vector<128x128xf32> to vector<128xf32>
    %611 = vector.shape_cast %610 : vector<128xf32> to vector<1x128xf32>
    %612 = vector.broadcast %611 : vector<1x128xf32> to vector<128x128xf32>
    %613 = arith.cmpf oeq, %609, %612 : vector<128x128xf32>
    %cst_159 = arith.constant 1.280000e+02 : f32
    %614 = vector.broadcast %cst_159 : f32 to vector<128x128xf32>
    %615 = arith.select %613, %1, %614 : vector<128x128xi1>, vector<128x128xf32>
    %cst_160 = arith.constant dense<0x7F800000> : vector<128xf32>
    %616 = vector.multi_reduction <minimumf>, %615, %cst_160 [0] : vector<128x128xf32> to vector<128xf32>
    %617 = vector.shape_cast %616 : vector<128xf32> to vector<1x128xf32>
    %618 = vector.broadcast %617 : vector<1x128xf32> to vector<128x128xf32>
    %619 = arith.cmpf oeq, %1, %618 : vector<128x128xf32>
    %620 = arith.extui %619 : vector<128x128xi1> to vector<128x128xi32>
    %621 = arith.sitofp %620 : vector<128x128xi32> to vector<128x128xf32>
    %622 = arith.addf %607, %621 : vector<128x128xf32>
    %cst_161 = arith.constant 1.000000e+30 : f32
    %623 = vector.broadcast %cst_161 : f32 to vector<128x128xf32>
    %624 = arith.select %619, %623, %609 : vector<128x128xi1>, vector<128x128xf32>
    %cst_162 = arith.constant dense<0x7F800000> : vector<128xf32>
    %625 = vector.multi_reduction <minimumf>, %624, %cst_162 [0] : vector<128x128xf32> to vector<128xf32>
    %626 = vector.shape_cast %625 : vector<128xf32> to vector<1x128xf32>
    %627 = vector.broadcast %626 : vector<1x128xf32> to vector<128x128xf32>
    %628 = arith.cmpf oeq, %624, %627 : vector<128x128xf32>
    %cst_163 = arith.constant 1.280000e+02 : f32
    %629 = vector.broadcast %cst_163 : f32 to vector<128x128xf32>
    %630 = arith.select %628, %1, %629 : vector<128x128xi1>, vector<128x128xf32>
    %cst_164 = arith.constant dense<0x7F800000> : vector<128xf32>
    %631 = vector.multi_reduction <minimumf>, %630, %cst_164 [0] : vector<128x128xf32> to vector<128xf32>
    %632 = vector.shape_cast %631 : vector<128xf32> to vector<1x128xf32>
    %633 = vector.broadcast %632 : vector<1x128xf32> to vector<128x128xf32>
    %634 = arith.cmpf oeq, %1, %633 : vector<128x128xf32>
    %635 = arith.extui %634 : vector<128x128xi1> to vector<128x128xi32>
    %636 = arith.sitofp %635 : vector<128x128xi32> to vector<128x128xf32>
    %637 = arith.addf %622, %636 : vector<128x128xf32>
    %cst_165 = arith.constant 1.000000e+30 : f32
    %638 = vector.broadcast %cst_165 : f32 to vector<128x128xf32>
    %639 = arith.select %634, %638, %624 : vector<128x128xi1>, vector<128x128xf32>
    %cst_166 = arith.constant dense<0x7F800000> : vector<128xf32>
    %640 = vector.multi_reduction <minimumf>, %639, %cst_166 [0] : vector<128x128xf32> to vector<128xf32>
    %641 = vector.shape_cast %640 : vector<128xf32> to vector<1x128xf32>
    %642 = vector.broadcast %641 : vector<1x128xf32> to vector<128x128xf32>
    %643 = arith.cmpf oeq, %639, %642 : vector<128x128xf32>
    %cst_167 = arith.constant 1.280000e+02 : f32
    %644 = vector.broadcast %cst_167 : f32 to vector<128x128xf32>
    %645 = arith.select %643, %1, %644 : vector<128x128xi1>, vector<128x128xf32>
    %cst_168 = arith.constant dense<0x7F800000> : vector<128xf32>
    %646 = vector.multi_reduction <minimumf>, %645, %cst_168 [0] : vector<128x128xf32> to vector<128xf32>
    %647 = vector.shape_cast %646 : vector<128xf32> to vector<1x128xf32>
    %648 = vector.broadcast %647 : vector<1x128xf32> to vector<128x128xf32>
    %649 = arith.cmpf oeq, %1, %648 : vector<128x128xf32>
    %650 = arith.extui %649 : vector<128x128xi1> to vector<128x128xi32>
    %651 = arith.sitofp %650 : vector<128x128xi32> to vector<128x128xf32>
    %652 = arith.addf %637, %651 : vector<128x128xf32>
    %cst_169 = arith.constant 1.000000e+30 : f32
    %653 = vector.broadcast %cst_169 : f32 to vector<128x128xf32>
    %654 = arith.select %649, %653, %639 : vector<128x128xi1>, vector<128x128xf32>
    %cst_170 = arith.constant dense<0x7F800000> : vector<128xf32>
    %655 = vector.multi_reduction <minimumf>, %654, %cst_170 [0] : vector<128x128xf32> to vector<128xf32>
    %656 = vector.shape_cast %655 : vector<128xf32> to vector<1x128xf32>
    %657 = vector.broadcast %656 : vector<1x128xf32> to vector<128x128xf32>
    %658 = arith.cmpf oeq, %654, %657 : vector<128x128xf32>
    %cst_171 = arith.constant 1.280000e+02 : f32
    %659 = vector.broadcast %cst_171 : f32 to vector<128x128xf32>
    %660 = arith.select %658, %1, %659 : vector<128x128xi1>, vector<128x128xf32>
    %cst_172 = arith.constant dense<0x7F800000> : vector<128xf32>
    %661 = vector.multi_reduction <minimumf>, %660, %cst_172 [0] : vector<128x128xf32> to vector<128xf32>
    %662 = vector.shape_cast %661 : vector<128xf32> to vector<1x128xf32>
    %663 = vector.broadcast %662 : vector<1x128xf32> to vector<128x128xf32>
    %664 = arith.cmpf oeq, %1, %663 : vector<128x128xf32>
    %665 = arith.extui %664 : vector<128x128xi1> to vector<128x128xi32>
    %666 = arith.sitofp %665 : vector<128x128xi32> to vector<128x128xf32>
    %667 = arith.addf %652, %666 : vector<128x128xf32>
    %cst_173 = arith.constant 1.000000e+30 : f32
    %668 = vector.broadcast %cst_173 : f32 to vector<128x128xf32>
    %669 = arith.select %664, %668, %654 : vector<128x128xi1>, vector<128x128xf32>
    %cst_174 = arith.constant dense<0x7F800000> : vector<128xf32>
    %670 = vector.multi_reduction <minimumf>, %669, %cst_174 [0] : vector<128x128xf32> to vector<128xf32>
    %671 = vector.shape_cast %670 : vector<128xf32> to vector<1x128xf32>
    %672 = vector.broadcast %671 : vector<1x128xf32> to vector<128x128xf32>
    %673 = arith.cmpf oeq, %669, %672 : vector<128x128xf32>
    %cst_175 = arith.constant 1.280000e+02 : f32
    %674 = vector.broadcast %cst_175 : f32 to vector<128x128xf32>
    %675 = arith.select %673, %1, %674 : vector<128x128xi1>, vector<128x128xf32>
    %cst_176 = arith.constant dense<0x7F800000> : vector<128xf32>
    %676 = vector.multi_reduction <minimumf>, %675, %cst_176 [0] : vector<128x128xf32> to vector<128xf32>
    %677 = vector.shape_cast %676 : vector<128xf32> to vector<1x128xf32>
    %678 = vector.broadcast %677 : vector<1x128xf32> to vector<128x128xf32>
    %679 = arith.cmpf oeq, %1, %678 : vector<128x128xf32>
    %680 = arith.extui %679 : vector<128x128xi1> to vector<128x128xi32>
    %681 = arith.sitofp %680 : vector<128x128xi32> to vector<128x128xf32>
    %682 = arith.addf %667, %681 : vector<128x128xf32>
    %683 = vector.extract_strided_slice %361 {offsets = [0, 0], sizes = [1, 128], strides = [1, 1]} : vector<3x128xf32> to vector<1x128xf32>
    %684 = vector.shape_cast %683 : vector<1x128xf32> to vector<128xf32>
    %685 = vector.extract_strided_slice %361 {offsets = [1, 0], sizes = [1, 128], strides = [1, 1]} : vector<3x128xf32> to vector<1x128xf32>
    %686 = vector.shape_cast %685 : vector<1x128xf32> to vector<128xf32>
    %687 = vector.extract_strided_slice %361 {offsets = [2, 0], sizes = [1, 128], strides = [1, 1]} : vector<3x128xf32> to vector<1x128xf32>
    %688 = vector.shape_cast %687 : vector<1x128xf32> to vector<128xf32>
    %cst_177 = arith.constant 0.000000e+00 : f32
    %689 = vector.broadcast %cst_177 : f32 to vector<128xf32>
    %690 = arith.mulf %684, %684 : vector<128xf32>
    %691 = arith.mulf %686, %686 : vector<128xf32>
    %692 = arith.mulf %688, %688 : vector<128xf32>
    %693 = arith.mulf %684, %686 : vector<128xf32>
    %694 = arith.mulf %684, %688 : vector<128xf32>
    %695 = arith.mulf %686, %688 : vector<128xf32>
    %696 = vector.shape_cast %684 : vector<128xf32> to vector<1x128xf32>
    %697 = vector.shape_cast %686 : vector<128xf32> to vector<1x128xf32>
    %698 = vector.shape_cast %688 : vector<128xf32> to vector<1x128xf32>
    %699 = vector.shape_cast %690 : vector<128xf32> to vector<1x128xf32>
    %700 = vector.shape_cast %691 : vector<128xf32> to vector<1x128xf32>
    %701 = vector.shape_cast %692 : vector<128xf32> to vector<1x128xf32>
    %702 = vector.shape_cast %693 : vector<128xf32> to vector<1x128xf32>
    %703 = vector.shape_cast %694 : vector<128xf32> to vector<1x128xf32>
    %704 = vector.shape_cast %695 : vector<128xf32> to vector<1x128xf32>
    %705 = vector.shape_cast %689 : vector<128xf32> to vector<1x128xf32>
    %706 = vector.shape_cast %689 : vector<128xf32> to vector<1x128xf32>
    %707 = vector.shape_cast %689 : vector<128xf32> to vector<1x128xf32>
    %708 = vector.shape_cast %689 : vector<128xf32> to vector<1x128xf32>
    %709 = vector.shape_cast %689 : vector<128xf32> to vector<1x128xf32>
    %710 = vector.shape_cast %689 : vector<128xf32> to vector<1x128xf32>
    %711 = vector.shape_cast %689 : vector<128xf32> to vector<1x128xf32>
    %712 = tpu.concatenate %696, %697, %698, %699, %700, %701, %702, %703, %704, %705, %706, %707, %708, %709, %710, %711 in 0 : vector<1x128xf32>, vector<1x128xf32>, vector<1x128xf32>, vector<1x128xf32>, vector<1x128xf32>, vector<1x128xf32>, vector<1x128xf32>, vector<1x128xf32>, vector<1x128xf32>, vector<1x128xf32>, vector<1x128xf32>, vector<1x128xf32>, vector<1x128xf32>, vector<1x128xf32>, vector<1x128xf32>, vector<1x128xf32> -> vector<16x128xf32>
    %cst_178 = arith.constant dense<0.000000e+00> : vector<16x128xf32>
    %713 = tpu.matmul %712, %682, %cst_178 {dimension_numbers = #tpu.dot_dimension_numbers<[1], [0], [0], [1], [0, 0, 1, 1], [], []>} : vector<16x128xf32>, vector<128x128xf32>, vector<16x128xf32> -> vector<16x128xf32>
    %714 = vector.extract_strided_slice %357 {offsets = [0, 0], sizes = [1, 128], strides = [1, 1]} : vector<16x128xf32> to vector<1x128xf32>
    %715 = vector.shape_cast %714 : vector<1x128xf32> to vector<128xf32>
    %716 = vector.extract_strided_slice %713 {offsets = [0, 0], sizes = [1, 128], strides = [1, 1]} : vector<16x128xf32> to vector<1x128xf32>
    %717 = vector.shape_cast %716 : vector<1x128xf32> to vector<128xf32>
    %718 = vector.shape_cast %715 : vector<128xf32> to vector<1x128xf32>
    %719 = vector.shape_cast %717 : vector<128xf32> to vector<1x128xf32>
    %720 = tpu.concatenate %718, %719 in 0 : vector<1x128xf32>, vector<1x128xf32> -> vector<2x128xf32>
    %cst_179 = arith.constant 5.000000e-02 : f32
    %721 = vector.broadcast %cst_179 : f32 to vector<2x128xf32>
    %722 = arith.mulf %720, %721 : vector<2x128xf32>
    %723 = vector.extract_strided_slice %357 {offsets = [1, 0], sizes = [1, 128], strides = [1, 1]} : vector<16x128xf32> to vector<1x128xf32>
    %724 = vector.shape_cast %723 : vector<1x128xf32> to vector<128xf32>
    %725 = vector.extract_strided_slice %713 {offsets = [1, 0], sizes = [1, 128], strides = [1, 1]} : vector<16x128xf32> to vector<1x128xf32>
    %726 = vector.shape_cast %725 : vector<1x128xf32> to vector<128xf32>
    %727 = vector.shape_cast %724 : vector<128xf32> to vector<1x128xf32>
    %728 = vector.shape_cast %726 : vector<128xf32> to vector<1x128xf32>
    %729 = tpu.concatenate %727, %728 in 0 : vector<1x128xf32>, vector<1x128xf32> -> vector<2x128xf32>
    %cst_180 = arith.constant 5.000000e-02 : f32
    %730 = vector.broadcast %cst_180 : f32 to vector<2x128xf32>
    %731 = arith.mulf %729, %730 : vector<2x128xf32>
    %732 = vector.extract_strided_slice %357 {offsets = [2, 0], sizes = [1, 128], strides = [1, 1]} : vector<16x128xf32> to vector<1x128xf32>
    %733 = vector.shape_cast %732 : vector<1x128xf32> to vector<128xf32>
    %734 = vector.extract_strided_slice %713 {offsets = [2, 0], sizes = [1, 128], strides = [1, 1]} : vector<16x128xf32> to vector<1x128xf32>
    %735 = vector.shape_cast %734 : vector<1x128xf32> to vector<128xf32>
    %736 = vector.shape_cast %733 : vector<128xf32> to vector<1x128xf32>
    %737 = vector.shape_cast %735 : vector<128xf32> to vector<1x128xf32>
    %738 = tpu.concatenate %736, %737 in 0 : vector<1x128xf32>, vector<1x128xf32> -> vector<2x128xf32>
    %cst_181 = arith.constant 5.000000e-02 : f32
    %739 = vector.broadcast %cst_181 : f32 to vector<2x128xf32>
    %740 = arith.mulf %738, %739 : vector<2x128xf32>
    %741 = vector.extract_strided_slice %357 {offsets = [3, 0], sizes = [1, 128], strides = [1, 1]} : vector<16x128xf32> to vector<1x128xf32>
    %742 = vector.shape_cast %741 : vector<1x128xf32> to vector<128xf32>
    %743 = vector.extract_strided_slice %713 {offsets = [3, 0], sizes = [1, 128], strides = [1, 1]} : vector<16x128xf32> to vector<1x128xf32>
    %744 = vector.shape_cast %743 : vector<1x128xf32> to vector<128xf32>
    %745 = vector.shape_cast %742 : vector<128xf32> to vector<1x128xf32>
    %746 = vector.shape_cast %744 : vector<128xf32> to vector<1x128xf32>
    %747 = tpu.concatenate %745, %746 in 0 : vector<1x128xf32>, vector<1x128xf32> -> vector<2x128xf32>
    %cst_182 = arith.constant 5.000000e-02 : f32
    %748 = vector.broadcast %cst_182 : f32 to vector<2x128xf32>
    %749 = arith.mulf %747, %748 : vector<2x128xf32>
    %750 = arith.mulf %722, %722 : vector<2x128xf32>
    %751 = arith.subf %749, %750 : vector<2x128xf32>
    %752 = vector.extract_strided_slice %357 {offsets = [4, 0], sizes = [1, 128], strides = [1, 1]} : vector<16x128xf32> to vector<1x128xf32>
    %753 = vector.shape_cast %752 : vector<1x128xf32> to vector<128xf32>
    %754 = vector.extract_strided_slice %713 {offsets = [4, 0], sizes = [1, 128], strides = [1, 1]} : vector<16x128xf32> to vector<1x128xf32>
    %755 = vector.shape_cast %754 : vector<1x128xf32> to vector<128xf32>
    %756 = vector.shape_cast %753 : vector<128xf32> to vector<1x128xf32>
    %757 = vector.shape_cast %755 : vector<128xf32> to vector<1x128xf32>
    %758 = tpu.concatenate %756, %757 in 0 : vector<1x128xf32>, vector<1x128xf32> -> vector<2x128xf32>
    %cst_183 = arith.constant 5.000000e-02 : f32
    %759 = vector.broadcast %cst_183 : f32 to vector<2x128xf32>
    %760 = arith.mulf %758, %759 : vector<2x128xf32>
    %761 = arith.mulf %731, %731 : vector<2x128xf32>
    %762 = arith.subf %760, %761 : vector<2x128xf32>
    %763 = vector.extract_strided_slice %357 {offsets = [5, 0], sizes = [1, 128], strides = [1, 1]} : vector<16x128xf32> to vector<1x128xf32>
    %764 = vector.shape_cast %763 : vector<1x128xf32> to vector<128xf32>
    %765 = vector.extract_strided_slice %713 {offsets = [5, 0], sizes = [1, 128], strides = [1, 1]} : vector<16x128xf32> to vector<1x128xf32>
    %766 = vector.shape_cast %765 : vector<1x128xf32> to vector<128xf32>
    %767 = vector.shape_cast %764 : vector<128xf32> to vector<1x128xf32>
    %768 = vector.shape_cast %766 : vector<128xf32> to vector<1x128xf32>
    %769 = tpu.concatenate %767, %768 in 0 : vector<1x128xf32>, vector<1x128xf32> -> vector<2x128xf32>
    %cst_184 = arith.constant 5.000000e-02 : f32
    %770 = vector.broadcast %cst_184 : f32 to vector<2x128xf32>
    %771 = arith.mulf %769, %770 : vector<2x128xf32>
    %772 = arith.mulf %740, %740 : vector<2x128xf32>
    %773 = arith.subf %771, %772 : vector<2x128xf32>
    %774 = vector.extract_strided_slice %357 {offsets = [6, 0], sizes = [1, 128], strides = [1, 1]} : vector<16x128xf32> to vector<1x128xf32>
    %775 = vector.shape_cast %774 : vector<1x128xf32> to vector<128xf32>
    %776 = vector.extract_strided_slice %713 {offsets = [6, 0], sizes = [1, 128], strides = [1, 1]} : vector<16x128xf32> to vector<1x128xf32>
    %777 = vector.shape_cast %776 : vector<1x128xf32> to vector<128xf32>
    %778 = vector.shape_cast %775 : vector<128xf32> to vector<1x128xf32>
    %779 = vector.shape_cast %777 : vector<128xf32> to vector<1x128xf32>
    %780 = tpu.concatenate %778, %779 in 0 : vector<1x128xf32>, vector<1x128xf32> -> vector<2x128xf32>
    %cst_185 = arith.constant 5.000000e-02 : f32
    %781 = vector.broadcast %cst_185 : f32 to vector<2x128xf32>
    %782 = arith.mulf %780, %781 : vector<2x128xf32>
    %783 = arith.mulf %722, %731 : vector<2x128xf32>
    %784 = arith.subf %782, %783 : vector<2x128xf32>
    %785 = vector.extract_strided_slice %357 {offsets = [7, 0], sizes = [1, 128], strides = [1, 1]} : vector<16x128xf32> to vector<1x128xf32>
    %786 = vector.shape_cast %785 : vector<1x128xf32> to vector<128xf32>
    %787 = vector.extract_strided_slice %713 {offsets = [7, 0], sizes = [1, 128], strides = [1, 1]} : vector<16x128xf32> to vector<1x128xf32>
    %788 = vector.shape_cast %787 : vector<1x128xf32> to vector<128xf32>
    %789 = vector.shape_cast %786 : vector<128xf32> to vector<1x128xf32>
    %790 = vector.shape_cast %788 : vector<128xf32> to vector<1x128xf32>
    %791 = tpu.concatenate %789, %790 in 0 : vector<1x128xf32>, vector<1x128xf32> -> vector<2x128xf32>
    %cst_186 = arith.constant 5.000000e-02 : f32
    %792 = vector.broadcast %cst_186 : f32 to vector<2x128xf32>
    %793 = arith.mulf %791, %792 : vector<2x128xf32>
    %794 = arith.mulf %722, %740 : vector<2x128xf32>
    %795 = arith.subf %793, %794 : vector<2x128xf32>
    %796 = vector.extract_strided_slice %357 {offsets = [8, 0], sizes = [1, 128], strides = [1, 1]} : vector<16x128xf32> to vector<1x128xf32>
    %797 = vector.shape_cast %796 : vector<1x128xf32> to vector<128xf32>
    %798 = vector.extract_strided_slice %713 {offsets = [8, 0], sizes = [1, 128], strides = [1, 1]} : vector<16x128xf32> to vector<1x128xf32>
    %799 = vector.shape_cast %798 : vector<1x128xf32> to vector<128xf32>
    %800 = vector.shape_cast %797 : vector<128xf32> to vector<1x128xf32>
    %801 = vector.shape_cast %799 : vector<128xf32> to vector<1x128xf32>
    %802 = tpu.concatenate %800, %801 in 0 : vector<1x128xf32>, vector<1x128xf32> -> vector<2x128xf32>
    %cst_187 = arith.constant 5.000000e-02 : f32
    %803 = vector.broadcast %cst_187 : f32 to vector<2x128xf32>
    %804 = arith.mulf %802, %803 : vector<2x128xf32>
    %805 = arith.mulf %731, %740 : vector<2x128xf32>
    %806 = arith.subf %804, %805 : vector<2x128xf32>
    %807 = arith.addf %751, %762 : vector<2x128xf32>
    %808 = arith.addf %807, %773 : vector<2x128xf32>
    %809 = arith.mulf %751, %762 : vector<2x128xf32>
    %810 = arith.mulf %751, %773 : vector<2x128xf32>
    %811 = arith.addf %809, %810 : vector<2x128xf32>
    %812 = arith.mulf %762, %773 : vector<2x128xf32>
    %813 = arith.addf %811, %812 : vector<2x128xf32>
    %814 = arith.mulf %784, %784 : vector<2x128xf32>
    %815 = arith.subf %813, %814 : vector<2x128xf32>
    %816 = arith.mulf %795, %795 : vector<2x128xf32>
    %817 = arith.subf %815, %816 : vector<2x128xf32>
    %818 = arith.mulf %806, %806 : vector<2x128xf32>
    %819 = arith.subf %817, %818 : vector<2x128xf32>
    %820 = arith.mulf %762, %773 : vector<2x128xf32>
    %821 = arith.mulf %806, %806 : vector<2x128xf32>
    %822 = arith.subf %820, %821 : vector<2x128xf32>
    %823 = arith.mulf %751, %822 : vector<2x128xf32>
    %824 = arith.mulf %784, %773 : vector<2x128xf32>
    %825 = arith.mulf %806, %795 : vector<2x128xf32>
    %826 = arith.subf %824, %825 : vector<2x128xf32>
    %827 = arith.mulf %784, %826 : vector<2x128xf32>
    %828 = arith.subf %823, %827 : vector<2x128xf32>
    %829 = arith.mulf %784, %806 : vector<2x128xf32>
    %830 = arith.mulf %762, %795 : vector<2x128xf32>
    %831 = arith.subf %829, %830 : vector<2x128xf32>
    %832 = arith.mulf %795, %831 : vector<2x128xf32>
    %833 = arith.addf %828, %832 : vector<2x128xf32>
    %cst_188 = arith.constant 0.333333343 : f32
    %834 = vector.broadcast %cst_188 : f32 to vector<2x128xf32>
    %835 = arith.mulf %808, %834 : vector<2x128xf32>
    %cst_189 = arith.constant 1.000000e-30 : f32
    %836 = vector.broadcast %cst_189 : f32 to vector<2x128xf32>
    %837 = arith.cmpf ogt, %835, %836 : vector<2x128xf32>
    %cst_190 = arith.constant 1.000000e+00 : f32
    %838 = vector.broadcast %cst_190 : f32 to vector<2x128xf32>
    %839 = arith.select %837, %835, %838 : vector<2x128xi1>, vector<2x128xf32>
    %cst_191 = arith.constant 1.000000e+00 : f32
    %840 = vector.broadcast %cst_191 : f32 to vector<2x128xf32>
    %841 = arith.divf %840, %839 : vector<2x128xf32>
    %842 = arith.mulf %819, %841 : vector<2x128xf32>
    %843 = arith.mulf %842, %841 : vector<2x128xf32>
    %844 = arith.mulf %833, %841 : vector<2x128xf32>
    %845 = arith.mulf %844, %841 : vector<2x128xf32>
    %846 = arith.mulf %845, %841 : vector<2x128xf32>
    %cst_192 = arith.constant 0.000000e+00 : f32
    %847 = vector.broadcast %cst_192 : f32 to vector<2x128xf32>
    %cst_193 = arith.constant 3.000000e+00 : f32
    %848 = vector.broadcast %cst_193 : f32 to vector<2x128xf32>
    %849 = arith.subf %847, %848 : vector<2x128xf32>
    %850 = arith.mulf %849, %847 : vector<2x128xf32>
    %851 = arith.addf %850, %843 : vector<2x128xf32>
    %852 = arith.mulf %851, %847 : vector<2x128xf32>
    %853 = arith.subf %852, %846 : vector<2x128xf32>
    %cst_194 = arith.constant 3.000000e+00 : f32
    %854 = vector.broadcast %cst_194 : f32 to vector<2x128xf32>
    %855 = arith.mulf %854, %847 : vector<2x128xf32>
    %cst_195 = arith.constant 6.000000e+00 : f32
    %856 = vector.broadcast %cst_195 : f32 to vector<2x128xf32>
    %857 = arith.subf %855, %856 : vector<2x128xf32>
    %858 = arith.mulf %857, %847 : vector<2x128xf32>
    %859 = arith.addf %858, %843 : vector<2x128xf32>
    %860 = math.absf %859 : vector<2x128xf32>
    %cst_196 = arith.constant 9.99999996E-13 : f32
    %861 = vector.broadcast %cst_196 : f32 to vector<2x128xf32>
    %862 = arith.cmpf ogt, %860, %861 : vector<2x128xf32>
    %cst_197 = arith.constant 0.000000e+00 : f32
    %863 = vector.broadcast %cst_197 : f32 to vector<2x128xf32>
    %864 = arith.cmpf oge, %859, %863 : vector<2x128xf32>
    %cst_198 = arith.constant 9.99999996E-13 : f32
    %cst_199 = arith.constant -9.99999996E-13 : f32
    %865 = vector.broadcast %cst_198 : f32 to vector<2x128xf32>
    %866 = vector.broadcast %cst_199 : f32 to vector<2x128xf32>
    %867 = arith.select %864, %865, %866 : vector<2x128xi1>, vector<2x128xf32>
    %868 = arith.select %862, %859, %867 : vector<2x128xi1>, vector<2x128xf32>
    %869 = tpu.reciprocal %868 {approx = true} : vector<2x128xf32> -> vector<2x128xf32>
    %870 = arith.mulf %853, %869 : vector<2x128xf32>
    %871 = arith.subf %847, %870 : vector<2x128xf32>
    %cst_200 = arith.constant 0.000000e+00 : f32
    %cst_201 = arith.constant 1.000000e+00 : f32
    %872 = vector.broadcast %cst_200 : f32 to vector<2x128xf32>
    %873 = arith.maximumf %872, %871 : vector<2x128xf32>
    %874 = vector.broadcast %cst_201 : f32 to vector<2x128xf32>
    %875 = arith.minimumf %874, %873 : vector<2x128xf32>
    %cst_202 = arith.constant 3.000000e+00 : f32
    %876 = vector.broadcast %cst_202 : f32 to vector<2x128xf32>
    %877 = arith.subf %875, %876 : vector<2x128xf32>
    %878 = arith.mulf %877, %875 : vector<2x128xf32>
    %879 = arith.addf %878, %843 : vector<2x128xf32>
    %880 = arith.mulf %879, %875 : vector<2x128xf32>
    %881 = arith.subf %880, %846 : vector<2x128xf32>
    %cst_203 = arith.constant 3.000000e+00 : f32
    %882 = vector.broadcast %cst_203 : f32 to vector<2x128xf32>
    %883 = arith.mulf %882, %875 : vector<2x128xf32>
    %cst_204 = arith.constant 6.000000e+00 : f32
    %884 = vector.broadcast %cst_204 : f32 to vector<2x128xf32>
    %885 = arith.subf %883, %884 : vector<2x128xf32>
    %886 = arith.mulf %885, %875 : vector<2x128xf32>
    %887 = arith.addf %886, %843 : vector<2x128xf32>
    %888 = math.absf %887 : vector<2x128xf32>
    %cst_205 = arith.constant 9.99999996E-13 : f32
    %889 = vector.broadcast %cst_205 : f32 to vector<2x128xf32>
    %890 = arith.cmpf ogt, %888, %889 : vector<2x128xf32>
    %cst_206 = arith.constant 0.000000e+00 : f32
    %891 = vector.broadcast %cst_206 : f32 to vector<2x128xf32>
    %892 = arith.cmpf oge, %887, %891 : vector<2x128xf32>
    %cst_207 = arith.constant 9.99999996E-13 : f32
    %cst_208 = arith.constant -9.99999996E-13 : f32
    %893 = vector.broadcast %cst_207 : f32 to vector<2x128xf32>
    %894 = vector.broadcast %cst_208 : f32 to vector<2x128xf32>
    %895 = arith.select %892, %893, %894 : vector<2x128xi1>, vector<2x128xf32>
    %896 = arith.select %890, %887, %895 : vector<2x128xi1>, vector<2x128xf32>
    %897 = tpu.reciprocal %896 {approx = true} : vector<2x128xf32> -> vector<2x128xf32>
    %898 = arith.mulf %881, %897 : vector<2x128xf32>
    %899 = arith.subf %875, %898 : vector<2x128xf32>
    %cst_209 = arith.constant 0.000000e+00 : f32
    %cst_210 = arith.constant 1.000000e+00 : f32
    %900 = vector.broadcast %cst_209 : f32 to vector<2x128xf32>
    %901 = arith.maximumf %900, %899 : vector<2x128xf32>
    %902 = vector.broadcast %cst_210 : f32 to vector<2x128xf32>
    %903 = arith.minimumf %902, %901 : vector<2x128xf32>
    %cst_211 = arith.constant 3.000000e+00 : f32
    %904 = vector.broadcast %cst_211 : f32 to vector<2x128xf32>
    %905 = arith.subf %903, %904 : vector<2x128xf32>
    %906 = arith.mulf %905, %903 : vector<2x128xf32>
    %907 = arith.addf %906, %843 : vector<2x128xf32>
    %908 = arith.mulf %907, %903 : vector<2x128xf32>
    %909 = arith.subf %908, %846 : vector<2x128xf32>
    %cst_212 = arith.constant 3.000000e+00 : f32
    %910 = vector.broadcast %cst_212 : f32 to vector<2x128xf32>
    %911 = arith.mulf %910, %903 : vector<2x128xf32>
    %cst_213 = arith.constant 6.000000e+00 : f32
    %912 = vector.broadcast %cst_213 : f32 to vector<2x128xf32>
    %913 = arith.subf %911, %912 : vector<2x128xf32>
    %914 = arith.mulf %913, %903 : vector<2x128xf32>
    %915 = arith.addf %914, %843 : vector<2x128xf32>
    %916 = math.absf %915 : vector<2x128xf32>
    %cst_214 = arith.constant 9.99999996E-13 : f32
    %917 = vector.broadcast %cst_214 : f32 to vector<2x128xf32>
    %918 = arith.cmpf ogt, %916, %917 : vector<2x128xf32>
    %cst_215 = arith.constant 0.000000e+00 : f32
    %919 = vector.broadcast %cst_215 : f32 to vector<2x128xf32>
    %920 = arith.cmpf oge, %915, %919 : vector<2x128xf32>
    %cst_216 = arith.constant 9.99999996E-13 : f32
    %cst_217 = arith.constant -9.99999996E-13 : f32
    %921 = vector.broadcast %cst_216 : f32 to vector<2x128xf32>
    %922 = vector.broadcast %cst_217 : f32 to vector<2x128xf32>
    %923 = arith.select %920, %921, %922 : vector<2x128xi1>, vector<2x128xf32>
    %924 = arith.select %918, %915, %923 : vector<2x128xi1>, vector<2x128xf32>
    %925 = tpu.reciprocal %924 {approx = true} : vector<2x128xf32> -> vector<2x128xf32>
    %926 = arith.mulf %909, %925 : vector<2x128xf32>
    %927 = arith.subf %903, %926 : vector<2x128xf32>
    %cst_218 = arith.constant 0.000000e+00 : f32
    %cst_219 = arith.constant 1.000000e+00 : f32
    %928 = vector.broadcast %cst_218 : f32 to vector<2x128xf32>
    %929 = arith.maximumf %928, %927 : vector<2x128xf32>
    %930 = vector.broadcast %cst_219 : f32 to vector<2x128xf32>
    %931 = arith.minimumf %930, %929 : vector<2x128xf32>
    %cst_220 = arith.constant 3.000000e+00 : f32
    %932 = vector.broadcast %cst_220 : f32 to vector<2x128xf32>
    %933 = arith.subf %931, %932 : vector<2x128xf32>
    %934 = arith.mulf %933, %931 : vector<2x128xf32>
    %935 = arith.addf %934, %843 : vector<2x128xf32>
    %936 = arith.mulf %935, %931 : vector<2x128xf32>
    %937 = arith.subf %936, %846 : vector<2x128xf32>
    %cst_221 = arith.constant 3.000000e+00 : f32
    %938 = vector.broadcast %cst_221 : f32 to vector<2x128xf32>
    %939 = arith.mulf %938, %931 : vector<2x128xf32>
    %cst_222 = arith.constant 6.000000e+00 : f32
    %940 = vector.broadcast %cst_222 : f32 to vector<2x128xf32>
    %941 = arith.subf %939, %940 : vector<2x128xf32>
    %942 = arith.mulf %941, %931 : vector<2x128xf32>
    %943 = arith.addf %942, %843 : vector<2x128xf32>
    %944 = math.absf %943 : vector<2x128xf32>
    %cst_223 = arith.constant 9.99999996E-13 : f32
    %945 = vector.broadcast %cst_223 : f32 to vector<2x128xf32>
    %946 = arith.cmpf ogt, %944, %945 : vector<2x128xf32>
    %cst_224 = arith.constant 0.000000e+00 : f32
    %947 = vector.broadcast %cst_224 : f32 to vector<2x128xf32>
    %948 = arith.cmpf oge, %943, %947 : vector<2x128xf32>
    %cst_225 = arith.constant 9.99999996E-13 : f32
    %cst_226 = arith.constant -9.99999996E-13 : f32
    %949 = vector.broadcast %cst_225 : f32 to vector<2x128xf32>
    %950 = vector.broadcast %cst_226 : f32 to vector<2x128xf32>
    %951 = arith.select %948, %949, %950 : vector<2x128xi1>, vector<2x128xf32>
    %952 = arith.select %946, %943, %951 : vector<2x128xi1>, vector<2x128xf32>
    %953 = tpu.reciprocal %952 {approx = true} : vector<2x128xf32> -> vector<2x128xf32>
    %954 = arith.mulf %937, %953 : vector<2x128xf32>
    %955 = arith.subf %931, %954 : vector<2x128xf32>
    %cst_227 = arith.constant 0.000000e+00 : f32
    %cst_228 = arith.constant 1.000000e+00 : f32
    %956 = vector.broadcast %cst_227 : f32 to vector<2x128xf32>
    %957 = arith.maximumf %956, %955 : vector<2x128xf32>
    %958 = vector.broadcast %cst_228 : f32 to vector<2x128xf32>
    %959 = arith.minimumf %958, %957 : vector<2x128xf32>
    %cst_229 = arith.constant 3.000000e+00 : f32
    %960 = vector.broadcast %cst_229 : f32 to vector<2x128xf32>
    %961 = arith.subf %959, %960 : vector<2x128xf32>
    %962 = arith.mulf %961, %959 : vector<2x128xf32>
    %963 = arith.addf %962, %843 : vector<2x128xf32>
    %964 = arith.mulf %963, %959 : vector<2x128xf32>
    %965 = arith.subf %964, %846 : vector<2x128xf32>
    %cst_230 = arith.constant 3.000000e+00 : f32
    %966 = vector.broadcast %cst_230 : f32 to vector<2x128xf32>
    %967 = arith.mulf %966, %959 : vector<2x128xf32>
    %cst_231 = arith.constant 6.000000e+00 : f32
    %968 = vector.broadcast %cst_231 : f32 to vector<2x128xf32>
    %969 = arith.subf %967, %968 : vector<2x128xf32>
    %970 = arith.mulf %969, %959 : vector<2x128xf32>
    %971 = arith.addf %970, %843 : vector<2x128xf32>
    %972 = math.absf %971 : vector<2x128xf32>
    %cst_232 = arith.constant 9.99999996E-13 : f32
    %973 = vector.broadcast %cst_232 : f32 to vector<2x128xf32>
    %974 = arith.cmpf ogt, %972, %973 : vector<2x128xf32>
    %cst_233 = arith.constant 0.000000e+00 : f32
    %975 = vector.broadcast %cst_233 : f32 to vector<2x128xf32>
    %976 = arith.cmpf oge, %971, %975 : vector<2x128xf32>
    %cst_234 = arith.constant 9.99999996E-13 : f32
    %cst_235 = arith.constant -9.99999996E-13 : f32
    %977 = vector.broadcast %cst_234 : f32 to vector<2x128xf32>
    %978 = vector.broadcast %cst_235 : f32 to vector<2x128xf32>
    %979 = arith.select %976, %977, %978 : vector<2x128xi1>, vector<2x128xf32>
    %980 = arith.select %974, %971, %979 : vector<2x128xi1>, vector<2x128xf32>
    %981 = tpu.reciprocal %980 {approx = true} : vector<2x128xf32> -> vector<2x128xf32>
    %982 = arith.mulf %965, %981 : vector<2x128xf32>
    %983 = arith.subf %959, %982 : vector<2x128xf32>
    %cst_236 = arith.constant 0.000000e+00 : f32
    %cst_237 = arith.constant 1.000000e+00 : f32
    %984 = vector.broadcast %cst_236 : f32 to vector<2x128xf32>
    %985 = arith.maximumf %984, %983 : vector<2x128xf32>
    %986 = vector.broadcast %cst_237 : f32 to vector<2x128xf32>
    %987 = arith.minimumf %986, %985 : vector<2x128xf32>
    %cst_238 = arith.constant 3.000000e+00 : f32
    %988 = vector.broadcast %cst_238 : f32 to vector<2x128xf32>
    %989 = arith.subf %987, %988 : vector<2x128xf32>
    %990 = arith.mulf %989, %987 : vector<2x128xf32>
    %991 = arith.addf %990, %843 : vector<2x128xf32>
    %992 = arith.mulf %991, %987 : vector<2x128xf32>
    %993 = arith.subf %992, %846 : vector<2x128xf32>
    %cst_239 = arith.constant 3.000000e+00 : f32
    %994 = vector.broadcast %cst_239 : f32 to vector<2x128xf32>
    %995 = arith.mulf %994, %987 : vector<2x128xf32>
    %cst_240 = arith.constant 6.000000e+00 : f32
    %996 = vector.broadcast %cst_240 : f32 to vector<2x128xf32>
    %997 = arith.subf %995, %996 : vector<2x128xf32>
    %998 = arith.mulf %997, %987 : vector<2x128xf32>
    %999 = arith.addf %998, %843 : vector<2x128xf32>
    %1000 = math.absf %999 : vector<2x128xf32>
    %cst_241 = arith.constant 9.99999996E-13 : f32
    %1001 = vector.broadcast %cst_241 : f32 to vector<2x128xf32>
    %1002 = arith.cmpf ogt, %1000, %1001 : vector<2x128xf32>
    %cst_242 = arith.constant 0.000000e+00 : f32
    %1003 = vector.broadcast %cst_242 : f32 to vector<2x128xf32>
    %1004 = arith.cmpf oge, %999, %1003 : vector<2x128xf32>
    %cst_243 = arith.constant 9.99999996E-13 : f32
    %cst_244 = arith.constant -9.99999996E-13 : f32
    %1005 = vector.broadcast %cst_243 : f32 to vector<2x128xf32>
    %1006 = vector.broadcast %cst_244 : f32 to vector<2x128xf32>
    %1007 = arith.select %1004, %1005, %1006 : vector<2x128xi1>, vector<2x128xf32>
    %1008 = arith.select %1002, %999, %1007 : vector<2x128xi1>, vector<2x128xf32>
    %1009 = tpu.reciprocal %1008 {approx = true} : vector<2x128xf32> -> vector<2x128xf32>
    %1010 = arith.mulf %993, %1009 : vector<2x128xf32>
    %1011 = arith.subf %987, %1010 : vector<2x128xf32>
    %cst_245 = arith.constant 0.000000e+00 : f32
    %cst_246 = arith.constant 1.000000e+00 : f32
    %1012 = vector.broadcast %cst_245 : f32 to vector<2x128xf32>
    %1013 = arith.maximumf %1012, %1011 : vector<2x128xf32>
    %1014 = vector.broadcast %cst_246 : f32 to vector<2x128xf32>
    %1015 = arith.minimumf %1014, %1013 : vector<2x128xf32>
    %cst_247 = arith.constant 3.000000e+00 : f32
    %1016 = vector.broadcast %cst_247 : f32 to vector<2x128xf32>
    %1017 = arith.subf %1015, %1016 : vector<2x128xf32>
    %1018 = arith.mulf %1017, %1015 : vector<2x128xf32>
    %1019 = arith.addf %1018, %843 : vector<2x128xf32>
    %1020 = arith.mulf %1019, %1015 : vector<2x128xf32>
    %1021 = arith.subf %1020, %846 : vector<2x128xf32>
    %cst_248 = arith.constant 3.000000e+00 : f32
    %1022 = vector.broadcast %cst_248 : f32 to vector<2x128xf32>
    %1023 = arith.mulf %1022, %1015 : vector<2x128xf32>
    %cst_249 = arith.constant 6.000000e+00 : f32
    %1024 = vector.broadcast %cst_249 : f32 to vector<2x128xf32>
    %1025 = arith.subf %1023, %1024 : vector<2x128xf32>
    %1026 = arith.mulf %1025, %1015 : vector<2x128xf32>
    %1027 = arith.addf %1026, %843 : vector<2x128xf32>
    %1028 = math.absf %1027 : vector<2x128xf32>
    %cst_250 = arith.constant 9.99999996E-13 : f32
    %1029 = vector.broadcast %cst_250 : f32 to vector<2x128xf32>
    %1030 = arith.cmpf ogt, %1028, %1029 : vector<2x128xf32>
    %cst_251 = arith.constant 0.000000e+00 : f32
    %1031 = vector.broadcast %cst_251 : f32 to vector<2x128xf32>
    %1032 = arith.cmpf oge, %1027, %1031 : vector<2x128xf32>
    %cst_252 = arith.constant 9.99999996E-13 : f32
    %cst_253 = arith.constant -9.99999996E-13 : f32
    %1033 = vector.broadcast %cst_252 : f32 to vector<2x128xf32>
    %1034 = vector.broadcast %cst_253 : f32 to vector<2x128xf32>
    %1035 = arith.select %1032, %1033, %1034 : vector<2x128xi1>, vector<2x128xf32>
    %1036 = arith.select %1030, %1027, %1035 : vector<2x128xi1>, vector<2x128xf32>
    %1037 = tpu.reciprocal %1036 {approx = true} : vector<2x128xf32> -> vector<2x128xf32>
    %1038 = arith.mulf %1021, %1037 : vector<2x128xf32>
    %1039 = arith.subf %1015, %1038 : vector<2x128xf32>
    %cst_254 = arith.constant 0.000000e+00 : f32
    %cst_255 = arith.constant 1.000000e+00 : f32
    %1040 = vector.broadcast %cst_254 : f32 to vector<2x128xf32>
    %1041 = arith.maximumf %1040, %1039 : vector<2x128xf32>
    %1042 = vector.broadcast %cst_255 : f32 to vector<2x128xf32>
    %1043 = arith.minimumf %1042, %1041 : vector<2x128xf32>
    %cst_256 = arith.constant 3.000000e+00 : f32
    %1044 = vector.broadcast %cst_256 : f32 to vector<2x128xf32>
    %1045 = arith.subf %1043, %1044 : vector<2x128xf32>
    %1046 = arith.mulf %1045, %1043 : vector<2x128xf32>
    %1047 = arith.addf %1046, %843 : vector<2x128xf32>
    %1048 = arith.mulf %1047, %1043 : vector<2x128xf32>
    %1049 = arith.subf %1048, %846 : vector<2x128xf32>
    %cst_257 = arith.constant 3.000000e+00 : f32
    %1050 = vector.broadcast %cst_257 : f32 to vector<2x128xf32>
    %1051 = arith.mulf %1050, %1043 : vector<2x128xf32>
    %cst_258 = arith.constant 6.000000e+00 : f32
    %1052 = vector.broadcast %cst_258 : f32 to vector<2x128xf32>
    %1053 = arith.subf %1051, %1052 : vector<2x128xf32>
    %1054 = arith.mulf %1053, %1043 : vector<2x128xf32>
    %1055 = arith.addf %1054, %843 : vector<2x128xf32>
    %1056 = math.absf %1055 : vector<2x128xf32>
    %cst_259 = arith.constant 9.99999996E-13 : f32
    %1057 = vector.broadcast %cst_259 : f32 to vector<2x128xf32>
    %1058 = arith.cmpf ogt, %1056, %1057 : vector<2x128xf32>
    %cst_260 = arith.constant 0.000000e+00 : f32
    %1059 = vector.broadcast %cst_260 : f32 to vector<2x128xf32>
    %1060 = arith.cmpf oge, %1055, %1059 : vector<2x128xf32>
    %cst_261 = arith.constant 9.99999996E-13 : f32
    %cst_262 = arith.constant -9.99999996E-13 : f32
    %1061 = vector.broadcast %cst_261 : f32 to vector<2x128xf32>
    %1062 = vector.broadcast %cst_262 : f32 to vector<2x128xf32>
    %1063 = arith.select %1060, %1061, %1062 : vector<2x128xi1>, vector<2x128xf32>
    %1064 = arith.select %1058, %1055, %1063 : vector<2x128xi1>, vector<2x128xf32>
    %1065 = tpu.reciprocal %1064 {approx = true} : vector<2x128xf32> -> vector<2x128xf32>
    %1066 = arith.mulf %1049, %1065 : vector<2x128xf32>
    %1067 = arith.subf %1043, %1066 : vector<2x128xf32>
    %cst_263 = arith.constant 0.000000e+00 : f32
    %cst_264 = arith.constant 1.000000e+00 : f32
    %1068 = vector.broadcast %cst_263 : f32 to vector<2x128xf32>
    %1069 = arith.maximumf %1068, %1067 : vector<2x128xf32>
    %1070 = vector.broadcast %cst_264 : f32 to vector<2x128xf32>
    %1071 = arith.minimumf %1070, %1069 : vector<2x128xf32>
    %cst_265 = arith.constant 3.000000e+00 : f32
    %1072 = vector.broadcast %cst_265 : f32 to vector<2x128xf32>
    %1073 = arith.subf %1071, %1072 : vector<2x128xf32>
    %1074 = arith.mulf %1073, %1071 : vector<2x128xf32>
    %1075 = arith.addf %1074, %843 : vector<2x128xf32>
    %1076 = arith.mulf %1075, %1071 : vector<2x128xf32>
    %1077 = arith.subf %1076, %846 : vector<2x128xf32>
    %cst_266 = arith.constant 3.000000e+00 : f32
    %1078 = vector.broadcast %cst_266 : f32 to vector<2x128xf32>
    %1079 = arith.mulf %1078, %1071 : vector<2x128xf32>
    %cst_267 = arith.constant 6.000000e+00 : f32
    %1080 = vector.broadcast %cst_267 : f32 to vector<2x128xf32>
    %1081 = arith.subf %1079, %1080 : vector<2x128xf32>
    %1082 = arith.mulf %1081, %1071 : vector<2x128xf32>
    %1083 = arith.addf %1082, %843 : vector<2x128xf32>
    %1084 = math.absf %1083 : vector<2x128xf32>
    %cst_268 = arith.constant 9.99999996E-13 : f32
    %1085 = vector.broadcast %cst_268 : f32 to vector<2x128xf32>
    %1086 = arith.cmpf ogt, %1084, %1085 : vector<2x128xf32>
    %cst_269 = arith.constant 0.000000e+00 : f32
    %1087 = vector.broadcast %cst_269 : f32 to vector<2x128xf32>
    %1088 = arith.cmpf oge, %1083, %1087 : vector<2x128xf32>
    %cst_270 = arith.constant 9.99999996E-13 : f32
    %cst_271 = arith.constant -9.99999996E-13 : f32
    %1089 = vector.broadcast %cst_270 : f32 to vector<2x128xf32>
    %1090 = vector.broadcast %cst_271 : f32 to vector<2x128xf32>
    %1091 = arith.select %1088, %1089, %1090 : vector<2x128xi1>, vector<2x128xf32>
    %1092 = arith.select %1086, %1083, %1091 : vector<2x128xi1>, vector<2x128xf32>
    %1093 = tpu.reciprocal %1092 {approx = true} : vector<2x128xf32> -> vector<2x128xf32>
    %1094 = arith.mulf %1077, %1093 : vector<2x128xf32>
    %1095 = arith.subf %1071, %1094 : vector<2x128xf32>
    %cst_272 = arith.constant 0.000000e+00 : f32
    %cst_273 = arith.constant 1.000000e+00 : f32
    %1096 = vector.broadcast %cst_272 : f32 to vector<2x128xf32>
    %1097 = arith.maximumf %1096, %1095 : vector<2x128xf32>
    %1098 = vector.broadcast %cst_273 : f32 to vector<2x128xf32>
    %1099 = arith.minimumf %1098, %1097 : vector<2x128xf32>
    %cst_274 = arith.constant 3.000000e+00 : f32
    %1100 = vector.broadcast %cst_274 : f32 to vector<2x128xf32>
    %1101 = arith.subf %1099, %1100 : vector<2x128xf32>
    %1102 = arith.mulf %1101, %1099 : vector<2x128xf32>
    %1103 = arith.addf %1102, %843 : vector<2x128xf32>
    %1104 = arith.mulf %1103, %1099 : vector<2x128xf32>
    %1105 = arith.subf %1104, %846 : vector<2x128xf32>
    %cst_275 = arith.constant 3.000000e+00 : f32
    %1106 = vector.broadcast %cst_275 : f32 to vector<2x128xf32>
    %1107 = arith.mulf %1106, %1099 : vector<2x128xf32>
    %cst_276 = arith.constant 6.000000e+00 : f32
    %1108 = vector.broadcast %cst_276 : f32 to vector<2x128xf32>
    %1109 = arith.subf %1107, %1108 : vector<2x128xf32>
    %1110 = arith.mulf %1109, %1099 : vector<2x128xf32>
    %1111 = arith.addf %1110, %843 : vector<2x128xf32>
    %1112 = math.absf %1111 : vector<2x128xf32>
    %cst_277 = arith.constant 9.99999996E-13 : f32
    %1113 = vector.broadcast %cst_277 : f32 to vector<2x128xf32>
    %1114 = arith.cmpf ogt, %1112, %1113 : vector<2x128xf32>
    %cst_278 = arith.constant 0.000000e+00 : f32
    %1115 = vector.broadcast %cst_278 : f32 to vector<2x128xf32>
    %1116 = arith.cmpf oge, %1111, %1115 : vector<2x128xf32>
    %cst_279 = arith.constant 9.99999996E-13 : f32
    %cst_280 = arith.constant -9.99999996E-13 : f32
    %1117 = vector.broadcast %cst_279 : f32 to vector<2x128xf32>
    %1118 = vector.broadcast %cst_280 : f32 to vector<2x128xf32>
    %1119 = arith.select %1116, %1117, %1118 : vector<2x128xi1>, vector<2x128xf32>
    %1120 = arith.select %1114, %1111, %1119 : vector<2x128xi1>, vector<2x128xf32>
    %1121 = tpu.reciprocal %1120 {approx = true} : vector<2x128xf32> -> vector<2x128xf32>
    %1122 = arith.mulf %1105, %1121 : vector<2x128xf32>
    %1123 = arith.subf %1099, %1122 : vector<2x128xf32>
    %cst_281 = arith.constant 0.000000e+00 : f32
    %cst_282 = arith.constant 1.000000e+00 : f32
    %1124 = vector.broadcast %cst_281 : f32 to vector<2x128xf32>
    %1125 = arith.maximumf %1124, %1123 : vector<2x128xf32>
    %1126 = vector.broadcast %cst_282 : f32 to vector<2x128xf32>
    %1127 = arith.minimumf %1126, %1125 : vector<2x128xf32>
    %cst_283 = arith.constant 3.000000e+00 : f32
    %1128 = vector.broadcast %cst_283 : f32 to vector<2x128xf32>
    %1129 = arith.subf %1127, %1128 : vector<2x128xf32>
    %1130 = arith.mulf %1129, %1127 : vector<2x128xf32>
    %1131 = arith.addf %1130, %843 : vector<2x128xf32>
    %1132 = arith.mulf %1131, %1127 : vector<2x128xf32>
    %1133 = arith.subf %1132, %846 : vector<2x128xf32>
    %cst_284 = arith.constant 3.000000e+00 : f32
    %1134 = vector.broadcast %cst_284 : f32 to vector<2x128xf32>
    %1135 = arith.mulf %1134, %1127 : vector<2x128xf32>
    %cst_285 = arith.constant 6.000000e+00 : f32
    %1136 = vector.broadcast %cst_285 : f32 to vector<2x128xf32>
    %1137 = arith.subf %1135, %1136 : vector<2x128xf32>
    %1138 = arith.mulf %1137, %1127 : vector<2x128xf32>
    %1139 = arith.addf %1138, %843 : vector<2x128xf32>
    %1140 = math.absf %1139 : vector<2x128xf32>
    %cst_286 = arith.constant 9.99999996E-13 : f32
    %1141 = vector.broadcast %cst_286 : f32 to vector<2x128xf32>
    %1142 = arith.cmpf ogt, %1140, %1141 : vector<2x128xf32>
    %cst_287 = arith.constant 0.000000e+00 : f32
    %1143 = vector.broadcast %cst_287 : f32 to vector<2x128xf32>
    %1144 = arith.cmpf oge, %1139, %1143 : vector<2x128xf32>
    %cst_288 = arith.constant 9.99999996E-13 : f32
    %cst_289 = arith.constant -9.99999996E-13 : f32
    %1145 = vector.broadcast %cst_288 : f32 to vector<2x128xf32>
    %1146 = vector.broadcast %cst_289 : f32 to vector<2x128xf32>
    %1147 = arith.select %1144, %1145, %1146 : vector<2x128xi1>, vector<2x128xf32>
    %1148 = arith.select %1142, %1139, %1147 : vector<2x128xi1>, vector<2x128xf32>
    %1149 = tpu.reciprocal %1148 {approx = true} : vector<2x128xf32> -> vector<2x128xf32>
    %1150 = arith.mulf %1133, %1149 : vector<2x128xf32>
    %1151 = arith.subf %1127, %1150 : vector<2x128xf32>
    %cst_290 = arith.constant 0.000000e+00 : f32
    %cst_291 = arith.constant 1.000000e+00 : f32
    %1152 = vector.broadcast %cst_290 : f32 to vector<2x128xf32>
    %1153 = arith.maximumf %1152, %1151 : vector<2x128xf32>
    %1154 = vector.broadcast %cst_291 : f32 to vector<2x128xf32>
    %1155 = arith.minimumf %1154, %1153 : vector<2x128xf32>
    %cst_292 = arith.constant 3.000000e+00 : f32
    %1156 = vector.broadcast %cst_292 : f32 to vector<2x128xf32>
    %1157 = arith.subf %1155, %1156 : vector<2x128xf32>
    %1158 = arith.mulf %1157, %1155 : vector<2x128xf32>
    %1159 = arith.addf %1158, %843 : vector<2x128xf32>
    %1160 = arith.mulf %1159, %1155 : vector<2x128xf32>
    %1161 = arith.subf %1160, %846 : vector<2x128xf32>
    %cst_293 = arith.constant 3.000000e+00 : f32
    %1162 = vector.broadcast %cst_293 : f32 to vector<2x128xf32>
    %1163 = arith.mulf %1162, %1155 : vector<2x128xf32>
    %cst_294 = arith.constant 6.000000e+00 : f32
    %1164 = vector.broadcast %cst_294 : f32 to vector<2x128xf32>
    %1165 = arith.subf %1163, %1164 : vector<2x128xf32>
    %1166 = arith.mulf %1165, %1155 : vector<2x128xf32>
    %1167 = arith.addf %1166, %843 : vector<2x128xf32>
    %1168 = math.absf %1167 : vector<2x128xf32>
    %cst_295 = arith.constant 9.99999996E-13 : f32
    %1169 = vector.broadcast %cst_295 : f32 to vector<2x128xf32>
    %1170 = arith.cmpf ogt, %1168, %1169 : vector<2x128xf32>
    %cst_296 = arith.constant 0.000000e+00 : f32
    %1171 = vector.broadcast %cst_296 : f32 to vector<2x128xf32>
    %1172 = arith.cmpf oge, %1167, %1171 : vector<2x128xf32>
    %cst_297 = arith.constant 9.99999996E-13 : f32
    %cst_298 = arith.constant -9.99999996E-13 : f32
    %1173 = vector.broadcast %cst_297 : f32 to vector<2x128xf32>
    %1174 = vector.broadcast %cst_298 : f32 to vector<2x128xf32>
    %1175 = arith.select %1172, %1173, %1174 : vector<2x128xi1>, vector<2x128xf32>
    %1176 = arith.select %1170, %1167, %1175 : vector<2x128xi1>, vector<2x128xf32>
    %1177 = tpu.reciprocal %1176 {approx = true} : vector<2x128xf32> -> vector<2x128xf32>
    %1178 = arith.mulf %1161, %1177 : vector<2x128xf32>
    %1179 = arith.subf %1155, %1178 : vector<2x128xf32>
    %cst_299 = arith.constant 0.000000e+00 : f32
    %cst_300 = arith.constant 1.000000e+00 : f32
    %1180 = vector.broadcast %cst_299 : f32 to vector<2x128xf32>
    %1181 = arith.maximumf %1180, %1179 : vector<2x128xf32>
    %1182 = vector.broadcast %cst_300 : f32 to vector<2x128xf32>
    %1183 = arith.minimumf %1182, %1181 : vector<2x128xf32>
    %cst_301 = arith.constant 3.000000e+00 : f32
    %1184 = vector.broadcast %cst_301 : f32 to vector<2x128xf32>
    %1185 = arith.subf %1184, %1183 : vector<2x128xf32>
    %1186 = arith.mulf %1183, %1185 : vector<2x128xf32>
    %1187 = arith.subf %843, %1186 : vector<2x128xf32>
    %1188 = arith.mulf %1187, %839 : vector<2x128xf32>
    %1189 = arith.mulf %1188, %839 : vector<2x128xf32>
    %cst_302 = arith.constant 0.000000e+00 : f32
    %1190 = vector.broadcast %cst_302 : f32 to vector<2x128xf32>
    %1191 = arith.select %837, %1189, %1190 : vector<2x128xi1>, vector<2x128xf32>
    %1192 = vector.extract_strided_slice %1191 {offsets = [0, 0], sizes = [1, 128], strides = [1, 1]} : vector<2x128xf32> to vector<1x128xf32>
    %1193 = vector.shape_cast %1192 : vector<1x128xf32> to vector<128xf32>
    %1194 = vector.extract_strided_slice %1191 {offsets = [1, 0], sizes = [1, 128], strides = [1, 1]} : vector<2x128xf32> to vector<1x128xf32>
    %1195 = vector.shape_cast %1194 : vector<1x128xf32> to vector<128xf32>
    %1196 = arith.subf %1193, %1195 : vector<128xf32>
    %1197 = arith.mulf %1196, %1196 : vector<128xf32>
    %1198 = vector.shape_cast %1197 : vector<128xf32> to vector<1x128xf32>
    %cst_303 = arith.constant dense<0.000000e+00> : vector<1xf32>
    %1199 = vector.multi_reduction <add>, %1198, %cst_303 [1] : vector<1x128xf32> to vector<1xf32>
    %1200 = vector.shape_cast %1199 : vector<1xf32> to vector<1x1xf32>
    %1201 = vector.extract %1200[0, 0] : f32 from vector<1x1xf32>
    %1202 = vector.broadcast %1201 : f32 to vector<1x1xf32>
    %c0_304 = arith.constant 0 : index
    %c0_305 = arith.constant 0 : index
    %c0_306 = arith.constant 0 : index
    %1203 = vector.load %arg3[%c0_304, %c0_305, %c0_306] : memref<1x1x1xf32, #tpu.memory_space<vmem>>, vector<1x1x1xf32>
    %1204 = vector.shape_cast %1203 : vector<1x1x1xf32> to vector<1x1xf32>
    %1205 = vector.shape_cast %1202 : vector<1x1xf32> to vector<1x1x1xf32>
    tpu.vector_store %arg3[%c0_304, %c0_305, %c0_306], %1205 {strides = array<i32>} : memref<1x1x1xf32, #tpu.memory_space<vmem>>, vector<1x1x1xf32>,
    return
  }
  func.func @transform_0(%arg0: i32) -> (i32, i32, i32, i32) {
    %c0_i32 = arith.constant 0 : i32
    %c0_i32_0 = arith.constant 0 : i32
    %c0_i32_1 = arith.constant 0 : i32
    %c0_i32_2 = arith.constant 0 : i32
    return %arg0, %c0_i32, %c0_i32_0, %c0_i32_1 : i32, i32, i32, i32
  }
  func.func @transform_1(%arg0: i32) -> (i32, i32, i32, i32) {
    %c0_i32 = arith.constant 0 : i32
    %c0_i32_0 = arith.constant 0 : i32
    %c0_i32_1 = arith.constant 0 : i32
    %c0_i32_2 = arith.constant 0 : i32
    return %arg0, %c0_i32, %c0_i32_0, %c0_i32_1 : i32, i32, i32, i32
  }
  func.func @transform_2(%arg0: i32) -> (i32, i32, i32) {
    %c0_i32 = arith.constant 0 : i32
    %c0_i32_0 = arith.constant 0 : i32
    %c0_i32_1 = arith.constant 0 : i32
    return %arg0, %c0_i32, %c0_i32_0 : i32, i32, i32
  }
}

</mosaic_0001>

<llo_original>
// kernel: curvature_distance.1
$region0: #{curvature_distance.1}
  #allocation0 [shape = 'u32[]', space=smem, size = 0x4, offset = 0x4, fixed_abs, tag = 'smem constant byte address 0x4 - core index']
  #allocation1 [shape = 'u32[144,128]{1,0:T(1,128)}', space=vmem, size = 0x12000, scoped, tag = 'internal scratch']
  %s0 = inlined_call_operand.vmem [shape: f32[2,2,128,3], index: 0, kind: input, shape index: {}]
  %s1 = inlined_call_operand.vmem [shape: f32[2,2,3,128], index: 1, kind: input, shape index: {}]
  %s2 = inlined_call_operand.vmem [shape: f32[2,1,1], index: 2, kind: output, shape index: {}]
  %s3 = sld [smem:[#allocation0]]
  $region41: #{curvature_distance.1} parent=0
    _
  %s5 = ssub.s32 1, %s3
  %s6 = scalar_select 0, %s5, %s3
  loop: start=0, step=1, limit=4
  $region2: #{curvature_distance.1} parent=0 // loop_pre_header
    _
  $region3: #{curvature_distance.1} parent=0 // loop_header
    %s8 = sphi 0, %s12
    %p9 = scmp.ge.s32.totalorder %s8, 4
    %s18 = sphi 0, %s20
    %s21 = sphi 0, %s18
    %s22 = sphi 0, %s21
    %s38 = sphi 0, %s22
    %s44 = sphi 0, %s46
    %s47 = sphi 0, %s44
    %s48 = sphi 0, %s47
    %s64 = sphi 0, %s48
    %s70 = sphi 0, %s72
    %s73 = sphi 0, %s70
    %s74 = sphi 0, %s73
    %s90 = sphi 0, %s74
  $region4: #{curvature_distance.1} parent=0 // loop_header_branch
    %11 = sbr.rel (%p9) target = $region8
  $region5: #{curvature_distance.1} parent=0 // loop_body
    %s13 = ssub.s32 %s8, 1
    %s14 = ssub.s32 %s8, 2
    %s15 = sadd.s32 %s8, 1
    %s16 = ssub.s32 %s8, %s15
    %p17 = scmp.eq.s32.totalorder %s16, 0
    %s19 = sadd.s32 %s18, 1
    %s20 = scalar_select %p17, %s18, %s19
    %p23 = pneg %p17
    %p24 = scmp.eq.s32.totalorder %s8, 1
    %p25 = por %p23, %p24
    %p26 = scmp.ne.s32.totalorder %s18, %s21
    %p27 = scmp.eq.s32.totalorder %s8, 0
    %p28 = por %p26, %p27
    %p29 = scmp.ne.s32.totalorder %s18, %s21
    %p30 = scmp.eq.s32.totalorder %s13, 1
    %p31 = por %p29, %p30
    %p32 = scmp.ne.s32.totalorder %s21, %s22
    %p33 = scmp.eq.s32.totalorder %s13, 0
    %p34 = por %p32, %p33
    %p35 = scmp.ne.s32.totalorder %s21, %s22
    %p36 = scmp.eq.s32.totalorder %s14, 1
    %p37 = por %p35, %p36
    %p39 = scmp.ne.s32.totalorder %s22, %s38
    %p40 = scmp.eq.s32.totalorder %s14, 0
    %p41 = por %p39, %p40
    %s42 = ssub.s32 %s8, %s15
    %p43 = scmp.eq.s32.totalorder %s42, 0
    %s45 = sadd.s32 %s44, 1
    %s46 = scalar_select %p43, %s44, %s45
    %p49 = pneg %p43
    %p50 = scmp.eq.s32.totalorder %s8, 1
    %p51 = por %p49, %p50
    %p52 = scmp.ne.s32.totalorder %s44, %s47
    %p53 = scmp.eq.s32.totalorder %s8, 0
    %p54 = por %p52, %p53
    %p55 = scmp.ne.s32.totalorder %s44, %s47
    %p56 = scmp.eq.s32.totalorder %s13, 1
    %p57 = por %p55, %p56
    %p58 = scmp.ne.s32.totalorder %s47, %s48
    %p59 = scmp.eq.s32.totalorder %s13, 0
    %p60 = por %p58, %p59
    %p61 = scmp.ne.s32.totalorder %s47, %s48
    %p62 = scmp.eq.s32.totalorder %s14, 1
    %p63 = por %p61, %p62
    %p65 = scmp.ne.s32.totalorder %s48, %s64
    %p66 = scmp.eq.s32.totalorder %s14, 0
    %p67 = por %p65, %p66
    %s68 = ssub.s32 %s8, %s15
    %p69 = scmp.eq.s32.totalorder %s68, 0
    %s71 = sadd.s32 %s70, 1
    %s72 = scalar_select %p69, %s70, %s71
    %p75 = pneg %p69
    %p76 = scmp.eq.s32.totalorder %s8, 1
    %p77 = por %p75, %p76
    %p78 = scmp.ne.s32.totalorder %s70, %s73
    %p79 = scmp.eq.s32.totalorder %s8, 0
    %p80 = por %p78, %p79
    %p81 = scmp.ne.s32.totalorder %s70, %s73
    %p82 = scmp.eq.s32.totalorder %s13, 1
    %p83 = por %p81, %p82
    %p84 = scmp.ne.s32.totalorder %s73, %s74
    %p85 = scmp.eq.s32.totalorder %s13, 0
    %p86 = por %p84, %p85
    %p87 = scmp.ne.s32.totalorder %s73, %s74
    %p88 = scmp.eq.s32.totalorder %s14, 1
    %p89 = por %p87, %p88
    %p91 = scmp.ne.s32.totalorder %s74, %s90
    %p92 = scmp.eq.s32.totalorder %s14, 0
    %p93 = por %p91, %p92
    %p94 = scmp.le.s32.totalorder 1, %s8
    %p95 = scmp.lt.s32.totalorder %s8, 3
    %p96 = pnand %p94, %p95
    %p97 = pneg %p96
    // Predicated region
    $region9: #{curvature_distance.1} parent=5 // pred_check
      _
    $region10: #{curvature_distance.1} parent=5 // pred_check_branch
      %99 = sbr.rel (%p96) target = $region12
    $region11: #{curvature_distance.1} parent=5 // pred_region
      %s100 = ssub.s32 %s8, 1
    $region12: #{curvature_distance.1} parent=5 // pred_fallthru
      _
    %p101 = scmp.lt.s32.totalorder %s8, 2
    // Predicated region
    $region13: #{curvature_distance.1} parent=5 // pred_check
      %p102 = pneg %p101
    $region14: #{curvature_distance.1} parent=5 // pred_check_branch
      %104 = sbr.rel (%p102) target = $region16
    $region15: #{curvature_distance.1} parent=5 // pred_region
      // Predicated region
      $region17: #{curvature_distance.1} parent=15 // pred_check
        %p105 = pneg %p28
      $region18: #{curvature_distance.1} parent=15 // pred_check_branch
        %107 = sbr.rel (%p105) target = $region20
      $region19: #{curvature_distance.1} parent=15 // pred_region
        %p108 = scmp.lt.s32.totalorder %s8, 1
        %s109 = scalar_select %p108, %s8, 1
        %s110 = smul.addr %s109, 32
        %s111 = smul.addr %s110, 8
        %s112 = scalar_lea.vmem %s0, %s111
      $region20: #{curvature_distance.1} parent=15 // pred_fallthru
        _
      // Predicated region
      $region21: #{curvature_distance.1} parent=15 // pred_check
        %p113 = pneg %p54
      $region22: #{curvature_distance.1} parent=15 // pred_check_branch
        %115 = sbr.rel (%p113) target = $region24
      $region23: #{curvature_distance.1} parent=15 // pred_region
        %p116 = scmp.lt.s32.totalorder %s8, 1
        %s117 = scalar_select %p116, %s8, 1
        %s118 = smul.addr %s117, 2
        %s119 = smul.addr %s118, 4
        %s120 = scalar_lea.vmem %s1, %s119
      $region24: #{curvature_distance.1} parent=15 // pred_fallthru
        _
    $region16: #{curvature_distance.1} parent=5 // pred_fallthru
      _
    %p121 = scmp.le.s32.totalorder 1, %s8
    %p122 = scmp.lt.s32.totalorder %s8, 3
    %p123 = pnand %p121, %p122
    %p124 = pneg %p123
    // Predicated region
    $region25: #{curvature_distance.1} parent=5 // pred_check
      _
    $region26: #{curvature_distance.1} parent=5 // pred_check_branch
      %126 = sbr.rel (%p123) target = $region28
    $region27: #{curvature_distance.1} parent=5 // pred_region
      %s127 = ssub.s32 %s8, 1
      %p128 = scmp.lt.s32.totalorder %s13, 1
      %s129 = scalar_select %p128, %s13, 1
      %s130 = smul.addr %s129, 32
      %s131 = smul.addr %s130, 8
      %s132 = scalar_lea.vmem %s0, %s131
      %p133 = pneg %p34
      %p134 = pneg %p31
      %p135 = scmp.lt.s32.totalorder %s13, 1
      %s136 = scalar_select %p135, %s13, 1
      %s137 = smul.addr %s136, 2
      %s138 = smul.addr %s137, 4
      %s139 = scalar_lea.vmem %s1, %s138
      %p140 = pneg %p60
      %p141 = pneg %p57
      %p142 = pneg %p86
      %p143 = pneg %p83
      %p144 = scmp.lt.s32.totalorder %s13, 1
      %s145 = scalar_select %p144, %s13, 1
      %s146 = scalar_lea.vmem %s2, %s145
      %p147 = scmp.lt.s32.totalorder %s13, 1
      %s148 = scalar_select %p147, %s13, 1
      %s149 = smul.addr %s148, 32
      %s150 = smul.addr %s149, 8
      %s151 = scalar_lea.vmem %s0, %s150
      %p152 = scmp.lt.s32.totalorder %s13, 1
      %s153 = scalar_select %p152, %s13, 1
      %s154 = smul.addr %s153, 2
      %s155 = smul.addr %s154, 4
      %s156 = scalar_lea.vmem %s1, %s155
      %p157 = scmp.lt.s32.totalorder %s13, 1
      %s158 = scalar_select %p157, %s13, 1
      %s159 = scalar_lea.vmem %s2, %s158
      %v160 = vlaneseq
      %v161 = vshrl.u32 %v160, 7
      %v162 = vadd.s32 %v161, 8
      %v163 = vadd.s32 %v161, 16
      %v164 = vadd.s32 %v161, 24
      %v165 = vadd.s32 %v161, 32
      %v166 = vadd.s32 %v161, 40
      %v167 = vadd.s32 %v161, 48
      %v168 = vadd.s32 %v161, 56
      %v169 = vadd.s32 %v161, 64
      %v170 = vadd.s32 %v161, 72
      %v171 = vadd.s32 %v161, 80
      %v172 = vadd.s32 %v161, 88
      %v173 = vadd.s32 %v161, 96
      %v174 = vadd.s32 %v161, 104
      %v175 = vadd.s32 %v161, 112
      %v176 = vadd.s32 %v161, 120
      %v177 = vcvt.s32.f32 %v161
      %v178 = vcvt.s32.f32 %v162
      %v179 = vcvt.s32.f32 %v163
      %v180 = vcvt.s32.f32 %v164
      %v181 = vcvt.s32.f32 %v165
      %v182 = vcvt.s32.f32 %v166
      %v183 = vcvt.s32.f32 %v167
      %v184 = vcvt.s32.f32 %v168
      %v185 = vcvt.s32.f32 %v169
      %v186 = vcvt.s32.f32 %v170
      %v187 = vcvt.s32.f32 %v171
      %v188 = vcvt.s32.f32 %v172
      %v189 = vcvt.s32.f32 %v173
      %v190 = vcvt.s32.f32 %v174
      %v191 = vcvt.s32.f32 %v175
      %v192 = vcvt.s32.f32 %v176
      %v193 = vld [vmem:[%s151] sm:$0xff]
      %v194 = vld [vmem:[%s151 + $0x8] sm:$0xff]
      %v195 = vld [vmem:[%s151 + $0x10] sm:$0xff]
      %v196 = vld [vmem:[%s151 + $0x18] sm:$0xff]
      %v197 = vld [vmem:[%s151 + $0x20] sm:$0xff]
      %v198 = vld [vmem:[%s151 + $0x28] sm:$0xff]
      %v199 = vld [vmem:[%s151 + $0x30] sm:$0xff]
      %v200 = vld [vmem:[%s151 + $0x38] sm:$0xff]
      %v201 = vld [vmem:[%s151 + $0x40] sm:$0xff]
      %v202 = vld [vmem:[%s151 + $0x48] sm:$0xff]
      %v203 = vld [vmem:[%s151 + $0x50] sm:$0xff]
      %v204 = vld [vmem:[%s151 + $0x58] sm:$0xff]
      %v205 = vld [vmem:[%s151 + $0x60] sm:$0xff]
      %v206 = vld [vmem:[%s151 + $0x68] sm:$0xff]
      %v207 = vld [vmem:[%s151 + $0x70] sm:$0xff]
      %v208 = vld [vmem:[%s151 + $0x78] sm:$0xff]
      %v209 = vld [vmem:[%s156] sm:$0x7]
      %211 = vset.pattern.permute.xlu0 0
      %212 = vperm.xlu0 %211, %v193
      %v213 = vpop.permute.xlu0 %212
      %216 = vset.pattern.permute.xlu0 0
      %217 = vperm.xlu0 %216, %v194
      %v218 = vpop.permute.xlu0 %217
      %221 = vset.pattern.permute.xlu0 0
      %222 = vperm.xlu0 %221, %v195
      %v223 = vpop.permute.xlu0 %222
      %226 = vset.pattern.permute.xlu0 0
      %227 = vperm.xlu0 %226, %v196
      %v228 = vpop.permute.xlu0 %227
      %231 = vset.pattern.permute.xlu0 0
      %232 = vperm.xlu0 %231, %v197
      %v233 = vpop.permute.xlu0 %232
      %236 = vset.pattern.permute.xlu0 0
      %237 = vperm.xlu0 %236, %v198
      %v238 = vpop.permute.xlu0 %237
      %241 = vset.pattern.permute.xlu0 0
      %242 = vperm.xlu0 %241, %v199
      %v243 = vpop.permute.xlu0 %242
      %246 = vset.pattern.permute.xlu0 0
      %247 = vperm.xlu0 %246, %v200
      %v248 = vpop.permute.xlu0 %247
      %251 = vset.pattern.permute.xlu0 0
      %252 = vperm.xlu0 %251, %v201
      %v253 = vpop.permute.xlu0 %252
      %256 = vset.pattern.permute.xlu0 0
      %257 = vperm.xlu0 %256, %v202
      %v258 = vpop.permute.xlu0 %257
      %261 = vset.pattern.permute.xlu0 0
      %262 = vperm.xlu0 %261, %v203
      %v263 = vpop.permute.xlu0 %262
      %266 = vset.pattern.permute.xlu0 0
      %267 = vperm.xlu0 %266, %v204
      %v268 = vpop.permute.xlu0 %267
      %271 = vset.pattern.permute.xlu0 0
      %272 = vperm.xlu0 %271, %v205
      %v273 = vpop.permute.xlu0 %272
      %276 = vset.pattern.permute.xlu0 0
      %277 = vperm.xlu0 %276, %v206
      %v278 = vpop.permute.xlu0 %277
      %281 = vset.pattern.permute.xlu0 0
      %282 = vperm.xlu0 %281, %v207
      %v283 = vpop.permute.xlu0 %282
      %286 = vset.pattern.permute.xlu0 0
      %287 = vperm.xlu0 %286, %v208
      %v288 = vpop.permute.xlu0 %287
      %v290 = vlaneseq
      %v291 = vshrl.u32 %v290, 7
      %v292 = vsub.s32 0, %v291
      %v293 = vrot.slane %v209, %v292
      %v294 = vsub.f32 %v213, %v293
      %v295 = vsub.f32 %v218, %v293
      %v296 = vsub.f32 %v223, %v293
      %v297 = vsub.f32 %v228, %v293
      %v298 = vsub.f32 %v233, %v293
      %v299 = vsub.f32 %v238, %v293
      %v300 = vsub.f32 %v243, %v293
      %v301 = vsub.f32 %v248, %v293
      %v302 = vsub.f32 %v253, %v293
      %v303 = vsub.f32 %v258, %v293
      %v304 = vsub.f32 %v263, %v293
      %v305 = vsub.f32 %v268, %v293
      %v306 = vsub.f32 %v273, %v293
      %v307 = vsub.f32 %v278, %v293
      %v308 = vsub.f32 %v283, %v293
      %v309 = vsub.f32 %v288, %v293
      %v310 = vmul.f32 %v294, %v294
      %v311 = vmul.f32 %v295, %v295
      %v312 = vmul.f32 %v296, %v296
      %v313 = vmul.f32 %v297, %v297
      %v314 = vmul.f32 %v298, %v298
      %v315 = vmul.f32 %v299, %v299
      %v316 = vmul.f32 %v300, %v300
      %v317 = vmul.f32 %v301, %v301
      %v318 = vmul.f32 %v302, %v302
      %v319 = vmul.f32 %v303, %v303
      %v320 = vmul.f32 %v304, %v304
      %v321 = vmul.f32 %v305, %v305
      %v322 = vmul.f32 %v306, %v306
      %v323 = vmul.f32 %v307, %v307
      %v324 = vmul.f32 %v308, %v308
      %v325 = vmul.f32 %v309, %v309
      %v326 = vadd.f32 %v310, 0.0
      %v327 = vadd.f32 %v311, 0.0
      %v328 = vadd.f32 %v312, 0.0
      %v329 = vadd.f32 %v313, 0.0
      %v330 = vadd.f32 %v314, 0.0
      %v331 = vadd.f32 %v315, 0.0
      %v332 = vadd.f32 %v316, 0.0
      %v333 = vadd.f32 %v317, 0.0
      %v334 = vadd.f32 %v318, 0.0
      %v335 = vadd.f32 %v319, 0.0
      %v336 = vadd.f32 %v320, 0.0
      %v337 = vadd.f32 %v321, 0.0
      %v338 = vadd.f32 %v322, 0.0
      %v339 = vadd.f32 %v323, 0.0
      %v340 = vadd.f32 %v324, 0.0
      %v341 = vadd.f32 %v325, 0.0
      %342 = vset.pattern.permute.xlu0 1
      %343 = vperm.xlu0 %342, %v193
      %v344 = vpop.permute.xlu0 %343
      %346 = vset.pattern.permute.xlu0 1
      %347 = vperm.xlu0 %346, %v194
      %v348 = vpop.permute.xlu0 %347
      %350 = vset.pattern.permute.xlu0 1
      %351 = vperm.xlu0 %350, %v195
      %v352 = vpop.permute.xlu0 %351
      %354 = vset.pattern.permute.xlu0 1
      %355 = vperm.xlu0 %354, %v196
      %v356 = vpop.permute.xlu0 %355
      %358 = vset.pattern.permute.xlu0 1
      %359 = vperm.xlu0 %358, %v197
      %v360 = vpop.permute.xlu0 %359
      %362 = vset.pattern.permute.xlu0 1
      %363 = vperm.xlu0 %362, %v198
      %v364 = vpop.permute.xlu0 %363
      %366 = vset.pattern.permute.xlu0 1
      %367 = vperm.xlu0 %366, %v199
      %v368 = vpop.permute.xlu0 %367
      %370 = vset.pattern.permute.xlu0 1
      %371 = vperm.xlu0 %370, %v200
      %v372 = vpop.permute.xlu0 %371
      %374 = vset.pattern.permute.xlu0 1
      %375 = vperm.xlu0 %374, %v201
      %v376 = vpop.permute.xlu0 %375
      %378 = vset.pattern.permute.xlu0 1
      %379 = vperm.xlu0 %378, %v202
      %v380 = vpop.permute.xlu0 %379
      %382 = vset.pattern.permute.xlu0 1
      %383 = vperm.xlu0 %382, %v203
      %v384 = vpop.permute.xlu0 %383
      %386 = vset.pattern.permute.xlu0 1
      %387 = vperm.xlu0 %386, %v204
      %v388 = vpop.permute.xlu0 %387
      %390 = vset.pattern.permute.xlu0 1
      %391 = vperm.xlu0 %390, %v205
      %v392 = vpop.permute.xlu0 %391
      %394 = vset.pattern.permute.xlu0 1
      %395 = vperm.xlu0 %394, %v206
      %v396 = vpop.permute.xlu0 %395
      %398 = vset.pattern.permute.xlu0 1
      %399 = vperm.xlu0 %398, %v207
      %v400 = vpop.permute.xlu0 %399
      %402 = vset.pattern.permute.xlu0 1
      %403 = vperm.xlu0 %402, %v208
      %v404 = vpop.permute.xlu0 %403
      %v406 = vlaneseq
      %v407 = vshrl.u32 %v406, 7
      %v408 = vsub.s32 1, %v407
      %v409 = vrot.slane %v209, %v408
      %v410 = vsub.f32 %v344, %v409
      %v411 = vsub.f32 %v348, %v409
      %v412 = vsub.f32 %v352, %v409
      %v413 = vsub.f32 %v356, %v409
      %v414 = vsub.f32 %v360, %v409
      %v415 = vsub.f32 %v364, %v409
      %v416 = vsub.f32 %v368, %v409
      %v417 = vsub.f32 %v372, %v409
      %v418 = vsub.f32 %v376, %v409
      %v419 = vsub.f32 %v380, %v409
      %v420 = vsub.f32 %v384, %v409
      %v421 = vsub.f32 %v388, %v409
      %v422 = vsub.f32 %v392, %v409
      %v423 = vsub.f32 %v396, %v409
      %v424 = vsub.f32 %v400, %v409
      %v425 = vsub.f32 %v404, %v409
      %v426 = vmul.f32 %v410, %v410
      %v427 = vmul.f32 %v411, %v411
      %v428 = vmul.f32 %v412, %v412
      %v429 = vmul.f32 %v413, %v413
      %v430 = vmul.f32 %v414, %v414
      %v431 = vmul.f32 %v415, %v415
      %v432 = vmul.f32 %v416, %v416
      %v433 = vmul.f32 %v417, %v417
      %v434 = vmul.f32 %v418, %v418
      %v435 = vmul.f32 %v419, %v419
      %v436 = vmul.f32 %v420, %v420
      %v437 = vmul.f32 %v421, %v421
      %v438 = vmul.f32 %v422, %v422
      %v439 = vmul.f32 %v423, %v423
      %v440 = vmul.f32 %v424, %v424
      %v441 = vmul.f32 %v425, %v425
      %v442 = vadd.f32 %v326, %v426
      %v443 = vadd.f32 %v327, %v427
      %v444 = vadd.f32 %v328, %v428
      %v445 = vadd.f32 %v329, %v429
      %v446 = vadd.f32 %v330, %v430
      %v447 = vadd.f32 %v331, %v431
      %v448 = vadd.f32 %v332, %v432
      %v449 = vadd.f32 %v333, %v433
      %v450 = vadd.f32 %v334, %v434
      %v451 = vadd.f32 %v335, %v435
      %v452 = vadd.f32 %v336, %v436
      %v453 = vadd.f32 %v337, %v437
      %v454 = vadd.f32 %v338, %v438
      %v455 = vadd.f32 %v339, %v439
      %v456 = vadd.f32 %v340, %v440
      %v457 = vadd.f32 %v341, %v441
      %458 = vset.pattern.permute.xlu0 2
      %459 = vperm.xlu0 %458, %v193
      %v460 = vpop.permute.xlu0 %459
      %462 = vset.pattern.permute.xlu0 2
      %463 = vperm.xlu0 %462, %v194
      %v464 = vpop.permute.xlu0 %463
      %466 = vset.pattern.permute.xlu0 2
      %467 = vperm.xlu0 %466, %v195
      %v468 = vpop.permute.xlu0 %467
      %470 = vset.pattern.permute.xlu0 2
      %471 = vperm.xlu0 %470, %v196
      %v472 = vpop.permute.xlu0 %471
      %474 = vset.pattern.permute.xlu0 2
      %475 = vperm.xlu0 %474, %v197
      %v476 = vpop.permute.xlu0 %475
      %478 = vset.pattern.permute.xlu0 2
      %479 = vperm.xlu0 %478, %v198
      %v480 = vpop.permute.xlu0 %479
      %482 = vset.pattern.permute.xlu0 2
      %483 = vperm.xlu0 %482, %v199
      %v484 = vpop.permute.xlu0 %483
      %486 = vset.pattern.permute.xlu0 2
      %487 = vperm.xlu0 %486, %v200
      %v488 = vpop.permute.xlu0 %487
      %490 = vset.pattern.permute.xlu0 2
      %491 = vperm.xlu0 %490, %v201
      %v492 = vpop.permute.xlu0 %491
      %494 = vset.pattern.permute.xlu0 2
      %495 = vperm.xlu0 %494, %v202
      %v496 = vpop.permute.xlu0 %495
      %498 = vset.pattern.permute.xlu0 2
      %499 = vperm.xlu0 %498, %v203
      %v500 = vpop.permute.xlu0 %499
      %502 = vset.pattern.permute.xlu0 2
      %503 = vperm.xlu0 %502, %v204
      %v504 = vpop.permute.xlu0 %503
      %506 = vset.pattern.permute.xlu0 2
      %507 = vperm.xlu0 %506, %v205
      %v508 = vpop.permute.xlu0 %507
      %510 = vset.pattern.permute.xlu0 2
      %511 = vperm.xlu0 %510, %v206
      %v512 = vpop.permute.xlu0 %511
      %514 = vset.pattern.permute.xlu0 2
      %515 = vperm.xlu0 %514, %v207
      %v516 = vpop.permute.xlu0 %515
      %518 = vset.pattern.permute.xlu0 2
      %519 = vperm.xlu0 %518, %v208
      %v520 = vpop.permute.xlu0 %519
      %v522 = vlaneseq
      %v523 = vshrl.u32 %v522, 7
      %v524 = vsub.s32 2, %v523
      %v525 = vrot.slane %v209, %v524
      %v526 = vsub.f32 %v460, %v525
      %v527 = vsub.f32 %v464, %v525
      %v528 = vsub.f32 %v468, %v525
      %v529 = vsub.f32 %v472, %v525
      %v530 = vsub.f32 %v476, %v525
      %v531 = vsub.f32 %v480, %v525
      %v532 = vsub.f32 %v484, %v525
      %v533 = vsub.f32 %v488, %v525
      %v534 = vsub.f32 %v492, %v525
      %v535 = vsub.f32 %v496, %v525
      %v536 = vsub.f32 %v500, %v525
      %v537 = vsub.f32 %v504, %v525
      %v538 = vsub.f32 %v508, %v525
      %v539 = vsub.f32 %v512, %v525
      %v540 = vsub.f32 %v516, %v525
      %v541 = vsub.f32 %v520, %v525
      %v542 = vmul.f32 %v526, %v526
      %v543 = vmul.f32 %v527, %v527
      %v544 = vmul.f32 %v528, %v528
      %v545 = vmul.f32 %v529, %v529
      %v546 = vmul.f32 %v530, %v530
      %v547 = vmul.f32 %v531, %v531
      %v548 = vmul.f32 %v532, %v532
      %v549 = vmul.f32 %v533, %v533
      %v550 = vmul.f32 %v534, %v534
      %v551 = vmul.f32 %v535, %v535
      %v552 = vmul.f32 %v536, %v536
      %v553 = vmul.f32 %v537, %v537
      %v554 = vmul.f32 %v538, %v538
      %v555 = vmul.f32 %v539, %v539
      %v556 = vmul.f32 %v540, %v540
      %v557 = vmul.f32 %v541, %v541
      %v558 = vadd.f32 %v442, %v542
      %v559 = vadd.f32 %v443, %v543
      %v560 = vadd.f32 %v444, %v544
      %v561 = vadd.f32 %v445, %v545
      %v562 = vadd.f32 %v446, %v546
      %v563 = vadd.f32 %v447, %v547
      %v564 = vadd.f32 %v448, %v548
      %v565 = vadd.f32 %v449, %v549
      %v566 = vadd.f32 %v450, %v550
      %v567 = vadd.f32 %v451, %v551
      %v568 = vadd.f32 %v452, %v552
      %v569 = vadd.f32 %v453, %v553
      %v570 = vadd.f32 %v454, %v554
      %v571 = vadd.f32 %v455, %v555
      %v572 = vadd.f32 %v456, %v556
      %v573 = vadd.f32 %v457, %v557
      %v574 = vmin.f32 %v558, %v562
      %v575 = vmin.f32 %v559, %v563
      %v576 = vmin.f32 %v560, %v564
      %v577 = vmin.f32 %v561, %v565
      %v578 = vmin.f32 %v574, %v566
      %v579 = vmin.f32 %v575, %v567
      %v580 = vmin.f32 %v576, %v568
      %v581 = vmin.f32 %v577, %v569
      %v582 = vmin.f32 %v578, %v570
      %v583 = vmin.f32 %v579, %v571
      %v584 = vmin.f32 %v580, %v572
      %v585 = vmin.f32 %v581, %v573
      %v586 = vmin.f32 %v582, %v583
      %v587 = vmin.f32 %v584, %v585
      %v588 = vmin.f32 %v586, %v587
      %v589 = vrot.slane %v588, 4
      %v590 = vmin.f32 %v588, %v589
      %v591 = vrot.slane %v590, 2
      %v592 = vmin.f32 %v590, %v591
      %v593 = vrot.slane %v592, 1
      %v594 = vmin.f32 %v592, %v593
      %vm595 = vcmp.eq.f32.partialorder %v558, %v594
      %vm596 = vcmp.eq.f32.partialorder %v559, %v594
      %vm597 = vcmp.eq.f32.partialorder %v560, %v594
      %vm598 = vcmp.eq.f32.partialorder %v561, %v594
      %vm599 = vcmp.eq.f32.partialorder %v562, %v594
      %vm600 = vcmp.eq.f32.partialorder %v563, %v594
      %vm601 = vcmp.eq.f32.partialorder %v564, %v594
      %vm602 = vcmp.eq.f32.partialorder %v565, %v594
      %vm603 = vcmp.eq.f32.partialorder %v566, %v594
      %vm604 = vcmp.eq.f32.partialorder %v567, %v594
      %vm605 = vcmp.eq.f32.partialorder %v568, %v594
      %vm606 = vcmp.eq.f32.partialorder %v569, %v594
      %vm607 = vcmp.eq.f32.partialorder %v570, %v594
      %vm608 = vcmp.eq.f32.partialorder %v571, %v594
      %vm609 = vcmp.eq.f32.partialorder %v572, %v594
      %vm610 = vcmp.eq.f32.partialorder %v573, %v594
      %v611 = vsel %vm595, %v177, 128.0
      %v612 = vsel %vm596, %v178, 128.0
      %v613 = vsel %vm597, %v179, 128.0
      %v614 = vsel %vm598, %v180, 128.0
      %v615 = vsel %vm599, %v181, 128.0
      %v616 = vsel %vm600, %v182, 128.0
      %v617 = vsel %vm601, %v183, 128.0
      %v618 = vsel %vm602, %v184, 128.0
      %v619 = vsel %vm603, %v185, 128.0
      %v620 = vsel %vm604, %v186, 128.0
      %v621 = vsel %vm605, %v187, 128.0
      %v622 = vsel %vm606, %v188, 128.0
      %v623 = vsel %vm607, %v189, 128.0
      %v624 = vsel %vm608, %v190, 128.0
      %v625 = vsel %vm609, %v191, 128.0
      %v626 = vsel %vm610, %v192, 128.0
      %v627 = vmin.f32 %v611, %v615
      %v628 = vmin.f32 %v612, %v616
      %v629 = vmin.f32 %v613, %v617
      %v630 = vmin.f32 %v614, %v618
      %v631 = vmin.f32 %v627, %v619
      %v632 = vmin.f32 %v628, %v620
      %v633 = vmin.f32 %v629, %v621
      %v634 = vmin.f32 %v630, %v622
      %v635 = vmin.f32 %v631, %v623
      %v636 = vmin.f32 %v632, %v624
      %v637 = vmin.f32 %v633, %v625
      %v638 = vmin.f32 %v634, %v626
      %v639 = vmin.f32 %v635, %v636
      %v640 = vmin.f32 %v637, %v638
      %v641 = vmin.f32 %v639, %v640
      %v642 = vrot.slane %v641, 4
      %v643 = vmin.f32 %v641, %v642
      %v644 = vrot.slane %v643, 2
      %v645 = vmin.f32 %v643, %v644
      %v646 = vrot.slane %v645, 1
      %v647 = vmin.f32 %v645, %v646
      %vm648 = vcmp.eq.f32.partialorder %v177, %v647
      %vm649 = vcmp.eq.f32.partialorder %v178, %v647
      %vm650 = vcmp.eq.f32.partialorder %v179, %v647
      %vm651 = vcmp.eq.f32.partialorder %v180, %v647
      %vm652 = vcmp.eq.f32.partialorder %v181, %v647
      %vm653 = vcmp.eq.f32.partialorder %v182, %v647
      %vm654 = vcmp.eq.f32.partialorder %v183, %v647
      %vm655 = vcmp.eq.f32.partialorder %v184, %v647
      %vm656 = vcmp.eq.f32.partialorder %v185, %v647
      %vm657 = vcmp.eq.f32.partialorder %v186, %v647
      %vm658 = vcmp.eq.f32.partialorder %v187, %v647
      %vm659 = vcmp.eq.f32.partialorder %v188, %v647
      %vm660 = vcmp.eq.f32.partialorder %v189, %v647
      %vm661 = vcmp.eq.f32.partialorder %v190, %v647
      %vm662 = vcmp.eq.f32.partialorder %v191, %v647
      %vm663 = vcmp.eq.f32.partialorder %v192, %v647
      %v664 = vsel %vm648, 1, 0
      %v665 = vsel %vm649, 1, 0
      %v666 = vsel %vm650, 1, 0
      %v667 = vsel %vm651, 1, 0
      %v668 = vsel %vm652, 1, 0
      %v669 = vsel %vm653, 1, 0
      %v670 = vsel %vm654, 1, 0
      %v671 = vsel %vm655, 1, 0
      %v672 = vsel %vm656, 1, 0
      %v673 = vsel %vm657, 1, 0
      %v674 = vsel %vm658, 1, 0
      %v675 = vsel %vm659, 1, 0
      %v676 = vsel %vm660, 1, 0
      %v677 = vsel %vm661, 1, 0
      %v678 = vsel %vm662, 1, 0
      %v679 = vsel %vm663, 1, 0
      %v680 = vcvt.s32.f32 %v664
      %v681 = vcvt.s32.f32 %v665
      %v682 = vcvt.s32.f32 %v666
      %v683 = vcvt.s32.f32 %v667
      %v684 = vcvt.s32.f32 %v668
      %v685 = vcvt.s32.f32 %v669
      %v686 = vcvt.s32.f32 %v670
      %v687 = vcvt.s32.f32 %v671
      %v688 = vcvt.s32.f32 %v672
      %v689 = vcvt.s32.f32 %v673
      %v690 = vcvt.s32.f32 %v674
      %v691 = vcvt.s32.f32 %v675
      %v692 = vcvt.s32.f32 %v676
      %v693 = vcvt.s32.f32 %v677
      %v694 = vcvt.s32.f32 %v678
      %v695 = vcvt.s32.f32 %v679
      %v696 = vadd.f32 %v680, 0.0
      %v697 = vadd.f32 %v681, 0.0
      %v698 = vadd.f32 %v682, 0.0
      %v699 = vadd.f32 %v683, 0.0
      %v700 = vadd.f32 %v684, 0.0
      %v701 = vadd.f32 %v685, 0.0
      %v702 = vadd.f32 %v686, 0.0
      %v703 = vadd.f32 %v687, 0.0
      %v704 = vadd.f32 %v688, 0.0
      %v705 = vadd.f32 %v689, 0.0
      %v706 = vadd.f32 %v690, 0.0
      %v707 = vadd.f32 %v691, 0.0
      %v708 = vadd.f32 %v692, 0.0
      %v709 = vadd.f32 %v693, 0.0
      %v710 = vadd.f32 %v694, 0.0
      %v711 = vadd.f32 %v695, 0.0
      %v712 = vsel %vm648, 1e+30, %v558
      %v713 = vsel %vm649, 1e+30, %v559
      %v714 = vsel %vm650, 1e+30, %v560
      %v715 = vsel %vm651, 1e+30, %v561
      %v716 = vsel %vm652, 1e+30, %v562
      %v717 = vsel %vm653, 1e+30, %v563
      %v718 = vsel %vm654, 1e+30, %v564
      %v719 = vsel %vm655, 1e+30, %v565
      %v720 = vsel %vm656, 1e+30, %v566
      %v721 = vsel %vm657, 1e+30, %v567
      %v722 = vsel %vm658, 1e+30, %v568
      %v723 = vsel %vm659, 1e+30, %v569
      %v724 = vsel %vm660, 1e+30, %v570
      %v725 = vsel %vm661, 1e+30, %v571
      %v726 = vsel %vm662, 1e+30, %v572
      %v727 = vsel %vm663, 1e+30, %v573
      %v728 = vmin.f32 %v712, %v716
      %v729 = vmin.f32 %v713, %v717
      %v730 = vmin.f32 %v714, %v718
      %v731 = vmin.f32 %v715, %v719
      %v732 = vmin.f32 %v728, %v720
      %v733 = vmin.f32 %v729, %v721
      %v734 = vmin.f32 %v730, %v722
      %v735 = vmin.f32 %v731, %v723
      %v736 = vmin.f32 %v732, %v724
      %v737 = vmin.f32 %v733, %v725
      %v738 = vmin.f32 %v734, %v726
      %v739 = vmin.f32 %v735, %v727
      %v740 = vmin.f32 %v736, %v737
      %v741 = vmin.f32 %v738, %v739
      %v742 = vmin.f32 %v740, %v741
      %v743 = vrot.slane %v742, 4
      %v744 = vmin.f32 %v742, %v743
      %v745 = vrot.slane %v744, 2
      %v746 = vmin.f32 %v744, %v745
      %v747 = vrot.slane %v746, 1
      %v748 = vmin.f32 %v746, %v747
      %vm749 = vcmp.eq.f32.partialorder %v712, %v748
      %vm750 = vcmp.eq.f32.partialorder %v713, %v748
      %vm751 = vcmp.eq.f32.partialorder %v714, %v748
      %vm752 = vcmp.eq.f32.partialorder %v715, %v748
      %vm753 = vcmp.eq.f32.partialorder %v716, %v748
      %vm754 = vcmp.eq.f32.partialorder %v717, %v748
      %vm755 = vcmp.eq.f32.partialorder %v718, %v748
      %vm756 = vcmp.eq.f32.partialorder %v719, %v748
      %vm757 = vcmp.eq.f32.partialorder %v720, %v748
      %vm758 = vcmp.eq.f32.partialorder %v721, %v748
      %vm759 = vcmp.eq.f32.partialorder %v722, %v748
      %vm760 = vcmp.eq.f32.partialorder %v723, %v748
      %vm761 = vcmp.eq.f32.partialorder %v724, %v748
      %vm762 = vcmp.eq.f32.partialorder %v725, %v748
      %vm763 = vcmp.eq.f32.partialorder %v726, %v748
      %vm764 = vcmp.eq.f32.partialorder %v727, %v748
      %v765 = vsel %vm749, %v177, 128.0
      %v766 = vsel %vm750, %v178, 128.0
      %v767 = vsel %vm751, %v179, 128.0
      %v768 = vsel %vm752, %v180, 128.0
      %v769 = vsel %vm753, %v181, 128.0
      %v770 = vsel %vm754, %v182, 128.0
      %v771 = vsel %vm755, %v183, 128.0
      %v772 = vsel %vm756, %v184, 128.0
      %v773 = vsel %vm757, %v185, 128.0
      %v774 = vsel %vm758, %v186, 128.0
      %v775 = vsel %vm759, %v187, 128.0
      %v776 = vsel %vm760, %v188, 128.0
      %v777 = vsel %vm761, %v189, 128.0
      %v778 = vsel %vm762, %v190, 128.0
      %v779 = vsel %vm763, %v191, 128.0
      %v780 = vsel %vm764, %v192, 128.0
      %v781 = vmin.f32 %v765, %v769
      %v782 = vmin.f32 %v766, %v770
      %v783 = vmin.f32 %v767, %v771
      %v784 = vmin.f32 %v768, %v772
      %v785 = vmin.f32 %v781, %v773
      %v786 = vmin.f32 %v782, %v774
      %v787 = vmin.f32 %v783, %v775
      %v788 = vmin.f32 %v784, %v776
      %v789 = vmin.f32 %v785, %v777
      %v790 = vmin.f32 %v786, %v778
      %v791 = vmin.f32 %v787, %v779
      %v792 = vmin.f32 %v788, %v780
      %v793 = vmin.f32 %v789, %v790
      %v794 = vmin.f32 %v791, %v792
      %v795 = vmin.f32 %v793, %v794
      %v796 = vrot.slane %v795, 4
      %v797 = vmin.f32 %v795, %v796
      %v798 = vrot.slane %v797, 2
      %v799 = vmin.f32 %v797, %v798
      %v800 = vrot.slane %v799, 1
      %v801 = vmin.f32 %v799, %v800
      %vm802 = vcmp.eq.f32.partialorder %v177, %v801
      %vm803 = vcmp.eq.f32.partialorder %v178, %v801
      %vm804 = vcmp.eq.f32.partialorder %v179, %v801
      %vm805 = vcmp.eq.f32.partialorder %v180, %v801
      %vm806 = vcmp.eq.f32.partialorder %v181, %v801
      %vm807 = vcmp.eq.f32.partialorder %v182, %v801
      %vm808 = vcmp.eq.f32.partialorder %v183, %v801
      %vm809 = vcmp.eq.f32.partialorder %v184, %v801
      %vm810 = vcmp.eq.f32.partialorder %v185, %v801
      %vm811 = vcmp.eq.f32.partialorder %v186, %v801
      %vm812 = vcmp.eq.f32.partialorder %v187, %v801
      %vm813 = vcmp.eq.f32.partialorder %v188, %v801
      %vm814 = vcmp.eq.f32.partialorder %v189, %v801
      %vm815 = vcmp.eq.f32.partialorder %v190, %v801
      %vm816 = vcmp.eq.f32.partialorder %v191, %v801
      %vm817 = vcmp.eq.f32.partialorder %v192, %v801
      %v818 = vsel %vm802, 1, 0
      %v819 = vsel %vm803, 1, 0
      %v820 = vsel %vm804, 1, 0
      %v821 = vsel %vm805, 1, 0
      %v822 = vsel %vm806, 1, 0
      %v823 = vsel %vm807, 1, 0
      %v824 = vsel %vm808, 1, 0
      %v825 = vsel %vm809, 1, 0
      %v826 = vsel %vm810, 1, 0
      %v827 = vsel %vm811, 1, 0
      %v828 = vsel %vm812, 1, 0
      %v829 = vsel %vm813, 1, 0
      %v830 = vsel %vm814, 1, 0
      %v831 = vsel %vm815, 1, 0
      %v832 = vsel %vm816, 1, 0
      %v833 = vsel %vm817, 1, 0
      %v834 = vcvt.s32.f32 %v818
      %v835 = vcvt.s32.f32 %v819
      %v836 = vcvt.s32.f32 %v820
      %v837 = vcvt.s32.f32 %v821
      %v838 = vcvt.s32.f32 %v822
      %v839 = vcvt.s32.f32 %v823
      %v840 = vcvt.s32.f32 %v824
      %v841 = vcvt.s32.f32 %v825
      %v842 = vcvt.s32.f32 %v826
      %v843 = vcvt.s32.f32 %v827
      %v844 = vcvt.s32.f32 %v828
      %v845 = vcvt.s32.f32 %v829
      %v846 = vcvt.s32.f32 %v830
      %v847 = vcvt.s32.f32 %v831
      %v848 = vcvt.s32.f32 %v832
      %v849 = vcvt.s32.f32 %v833
      %v850 = vadd.f32 %v696, %v834
      %v851 = vadd.f32 %v697, %v835
      %v852 = vadd.f32 %v698, %v836
      %v853 = vadd.f32 %v699, %v837
      %v854 = vadd.f32 %v700, %v838
      %v855 = vadd.f32 %v701, %v839
      %v856 = vadd.f32 %v702, %v840
      %v857 = vadd.f32 %v703, %v841
      %v858 = vadd.f32 %v704, %v842
      %v859 = vadd.f32 %v705, %v843
      %v860 = vadd.f32 %v706, %v844
      %v861 = vadd.f32 %v707, %v845
      %v862 = vadd.f32 %v708, %v846
      %v863 = vadd.f32 %v709, %v847
      %v864 = vadd.f32 %v710, %v848
      %v865 = vadd.f32 %v711, %v849
      %v866 = vsel %vm802, 1e+30, %v712
      %v867 = vsel %vm803, 1e+30, %v713
      %v868 = vsel %vm804, 1e+30, %v714
      %v869 = vsel %vm805, 1e+30, %v715
      %v870 = vsel %vm806, 1e+30, %v716
      %v871 = vsel %vm807, 1e+30, %v717
      %v872 = vsel %vm808, 1e+30, %v718
      %v873 = vsel %vm809, 1e+30, %v719
      %v874 = vsel %vm810, 1e+30, %v720
      %v875 = vsel %vm811, 1e+30, %v721
      %v876 = vsel %vm812, 1e+30, %v722
      %v877 = vsel %vm813, 1e+30, %v723
      %v878 = vsel %vm814, 1e+30, %v724
      %v879 = vsel %vm815, 1e+30, %v725
      %v880 = vsel %vm816, 1e+30, %v726
      %v881 = vsel %vm817, 1e+30, %v727
      %v882 = vmin.f32 %v866, %v870
      %v883 = vmin.f32 %v867, %v871
      %v884 = vmin.f32 %v868, %v872
      %v885 = vmin.f32 %v869, %v873
      %v886 = vmin.f32 %v882, %v874
      %v887 = vmin.f32 %v883, %v875
      %v888 = vmin.f32 %v884, %v876
      %v889 = vmin.f32 %v885, %v877
      %v890 = vmin.f32 %v886, %v878
      %v891 = vmin.f32 %v887, %v879
      %v892 = vmin.f32 %v888, %v880
      %v893 = vmin.f32 %v889, %v881
      %v894 = vmin.f32 %v890, %v891
      %v895 = vmin.f32 %v892, %v893
      %v896 = vmin.f32 %v894, %v895
      %v897 = vrot.slane %v896, 4
      %v898 = vmin.f32 %v896, %v897
      %v899 = vrot.slane %v898, 2
      %v900 = vmin.f32 %v898, %v899
      %v901 = vrot.slane %v900, 1
      %v902 = vmin.f32 %v900, %v901
      %vm903 = vcmp.eq.f32.partialorder %v866, %v902
      %vm904 = vcmp.eq.f32.partialorder %v867, %v902
      %vm905 = vcmp.eq.f32.partialorder %v868, %v902
      %vm906 = vcmp.eq.f32.partialorder %v869, %v902
      %vm907 = vcmp.eq.f32.partialorder %v870, %v902
      %vm908 = vcmp.eq.f32.partialorder %v871, %v902
      %vm909 = vcmp.eq.f32.partialorder %v872, %v902
      %vm910 = vcmp.eq.f32.partialorder %v873, %v902
      %vm911 = vcmp.eq.f32.partialorder %v874, %v902
      %vm912 = vcmp.eq.f32.partialorder %v875, %v902
      %vm913 = vcmp.eq.f32.partialorder %v876, %v902
      %vm914 = vcmp.eq.f32.partialorder %v877, %v902
      %vm915 = vcmp.eq.f32.partialorder %v878, %v902
      %vm916 = vcmp.eq.f32.partialorder %v879, %v902
      %vm917 = vcmp.eq.f32.partialorder %v880, %v902
      %vm918 = vcmp.eq.f32.partialorder %v881, %v902
      %v919 = vsel %vm903, %v177, 128.0
      %v920 = vsel %vm904, %v178, 128.0
      %v921 = vsel %vm905, %v179, 128.0
      %v922 = vsel %vm906, %v180, 128.0
      %v923 = vsel %vm907, %v181, 128.0
      %v924 = vsel %vm908, %v182, 128.0
      %v925 = vsel %vm909, %v183, 128.0
      %v926 = vsel %vm910, %v184, 128.0
      %v927 = vsel %vm911, %v185, 128.0
      %v928 = vsel %vm912, %v186, 128.0
      %v929 = vsel %vm913, %v187, 128.0
      %v930 = vsel %vm914, %v188, 128.0
      %v931 = vsel %vm915, %v189, 128.0
      %v932 = vsel %vm916, %v190, 128.0
      %v933 = vsel %vm917, %v191, 128.0
      %v934 = vsel %vm918, %v192, 128.0
      %v935 = vmin.f32 %v919, %v923
      %v936 = vmin.f32 %v920, %v924
      %v937 = vmin.f32 %v921, %v925
      %v938 = vmin.f32 %v922, %v926
      %v939 = vmin.f32 %v935, %v927
      %v940 = vmin.f32 %v936, %v928
      %v941 = vmin.f32 %v937, %v929
      %v942 = vmin.f32 %v938, %v930
      %v943 = vmin.f32 %v939, %v931
      %v944 = vmin.f32 %v940, %v932
      %v945 = vmin.f32 %v941, %v933
      %v946 = vmin.f32 %v942, %v934
      %v947 = vmin.f32 %v943, %v944
      %v948 = vmin.f32 %v945, %v946
      %v949 = vmin.f32 %v947, %v948
      %v950 = vrot.slane %v949, 4
      %v951 = vmin.f32 %v949, %v950
      %v952 = vrot.slane %v951, 2
      %v953 = vmin.f32 %v951, %v952
      %v954 = vrot.slane %v953, 1
      %v955 = vmin.f32 %v953, %v954
      %vm956 = vcmp.eq.f32.partialorder %v177, %v955
      %vm957 = vcmp.eq.f32.partialorder %v178, %v955
      %vm958 = vcmp.eq.f32.partialorder %v179, %v955
      %vm959 = vcmp.eq.f32.partialorder %v180, %v955
      %vm960 = vcmp.eq.f32.partialorder %v181, %v955
      %vm961 = vcmp.eq.f32.partialorder %v182, %v955
      %vm962 = vcmp.eq.f32.partialorder %v183, %v955
      %vm963 = vcmp.eq.f32.partialorder %v184, %v955
      %vm964 = vcmp.eq.f32.partialorder %v185, %v955
      %vm965 = vcmp.eq.f32.partialorder %v186, %v955
      %vm966 = vcmp.eq.f32.partialorder %v187, %v955
      %vm967 = vcmp.eq.f32.partialorder %v188, %v955
      %vm968 = vcmp.eq.f32.partialorder %v189, %v955
      %vm969 = vcmp.eq.f32.partialorder %v190, %v955
      %vm970 = vcmp.eq.f32.partialorder %v191, %v955
      %vm971 = vcmp.eq.f32.partialorder %v192, %v955
      %v972 = vsel %vm956, 1, 0
      %v973 = vsel %vm957, 1, 0
      %v974 = vsel %vm958, 1, 0
      %v975 = vsel %vm959, 1, 0
      %v976 = vsel %vm960, 1, 0
      %v977 = vsel %vm961, 1, 0
      %v978 = vsel %vm962, 1, 0
      %v979 = vsel %vm963, 1, 0
      %v980 = vsel %vm964, 1, 0
      %v981 = vsel %vm965, 1, 0
      %v982 = vsel %vm966, 1, 0
      %v983 = vsel %vm967, 1, 0
      %v984 = vsel %vm968, 1, 0
      %v985 = vsel %vm969, 1, 0
      %v986 = vsel %vm970, 1, 0
      %v987 = vsel %vm971, 1, 0
      %v988 = vcvt.s32.f32 %v972
      %v989 = vcvt.s32.f32 %v973
      %v990 = vcvt.s32.f32 %v974
      %v991 = vcvt.s32.f32 %v975
      %v992 = vcvt.s32.f32 %v976
      %v993 = vcvt.s32.f32 %v977
      %v994 = vcvt.s32.f32 %v978
      %v995 = vcvt.s32.f32 %v979
      %v996 = vcvt.s32.f32 %v980
      %v997 = vcvt.s32.f32 %v981
      %v998 = vcvt.s32.f32 %v982
      %v999 = vcvt.s32.f32 %v983
      %v1000 = vcvt.s32.f32 %v984
      %v1001 = vcvt.s32.f32 %v985
      %v1002 = vcvt.s32.f32 %v986
      %v1003 = vcvt.s32.f32 %v987
      %v1004 = vadd.f32 %v850, %v988
      %v1005 = vadd.f32 %v851, %v989
      %v1006 = vadd.f32 %v852, %v990
      %v1007 = vadd.f32 %v853, %v991
      %v1008 = vadd.f32 %v854, %v992
      %v1009 = vadd.f32 %v855, %v993
      %v1010 = vadd.f32 %v856, %v994
      %v1011 = vadd.f32 %v857, %v995
      %v1012 = vadd.f32 %v858, %v996
      %v1013 = vadd.f32 %v859, %v997
      %v1014 = vadd.f32 %v860, %v998
      %v1015 = vadd.f32 %v861, %v999
      %v1016 = vadd.f32 %v862, %v1000
      %v1017 = vadd.f32 %v863, %v1001
      %v1018 = vadd.f32 %v864, %v1002
      %v1019 = vadd.f32 %v865, %v1003
      %v1020 = vsel %vm956, 1e+30, %v866
      %v1021 = vsel %vm957, 1e+30, %v867
      %v1022 = vsel %vm958, 1e+30, %v868
      %v1023 = vsel %vm959, 1e+30, %v869
      %v1024 = vsel %vm960, 1e+30, %v870
      %v1025 = vsel %vm961, 1e+30, %v871
      %v1026 = vsel %vm962, 1e+30, %v872
      %v1027 = vsel %vm963, 1e+30, %v873
      %v1028 = vsel %vm964, 1e+30, %v874
      %v1029 = vsel %vm965, 1e+30, %v875
      %v1030 = vsel %vm966, 1e+30, %v876
      %v1031 = vsel %vm967, 1e+30, %v877
      %v1032 = vsel %vm968, 1e+30, %v878
      %v1033 = vsel %vm969, 1e+30, %v879
      %v1034 = vsel %vm970, 1e+30, %v880
      %v1035 = vsel %vm971, 1e+30, %v881
      %v1036 = vmin.f32 %v1020, %v1024
      %v1037 = vmin.f32 %v1021, %v1025
      %v1038 = vmin.f32 %v1022, %v1026
      %v1039 = vmin.f32 %v1023, %v1027
      %v1040 = vmin.f32 %v1036, %v1028
      %v1041 = vmin.f32 %v1037, %v1029
      %v1042 = vmin.f32 %v1038, %v1030
      %v1043 = vmin.f32 %v1039, %v1031
      %v1044 = vmin.f32 %v1040, %v1032
      %v1045 = vmin.f32 %v1041, %v1033
      %v1046 = vmin.f32 %v1042, %v1034
      %v1047 = vmin.f32 %v1043, %v1035
      %v1048 = vmin.f32 %v1044, %v1045
      %v1049 = vmin.f32 %v1046, %v1047
      %v1050 = vmin.f32 %v1048, %v1049
      %v1051 = vrot.slane %v1050, 4
      %v1052 = vmin.f32 %v1050, %v1051
      %v1053 = vrot.slane %v1052, 2
      %v1054 = vmin.f32 %v1052, %v1053
      %v1055 = vrot.slane %v1054, 1
      %v1056 = vmin.f32 %v1054, %v1055
      %vm1057 = vcmp.eq.f32.partialorder %v1020, %v1056
      %vm1058 = vcmp.eq.f32.partialorder %v1021, %v1056
      %vm1059 = vcmp.eq.f32.partialorder %v1022, %v1056
      %vm1060 = vcmp.eq.f32.partialorder %v1023, %v1056
      %vm1061 = vcmp.eq.f32.partialorder %v1024, %v1056
      %vm1062 = vcmp.eq.f32.partialorder %v1025, %v1056
      %vm1063 = vcmp.eq.f32.partialorder %v1026, %v1056
      %vm1064 = vcmp.eq.f32.partialorder %v1027, %v1056
      %vm1065 = vcmp.eq.f32.partialorder %v1028, %v1056
      %vm1066 = vcmp.eq.f32.partialorder %v1029, %v1056
      %vm1067 = vcmp.eq.f32.partialorder %v1030, %v1056
      %vm1068 = vcmp.eq.f32.partialorder %v1031, %v1056
      %vm1069 = vcmp.eq.f32.partialorder %v1032, %v1056
      %vm1070 = vcmp.eq.f32.partialorder %v1033, %v1056
      %vm1071 = vcmp.eq.f32.partialorder %v1034, %v1056
      %vm1072 = vcmp.eq.f32.partialorder %v1035, %v1056
      %v1073 = vsel %vm1057, %v177, 128.0
      %v1074 = vsel %vm1058, %v178, 128.0
      %v1075 = vsel %vm1059, %v179, 128.0
      %v1076 = vsel %vm1060, %v180, 128.0
      %v1077 = vsel %vm1061, %v181, 128.0
      %v1078 = vsel %vm1062, %v182, 128.0
      %v1079 = vsel %vm1063, %v183, 128.0
      %v1080 = vsel %vm1064, %v184, 128.0
      %v1081 = vsel %vm1065, %v185, 128.0
      %v1082 = vsel %vm1066, %v186, 128.0
      %v1083 = vsel %vm1067, %v187, 128.0
      %v1084 = vsel %vm1068, %v188, 128.0
      %v1085 = vsel %vm1069, %v189, 128.0
      %v1086 = vsel %vm1070, %v190, 128.0
      %v1087 = vsel %vm1071, %v191, 128.0
      %v1088 = vsel %vm1072, %v192, 128.0
      %v1089 = vmin.f32 %v1073, %v1077
      %v1090 = vmin.f32 %v1074, %v1078
      %v1091 = vmin.f32 %v1075, %v1079
      %v1092 = vmin.f32 %v1076, %v1080
      %v1093 = vmin.f32 %v1089, %v1081
      %v1094 = vmin.f32 %v1090, %v1082
      %v1095 = vmin.f32 %v1091, %v1083
      %v1096 = vmin.f32 %v1092, %v1084
      %v1097 = vmin.f32 %v1093, %v1085
      %v1098 = vmin.f32 %v1094, %v1086
      %v1099 = vmin.f32 %v1095, %v1087
      %v1100 = vmin.f32 %v1096, %v1088
      %v1101 = vmin.f32 %v1097, %v1098
      %v1102 = vmin.f32 %v1099, %v1100
      %v1103 = vmin.f32 %v1101, %v1102
      %v1104 = vrot.slane %v1103, 4
      %v1105 = vmin.f32 %v1103, %v1104
      %v1106 = vrot.slane %v1105, 2
      %v1107 = vmin.f32 %v1105, %v1106
      %v1108 = vrot.slane %v1107, 1
      %v1109 = vmin.f32 %v1107, %v1108
      %vm1110 = vcmp.eq.f32.partialorder %v177, %v1109
      %vm1111 = vcmp.eq.f32.partialorder %v178, %v1109
      %vm1112 = vcmp.eq.f32.partialorder %v179, %v1109
      %vm1113 = vcmp.eq.f32.partialorder %v180, %v1109
      %vm1114 = vcmp.eq.f32.partialorder %v181, %v1109
      %vm1115 = vcmp.eq.f32.partialorder %v182, %v1109
      %vm1116 = vcmp.eq.f32.partialorder %v183, %v1109
      %vm1117 = vcmp.eq.f32.partialorder %v184, %v1109
      %vm1118 = vcmp.eq.f32.partialorder %v185, %v1109
      %vm1119 = vcmp.eq.f32.partialorder %v186, %v1109
      %vm1120 = vcmp.eq.f32.partialorder %v187, %v1109
      %vm1121 = vcmp.eq.f32.partialorder %v188, %v1109
      %vm1122 = vcmp.eq.f32.partialorder %v189, %v1109
      %vm1123 = vcmp.eq.f32.partialorder %v190, %v1109
      %vm1124 = vcmp.eq.f32.partialorder %v191, %v1109
      %vm1125 = vcmp.eq.f32.partialorder %v192, %v1109
      %v1126 = vsel %vm1110, 1, 0
      %v1127 = vsel %vm1111, 1, 0
      %v1128 = vsel %vm1112, 1, 0
      %v1129 = vsel %vm1113, 1, 0
      %v1130 = vsel %vm1114, 1, 0
      %v1131 = vsel %vm1115, 1, 0
      %v1132 = vsel %vm1116, 1, 0
      %v1133 = vsel %vm1117, 1, 0
      %v1134 = vsel %vm1118, 1, 0
      %v1135 = vsel %vm1119, 1, 0
      %v1136 = vsel %vm1120, 1, 0
      %v1137 = vsel %vm1121, 1, 0
      %v1138 = vsel %vm1122, 1, 0
      %v1139 = vsel %vm1123, 1, 0
      %v1140 = vsel %vm1124, 1, 0
      %v1141 = vsel %vm1125, 1, 0
      %v1142 = vcvt.s32.f32 %v1126
      %v1143 = vcvt.s32.f32 %v1127
      %v1144 = vcvt.s32.f32 %v1128
      %v1145 = vcvt.s32.f32 %v1129
      %v1146 = vcvt.s32.f32 %v1130
      %v1147 = vcvt.s32.f32 %v1131
      %v1148 = vcvt.s32.f32 %v1132
      %v1149 = vcvt.s32.f32 %v1133
      %v1150 = vcvt.s32.f32 %v1134
      %v1151 = vcvt.s32.f32 %v1135
      %v1152 = vcvt.s32.f32 %v1136
      %v1153 = vcvt.s32.f32 %v1137
      %v1154 = vcvt.s32.f32 %v1138
      %v1155 = vcvt.s32.f32 %v1139
      %v1156 = vcvt.s32.f32 %v1140
      %v1157 = vcvt.s32.f32 %v1141
      %v1158 = vadd.f32 %v1004, %v1142
      %v1159 = vadd.f32 %v1005, %v1143
      %v1160 = vadd.f32 %v1006, %v1144
      %v1161 = vadd.f32 %v1007, %v1145
      %v1162 = vadd.f32 %v1008, %v1146
      %v1163 = vadd.f32 %v1009, %v1147
      %v1164 = vadd.f32 %v1010, %v1148
      %v1165 = vadd.f32 %v1011, %v1149
      %v1166 = vadd.f32 %v1012, %v1150
      %v1167 = vadd.f32 %v1013, %v1151
      %v1168 = vadd.f32 %v1014, %v1152
      %v1169 = vadd.f32 %v1015, %v1153
      %v1170 = vadd.f32 %v1016, %v1154
      %v1171 = vadd.f32 %v1017, %v1155
      %v1172 = vadd.f32 %v1018, %v1156
      %v1173 = vadd.f32 %v1019, %v1157
      %v1174 = vsel %vm1110, 1e+30, %v1020
      %v1175 = vsel %vm1111, 1e+30, %v1021
      %v1176 = vsel %vm1112, 1e+30, %v1022
      %v1177 = vsel %vm1113, 1e+30, %v1023
      %v1178 = vsel %vm1114, 1e+30, %v1024
      %v1179 = vsel %vm1115, 1e+30, %v1025
      %v1180 = vsel %vm1116, 1e+30, %v1026
      %v1181 = vsel %vm1117, 1e+30, %v1027
      %v1182 = vsel %vm1118, 1e+30, %v1028
      %v1183 = vsel %vm1119, 1e+30, %v1029
      %v1184 = vsel %vm1120, 1e+30, %v1030
      %v1185 = vsel %vm1121, 1e+30, %v1031
      %v1186 = vsel %vm1122, 1e+30, %v1032
      %v1187 = vsel %vm1123, 1e+30, %v1033
      %v1188 = vsel %vm1124, 1e+30, %v1034
      %v1189 = vsel %vm1125, 1e+30, %v1035
      %v1190 = vmin.f32 %v1174, %v1178
      %v1191 = vmin.f32 %v1175, %v1179
      %v1192 = vmin.f32 %v1176, %v1180
      %v1193 = vmin.f32 %v1177, %v1181
      %v1194 = vmin.f32 %v1190, %v1182
      %v1195 = vmin.f32 %v1191, %v1183
      %v1196 = vmin.f32 %v1192, %v1184
      %v1197 = vmin.f32 %v1193, %v1185
      %v1198 = vmin.f32 %v1194, %v1186
      %v1199 = vmin.f32 %v1195, %v1187
      %v1200 = vmin.f32 %v1196, %v1188
      %v1201 = vmin.f32 %v1197, %v1189
      %v1202 = vmin.f32 %v1198, %v1199
      %v1203 = vmin.f32 %v1200, %v1201
      %v1204 = vmin.f32 %v1202, %v1203
      %v1205 = vrot.slane %v1204, 4
      %v1206 = vmin.f32 %v1204, %v1205
      %v1207 = vrot.slane %v1206, 2
      %v1208 = vmin.f32 %v1206, %v1207
      %v1209 = vrot.slane %v1208, 1
      %v1210 = vmin.f32 %v1208, %v1209
      %vm1211 = vcmp.eq.f32.partialorder %v1174, %v1210
      %vm1212 = vcmp.eq.f32.partialorder %v1175, %v1210
      %vm1213 = vcmp.eq.f32.partialorder %v1176, %v1210
      %vm1214 = vcmp.eq.f32.partialorder %v1177, %v1210
      %vm1215 = vcmp.eq.f32.partialorder %v1178, %v1210
      %vm1216 = vcmp.eq.f32.partialorder %v1179, %v1210
      %vm1217 = vcmp.eq.f32.partialorder %v1180, %v1210
      %vm1218 = vcmp.eq.f32.partialorder %v1181, %v1210
      %vm1219 = vcmp.eq.f32.partialorder %v1182, %v1210
      %vm1220 = vcmp.eq.f32.partialorder %v1183, %v1210
      %vm1221 = vcmp.eq.f32.partialorder %v1184, %v1210
      %vm1222 = vcmp.eq.f32.partialorder %v1185, %v1210
      %vm1223 = vcmp.eq.f32.partialorder %v1186, %v1210
      %vm1224 = vcmp.eq.f32.partialorder %v1187, %v1210
      %vm1225 = vcmp.eq.f32.partialorder %v1188, %v1210
      %vm1226 = vcmp.eq.f32.partialorder %v1189, %v1210
      %v1227 = vsel %vm1211, %v177, 128.0
      %v1228 = vsel %vm1212, %v178, 128.0
      %v1229 = vsel %vm1213, %v179, 128.0
      %v1230 = vsel %vm1214, %v180, 128.0
      %v1231 = vsel %vm1215, %v181, 128.0
      %v1232 = vsel %vm1216, %v182, 128.0
      %v1233 = vsel %vm1217, %v183, 128.0
      %v1234 = vsel %vm1218, %v184, 128.0
      %v1235 = vsel %vm1219, %v185, 128.0
      %v1236 = vsel %vm1220, %v186, 128.0
      %v1237 = vsel %vm1221, %v187, 128.0
      %v1238 = vsel %vm1222, %v188, 128.0
      %v1239 = vsel %vm1223, %v189, 128.0
      %v1240 = vsel %vm1224, %v190, 128.0
      %v1241 = vsel %vm1225, %v191, 128.0
      %v1242 = vsel %vm1226, %v192, 128.0
      %v1243 = vmin.f32 %v1227, %v1231
      %v1244 = vmin.f32 %v1228, %v1232
      %v1245 = vmin.f32 %v1229, %v1233
      %v1246 = vmin.f32 %v1230, %v1234
      %v1247 = vmin.f32 %v1243, %v1235
      %v1248 = vmin.f32 %v1244, %v1236
      %v1249 = vmin.f32 %v1245, %v1237
      %v1250 = vmin.f32 %v1246, %v1238
      %v1251 = vmin.f32 %v1247, %v1239
      %v1252 = vmin.f32 %v1248, %v1240
      %v1253 = vmin.f32 %v1249, %v1241
      %v1254 = vmin.f32 %v1250, %v1242
      %v1255 = vmin.f32 %v1251, %v1252
      %v1256 = vmin.f32 %v1253, %v1254
      %v1257 = vmin.f32 %v1255, %v1256
      %v1258 = vrot.slane %v1257, 4
      %v1259 = vmin.f32 %v1257, %v1258
      %v1260 = vrot.slane %v1259, 2
      %v1261 = vmin.f32 %v1259, %v1260
      %v1262 = vrot.slane %v1261, 1
      %v1263 = vmin.f32 %v1261, %v1262
      %vm1264 = vcmp.eq.f32.partialorder %v177, %v1263
      %vm1265 = vcmp.eq.f32.partialorder %v178, %v1263
      %vm1266 = vcmp.eq.f32.partialorder %v179, %v1263
      %vm1267 = vcmp.eq.f32.partialorder %v180, %v1263
      %vm1268 = vcmp.eq.f32.partialorder %v181, %v1263
      %vm1269 = vcmp.eq.f32.partialorder %v182, %v1263
      %vm1270 = vcmp.eq.f32.partialorder %v183, %v1263
      %vm1271 = vcmp.eq.f32.partialorder %v184, %v1263
      %vm1272 = vcmp.eq.f32.partialorder %v185, %v1263
      %vm1273 = vcmp.eq.f32.partialorder %v186, %v1263
      %vm1274 = vcmp.eq.f32.partialorder %v187, %v1263
      %vm1275 = vcmp.eq.f32.partialorder %v188, %v1263
      %vm1276 = vcmp.eq.f32.partialorder %v189, %v1263
      %vm1277 = vcmp.eq.f32.partialorder %v190, %v1263
      %vm1278 = vcmp.eq.f32.partialorder %v191, %v1263
      %vm1279 = vcmp.eq.f32.partialorder %v192, %v1263
      %v1280 = vsel %vm1264, 1, 0
      %v1281 = vsel %vm1265, 1, 0
      %v1282 = vsel %vm1266, 1, 0
      %v1283 = vsel %vm1267, 1, 0
      %v1284 = vsel %vm1268, 1, 0
      %v1285 = vsel %vm1269, 1, 0
      %v1286 = vsel %vm1270, 1, 0
      %v1287 = vsel %vm1271, 1, 0
      %v1288 = vsel %vm1272, 1, 0
      %v1289 = vsel %vm1273, 1, 0
      %v1290 = vsel %vm1274, 1, 0
      %v1291 = vsel %vm1275, 1, 0
      %v1292 = vsel %vm1276, 1, 0
      %v1293 = vsel %vm1277, 1, 0
      %v1294 = vsel %vm1278, 1, 0
      %v1295 = vsel %vm1279, 1, 0
      %v1296 = vcvt.s32.f32 %v1280
      %v1297 = vcvt.s32.f32 %v1281
      %v1298 = vcvt.s32.f32 %v1282
      %v1299 = vcvt.s32.f32 %v1283
      %v1300 = vcvt.s32.f32 %v1284
      %v1301 = vcvt.s32.f32 %v1285
      %v1302 = vcvt.s32.f32 %v1286
      %v1303 = vcvt.s32.f32 %v1287
      %v1304 = vcvt.s32.f32 %v1288
      %v1305 = vcvt.s32.f32 %v1289
      %v1306 = vcvt.s32.f32 %v1290
      %v1307 = vcvt.s32.f32 %v1291
      %v1308 = vcvt.s32.f32 %v1292
      %v1309 = vcvt.s32.f32 %v1293
      %v1310 = vcvt.s32.f32 %v1294
      %v1311 = vcvt.s32.f32 %v1295
      %v1312 = vadd.f32 %v1158, %v1296
      %v1313 = vadd.f32 %v1159, %v1297
      %v1314 = vadd.f32 %v1160, %v1298
      %v1315 = vadd.f32 %v1161, %v1299
      %v1316 = vadd.f32 %v1162, %v1300
      %v1317 = vadd.f32 %v1163, %v1301
      %v1318 = vadd.f32 %v1164, %v1302
      %v1319 = vadd.f32 %v1165, %v1303
      %v1320 = vadd.f32 %v1166, %v1304
      %v1321 = vadd.f32 %v1167, %v1305
      %v1322 = vadd.f32 %v1168, %v1306
      %v1323 = vadd.f32 %v1169, %v1307
      %v1324 = vadd.f32 %v1170, %v1308
      %v1325 = vadd.f32 %v1171, %v1309
      %v1326 = vadd.f32 %v1172, %v1310
      %v1327 = vadd.f32 %v1173, %v1311
      %v1328 = vsel %vm1264, 1e+30, %v1174
      %v1329 = vsel %vm1265, 1e+30, %v1175
      %v1330 = vsel %vm1266, 1e+30, %v1176
      %v1331 = vsel %vm1267, 1e+30, %v1177
      %v1332 = vsel %vm1268, 1e+30, %v1178
      %v1333 = vsel %vm1269, 1e+30, %v1179
      %v1334 = vsel %vm1270, 1e+30, %v1180
      %v1335 = vsel %vm1271, 1e+30, %v1181
      %v1336 = vsel %vm1272, 1e+30, %v1182
      %v1337 = vsel %vm1273, 1e+30, %v1183
      %v1338 = vsel %vm1274, 1e+30, %v1184
      %v1339 = vsel %vm1275, 1e+30, %v1185
      %v1340 = vsel %vm1276, 1e+30, %v1186
      %v1341 = vsel %vm1277, 1e+30, %v1187
      %v1342 = vsel %vm1278, 1e+30, %v1188
      %v1343 = vsel %vm1279, 1e+30, %v1189
      %v1344 = vmin.f32 %v1328, %v1332
      %v1345 = vmin.f32 %v1329, %v1333
      %v1346 = vmin.f32 %v1330, %v1334
      %v1347 = vmin.f32 %v1331, %v1335
      %v1348 = vmin.f32 %v1344, %v1336
      %v1349 = vmin.f32 %v1345, %v1337
      %v1350 = vmin.f32 %v1346, %v1338
      %v1351 = vmin.f32 %v1347, %v1339
      %v1352 = vmin.f32 %v1348, %v1340
      %v1353 = vmin.f32 %v1349, %v1341
      %v1354 = vmin.f32 %v1350, %v1342
      %v1355 = vmin.f32 %v1351, %v1343
      %v1356 = vmin.f32 %v1352, %v1353
      %v1357 = vmin.f32 %v1354, %v1355
      %v1358 = vmin.f32 %v1356, %v1357
      %v1359 = vrot.slane %v1358, 4
      %v1360 = vmin.f32 %v1358, %v1359
      %v1361 = vrot.slane %v1360, 2
      %v1362 = vmin.f32 %v1360, %v1361
      %v1363 = vrot.slane %v1362, 1
      %v1364 = vmin.f32 %v1362, %v1363
      %vm1365 = vcmp.eq.f32.partialorder %v1328, %v1364
      %vm1366 = vcmp.eq.f32.partialorder %v1329, %v1364
      %vm1367 = vcmp.eq.f32.partialorder %v1330, %v1364
      %vm1368 = vcmp.eq.f32.partialorder %v1331, %v1364
      %vm1369 = vcmp.eq.f32.partialorder %v1332, %v1364
      %vm1370 = vcmp.eq.f32.partialorder %v1333, %v1364
      %vm1371 = vcmp.eq.f32.partialorder %v1334, %v1364
      %vm1372 = vcmp.eq.f32.partialorder %v1335, %v1364
      %vm1373 = vcmp.eq.f32.partialorder %v1336, %v1364
      %vm1374 = vcmp.eq.f32.partialorder %v1337, %v1364
      %vm1375 = vcmp.eq.f32.partialorder %v1338, %v1364
      %vm1376 = vcmp.eq.f32.partialorder %v1339, %v1364
      %vm1377 = vcmp.eq.f32.partialorder %v1340, %v1364
      %vm1378 = vcmp.eq.f32.partialorder %v1341, %v1364
      %vm1379 = vcmp.eq.f32.partialorder %v1342, %v1364
      %vm1380 = vcmp.eq.f32.partialorder %v1343, %v1364
      %v1381 = vsel %vm1365, %v177, 128.0
      %v1382 = vsel %vm1366, %v178, 128.0
      %v1383 = vsel %vm1367, %v179, 128.0
      %v1384 = vsel %vm1368, %v180, 128.0
      %v1385 = vsel %vm1369, %v181, 128.0
      %v1386 = vsel %vm1370, %v182, 128.0
      %v1387 = vsel %vm1371, %v183, 128.0
      %v1388 = vsel %vm1372, %v184, 128.0
      %v1389 = vsel %vm1373, %v185, 128.0
      %v1390 = vsel %vm1374, %v186, 128.0
      %v1391 = vsel %vm1375, %v187, 128.0
      %v1392 = vsel %vm1376, %v188, 128.0
      %v1393 = vsel %vm1377, %v189, 128.0
      %v1394 = vsel %vm1378, %v190, 128.0
      %v1395 = vsel %vm1379, %v191, 128.0
      %v1396 = vsel %vm1380, %v192, 128.0
      %v1397 = vmin.f32 %v1381, %v1385
      %v1398 = vmin.f32 %v1382, %v1386
      %v1399 = vmin.f32 %v1383, %v1387
      %v1400 = vmin.f32 %v1384, %v1388
      %v1401 = vmin.f32 %v1397, %v1389
      %v1402 = vmin.f32 %v1398, %v1390
      %v1403 = vmin.f32 %v1399, %v1391
      %v1404 = vmin.f32 %v1400, %v1392
      %v1405 = vmin.f32 %v1401, %v1393
      %v1406 = vmin.f32 %v1402, %v1394
      %v1407 = vmin.f32 %v1403, %v1395
      %v1408 = vmin.f32 %v1404, %v1396
      %v1409 = vmin.f32 %v1405, %v1406
      %v1410 = vmin.f32 %v1407, %v1408
      %v1411 = vmin.f32 %v1409, %v1410
      %v1412 = vrot.slane %v1411, 4
      %v1413 = vmin.f32 %v1411, %v1412
      %v1414 = vrot.slane %v1413, 2
      %v1415 = vmin.f32 %v1413, %v1414
      %v1416 = vrot.slane %v1415, 1
      %v1417 = vmin.f32 %v1415, %v1416
      %vm1418 = vcmp.eq.f32.partialorder %v177, %v1417
      %vm1419 = vcmp.eq.f32.partialorder %v178, %v1417
      %vm1420 = vcmp.eq.f32.partialorder %v179, %v1417
      %vm1421 = vcmp.eq.f32.partialorder %v180, %v1417
      %vm1422 = vcmp.eq.f32.partialorder %v181, %v1417
      %vm1423 = vcmp.eq.f32.partialorder %v182, %v1417
      %vm1424 = vcmp.eq.f32.partialorder %v183, %v1417
      %vm1425 = vcmp.eq.f32.partialorder %v184, %v1417
      %vm1426 = vcmp.eq.f32.partialorder %v185, %v1417
      %vm1427 = vcmp.eq.f32.partialorder %v186, %v1417
      %vm1428 = vcmp.eq.f32.partialorder %v187, %v1417
      %vm1429 = vcmp.eq.f32.partialorder %v188, %v1417
      %vm1430 = vcmp.eq.f32.partialorder %v189, %v1417
      %vm1431 = vcmp.eq.f32.partialorder %v190, %v1417
      %vm1432 = vcmp.eq.f32.partialorder %v191, %v1417
      %vm1433 = vcmp.eq.f32.partialorder %v192, %v1417
      %v1434 = vsel %vm1418, 1, 0
      %v1435 = vsel %vm1419, 1, 0
      %v1436 = vsel %vm1420, 1, 0
      %v1437 = vsel %vm1421, 1, 0
      %v1438 = vsel %vm1422, 1, 0
      %v1439 = vsel %vm1423, 1, 0
      %v1440 = vsel %vm1424, 1, 0
      %v1441 = vsel %vm1425, 1, 0
      %v1442 = vsel %vm1426, 1, 0
      %v1443 = vsel %vm1427, 1, 0
      %v1444 = vsel %vm1428, 1, 0
      %v1445 = vsel %vm1429, 1, 0
      %v1446 = vsel %vm1430, 1, 0
      %v1447 = vsel %vm1431, 1, 0
      %v1448 = vsel %vm1432, 1, 0
      %v1449 = vsel %vm1433, 1, 0
      %v1450 = vcvt.s32.f32 %v1434
      %v1451 = vcvt.s32.f32 %v1435
      %v1452 = vcvt.s32.f32 %v1436
      %v1453 = vcvt.s32.f32 %v1437
      %v1454 = vcvt.s32.f32 %v1438
      %v1455 = vcvt.s32.f32 %v1439
      %v1456 = vcvt.s32.f32 %v1440
      %v1457 = vcvt.s32.f32 %v1441
      %v1458 = vcvt.s32.f32 %v1442
      %v1459 = vcvt.s32.f32 %v1443
      %v1460 = vcvt.s32.f32 %v1444
      %v1461 = vcvt.s32.f32 %v1445
      %v1462 = vcvt.s32.f32 %v1446
      %v1463 = vcvt.s32.f32 %v1447
      %v1464 = vcvt.s32.f32 %v1448
      %v1465 = vcvt.s32.f32 %v1449
      %v1466 = vadd.f32 %v1312, %v1450
      %v1467 = vadd.f32 %v1313, %v1451
      %v1468 = vadd.f32 %v1314, %v1452
      %v1469 = vadd.f32 %v1315, %v1453
      %v1470 = vadd.f32 %v1316, %v1454
      %v1471 = vadd.f32 %v1317, %v1455
      %v1472 = vadd.f32 %v1318, %v1456
      %v1473 = vadd.f32 %v1319, %v1457
      %v1474 = vadd.f32 %v1320, %v1458
      %v1475 = vadd.f32 %v1321, %v1459
      %v1476 = vadd.f32 %v1322, %v1460
      %v1477 = vadd.f32 %v1323, %v1461
      %v1478 = vadd.f32 %v1324, %v1462
      %v1479 = vadd.f32 %v1325, %v1463
      %v1480 = vadd.f32 %v1326, %v1464
      %v1481 = vadd.f32 %v1327, %v1465
      %v1482 = vsel %vm1418, 1e+30, %v1328
      %v1483 = vsel %vm1419, 1e+30, %v1329
      %v1484 = vsel %vm1420, 1e+30, %v1330
      %v1485 = vsel %vm1421, 1e+30, %v1331
      %v1486 = vsel %vm1422, 1e+30, %v1332
      %v1487 = vsel %vm1423, 1e+30, %v1333
      %v1488 = vsel %vm1424, 1e+30, %v1334
      %v1489 = vsel %vm1425, 1e+30, %v1335
      %v1490 = vsel %vm1426, 1e+30, %v1336
      %v1491 = vsel %vm1427, 1e+30, %v1337
      %v1492 = vsel %vm1428, 1e+30, %v1338
      %v1493 = vsel %vm1429, 1e+30, %v1339
      %v1494 = vsel %vm1430, 1e+30, %v1340
      %v1495 = vsel %vm1431, 1e+30, %v1341
      %v1496 = vsel %vm1432, 1e+30, %v1342
      %v1497 = vsel %vm1433, 1e+30, %v1343
      %v1498 = vmin.f32 %v1482, %v1486
      %v1499 = vmin.f32 %v1483, %v1487
      %v1500 = vmin.f32 %v1484, %v1488
      %v1501 = vmin.f32 %v1485, %v1489
      %v1502 = vmin.f32 %v1498, %v1490
      %v1503 = vmin.f32 %v1499, %v1491
      %v1504 = vmin.f32 %v1500, %v1492
      %v1505 = vmin.f32 %v1501, %v1493
      %v1506 = vmin.f32 %v1502, %v1494
      %v1507 = vmin.f32 %v1503, %v1495
      %v1508 = vmin.f32 %v1504, %v1496
      %v1509 = vmin.f32 %v1505, %v1497
      %v1510 = vmin.f32 %v1506, %v1507
      %v1511 = vmin.f32 %v1508, %v1509
      %v1512 = vmin.f32 %v1510, %v1511
      %v1513 = vrot.slane %v1512, 4
      %v1514 = vmin.f32 %v1512, %v1513
      %v1515 = vrot.slane %v1514, 2
      %v1516 = vmin.f32 %v1514, %v1515
      %v1517 = vrot.slane %v1516, 1
      %v1518 = vmin.f32 %v1516, %v1517
      %vm1519 = vcmp.eq.f32.partialorder %v1482, %v1518
      %vm1520 = vcmp.eq.f32.partialorder %v1483, %v1518
      %vm1521 = vcmp.eq.f32.partialorder %v1484, %v1518
      %vm1522 = vcmp.eq.f32.partialorder %v1485, %v1518
      %vm1523 = vcmp.eq.f32.partialorder %v1486, %v1518
      %vm1524 = vcmp.eq.f32.partialorder %v1487, %v1518
      %vm1525 = vcmp.eq.f32.partialorder %v1488, %v1518
      %vm1526 = vcmp.eq.f32.partialorder %v1489, %v1518
      %vm1527 = vcmp.eq.f32.partialorder %v1490, %v1518
      %vm1528 = vcmp.eq.f32.partialorder %v1491, %v1518
      %vm1529 = vcmp.eq.f32.partialorder %v1492, %v1518
      %vm1530 = vcmp.eq.f32.partialorder %v1493, %v1518
      %vm1531 = vcmp.eq.f32.partialorder %v1494, %v1518
      %vm1532 = vcmp.eq.f32.partialorder %v1495, %v1518
      %vm1533 = vcmp.eq.f32.partialorder %v1496, %v1518
      %vm1534 = vcmp.eq.f32.partialorder %v1497, %v1518
      %v1535 = vsel %vm1519, %v177, 128.0
      %v1536 = vsel %vm1520, %v178, 128.0
      %v1537 = vsel %vm1521, %v179, 128.0
      %v1538 = vsel %vm1522, %v180, 128.0
      %v1539 = vsel %vm1523, %v181, 128.0
      %v1540 = vsel %vm1524, %v182, 128.0
      %v1541 = vsel %vm1525, %v183, 128.0
      %v1542 = vsel %vm1526, %v184, 128.0
      %v1543 = vsel %vm1527, %v185, 128.0
      %v1544 = vsel %vm1528, %v186, 128.0
      %v1545 = vsel %vm1529, %v187, 128.0
      %v1546 = vsel %vm1530, %v188, 128.0
      %v1547 = vsel %vm1531, %v189, 128.0
      %v1548 = vsel %vm1532, %v190, 128.0
      %v1549 = vsel %vm1533, %v191, 128.0
      %v1550 = vsel %vm1534, %v192, 128.0
      %v1551 = vmin.f32 %v1535, %v1539
      %v1552 = vmin.f32 %v1536, %v1540
      %v1553 = vmin.f32 %v1537, %v1541
      %v1554 = vmin.f32 %v1538, %v1542
      %v1555 = vmin.f32 %v1551, %v1543
      %v1556 = vmin.f32 %v1552, %v1544
      %v1557 = vmin.f32 %v1553, %v1545
      %v1558 = vmin.f32 %v1554, %v1546
      %v1559 = vmin.f32 %v1555, %v1547
      %v1560 = vmin.f32 %v1556, %v1548
      %v1561 = vmin.f32 %v1557, %v1549
      %v1562 = vmin.f32 %v1558, %v1550
      %v1563 = vmin.f32 %v1559, %v1560
      %v1564 = vmin.f32 %v1561, %v1562
      %v1565 = vmin.f32 %v1563, %v1564
      %v1566 = vrot.slane %v1565, 4
      %v1567 = vmin.f32 %v1565, %v1566
      %v1568 = vrot.slane %v1567, 2
      %v1569 = vmin.f32 %v1567, %v1568
      %v1570 = vrot.slane %v1569, 1
      %v1571 = vmin.f32 %v1569, %v1570
      %vm1572 = vcmp.eq.f32.partialorder %v177, %v1571
      %vm1573 = vcmp.eq.f32.partialorder %v178, %v1571
      %vm1574 = vcmp.eq.f32.partialorder %v179, %v1571
      %vm1575 = vcmp.eq.f32.partialorder %v180, %v1571
      %vm1576 = vcmp.eq.f32.partialorder %v181, %v1571
      %vm1577 = vcmp.eq.f32.partialorder %v182, %v1571
      %vm1578 = vcmp.eq.f32.partialorder %v183, %v1571
      %vm1579 = vcmp.eq.f32.partialorder %v184, %v1571
      %vm1580 = vcmp.eq.f32.partialorder %v185, %v1571
      %vm1581 = vcmp.eq.f32.partialorder %v186, %v1571
      %vm1582 = vcmp.eq.f32.partialorder %v187, %v1571
      %vm1583 = vcmp.eq.f32.partialorder %v188, %v1571
      %vm1584 = vcmp.eq.f32.partialorder %v189, %v1571
      %vm1585 = vcmp.eq.f32.partialorder %v190, %v1571
      %vm1586 = vcmp.eq.f32.partialorder %v191, %v1571
      %vm1587 = vcmp.eq.f32.partialorder %v192, %v1571
      %v1588 = vsel %vm1572, 1, 0
      %v1589 = vsel %vm1573, 1, 0
      %v1590 = vsel %vm1574, 1, 0
      %v1591 = vsel %vm1575, 1, 0
      %v1592 = vsel %vm1576, 1, 0
      %v1593 = vsel %vm1577, 1, 0
      %v1594 = vsel %vm1578, 1, 0
      %v1595 = vsel %vm1579, 1, 0
      %v1596 = vsel %vm1580, 1, 0
      %v1597 = vsel %vm1581, 1, 0
      %v1598 = vsel %vm1582, 1, 0
      %v1599 = vsel %vm1583, 1, 0
      %v1600 = vsel %vm1584, 1, 0
      %v1601 = vsel %vm1585, 1, 0
      %v1602 = vsel %vm1586, 1, 0
      %v1603 = vsel %vm1587, 1, 0
      %v1604 = vcvt.s32.f32 %v1588
      %v1605 = vcvt.s32.f32 %v1589
      %v1606 = vcvt.s32.f32 %v1590
      %v1607 = vcvt.s32.f32 %v1591
      %v1608 = vcvt.s32.f32 %v1592
      %v1609 = vcvt.s32.f32 %v1593
      %v1610 = vcvt.s32.f32 %v1594
      %v1611 = vcvt.s32.f32 %v1595
      %v1612 = vcvt.s32.f32 %v1596
      %v1613 = vcvt.s32.f32 %v1597
      %v1614 = vcvt.s32.f32 %v1598
      %v1615 = vcvt.s32.f32 %v1599
      %v1616 = vcvt.s32.f32 %v1600
      %v1617 = vcvt.s32.f32 %v1601
      %v1618 = vcvt.s32.f32 %v1602
      %v1619 = vcvt.s32.f32 %v1603
      %v1620 = vadd.f32 %v1466, %v1604
      %v1621 = vadd.f32 %v1467, %v1605
      %v1622 = vadd.f32 %v1468, %v1606
      %v1623 = vadd.f32 %v1469, %v1607
      %v1624 = vadd.f32 %v1470, %v1608
      %v1625 = vadd.f32 %v1471, %v1609
      %v1626 = vadd.f32 %v1472, %v1610
      %v1627 = vadd.f32 %v1473, %v1611
      %v1628 = vadd.f32 %v1474, %v1612
      %v1629 = vadd.f32 %v1475, %v1613
      %v1630 = vadd.f32 %v1476, %v1614
      %v1631 = vadd.f32 %v1477, %v1615
      %v1632 = vadd.f32 %v1478, %v1616
      %v1633 = vadd.f32 %v1479, %v1617
      %v1634 = vadd.f32 %v1480, %v1618
      %v1635 = vadd.f32 %v1481, %v1619
      %v1636 = vsel %vm1572, 1e+30, %v1482
      %v1637 = vsel %vm1573, 1e+30, %v1483
      %v1638 = vsel %vm1574, 1e+30, %v1484
      %v1639 = vsel %vm1575, 1e+30, %v1485
      %v1640 = vsel %vm1576, 1e+30, %v1486
      %v1641 = vsel %vm1577, 1e+30, %v1487
      %v1642 = vsel %vm1578, 1e+30, %v1488
      %v1643 = vsel %vm1579, 1e+30, %v1489
      %v1644 = vsel %vm1580, 1e+30, %v1490
      %v1645 = vsel %vm1581, 1e+30, %v1491
      %v1646 = vsel %vm1582, 1e+30, %v1492
      %v1647 = vsel %vm1583, 1e+30, %v1493
      %v1648 = vsel %vm1584, 1e+30, %v1494
      %v1649 = vsel %vm1585, 1e+30, %v1495
      %v1650 = vsel %vm1586, 1e+30, %v1496
      %v1651 = vsel %vm1587, 1e+30, %v1497
      %v1652 = vmin.f32 %v1636, %v1640
      %v1653 = vmin.f32 %v1637, %v1641
      %v1654 = vmin.f32 %v1638, %v1642
      %v1655 = vmin.f32 %v1639, %v1643
      %v1656 = vmin.f32 %v1652, %v1644
      %v1657 = vmin.f32 %v1653, %v1645
      %v1658 = vmin.f32 %v1654, %v1646
      %v1659 = vmin.f32 %v1655, %v1647
      %v1660 = vmin.f32 %v1656, %v1648
      %v1661 = vmin.f32 %v1657, %v1649
      %v1662 = vmin.f32 %v1658, %v1650
      %v1663 = vmin.f32 %v1659, %v1651
      %v1664 = vmin.f32 %v1660, %v1661
      %v1665 = vmin.f32 %v1662, %v1663
      %v1666 = vmin.f32 %v1664, %v1665
      %v1667 = vrot.slane %v1666, 4
      %v1668 = vmin.f32 %v1666, %v1667
      %v1669 = vrot.slane %v1668, 2
      %v1670 = vmin.f32 %v1668, %v1669
      %v1671 = vrot.slane %v1670, 1
      %v1672 = vmin.f32 %v1670, %v1671
      %vm1673 = vcmp.eq.f32.partialorder %v1636, %v1672
      %vm1674 = vcmp.eq.f32.partialorder %v1637, %v1672
      %vm1675 = vcmp.eq.f32.partialorder %v1638, %v1672
      %vm1676 = vcmp.eq.f32.partialorder %v1639, %v1672
      %vm1677 = vcmp.eq.f32.partialorder %v1640, %v1672
      %vm1678 = vcmp.eq.f32.partialorder %v1641, %v1672
      %vm1679 = vcmp.eq.f32.partialorder %v1642, %v1672
      %vm1680 = vcmp.eq.f32.partialorder %v1643, %v1672
      %vm1681 = vcmp.eq.f32.partialorder %v1644, %v1672
      %vm1682 = vcmp.eq.f32.partialorder %v1645, %v1672
      %vm1683 = vcmp.eq.f32.partialorder %v1646, %v1672
      %vm1684 = vcmp.eq.f32.partialorder %v1647, %v1672
      %vm1685 = vcmp.eq.f32.partialorder %v1648, %v1672
      %vm1686 = vcmp.eq.f32.partialorder %v1649, %v1672
      %vm1687 = vcmp.eq.f32.partialorder %v1650, %v1672
      %vm1688 = vcmp.eq.f32.partialorder %v1651, %v1672
      %v1689 = vsel %vm1673, %v177, 128.0
      %v1690 = vsel %vm1674, %v178, 128.0
      %v1691 = vsel %vm1675, %v179, 128.0
      %v1692 = vsel %vm1676, %v180, 128.0
      %v1693 = vsel %vm1677, %v181, 128.0
      %v1694 = vsel %vm1678, %v182, 128.0
      %v1695 = vsel %vm1679, %v183, 128.0
      %v1696 = vsel %vm1680, %v184, 128.0
      %v1697 = vsel %vm1681, %v185, 128.0
      %v1698 = vsel %vm1682, %v186, 128.0
      %v1699 = vsel %vm1683, %v187, 128.0
      %v1700 = vsel %vm1684, %v188, 128.0
      %v1701 = vsel %vm1685, %v189, 128.0
      %v1702 = vsel %vm1686, %v190, 128.0
      %v1703 = vsel %vm1687, %v191, 128.0
      %v1704 = vsel %vm1688, %v192, 128.0
      %v1705 = vmin.f32 %v1689, %v1693
      %v1706 = vmin.f32 %v1690, %v1694
      %v1707 = vmin.f32 %v1691, %v1695
      %v1708 = vmin.f32 %v1692, %v1696
      %v1709 = vmin.f32 %v1705, %v1697
      %v1710 = vmin.f32 %v1706, %v1698
      %v1711 = vmin.f32 %v1707, %v1699
      %v1712 = vmin.f32 %v1708, %v1700
      %v1713 = vmin.f32 %v1709, %v1701
      %v1714 = vmin.f32 %v1710, %v1702
      %v1715 = vmin.f32 %v1711, %v1703
      %v1716 = vmin.f32 %v1712, %v1704
      %v1717 = vmin.f32 %v1713, %v1714
      %v1718 = vmin.f32 %v1715, %v1716
      %v1719 = vmin.f32 %v1717, %v1718
      %v1720 = vrot.slane %v1719, 4
      %v1721 = vmin.f32 %v1719, %v1720
      %v1722 = vrot.slane %v1721, 2
      %v1723 = vmin.f32 %v1721, %v1722
      %v1724 = vrot.slane %v1723, 1
      %v1725 = vmin.f32 %v1723, %v1724
      %vm1726 = vcmp.eq.f32.partialorder %v177, %v1725
      %vm1727 = vcmp.eq.f32.partialorder %v178, %v1725
      %vm1728 = vcmp.eq.f32.partialorder %v179, %v1725
      %vm1729 = vcmp.eq.f32.partialorder %v180, %v1725
      %vm1730 = vcmp.eq.f32.partialorder %v181, %v1725
      %vm1731 = vcmp.eq.f32.partialorder %v182, %v1725
      %vm1732 = vcmp.eq.f32.partialorder %v183, %v1725
      %vm1733 = vcmp.eq.f32.partialorder %v184, %v1725
      %vm1734 = vcmp.eq.f32.partialorder %v185, %v1725
      %vm1735 = vcmp.eq.f32.partialorder %v186, %v1725
      %vm1736 = vcmp.eq.f32.partialorder %v187, %v1725
      %vm1737 = vcmp.eq.f32.partialorder %v188, %v1725
      %vm1738 = vcmp.eq.f32.partialorder %v189, %v1725
      %vm1739 = vcmp.eq.f32.partialorder %v190, %v1725
      %vm1740 = vcmp.eq.f32.partialorder %v191, %v1725
      %vm1741 = vcmp.eq.f32.partialorder %v192, %v1725
      %v1742 = vsel %vm1726, 1, 0
      %v1743 = vsel %vm1727, 1, 0
      %v1744 = vsel %vm1728, 1, 0
      %v1745 = vsel %vm1729, 1, 0
      %v1746 = vsel %vm1730, 1, 0
      %v1747 = vsel %vm1731, 1, 0
      %v1748 = vsel %vm1732, 1, 0
      %v1749 = vsel %vm1733, 1, 0
      %v1750 = vsel %vm1734, 1, 0
      %v1751 = vsel %vm1735, 1, 0
      %v1752 = vsel %vm1736, 1, 0
      %v1753 = vsel %vm1737, 1, 0
      %v1754 = vsel %vm1738, 1, 0
      %v1755 = vsel %vm1739, 1, 0
      %v1756 = vsel %vm1740, 1, 0
      %v1757 = vsel %vm1741, 1, 0
      %v1758 = vcvt.s32.f32 %v1742
      %v1759 = vcvt.s32.f32 %v1743
      %v1760 = vcvt.s32.f32 %v1744
      %v1761 = vcvt.s32.f32 %v1745
      %v1762 = vcvt.s32.f32 %v1746
      %v1763 = vcvt.s32.f32 %v1747
      %v1764 = vcvt.s32.f32 %v1748
      %v1765 = vcvt.s32.f32 %v1749
      %v1766 = vcvt.s32.f32 %v1750
      %v1767 = vcvt.s32.f32 %v1751
      %v1768 = vcvt.s32.f32 %v1752
      %v1769 = vcvt.s32.f32 %v1753
      %v1770 = vcvt.s32.f32 %v1754
      %v1771 = vcvt.s32.f32 %v1755
      %v1772 = vcvt.s32.f32 %v1756
      %v1773 = vcvt.s32.f32 %v1757
      %v1774 = vadd.f32 %v1620, %v1758
      %v1775 = vadd.f32 %v1621, %v1759
      %v1776 = vadd.f32 %v1622, %v1760
      %v1777 = vadd.f32 %v1623, %v1761
      %v1778 = vadd.f32 %v1624, %v1762
      %v1779 = vadd.f32 %v1625, %v1763
      %v1780 = vadd.f32 %v1626, %v1764
      %v1781 = vadd.f32 %v1627, %v1765
      %v1782 = vadd.f32 %v1628, %v1766
      %v1783 = vadd.f32 %v1629, %v1767
      %v1784 = vadd.f32 %v1630, %v1768
      %v1785 = vadd.f32 %v1631, %v1769
      %v1786 = vadd.f32 %v1632, %v1770
      %v1787 = vadd.f32 %v1633, %v1771
      %v1788 = vadd.f32 %v1634, %v1772
      %v1789 = vadd.f32 %v1635, %v1773
      %v1790 = vsel %vm1726, 1e+30, %v1636
      %v1791 = vsel %vm1727, 1e+30, %v1637
      %v1792 = vsel %vm1728, 1e+30, %v1638
      %v1793 = vsel %vm1729, 1e+30, %v1639
      %v1794 = vsel %vm1730, 1e+30, %v1640
      %v1795 = vsel %vm1731, 1e+30, %v1641
      %v1796 = vsel %vm1732, 1e+30, %v1642
      %v1797 = vsel %vm1733, 1e+30, %v1643
      %v1798 = vsel %vm1734, 1e+30, %v1644
      %v1799 = vsel %vm1735, 1e+30, %v1645
      %v1800 = vsel %vm1736, 1e+30, %v1646
      %v1801 = vsel %vm1737, 1e+30, %v1647
      %v1802 = vsel %vm1738, 1e+30, %v1648
      %v1803 = vsel %vm1739, 1e+30, %v1649
      %v1804 = vsel %vm1740, 1e+30, %v1650
      %v1805 = vsel %vm1741, 1e+30, %v1651
      %v1806 = vmin.f32 %v1790, %v1794
      %v1807 = vmin.f32 %v1791, %v1795
      %v1808 = vmin.f32 %v1792, %v1796
      %v1809 = vmin.f32 %v1793, %v1797
      %v1810 = vmin.f32 %v1806, %v1798
      %v1811 = vmin.f32 %v1807, %v1799
      %v1812 = vmin.f32 %v1808, %v1800
      %v1813 = vmin.f32 %v1809, %v1801
      %v1814 = vmin.f32 %v1810, %v1802
      %v1815 = vmin.f32 %v1811, %v1803
      %v1816 = vmin.f32 %v1812, %v1804
      %v1817 = vmin.f32 %v1813, %v1805
      %v1818 = vmin.f32 %v1814, %v1815
      %v1819 = vmin.f32 %v1816, %v1817
      %v1820 = vmin.f32 %v1818, %v1819
      %v1821 = vrot.slane %v1820, 4
      %v1822 = vmin.f32 %v1820, %v1821
      %v1823 = vrot.slane %v1822, 2
      %v1824 = vmin.f32 %v1822, %v1823
      %v1825 = vrot.slane %v1824, 1
      %v1826 = vmin.f32 %v1824, %v1825
      %vm1827 = vcmp.eq.f32.partialorder %v1790, %v1826
      %vm1828 = vcmp.eq.f32.partialorder %v1791, %v1826
      %vm1829 = vcmp.eq.f32.partialorder %v1792, %v1826
      %vm1830 = vcmp.eq.f32.partialorder %v1793, %v1826
      %vm1831 = vcmp.eq.f32.partialorder %v1794, %v1826
      %vm1832 = vcmp.eq.f32.partialorder %v1795, %v1826
      %vm1833 = vcmp.eq.f32.partialorder %v1796, %v1826
      %vm1834 = vcmp.eq.f32.partialorder %v1797, %v1826
      %vm1835 = vcmp.eq.f32.partialorder %v1798, %v1826
      %vm1836 = vcmp.eq.f32.partialorder %v1799, %v1826
      %vm1837 = vcmp.eq.f32.partialorder %v1800, %v1826
      %vm1838 = vcmp.eq.f32.partialorder %v1801, %v1826
      %vm1839 = vcmp.eq.f32.partialorder %v1802, %v1826
      %vm1840 = vcmp.eq.f32.partialorder %v1803, %v1826
      %vm1841 = vcmp.eq.f32.partialorder %v1804, %v1826
      %vm1842 = vcmp.eq.f32.partialorder %v1805, %v1826
      %v1843 = vsel %vm1827, %v177, 128.0
      %v1844 = vsel %vm1828, %v178, 128.0
      %v1845 = vsel %vm1829, %v179, 128.0
      %v1846 = vsel %vm1830, %v180, 128.0
      %v1847 = vsel %vm1831, %v181, 128.0
      %v1848 = vsel %vm1832, %v182, 128.0
      %v1849 = vsel %vm1833, %v183, 128.0
      %v1850 = vsel %vm1834, %v184, 128.0
      %v1851 = vsel %vm1835, %v185, 128.0
      %v1852 = vsel %vm1836, %v186, 128.0
      %v1853 = vsel %vm1837, %v187, 128.0
      %v1854 = vsel %vm1838, %v188, 128.0
      %v1855 = vsel %vm1839, %v189, 128.0
      %v1856 = vsel %vm1840, %v190, 128.0
      %v1857 = vsel %vm1841, %v191, 128.0
      %v1858 = vsel %vm1842, %v192, 128.0
      %v1859 = vmin.f32 %v1843, %v1847
      %v1860 = vmin.f32 %v1844, %v1848
      %v1861 = vmin.f32 %v1845, %v1849
      %v1862 = vmin.f32 %v1846, %v1850
      %v1863 = vmin.f32 %v1859, %v1851
      %v1864 = vmin.f32 %v1860, %v1852
      %v1865 = vmin.f32 %v1861, %v1853
      %v1866 = vmin.f32 %v1862, %v1854
      %v1867 = vmin.f32 %v1863, %v1855
      %v1868 = vmin.f32 %v1864, %v1856
      %v1869 = vmin.f32 %v1865, %v1857
      %v1870 = vmin.f32 %v1866, %v1858
      %v1871 = vmin.f32 %v1867, %v1868
      %v1872 = vmin.f32 %v1869, %v1870
      %v1873 = vmin.f32 %v1871, %v1872
      %v1874 = vrot.slane %v1873, 4
      %v1875 = vmin.f32 %v1873, %v1874
      %v1876 = vrot.slane %v1875, 2
      %v1877 = vmin.f32 %v1875, %v1876
      %v1878 = vrot.slane %v1877, 1
      %v1879 = vmin.f32 %v1877, %v1878
      %vm1880 = vcmp.eq.f32.partialorder %v177, %v1879
      %vm1881 = vcmp.eq.f32.partialorder %v178, %v1879
      %vm1882 = vcmp.eq.f32.partialorder %v179, %v1879
      %vm1883 = vcmp.eq.f32.partialorder %v180, %v1879
      %vm1884 = vcmp.eq.f32.partialorder %v181, %v1879
      %vm1885 = vcmp.eq.f32.partialorder %v182, %v1879
      %vm1886 = vcmp.eq.f32.partialorder %v183, %v1879
      %vm1887 = vcmp.eq.f32.partialorder %v184, %v1879
      %vm1888 = vcmp.eq.f32.partialorder %v185, %v1879
      %vm1889 = vcmp.eq.f32.partialorder %v186, %v1879
      %vm1890 = vcmp.eq.f32.partialorder %v187, %v1879
      %vm1891 = vcmp.eq.f32.partialorder %v188, %v1879
      %vm1892 = vcmp.eq.f32.partialorder %v189, %v1879
      %vm1893 = vcmp.eq.f32.partialorder %v190, %v1879
      %vm1894 = vcmp.eq.f32.partialorder %v191, %v1879
      %vm1895 = vcmp.eq.f32.partialorder %v192, %v1879
      %v1896 = vsel %vm1880, 1, 0
      %v1897 = vsel %vm1881, 1, 0
      %v1898 = vsel %vm1882, 1, 0
      %v1899 = vsel %vm1883, 1, 0
      %v1900 = vsel %vm1884, 1, 0
      %v1901 = vsel %vm1885, 1, 0
      %v1902 = vsel %vm1886, 1, 0
      %v1903 = vsel %vm1887, 1, 0
      %v1904 = vsel %vm1888, 1, 0
      %v1905 = vsel %vm1889, 1, 0
      %v1906 = vsel %vm1890, 1, 0
      %v1907 = vsel %vm1891, 1, 0
      %v1908 = vsel %vm1892, 1, 0
      %v1909 = vsel %vm1893, 1, 0
      %v1910 = vsel %vm1894, 1, 0
      %v1911 = vsel %vm1895, 1, 0
      %v1912 = vcvt.s32.f32 %v1896
      %v1913 = vcvt.s32.f32 %v1897
      %v1914 = vcvt.s32.f32 %v1898
      %v1915 = vcvt.s32.f32 %v1899
      %v1916 = vcvt.s32.f32 %v1900
      %v1917 = vcvt.s32.f32 %v1901
      %v1918 = vcvt.s32.f32 %v1902
      %v1919 = vcvt.s32.f32 %v1903
      %v1920 = vcvt.s32.f32 %v1904
      %v1921 = vcvt.s32.f32 %v1905
      %v1922 = vcvt.s32.f32 %v1906
      %v1923 = vcvt.s32.f32 %v1907
      %v1924 = vcvt.s32.f32 %v1908
      %v1925 = vcvt.s32.f32 %v1909
      %v1926 = vcvt.s32.f32 %v1910
      %v1927 = vcvt.s32.f32 %v1911
      %v1928 = vadd.f32 %v1774, %v1912
      %v1929 = vadd.f32 %v1775, %v1913
      %v1930 = vadd.f32 %v1776, %v1914
      %v1931 = vadd.f32 %v1777, %v1915
      %v1932 = vadd.f32 %v1778, %v1916
      %v1933 = vadd.f32 %v1779, %v1917
      %v1934 = vadd.f32 %v1780, %v1918
      %v1935 = vadd.f32 %v1781, %v1919
      %v1936 = vadd.f32 %v1782, %v1920
      %v1937 = vadd.f32 %v1783, %v1921
      %v1938 = vadd.f32 %v1784, %v1922
      %v1939 = vadd.f32 %v1785, %v1923
      %v1940 = vadd.f32 %v1786, %v1924
      %v1941 = vadd.f32 %v1787, %v1925
      %v1942 = vadd.f32 %v1788, %v1926
      %v1943 = vadd.f32 %v1789, %v1927
      %v1944 = vsel %vm1880, 1e+30, %v1790
      %v1945 = vsel %vm1881, 1e+30, %v1791
      %v1946 = vsel %vm1882, 1e+30, %v1792
      %v1947 = vsel %vm1883, 1e+30, %v1793
      %v1948 = vsel %vm1884, 1e+30, %v1794
      %v1949 = vsel %vm1885, 1e+30, %v1795
      %v1950 = vsel %vm1886, 1e+30, %v1796
      %v1951 = vsel %vm1887, 1e+30, %v1797
      %v1952 = vsel %vm1888, 1e+30, %v1798
      %v1953 = vsel %vm1889, 1e+30, %v1799
      %v1954 = vsel %vm1890, 1e+30, %v1800
      %v1955 = vsel %vm1891, 1e+30, %v1801
      %v1956 = vsel %vm1892, 1e+30, %v1802
      %v1957 = vsel %vm1893, 1e+30, %v1803
      %v1958 = vsel %vm1894, 1e+30, %v1804
      %v1959 = vsel %vm1895, 1e+30, %v1805
      %v1960 = vmin.f32 %v1944, %v1948
      %v1961 = vmin.f32 %v1945, %v1949
      %v1962 = vmin.f32 %v1946, %v1950
      %v1963 = vmin.f32 %v1947, %v1951
      %v1964 = vmin.f32 %v1960, %v1952
      %v1965 = vmin.f32 %v1961, %v1953
      %v1966 = vmin.f32 %v1962, %v1954
      %v1967 = vmin.f32 %v1963, %v1955
      %v1968 = vmin.f32 %v1964, %v1956
      %v1969 = vmin.f32 %v1965, %v1957
      %v1970 = vmin.f32 %v1966, %v1958
      %v1971 = vmin.f32 %v1967, %v1959
      %v1972 = vmin.f32 %v1968, %v1969
      %v1973 = vmin.f32 %v1970, %v1971
      %v1974 = vmin.f32 %v1972, %v1973
      %v1975 = vrot.slane %v1974, 4
      %v1976 = vmin.f32 %v1974, %v1975
      %v1977 = vrot.slane %v1976, 2
      %v1978 = vmin.f32 %v1976, %v1977
      %v1979 = vrot.slane %v1978, 1
      %v1980 = vmin.f32 %v1978, %v1979
      %vm1981 = vcmp.eq.f32.partialorder %v1944, %v1980
      %vm1982 = vcmp.eq.f32.partialorder %v1945, %v1980
      %vm1983 = vcmp.eq.f32.partialorder %v1946, %v1980
      %vm1984 = vcmp.eq.f32.partialorder %v1947, %v1980
      %vm1985 = vcmp.eq.f32.partialorder %v1948, %v1980
      %vm1986 = vcmp.eq.f32.partialorder %v1949, %v1980
      %vm1987 = vcmp.eq.f32.partialorder %v1950, %v1980
      %vm1988 = vcmp.eq.f32.partialorder %v1951, %v1980
      %vm1989 = vcmp.eq.f32.partialorder %v1952, %v1980
      %vm1990 = vcmp.eq.f32.partialorder %v1953, %v1980
      %vm1991 = vcmp.eq.f32.partialorder %v1954, %v1980
      %vm1992 = vcmp.eq.f32.partialorder %v1955, %v1980
      %vm1993 = vcmp.eq.f32.partialorder %v1956, %v1980
      %vm1994 = vcmp.eq.f32.partialorder %v1957, %v1980
      %vm1995 = vcmp.eq.f32.partialorder %v1958, %v1980
      %vm1996 = vcmp.eq.f32.partialorder %v1959, %v1980
      %v1997 = vsel %vm1981, %v177, 128.0
      %v1998 = vsel %vm1982, %v178, 128.0
      %v1999 = vsel %vm1983, %v179, 128.0
      %v2000 = vsel %vm1984, %v180, 128.0
      %v2001 = vsel %vm1985, %v181, 128.0
      %v2002 = vsel %vm1986, %v182, 128.0
      %v2003 = vsel %vm1987, %v183, 128.0
      %v2004 = vsel %vm1988, %v184, 128.0
      %v2005 = vsel %vm1989, %v185, 128.0
      %v2006 = vsel %vm1990, %v186, 128.0
      %v2007 = vsel %vm1991, %v187, 128.0
      %v2008 = vsel %vm1992, %v188, 128.0
      %v2009 = vsel %vm1993, %v189, 128.0
      %v2010 = vsel %vm1994, %v190, 128.0
      %v2011 = vsel %vm1995, %v191, 128.0
      %v2012 = vsel %vm1996, %v192, 128.0
      %v2013 = vmin.f32 %v1997, %v2001
      %v2014 = vmin.f32 %v1998, %v2002
      %v2015 = vmin.f32 %v1999, %v2003
      %v2016 = vmin.f32 %v2000, %v2004
      %v2017 = vmin.f32 %v2013, %v2005
      %v2018 = vmin.f32 %v2014, %v2006
      %v2019 = vmin.f32 %v2015, %v2007
      %v2020 = vmin.f32 %v2016, %v2008
      %v2021 = vmin.f32 %v2017, %v2009
      %v2022 = vmin.f32 %v2018, %v2010
      %v2023 = vmin.f32 %v2019, %v2011
      %v2024 = vmin.f32 %v2020, %v2012
      %v2025 = vmin.f32 %v2021, %v2022
      %v2026 = vmin.f32 %v2023, %v2024
      %v2027 = vmin.f32 %v2025, %v2026
      %v2028 = vrot.slane %v2027, 4
      %v2029 = vmin.f32 %v2027, %v2028
      %v2030 = vrot.slane %v2029, 2
      %v2031 = vmin.f32 %v2029, %v2030
      %v2032 = vrot.slane %v2031, 1
      %v2033 = vmin.f32 %v2031, %v2032
      %vm2034 = vcmp.eq.f32.partialorder %v177, %v2033
      %vm2035 = vcmp.eq.f32.partialorder %v178, %v2033
      %vm2036 = vcmp.eq.f32.partialorder %v179, %v2033
      %vm2037 = vcmp.eq.f32.partialorder %v180, %v2033
      %vm2038 = vcmp.eq.f32.partialorder %v181, %v2033
      %vm2039 = vcmp.eq.f32.partialorder %v182, %v2033
      %vm2040 = vcmp.eq.f32.partialorder %v183, %v2033
      %vm2041 = vcmp.eq.f32.partialorder %v184, %v2033
      %vm2042 = vcmp.eq.f32.partialorder %v185, %v2033
      %vm2043 = vcmp.eq.f32.partialorder %v186, %v2033
      %vm2044 = vcmp.eq.f32.partialorder %v187, %v2033
      %vm2045 = vcmp.eq.f32.partialorder %v188, %v2033
      %vm2046 = vcmp.eq.f32.partialorder %v189, %v2033
      %vm2047 = vcmp.eq.f32.partialorder %v190, %v2033
      %vm2048 = vcmp.eq.f32.partialorder %v191, %v2033
      %vm2049 = vcmp.eq.f32.partialorder %v192, %v2033
      %v2050 = vsel %vm2034, 1, 0
      %v2051 = vsel %vm2035, 1, 0
      %v2052 = vsel %vm2036, 1, 0
      %v2053 = vsel %vm2037, 1, 0
      %v2054 = vsel %vm2038, 1, 0
      %v2055 = vsel %vm2039, 1, 0
      %v2056 = vsel %vm2040, 1, 0
      %v2057 = vsel %vm2041, 1, 0
      %v2058 = vsel %vm2042, 1, 0
      %v2059 = vsel %vm2043, 1, 0
      %v2060 = vsel %vm2044, 1, 0
      %v2061 = vsel %vm2045, 1, 0
      %v2062 = vsel %vm2046, 1, 0
      %v2063 = vsel %vm2047, 1, 0
      %v2064 = vsel %vm2048, 1, 0
      %v2065 = vsel %vm2049, 1, 0
      %v2066 = vcvt.s32.f32 %v2050
      %v2067 = vcvt.s32.f32 %v2051
      %v2068 = vcvt.s32.f32 %v2052
      %v2069 = vcvt.s32.f32 %v2053
      %v2070 = vcvt.s32.f32 %v2054
      %v2071 = vcvt.s32.f32 %v2055
      %v2072 = vcvt.s32.f32 %v2056
      %v2073 = vcvt.s32.f32 %v2057
      %v2074 = vcvt.s32.f32 %v2058
      %v2075 = vcvt.s32.f32 %v2059
      %v2076 = vcvt.s32.f32 %v2060
      %v2077 = vcvt.s32.f32 %v2061
      %v2078 = vcvt.s32.f32 %v2062
      %v2079 = vcvt.s32.f32 %v2063
      %v2080 = vcvt.s32.f32 %v2064
      %v2081 = vcvt.s32.f32 %v2065
      %v2082 = vadd.f32 %v1928, %v2066
      %v2083 = vadd.f32 %v1929, %v2067
      %v2084 = vadd.f32 %v1930, %v2068
      %v2085 = vadd.f32 %v1931, %v2069
      %v2086 = vadd.f32 %v1932, %v2070
      %v2087 = vadd.f32 %v1933, %v2071
      %v2088 = vadd.f32 %v1934, %v2072
      %v2089 = vadd.f32 %v1935, %v2073
      %v2090 = vadd.f32 %v1936, %v2074
      %v2091 = vadd.f32 %v1937, %v2075
      %v2092 = vadd.f32 %v1938, %v2076
      %v2093 = vadd.f32 %v1939, %v2077
      %v2094 = vadd.f32 %v1940, %v2078
      %v2095 = vadd.f32 %v1941, %v2079
      %v2096 = vadd.f32 %v1942, %v2080
      %v2097 = vadd.f32 %v1943, %v2081
      %v2098 = vsel %vm2034, 1e+30, %v1944
      %v2099 = vsel %vm2035, 1e+30, %v1945
      %v2100 = vsel %vm2036, 1e+30, %v1946
      %v2101 = vsel %vm2037, 1e+30, %v1947
      %v2102 = vsel %vm2038, 1e+30, %v1948
      %v2103 = vsel %vm2039, 1e+30, %v1949
      %v2104 = vsel %vm2040, 1e+30, %v1950
      %v2105 = vsel %vm2041, 1e+30, %v1951
      %v2106 = vsel %vm2042, 1e+30, %v1952
      %v2107 = vsel %vm2043, 1e+30, %v1953
      %v2108 = vsel %vm2044, 1e+30, %v1954
      %v2109 = vsel %vm2045, 1e+30, %v1955
      %v2110 = vsel %vm2046, 1e+30, %v1956
      %v2111 = vsel %vm2047, 1e+30, %v1957
      %v2112 = vsel %vm2048, 1e+30, %v1958
      %v2113 = vsel %vm2049, 1e+30, %v1959
      %v2114 = vmin.f32 %v2098, %v2102
      %v2115 = vmin.f32 %v2099, %v2103
      %v2116 = vmin.f32 %v2100, %v2104
      %v2117 = vmin.f32 %v2101, %v2105
      %v2118 = vmin.f32 %v2114, %v2106
      %v2119 = vmin.f32 %v2115, %v2107
      %v2120 = vmin.f32 %v2116, %v2108
      %v2121 = vmin.f32 %v2117, %v2109
      %v2122 = vmin.f32 %v2118, %v2110
      %v2123 = vmin.f32 %v2119, %v2111
      %v2124 = vmin.f32 %v2120, %v2112
      %v2125 = vmin.f32 %v2121, %v2113
      %v2126 = vmin.f32 %v2122, %v2123
      %v2127 = vmin.f32 %v2124, %v2125
      %v2128 = vmin.f32 %v2126, %v2127
      %v2129 = vrot.slane %v2128, 4
      %v2130 = vmin.f32 %v2128, %v2129
      %v2131 = vrot.slane %v2130, 2
      %v2132 = vmin.f32 %v2130, %v2131
      %v2133 = vrot.slane %v2132, 1
      %v2134 = vmin.f32 %v2132, %v2133
      %vm2135 = vcmp.eq.f32.partialorder %v2098, %v2134
      %vm2136 = vcmp.eq.f32.partialorder %v2099, %v2134
      %vm2137 = vcmp.eq.f32.partialorder %v2100, %v2134
      %vm2138 = vcmp.eq.f32.partialorder %v2101, %v2134
      %vm2139 = vcmp.eq.f32.partialorder %v2102, %v2134
      %vm2140 = vcmp.eq.f32.partialorder %v2103, %v2134
      %vm2141 = vcmp.eq.f32.partialorder %v2104, %v2134
      %vm2142 = vcmp.eq.f32.partialorder %v2105, %v2134
      %vm2143 = vcmp.eq.f32.partialorder %v2106, %v2134
      %vm2144 = vcmp.eq.f32.partialorder %v2107, %v2134
      %vm2145 = vcmp.eq.f32.partialorder %v2108, %v2134
      %vm2146 = vcmp.eq.f32.partialorder %v2109, %v2134
      %vm2147 = vcmp.eq.f32.partialorder %v2110, %v2134
      %vm2148 = vcmp.eq.f32.partialorder %v2111, %v2134
      %vm2149 = vcmp.eq.f32.partialorder %v2112, %v2134
      %vm2150 = vcmp.eq.f32.partialorder %v2113, %v2134
      %v2151 = vsel %vm2135, %v177, 128.0
      %v2152 = vsel %vm2136, %v178, 128.0
      %v2153 = vsel %vm2137, %v179, 128.0
      %v2154 = vsel %vm2138, %v180, 128.0
      %v2155 = vsel %vm2139, %v181, 128.0
      %v2156 = vsel %vm2140, %v182, 128.0
      %v2157 = vsel %vm2141, %v183, 128.0
      %v2158 = vsel %vm2142, %v184, 128.0
      %v2159 = vsel %vm2143, %v185, 128.0
      %v2160 = vsel %vm2144, %v186, 128.0
      %v2161 = vsel %vm2145, %v187, 128.0
      %v2162 = vsel %vm2146, %v188, 128.0
      %v2163 = vsel %vm2147, %v189, 128.0
      %v2164 = vsel %vm2148, %v190, 128.0
      %v2165 = vsel %vm2149, %v191, 128.0
      %v2166 = vsel %vm2150, %v192, 128.0
      %v2167 = vmin.f32 %v2151, %v2155
      %v2168 = vmin.f32 %v2152, %v2156
      %v2169 = vmin.f32 %v2153, %v2157
      %v2170 = vmin.f32 %v2154, %v2158
      %v2171 = vmin.f32 %v2167, %v2159
      %v2172 = vmin.f32 %v2168, %v2160
      %v2173 = vmin.f32 %v2169, %v2161
      %v2174 = vmin.f32 %v2170, %v2162
      %v2175 = vmin.f32 %v2171, %v2163
      %v2176 = vmin.f32 %v2172, %v2164
      %v2177 = vmin.f32 %v2173, %v2165
      %v2178 = vmin.f32 %v2174, %v2166
      %v2179 = vmin.f32 %v2175, %v2176
      %v2180 = vmin.f32 %v2177, %v2178
      %v2181 = vmin.f32 %v2179, %v2180
      %v2182 = vrot.slane %v2181, 4
      %v2183 = vmin.f32 %v2181, %v2182
      %v2184 = vrot.slane %v2183, 2
      %v2185 = vmin.f32 %v2183, %v2184
      %v2186 = vrot.slane %v2185, 1
      %v2187 = vmin.f32 %v2185, %v2186
      %vm2188 = vcmp.eq.f32.partialorder %v177, %v2187
      %vm2189 = vcmp.eq.f32.partialorder %v178, %v2187
      %vm2190 = vcmp.eq.f32.partialorder %v179, %v2187
      %vm2191 = vcmp.eq.f32.partialorder %v180, %v2187
      %vm2192 = vcmp.eq.f32.partialorder %v181, %v2187
      %vm2193 = vcmp.eq.f32.partialorder %v182, %v2187
      %vm2194 = vcmp.eq.f32.partialorder %v183, %v2187
      %vm2195 = vcmp.eq.f32.partialorder %v184, %v2187
      %vm2196 = vcmp.eq.f32.partialorder %v185, %v2187
      %vm2197 = vcmp.eq.f32.partialorder %v186, %v2187
      %vm2198 = vcmp.eq.f32.partialorder %v187, %v2187
      %vm2199 = vcmp.eq.f32.partialorder %v188, %v2187
      %vm2200 = vcmp.eq.f32.partialorder %v189, %v2187
      %vm2201 = vcmp.eq.f32.partialorder %v190, %v2187
      %vm2202 = vcmp.eq.f32.partialorder %v191, %v2187
      %vm2203 = vcmp.eq.f32.partialorder %v192, %v2187
      %v2204 = vsel %vm2188, 1, 0
      %v2205 = vsel %vm2189, 1, 0
      %v2206 = vsel %vm2190, 1, 0
      %v2207 = vsel %vm2191, 1, 0
      %v2208 = vsel %vm2192, 1, 0
      %v2209 = vsel %vm2193, 1, 0
      %v2210 = vsel %vm2194, 1, 0
      %v2211 = vsel %vm2195, 1, 0
      %v2212 = vsel %vm2196, 1, 0
      %v2213 = vsel %vm2197, 1, 0
      %v2214 = vsel %vm2198, 1, 0
      %v2215 = vsel %vm2199, 1, 0
      %v2216 = vsel %vm2200, 1, 0
      %v2217 = vsel %vm2201, 1, 0
      %v2218 = vsel %vm2202, 1, 0
      %v2219 = vsel %vm2203, 1, 0
      %v2220 = vcvt.s32.f32 %v2204
      %v2221 = vcvt.s32.f32 %v2205
      %v2222 = vcvt.s32.f32 %v2206
      %v2223 = vcvt.s32.f32 %v2207
      %v2224 = vcvt.s32.f32 %v2208
      %v2225 = vcvt.s32.f32 %v2209
      %v2226 = vcvt.s32.f32 %v2210
      %v2227 = vcvt.s32.f32 %v2211
      %v2228 = vcvt.s32.f32 %v2212
      %v2229 = vcvt.s32.f32 %v2213
      %v2230 = vcvt.s32.f32 %v2214
      %v2231 = vcvt.s32.f32 %v2215
      %v2232 = vcvt.s32.f32 %v2216
      %v2233 = vcvt.s32.f32 %v2217
      %v2234 = vcvt.s32.f32 %v2218
      %v2235 = vcvt.s32.f32 %v2219
      %v2236 = vadd.f32 %v2082, %v2220
      %v2237 = vadd.f32 %v2083, %v2221
      %v2238 = vadd.f32 %v2084, %v2222
      %v2239 = vadd.f32 %v2085, %v2223
      %v2240 = vadd.f32 %v2086, %v2224
      %v2241 = vadd.f32 %v2087, %v2225
      %v2242 = vadd.f32 %v2088, %v2226
      %v2243 = vadd.f32 %v2089, %v2227
      %v2244 = vadd.f32 %v2090, %v2228
      %v2245 = vadd.f32 %v2091, %v2229
      %v2246 = vadd.f32 %v2092, %v2230
      %v2247 = vadd.f32 %v2093, %v2231
      %v2248 = vadd.f32 %v2094, %v2232
      %v2249 = vadd.f32 %v2095, %v2233
      %v2250 = vadd.f32 %v2096, %v2234
      %v2251 = vadd.f32 %v2097, %v2235
      %v2252 = vsel %vm2188, 1e+30, %v2098
      %v2253 = vsel %vm2189, 1e+30, %v2099
      %v2254 = vsel %vm2190, 1e+30, %v2100
      %v2255 = vsel %vm2191, 1e+30, %v2101
      %v2256 = vsel %vm2192, 1e+30, %v2102
      %v2257 = vsel %vm2193, 1e+30, %v2103
      %v2258 = vsel %vm2194, 1e+30, %v2104
      %v2259 = vsel %vm2195, 1e+30, %v2105
      %v2260 = vsel %vm2196, 1e+30, %v2106
      %v2261 = vsel %vm2197, 1e+30, %v2107
      %v2262 = vsel %vm2198, 1e+30, %v2108
      %v2263 = vsel %vm2199, 1e+30, %v2109
      %v2264 = vsel %vm2200, 1e+30, %v2110
      %v2265 = vsel %vm2201, 1e+30, %v2111
      %v2266 = vsel %vm2202, 1e+30, %v2112
      %v2267 = vsel %vm2203, 1e+30, %v2113
      %v2268 = vmin.f32 %v2252, %v2256
      %v2269 = vmin.f32 %v2253, %v2257
      %v2270 = vmin.f32 %v2254, %v2258
      %v2271 = vmin.f32 %v2255, %v2259
      %v2272 = vmin.f32 %v2268, %v2260
      %v2273 = vmin.f32 %v2269, %v2261
      %v2274 = vmin.f32 %v2270, %v2262
      %v2275 = vmin.f32 %v2271, %v2263
      %v2276 = vmin.f32 %v2272, %v2264
      %v2277 = vmin.f32 %v2273, %v2265
      %v2278 = vmin.f32 %v2274, %v2266
      %v2279 = vmin.f32 %v2275, %v2267
      %v2280 = vmin.f32 %v2276, %v2277
      %v2281 = vmin.f32 %v2278, %v2279
      %v2282 = vmin.f32 %v2280, %v2281
      %v2283 = vrot.slane %v2282, 4
      %v2284 = vmin.f32 %v2282, %v2283
      %v2285 = vrot.slane %v2284, 2
      %v2286 = vmin.f32 %v2284, %v2285
      %v2287 = vrot.slane %v2286, 1
      %v2288 = vmin.f32 %v2286, %v2287
      %vm2289 = vcmp.eq.f32.partialorder %v2252, %v2288
      %vm2290 = vcmp.eq.f32.partialorder %v2253, %v2288
      %vm2291 = vcmp.eq.f32.partialorder %v2254, %v2288
      %vm2292 = vcmp.eq.f32.partialorder %v2255, %v2288
      %vm2293 = vcmp.eq.f32.partialorder %v2256, %v2288
      %vm2294 = vcmp.eq.f32.partialorder %v2257, %v2288
      %vm2295 = vcmp.eq.f32.partialorder %v2258, %v2288
      %vm2296 = vcmp.eq.f32.partialorder %v2259, %v2288
      %vm2297 = vcmp.eq.f32.partialorder %v2260, %v2288
      %vm2298 = vcmp.eq.f32.partialorder %v2261, %v2288
      %vm2299 = vcmp.eq.f32.partialorder %v2262, %v2288
      %vm2300 = vcmp.eq.f32.partialorder %v2263, %v2288
      %vm2301 = vcmp.eq.f32.partialorder %v2264, %v2288
      %vm2302 = vcmp.eq.f32.partialorder %v2265, %v2288
      %vm2303 = vcmp.eq.f32.partialorder %v2266, %v2288
      %vm2304 = vcmp.eq.f32.partialorder %v2267, %v2288
      %v2305 = vsel %vm2289, %v177, 128.0
      %v2306 = vsel %vm2290, %v178, 128.0
      %v2307 = vsel %vm2291, %v179, 128.0
      %v2308 = vsel %vm2292, %v180, 128.0
      %v2309 = vsel %vm2293, %v181, 128.0
      %v2310 = vsel %vm2294, %v182, 128.0
      %v2311 = vsel %vm2295, %v183, 128.0
      %v2312 = vsel %vm2296, %v184, 128.0
      %v2313 = vsel %vm2297, %v185, 128.0
      %v2314 = vsel %vm2298, %v186, 128.0
      %v2315 = vsel %vm2299, %v187, 128.0
      %v2316 = vsel %vm2300, %v188, 128.0
      %v2317 = vsel %vm2301, %v189, 128.0
      %v2318 = vsel %vm2302, %v190, 128.0
      %v2319 = vsel %vm2303, %v191, 128.0
      %v2320 = vsel %vm2304, %v192, 128.0
      %v2321 = vmin.f32 %v2305, %v2309
      %v2322 = vmin.f32 %v2306, %v2310
      %v2323 = vmin.f32 %v2307, %v2311
      %v2324 = vmin.f32 %v2308, %v2312
      %v2325 = vmin.f32 %v2321, %v2313
      %v2326 = vmin.f32 %v2322, %v2314
      %v2327 = vmin.f32 %v2323, %v2315
      %v2328 = vmin.f32 %v2324, %v2316
      %v2329 = vmin.f32 %v2325, %v2317
      %v2330 = vmin.f32 %v2326, %v2318
      %v2331 = vmin.f32 %v2327, %v2319
      %v2332 = vmin.f32 %v2328, %v2320
      %v2333 = vmin.f32 %v2329, %v2330
      %v2334 = vmin.f32 %v2331, %v2332
      %v2335 = vmin.f32 %v2333, %v2334
      %v2336 = vrot.slane %v2335, 4
      %v2337 = vmin.f32 %v2335, %v2336
      %v2338 = vrot.slane %v2337, 2
      %v2339 = vmin.f32 %v2337, %v2338
      %v2340 = vrot.slane %v2339, 1
      %v2341 = vmin.f32 %v2339, %v2340
      %vm2342 = vcmp.eq.f32.partialorder %v177, %v2341
      %vm2343 = vcmp.eq.f32.partialorder %v178, %v2341
      %vm2344 = vcmp.eq.f32.partialorder %v179, %v2341
      %vm2345 = vcmp.eq.f32.partialorder %v180, %v2341
      %vm2346 = vcmp.eq.f32.partialorder %v181, %v2341
      %vm2347 = vcmp.eq.f32.partialorder %v182, %v2341
      %vm2348 = vcmp.eq.f32.partialorder %v183, %v2341
      %vm2349 = vcmp.eq.f32.partialorder %v184, %v2341
      %vm2350 = vcmp.eq.f32.partialorder %v185, %v2341
      %vm2351 = vcmp.eq.f32.partialorder %v186, %v2341
      %vm2352 = vcmp.eq.f32.partialorder %v187, %v2341
      %vm2353 = vcmp.eq.f32.partialorder %v188, %v2341
      %vm2354 = vcmp.eq.f32.partialorder %v189, %v2341
      %vm2355 = vcmp.eq.f32.partialorder %v190, %v2341
      %vm2356 = vcmp.eq.f32.partialorder %v191, %v2341
      %vm2357 = vcmp.eq.f32.partialorder %v192, %v2341
      %v2358 = vsel %vm2342, 1, 0
      %v2359 = vsel %vm2343, 1, 0
      %v2360 = vsel %vm2344, 1, 0
      %v2361 = vsel %vm2345, 1, 0
      %v2362 = vsel %vm2346, 1, 0
      %v2363 = vsel %vm2347, 1, 0
      %v2364 = vsel %vm2348, 1, 0
      %v2365 = vsel %vm2349, 1, 0
      %v2366 = vsel %vm2350, 1, 0
      %v2367 = vsel %vm2351, 1, 0
      %v2368 = vsel %vm2352, 1, 0
      %v2369 = vsel %vm2353, 1, 0
      %v2370 = vsel %vm2354, 1, 0
      %v2371 = vsel %vm2355, 1, 0
      %v2372 = vsel %vm2356, 1, 0
      %v2373 = vsel %vm2357, 1, 0
      %v2374 = vcvt.s32.f32 %v2358
      %v2375 = vcvt.s32.f32 %v2359
      %v2376 = vcvt.s32.f32 %v2360
      %v2377 = vcvt.s32.f32 %v2361
      %v2378 = vcvt.s32.f32 %v2362
      %v2379 = vcvt.s32.f32 %v2363
      %v2380 = vcvt.s32.f32 %v2364
      %v2381 = vcvt.s32.f32 %v2365
      %v2382 = vcvt.s32.f32 %v2366
      %v2383 = vcvt.s32.f32 %v2367
      %v2384 = vcvt.s32.f32 %v2368
      %v2385 = vcvt.s32.f32 %v2369
      %v2386 = vcvt.s32.f32 %v2370
      %v2387 = vcvt.s32.f32 %v2371
      %v2388 = vcvt.s32.f32 %v2372
      %v2389 = vcvt.s32.f32 %v2373
      %v2390 = vadd.f32 %v2236, %v2374
      %v2391 = vadd.f32 %v2237, %v2375
      %v2392 = vadd.f32 %v2238, %v2376
      %v2393 = vadd.f32 %v2239, %v2377
      %v2394 = vadd.f32 %v2240, %v2378
      %v2395 = vadd.f32 %v2241, %v2379
      %v2396 = vadd.f32 %v2242, %v2380
      %v2397 = vadd.f32 %v2243, %v2381
      %v2398 = vadd.f32 %v2244, %v2382
      %v2399 = vadd.f32 %v2245, %v2383
      %v2400 = vadd.f32 %v2246, %v2384
      %v2401 = vadd.f32 %v2247, %v2385
      %v2402 = vadd.f32 %v2248, %v2386
      %v2403 = vadd.f32 %v2249, %v2387
      %v2404 = vadd.f32 %v2250, %v2388
      %v2405 = vadd.f32 %v2251, %v2389
      %v2406 = vsel %vm2342, 1e+30, %v2252
      %v2407 = vsel %vm2343, 1e+30, %v2253
      %v2408 = vsel %vm2344, 1e+30, %v2254
      %v2409 = vsel %vm2345, 1e+30, %v2255
      %v2410 = vsel %vm2346, 1e+30, %v2256
      %v2411 = vsel %vm2347, 1e+30, %v2257
      %v2412 = vsel %vm2348, 1e+30, %v2258
      %v2413 = vsel %vm2349, 1e+30, %v2259
      %v2414 = vsel %vm2350, 1e+30, %v2260
      %v2415 = vsel %vm2351, 1e+30, %v2261
      %v2416 = vsel %vm2352, 1e+30, %v2262
      %v2417 = vsel %vm2353, 1e+30, %v2263
      %v2418 = vsel %vm2354, 1e+30, %v2264
      %v2419 = vsel %vm2355, 1e+30, %v2265
      %v2420 = vsel %vm2356, 1e+30, %v2266
      %v2421 = vsel %vm2357, 1e+30, %v2267
      %v2422 = vmin.f32 %v2406, %v2410
      %v2423 = vmin.f32 %v2407, %v2411
      %v2424 = vmin.f32 %v2408, %v2412
      %v2425 = vmin.f32 %v2409, %v2413
      %v2426 = vmin.f32 %v2422, %v2414
      %v2427 = vmin.f32 %v2423, %v2415
      %v2428 = vmin.f32 %v2424, %v2416
      %v2429 = vmin.f32 %v2425, %v2417
      %v2430 = vmin.f32 %v2426, %v2418
      %v2431 = vmin.f32 %v2427, %v2419
      %v2432 = vmin.f32 %v2428, %v2420
      %v2433 = vmin.f32 %v2429, %v2421
      %v2434 = vmin.f32 %v2430, %v2431
      %v2435 = vmin.f32 %v2432, %v2433
      %v2436 = vmin.f32 %v2434, %v2435
      %v2437 = vrot.slane %v2436, 4
      %v2438 = vmin.f32 %v2436, %v2437
      %v2439 = vrot.slane %v2438, 2
      %v2440 = vmin.f32 %v2438, %v2439
      %v2441 = vrot.slane %v2440, 1
      %v2442 = vmin.f32 %v2440, %v2441
      %vm2443 = vcmp.eq.f32.partialorder %v2406, %v2442
      %vm2444 = vcmp.eq.f32.partialorder %v2407, %v2442
      %vm2445 = vcmp.eq.f32.partialorder %v2408, %v2442
      %vm2446 = vcmp.eq.f32.partialorder %v2409, %v2442
      %vm2447 = vcmp.eq.f32.partialorder %v2410, %v2442
      %vm2448 = vcmp.eq.f32.partialorder %v2411, %v2442
      %vm2449 = vcmp.eq.f32.partialorder %v2412, %v2442
      %vm2450 = vcmp.eq.f32.partialorder %v2413, %v2442
      %vm2451 = vcmp.eq.f32.partialorder %v2414, %v2442
      %vm2452 = vcmp.eq.f32.partialorder %v2415, %v2442
      %vm2453 = vcmp.eq.f32.partialorder %v2416, %v2442
      %vm2454 = vcmp.eq.f32.partialorder %v2417, %v2442
      %vm2455 = vcmp.eq.f32.partialorder %v2418, %v2442
      %vm2456 = vcmp.eq.f32.partialorder %v2419, %v2442
      %vm2457 = vcmp.eq.f32.partialorder %v2420, %v2442
      %vm2458 = vcmp.eq.f32.partialorder %v2421, %v2442
      %v2459 = vsel %vm2443, %v177, 128.0
      %v2460 = vsel %vm2444, %v178, 128.0
      %v2461 = vsel %vm2445, %v179, 128.0
      %v2462 = vsel %vm2446, %v180, 128.0
      %v2463 = vsel %vm2447, %v181, 128.0
      %v2464 = vsel %vm2448, %v182, 128.0
      %v2465 = vsel %vm2449, %v183, 128.0
      %v2466 = vsel %vm2450, %v184, 128.0
      %v2467 = vsel %vm2451, %v185, 128.0
      %v2468 = vsel %vm2452, %v186, 128.0
      %v2469 = vsel %vm2453, %v187, 128.0
      %v2470 = vsel %vm2454, %v188, 128.0
      %v2471 = vsel %vm2455, %v189, 128.0
      %v2472 = vsel %vm2456, %v190, 128.0
      %v2473 = vsel %vm2457, %v191, 128.0
      %v2474 = vsel %vm2458, %v192, 128.0
      %v2475 = vmin.f32 %v2459, %v2463
      %v2476 = vmin.f32 %v2460, %v2464
      %v2477 = vmin.f32 %v2461, %v2465
      %v2478 = vmin.f32 %v2462, %v2466
      %v2479 = vmin.f32 %v2475, %v2467
      %v2480 = vmin.f32 %v2476, %v2468
      %v2481 = vmin.f32 %v2477, %v2469
      %v2482 = vmin.f32 %v2478, %v2470
      %v2483 = vmin.f32 %v2479, %v2471
      %v2484 = vmin.f32 %v2480, %v2472
      %v2485 = vmin.f32 %v2481, %v2473
      %v2486 = vmin.f32 %v2482, %v2474
      %v2487 = vmin.f32 %v2483, %v2484
      %v2488 = vmin.f32 %v2485, %v2486
      %v2489 = vmin.f32 %v2487, %v2488
      %v2490 = vrot.slane %v2489, 4
      %v2491 = vmin.f32 %v2489, %v2490
      %v2492 = vrot.slane %v2491, 2
      %v2493 = vmin.f32 %v2491, %v2492
      %v2494 = vrot.slane %v2493, 1
      %v2495 = vmin.f32 %v2493, %v2494
      %vm2496 = vcmp.eq.f32.partialorder %v177, %v2495
      %vm2497 = vcmp.eq.f32.partialorder %v178, %v2495
      %vm2498 = vcmp.eq.f32.partialorder %v179, %v2495
      %vm2499 = vcmp.eq.f32.partialorder %v180, %v2495
      %vm2500 = vcmp.eq.f32.partialorder %v181, %v2495
      %vm2501 = vcmp.eq.f32.partialorder %v182, %v2495
      %vm2502 = vcmp.eq.f32.partialorder %v183, %v2495
      %vm2503 = vcmp.eq.f32.partialorder %v184, %v2495
      %vm2504 = vcmp.eq.f32.partialorder %v185, %v2495
      %vm2505 = vcmp.eq.f32.partialorder %v186, %v2495
      %vm2506 = vcmp.eq.f32.partialorder %v187, %v2495
      %vm2507 = vcmp.eq.f32.partialorder %v188, %v2495
      %vm2508 = vcmp.eq.f32.partialorder %v189, %v2495
      %vm2509 = vcmp.eq.f32.partialorder %v190, %v2495
      %vm2510 = vcmp.eq.f32.partialorder %v191, %v2495
      %vm2511 = vcmp.eq.f32.partialorder %v192, %v2495
      %v2512 = vsel %vm2496, 1, 0
      %v2513 = vsel %vm2497, 1, 0
      %v2514 = vsel %vm2498, 1, 0
      %v2515 = vsel %vm2499, 1, 0
      %v2516 = vsel %vm2500, 1, 0
      %v2517 = vsel %vm2501, 1, 0
      %v2518 = vsel %vm2502, 1, 0
      %v2519 = vsel %vm2503, 1, 0
      %v2520 = vsel %vm2504, 1, 0
      %v2521 = vsel %vm2505, 1, 0
      %v2522 = vsel %vm2506, 1, 0
      %v2523 = vsel %vm2507, 1, 0
      %v2524 = vsel %vm2508, 1, 0
      %v2525 = vsel %vm2509, 1, 0
      %v2526 = vsel %vm2510, 1, 0
      %v2527 = vsel %vm2511, 1, 0
      %v2528 = vcvt.s32.f32 %v2512
      %v2529 = vcvt.s32.f32 %v2513
      %v2530 = vcvt.s32.f32 %v2514
      %v2531 = vcvt.s32.f32 %v2515
      %v2532 = vcvt.s32.f32 %v2516
      %v2533 = vcvt.s32.f32 %v2517
      %v2534 = vcvt.s32.f32 %v2518
      %v2535 = vcvt.s32.f32 %v2519
      %v2536 = vcvt.s32.f32 %v2520
      %v2537 = vcvt.s32.f32 %v2521
      %v2538 = vcvt.s32.f32 %v2522
      %v2539 = vcvt.s32.f32 %v2523
      %v2540 = vcvt.s32.f32 %v2524
      %v2541 = vcvt.s32.f32 %v2525
      %v2542 = vcvt.s32.f32 %v2526
      %v2543 = vcvt.s32.f32 %v2527
      %v2544 = vadd.f32 %v2390, %v2528
      %v2545 = vadd.f32 %v2391, %v2529
      %v2546 = vadd.f32 %v2392, %v2530
      %v2547 = vadd.f32 %v2393, %v2531
      %v2548 = vadd.f32 %v2394, %v2532
      %v2549 = vadd.f32 %v2395, %v2533
      %v2550 = vadd.f32 %v2396, %v2534
      %v2551 = vadd.f32 %v2397, %v2535
      %v2552 = vadd.f32 %v2398, %v2536
      %v2553 = vadd.f32 %v2399, %v2537
      %v2554 = vadd.f32 %v2400, %v2538
      %v2555 = vadd.f32 %v2401, %v2539
      %v2556 = vadd.f32 %v2402, %v2540
      %v2557 = vadd.f32 %v2403, %v2541
      %v2558 = vadd.f32 %v2404, %v2542
      %v2559 = vadd.f32 %v2405, %v2543
      %v2560 = vsel %vm2496, 1e+30, %v2406
      %v2561 = vsel %vm2497, 1e+30, %v2407
      %v2562 = vsel %vm2498, 1e+30, %v2408
      %v2563 = vsel %vm2499, 1e+30, %v2409
      %v2564 = vsel %vm2500, 1e+30, %v2410
      %v2565 = vsel %vm2501, 1e+30, %v2411
      %v2566 = vsel %vm2502, 1e+30, %v2412
      %v2567 = vsel %vm2503, 1e+30, %v2413
      %v2568 = vsel %vm2504, 1e+30, %v2414
      %v2569 = vsel %vm2505, 1e+30, %v2415
      %v2570 = vsel %vm2506, 1e+30, %v2416
      %v2571 = vsel %vm2507, 1e+30, %v2417
      %v2572 = vsel %vm2508, 1e+30, %v2418
      %v2573 = vsel %vm2509, 1e+30, %v2419
      %v2574 = vsel %vm2510, 1e+30, %v2420
      %v2575 = vsel %vm2511, 1e+30, %v2421
      %v2576 = vmin.f32 %v2560, %v2564
      %v2577 = vmin.f32 %v2561, %v2565
      %v2578 = vmin.f32 %v2562, %v2566
      %v2579 = vmin.f32 %v2563, %v2567
      %v2580 = vmin.f32 %v2576, %v2568
      %v2581 = vmin.f32 %v2577, %v2569
      %v2582 = vmin.f32 %v2578, %v2570
      %v2583 = vmin.f32 %v2579, %v2571
      %v2584 = vmin.f32 %v2580, %v2572
      %v2585 = vmin.f32 %v2581, %v2573
      %v2586 = vmin.f32 %v2582, %v2574
      %v2587 = vmin.f32 %v2583, %v2575
      %v2588 = vmin.f32 %v2584, %v2585
      %v2589 = vmin.f32 %v2586, %v2587
      %v2590 = vmin.f32 %v2588, %v2589
      %v2591 = vrot.slane %v2590, 4
      %v2592 = vmin.f32 %v2590, %v2591
      %v2593 = vrot.slane %v2592, 2
      %v2594 = vmin.f32 %v2592, %v2593
      %v2595 = vrot.slane %v2594, 1
      %v2596 = vmin.f32 %v2594, %v2595
      %vm2597 = vcmp.eq.f32.partialorder %v2560, %v2596
      %vm2598 = vcmp.eq.f32.partialorder %v2561, %v2596
      %vm2599 = vcmp.eq.f32.partialorder %v2562, %v2596
      %vm2600 = vcmp.eq.f32.partialorder %v2563, %v2596
      %vm2601 = vcmp.eq.f32.partialorder %v2564, %v2596
      %vm2602 = vcmp.eq.f32.partialorder %v2565, %v2596
      %vm2603 = vcmp.eq.f32.partialorder %v2566, %v2596
      %vm2604 = vcmp.eq.f32.partialorder %v2567, %v2596
      %vm2605 = vcmp.eq.f32.partialorder %v2568, %v2596
      %vm2606 = vcmp.eq.f32.partialorder %v2569, %v2596
      %vm2607 = vcmp.eq.f32.partialorder %v2570, %v2596
      %vm2608 = vcmp.eq.f32.partialorder %v2571, %v2596
      %vm2609 = vcmp.eq.f32.partialorder %v2572, %v2596
      %vm2610 = vcmp.eq.f32.partialorder %v2573, %v2596
      %vm2611 = vcmp.eq.f32.partialorder %v2574, %v2596
      %vm2612 = vcmp.eq.f32.partialorder %v2575, %v2596
      %v2613 = vsel %vm2597, %v177, 128.0
      %v2614 = vsel %vm2598, %v178, 128.0
      %v2615 = vsel %vm2599, %v179, 128.0
      %v2616 = vsel %vm2600, %v180, 128.0
      %v2617 = vsel %vm2601, %v181, 128.0
      %v2618 = vsel %vm2602, %v182, 128.0
      %v2619 = vsel %vm2603, %v183, 128.0
      %v2620 = vsel %vm2604, %v184, 128.0
      %v2621 = vsel %vm2605, %v185, 128.0
      %v2622 = vsel %vm2606, %v186, 128.0
      %v2623 = vsel %vm2607, %v187, 128.0
      %v2624 = vsel %vm2608, %v188, 128.0
      %v2625 = vsel %vm2609, %v189, 128.0
      %v2626 = vsel %vm2610, %v190, 128.0
      %v2627 = vsel %vm2611, %v191, 128.0
      %v2628 = vsel %vm2612, %v192, 128.0
      %v2629 = vmin.f32 %v2613, %v2617
      %v2630 = vmin.f32 %v2614, %v2618
      %v2631 = vmin.f32 %v2615, %v2619
      %v2632 = vmin.f32 %v2616, %v2620
      %v2633 = vmin.f32 %v2629, %v2621
      %v2634 = vmin.f32 %v2630, %v2622
      %v2635 = vmin.f32 %v2631, %v2623
      %v2636 = vmin.f32 %v2632, %v2624
      %v2637 = vmin.f32 %v2633, %v2625
      %v2638 = vmin.f32 %v2634, %v2626
      %v2639 = vmin.f32 %v2635, %v2627
      %v2640 = vmin.f32 %v2636, %v2628
      %v2641 = vmin.f32 %v2637, %v2638
      %v2642 = vmin.f32 %v2639, %v2640
      %v2643 = vmin.f32 %v2641, %v2642
      %v2644 = vrot.slane %v2643, 4
      %v2645 = vmin.f32 %v2643, %v2644
      %v2646 = vrot.slane %v2645, 2
      %v2647 = vmin.f32 %v2645, %v2646
      %v2648 = vrot.slane %v2647, 1
      %v2649 = vmin.f32 %v2647, %v2648
      %vm2650 = vcmp.eq.f32.partialorder %v177, %v2649
      %vm2651 = vcmp.eq.f32.partialorder %v178, %v2649
      %vm2652 = vcmp.eq.f32.partialorder %v179, %v2649
      %vm2653 = vcmp.eq.f32.partialorder %v180, %v2649
      %vm2654 = vcmp.eq.f32.partialorder %v181, %v2649
      %vm2655 = vcmp.eq.f32.partialorder %v182, %v2649
      %vm2656 = vcmp.eq.f32.partialorder %v183, %v2649
      %vm2657 = vcmp.eq.f32.partialorder %v184, %v2649
      %vm2658 = vcmp.eq.f32.partialorder %v185, %v2649
      %vm2659 = vcmp.eq.f32.partialorder %v186, %v2649
      %vm2660 = vcmp.eq.f32.partialorder %v187, %v2649
      %vm2661 = vcmp.eq.f32.partialorder %v188, %v2649
      %vm2662 = vcmp.eq.f32.partialorder %v189, %v2649
      %vm2663 = vcmp.eq.f32.partialorder %v190, %v2649
      %vm2664 = vcmp.eq.f32.partialorder %v191, %v2649
      %vm2665 = vcmp.eq.f32.partialorder %v192, %v2649
      %v2666 = vsel %vm2650, 1, 0
      %v2667 = vsel %vm2651, 1, 0
      %v2668 = vsel %vm2652, 1, 0
      %v2669 = vsel %vm2653, 1, 0
      %v2670 = vsel %vm2654, 1, 0
      %v2671 = vsel %vm2655, 1, 0
      %v2672 = vsel %vm2656, 1, 0
      %v2673 = vsel %vm2657, 1, 0
      %v2674 = vsel %vm2658, 1, 0
      %v2675 = vsel %vm2659, 1, 0
      %v2676 = vsel %vm2660, 1, 0
      %v2677 = vsel %vm2661, 1, 0
      %v2678 = vsel %vm2662, 1, 0
      %v2679 = vsel %vm2663, 1, 0
      %v2680 = vsel %vm2664, 1, 0
      %v2681 = vsel %vm2665, 1, 0
      %v2682 = vcvt.s32.f32 %v2666
      %v2683 = vcvt.s32.f32 %v2667
      %v2684 = vcvt.s32.f32 %v2668
      %v2685 = vcvt.s32.f32 %v2669
      %v2686 = vcvt.s32.f32 %v2670
      %v2687 = vcvt.s32.f32 %v2671
      %v2688 = vcvt.s32.f32 %v2672
      %v2689 = vcvt.s32.f32 %v2673
      %v2690 = vcvt.s32.f32 %v2674
      %v2691 = vcvt.s32.f32 %v2675
      %v2692 = vcvt.s32.f32 %v2676
      %v2693 = vcvt.s32.f32 %v2677
      %v2694 = vcvt.s32.f32 %v2678
      %v2695 = vcvt.s32.f32 %v2679
      %v2696 = vcvt.s32.f32 %v2680
      %v2697 = vcvt.s32.f32 %v2681
      %v2698 = vadd.f32 %v2544, %v2682
      %v2699 = vadd.f32 %v2545, %v2683
      %v2700 = vadd.f32 %v2546, %v2684
      %v2701 = vadd.f32 %v2547, %v2685
      %v2702 = vadd.f32 %v2548, %v2686
      %v2703 = vadd.f32 %v2549, %v2687
      %v2704 = vadd.f32 %v2550, %v2688
      %v2705 = vadd.f32 %v2551, %v2689
      %v2706 = vadd.f32 %v2552, %v2690
      %v2707 = vadd.f32 %v2553, %v2691
      %v2708 = vadd.f32 %v2554, %v2692
      %v2709 = vadd.f32 %v2555, %v2693
      %v2710 = vadd.f32 %v2556, %v2694
      %v2711 = vadd.f32 %v2557, %v2695
      %v2712 = vadd.f32 %v2558, %v2696
      %v2713 = vadd.f32 %v2559, %v2697
      %v2714 = vsel %vm2650, 1e+30, %v2560
      %v2715 = vsel %vm2651, 1e+30, %v2561
      %v2716 = vsel %vm2652, 1e+30, %v2562
      %v2717 = vsel %vm2653, 1e+30, %v2563
      %v2718 = vsel %vm2654, 1e+30, %v2564
      %v2719 = vsel %vm2655, 1e+30, %v2565
      %v2720 = vsel %vm2656, 1e+30, %v2566
      %v2721 = vsel %vm2657, 1e+30, %v2567
      %v2722 = vsel %vm2658, 1e+30, %v2568
      %v2723 = vsel %vm2659, 1e+30, %v2569
      %v2724 = vsel %vm2660, 1e+30, %v2570
      %v2725 = vsel %vm2661, 1e+30, %v2571
      %v2726 = vsel %vm2662, 1e+30, %v2572
      %v2727 = vsel %vm2663, 1e+30, %v2573
      %v2728 = vsel %vm2664, 1e+30, %v2574
      %v2729 = vsel %vm2665, 1e+30, %v2575
      %v2730 = vmin.f32 %v2714, %v2718
      %v2731 = vmin.f32 %v2715, %v2719
      %v2732 = vmin.f32 %v2716, %v2720
      %v2733 = vmin.f32 %v2717, %v2721
      %v2734 = vmin.f32 %v2730, %v2722
      %v2735 = vmin.f32 %v2731, %v2723
      %v2736 = vmin.f32 %v2732, %v2724
      %v2737 = vmin.f32 %v2733, %v2725
      %v2738 = vmin.f32 %v2734, %v2726
      %v2739 = vmin.f32 %v2735, %v2727
      %v2740 = vmin.f32 %v2736, %v2728
      %v2741 = vmin.f32 %v2737, %v2729
      %v2742 = vmin.f32 %v2738, %v2739
      %v2743 = vmin.f32 %v2740, %v2741
      %v2744 = vmin.f32 %v2742, %v2743
      %v2745 = vrot.slane %v2744, 4
      %v2746 = vmin.f32 %v2744, %v2745
      %v2747 = vrot.slane %v2746, 2
      %v2748 = vmin.f32 %v2746, %v2747
      %v2749 = vrot.slane %v2748, 1
      %v2750 = vmin.f32 %v2748, %v2749
      %vm2751 = vcmp.eq.f32.partialorder %v2714, %v2750
      %vm2752 = vcmp.eq.f32.partialorder %v2715, %v2750
      %vm2753 = vcmp.eq.f32.partialorder %v2716, %v2750
      %vm2754 = vcmp.eq.f32.partialorder %v2717, %v2750
      %vm2755 = vcmp.eq.f32.partialorder %v2718, %v2750
      %vm2756 = vcmp.eq.f32.partialorder %v2719, %v2750
      %vm2757 = vcmp.eq.f32.partialorder %v2720, %v2750
      %vm2758 = vcmp.eq.f32.partialorder %v2721, %v2750
      %vm2759 = vcmp.eq.f32.partialorder %v2722, %v2750
      %vm2760 = vcmp.eq.f32.partialorder %v2723, %v2750
      %vm2761 = vcmp.eq.f32.partialorder %v2724, %v2750
      %vm2762 = vcmp.eq.f32.partialorder %v2725, %v2750
      %vm2763 = vcmp.eq.f32.partialorder %v2726, %v2750
      %vm2764 = vcmp.eq.f32.partialorder %v2727, %v2750
      %vm2765 = vcmp.eq.f32.partialorder %v2728, %v2750
      %vm2766 = vcmp.eq.f32.partialorder %v2729, %v2750
      %v2767 = vsel %vm2751, %v177, 128.0
      %v2768 = vsel %vm2752, %v178, 128.0
      %v2769 = vsel %vm2753, %v179, 128.0
      %v2770 = vsel %vm2754, %v180, 128.0
      %v2771 = vsel %vm2755, %v181, 128.0
      %v2772 = vsel %vm2756, %v182, 128.0
      %v2773 = vsel %vm2757, %v183, 128.0
      %v2774 = vsel %vm2758, %v184, 128.0
      %v2775 = vsel %vm2759, %v185, 128.0
      %v2776 = vsel %vm2760, %v186, 128.0
      %v2777 = vsel %vm2761, %v187, 128.0
      %v2778 = vsel %vm2762, %v188, 128.0
      %v2779 = vsel %vm2763, %v189, 128.0
      %v2780 = vsel %vm2764, %v190, 128.0
      %v2781 = vsel %vm2765, %v191, 128.0
      %v2782 = vsel %vm2766, %v192, 128.0
      %v2783 = vmin.f32 %v2767, %v2771
      %v2784 = vmin.f32 %v2768, %v2772
      %v2785 = vmin.f32 %v2769, %v2773
      %v2786 = vmin.f32 %v2770, %v2774
      %v2787 = vmin.f32 %v2783, %v2775
      %v2788 = vmin.f32 %v2784, %v2776
      %v2789 = vmin.f32 %v2785, %v2777
      %v2790 = vmin.f32 %v2786, %v2778
      %v2791 = vmin.f32 %v2787, %v2779
      %v2792 = vmin.f32 %v2788, %v2780
      %v2793 = vmin.f32 %v2789, %v2781
      %v2794 = vmin.f32 %v2790, %v2782
      %v2795 = vmin.f32 %v2791, %v2792
      %v2796 = vmin.f32 %v2793, %v2794
      %v2797 = vmin.f32 %v2795, %v2796
      %v2798 = vrot.slane %v2797, 4
      %v2799 = vmin.f32 %v2797, %v2798
      %v2800 = vrot.slane %v2799, 2
      %v2801 = vmin.f32 %v2799, %v2800
      %v2802 = vrot.slane %v2801, 1
      %v2803 = vmin.f32 %v2801, %v2802
      %vm2804 = vcmp.eq.f32.partialorder %v177, %v2803
      %vm2805 = vcmp.eq.f32.partialorder %v178, %v2803
      %vm2806 = vcmp.eq.f32.partialorder %v179, %v2803
      %vm2807 = vcmp.eq.f32.partialorder %v180, %v2803
      %vm2808 = vcmp.eq.f32.partialorder %v181, %v2803
      %vm2809 = vcmp.eq.f32.partialorder %v182, %v2803
      %vm2810 = vcmp.eq.f32.partialorder %v183, %v2803
      %vm2811 = vcmp.eq.f32.partialorder %v184, %v2803
      %vm2812 = vcmp.eq.f32.partialorder %v185, %v2803
      %vm2813 = vcmp.eq.f32.partialorder %v186, %v2803
      %vm2814 = vcmp.eq.f32.partialorder %v187, %v2803
      %vm2815 = vcmp.eq.f32.partialorder %v188, %v2803
      %vm2816 = vcmp.eq.f32.partialorder %v189, %v2803
      %vm2817 = vcmp.eq.f32.partialorder %v190, %v2803
      %vm2818 = vcmp.eq.f32.partialorder %v191, %v2803
      %vm2819 = vcmp.eq.f32.partialorder %v192, %v2803
      %v2820 = vsel %vm2804, 1, 0
      %v2821 = vsel %vm2805, 1, 0
      %v2822 = vsel %vm2806, 1, 0
      %v2823 = vsel %vm2807, 1, 0
      %v2824 = vsel %vm2808, 1, 0
      %v2825 = vsel %vm2809, 1, 0
      %v2826 = vsel %vm2810, 1, 0
      %v2827 = vsel %vm2811, 1, 0
      %v2828 = vsel %vm2812, 1, 0
      %v2829 = vsel %vm2813, 1, 0
      %v2830 = vsel %vm2814, 1, 0
      %v2831 = vsel %vm2815, 1, 0
      %v2832 = vsel %vm2816, 1, 0
      %v2833 = vsel %vm2817, 1, 0
      %v2834 = vsel %vm2818, 1, 0
      %v2835 = vsel %vm2819, 1, 0
      %v2836 = vcvt.s32.f32 %v2820
      %v2837 = vcvt.s32.f32 %v2821
      %v2838 = vcvt.s32.f32 %v2822
      %v2839 = vcvt.s32.f32 %v2823
      %v2840 = vcvt.s32.f32 %v2824
      %v2841 = vcvt.s32.f32 %v2825
      %v2842 = vcvt.s32.f32 %v2826
      %v2843 = vcvt.s32.f32 %v2827
      %v2844 = vcvt.s32.f32 %v2828
      %v2845 = vcvt.s32.f32 %v2829
      %v2846 = vcvt.s32.f32 %v2830
      %v2847 = vcvt.s32.f32 %v2831
      %v2848 = vcvt.s32.f32 %v2832
      %v2849 = vcvt.s32.f32 %v2833
      %v2850 = vcvt.s32.f32 %v2834
      %v2851 = vcvt.s32.f32 %v2835
      %v2852 = vadd.f32 %v2698, %v2836
      %v2853 = vadd.f32 %v2699, %v2837
      %v2854 = vadd.f32 %v2700, %v2838
      %v2855 = vadd.f32 %v2701, %v2839
      %v2856 = vadd.f32 %v2702, %v2840
      %v2857 = vadd.f32 %v2703, %v2841
      %v2858 = vadd.f32 %v2704, %v2842
      %v2859 = vadd.f32 %v2705, %v2843
      %v2860 = vadd.f32 %v2706, %v2844
      %v2861 = vadd.f32 %v2707, %v2845
      %v2862 = vadd.f32 %v2708, %v2846
      %v2863 = vadd.f32 %v2709, %v2847
      %v2864 = vadd.f32 %v2710, %v2848
      %v2865 = vadd.f32 %v2711, %v2849
      %v2866 = vadd.f32 %v2712, %v2850
      %v2867 = vadd.f32 %v2713, %v2851
      %v2868 = vsel %vm2804, 1e+30, %v2714
      %v2869 = vsel %vm2805, 1e+30, %v2715
      %v2870 = vsel %vm2806, 1e+30, %v2716
      %v2871 = vsel %vm2807, 1e+30, %v2717
      %v2872 = vsel %vm2808, 1e+30, %v2718
      %v2873 = vsel %vm2809, 1e+30, %v2719
      %v2874 = vsel %vm2810, 1e+30, %v2720
      %v2875 = vsel %vm2811, 1e+30, %v2721
      %v2876 = vsel %vm2812, 1e+30, %v2722
      %v2877 = vsel %vm2813, 1e+30, %v2723
      %v2878 = vsel %vm2814, 1e+30, %v2724
      %v2879 = vsel %vm2815, 1e+30, %v2725
      %v2880 = vsel %vm2816, 1e+30, %v2726
      %v2881 = vsel %vm2817, 1e+30, %v2727
      %v2882 = vsel %vm2818, 1e+30, %v2728
      %v2883 = vsel %vm2819, 1e+30, %v2729
      %v2884 = vmin.f32 %v2868, %v2872
      %v2885 = vmin.f32 %v2869, %v2873
      %v2886 = vmin.f32 %v2870, %v2874
      %v2887 = vmin.f32 %v2871, %v2875
      %v2888 = vmin.f32 %v2884, %v2876
      %v2889 = vmin.f32 %v2885, %v2877
      %v2890 = vmin.f32 %v2886, %v2878
      %v2891 = vmin.f32 %v2887, %v2879
      %v2892 = vmin.f32 %v2888, %v2880
      %v2893 = vmin.f32 %v2889, %v2881
      %v2894 = vmin.f32 %v2890, %v2882
      %v2895 = vmin.f32 %v2891, %v2883
      %v2896 = vmin.f32 %v2892, %v2893
      %v2897 = vmin.f32 %v2894, %v2895
      %v2898 = vmin.f32 %v2896, %v2897
      %v2899 = vrot.slane %v2898, 4
      %v2900 = vmin.f32 %v2898, %v2899
      %v2901 = vrot.slane %v2900, 2
      %v2902 = vmin.f32 %v2900, %v2901
      %v2903 = vrot.slane %v2902, 1
      %v2904 = vmin.f32 %v2902, %v2903
      %vm2905 = vcmp.eq.f32.partialorder %v2868, %v2904
      %vm2906 = vcmp.eq.f32.partialorder %v2869, %v2904
      %vm2907 = vcmp.eq.f32.partialorder %v2870, %v2904
      %vm2908 = vcmp.eq.f32.partialorder %v2871, %v2904
      %vm2909 = vcmp.eq.f32.partialorder %v2872, %v2904
      %vm2910 = vcmp.eq.f32.partialorder %v2873, %v2904
      %vm2911 = vcmp.eq.f32.partialorder %v2874, %v2904
      %vm2912 = vcmp.eq.f32.partialorder %v2875, %v2904
      %vm2913 = vcmp.eq.f32.partialorder %v2876, %v2904
      %vm2914 = vcmp.eq.f32.partialorder %v2877, %v2904
      %vm2915 = vcmp.eq.f32.partialorder %v2878, %v2904
      %vm2916 = vcmp.eq.f32.partialorder %v2879, %v2904
      %vm2917 = vcmp.eq.f32.partialorder %v2880, %v2904
      %vm2918 = vcmp.eq.f32.partialorder %v2881, %v2904
      %vm2919 = vcmp.eq.f32.partialorder %v2882, %v2904
      %vm2920 = vcmp.eq.f32.partialorder %v2883, %v2904
      %v2921 = vsel %vm2905, %v177, 128.0
      %v2922 = vsel %vm2906, %v178, 128.0
      %v2923 = vsel %vm2907, %v179, 128.0
      %v2924 = vsel %vm2908, %v180, 128.0
      %v2925 = vsel %vm2909, %v181, 128.0
      %v2926 = vsel %vm2910, %v182, 128.0
      %v2927 = vsel %vm2911, %v183, 128.0
      %v2928 = vsel %vm2912, %v184, 128.0
      %v2929 = vsel %vm2913, %v185, 128.0
      %v2930 = vsel %vm2914, %v186, 128.0
      %v2931 = vsel %vm2915, %v187, 128.0
      %v2932 = vsel %vm2916, %v188, 128.0
      %v2933 = vsel %vm2917, %v189, 128.0
      %v2934 = vsel %vm2918, %v190, 128.0
      %v2935 = vsel %vm2919, %v191, 128.0
      %v2936 = vsel %vm2920, %v192, 128.0
      %v2937 = vmin.f32 %v2921, %v2925
      %v2938 = vmin.f32 %v2922, %v2926
      %v2939 = vmin.f32 %v2923, %v2927
      %v2940 = vmin.f32 %v2924, %v2928
      %v2941 = vmin.f32 %v2937, %v2929
      %v2942 = vmin.f32 %v2938, %v2930
      %v2943 = vmin.f32 %v2939, %v2931
      %v2944 = vmin.f32 %v2940, %v2932
      %v2945 = vmin.f32 %v2941, %v2933
      %v2946 = vmin.f32 %v2942, %v2934
      %v2947 = vmin.f32 %v2943, %v2935
      %v2948 = vmin.f32 %v2944, %v2936
      %v2949 = vmin.f32 %v2945, %v2946
      %v2950 = vmin.f32 %v2947, %v2948
      %v2951 = vmin.f32 %v2949, %v2950
      %v2952 = vrot.slane %v2951, 4
      %v2953 = vmin.f32 %v2951, %v2952
      %v2954 = vrot.slane %v2953, 2
      %v2955 = vmin.f32 %v2953, %v2954
      %v2956 = vrot.slane %v2955, 1
      %v2957 = vmin.f32 %v2955, %v2956
      %vm2958 = vcmp.eq.f32.partialorder %v177, %v2957
      %vm2959 = vcmp.eq.f32.partialorder %v178, %v2957
      %vm2960 = vcmp.eq.f32.partialorder %v179, %v2957
      %vm2961 = vcmp.eq.f32.partialorder %v180, %v2957
      %vm2962 = vcmp.eq.f32.partialorder %v181, %v2957
      %vm2963 = vcmp.eq.f32.partialorder %v182, %v2957
      %vm2964 = vcmp.eq.f32.partialorder %v183, %v2957
      %vm2965 = vcmp.eq.f32.partialorder %v184, %v2957
      %vm2966 = vcmp.eq.f32.partialorder %v185, %v2957
      %vm2967 = vcmp.eq.f32.partialorder %v186, %v2957
      %vm2968 = vcmp.eq.f32.partialorder %v187, %v2957
      %vm2969 = vcmp.eq.f32.partialorder %v188, %v2957
      %vm2970 = vcmp.eq.f32.partialorder %v189, %v2957
      %vm2971 = vcmp.eq.f32.partialorder %v190, %v2957
      %vm2972 = vcmp.eq.f32.partialorder %v191, %v2957
      %vm2973 = vcmp.eq.f32.partialorder %v192, %v2957
      %v2974 = vsel %vm2958, 1, 0
      %v2975 = vsel %vm2959, 1, 0
      %v2976 = vsel %vm2960, 1, 0
      %v2977 = vsel %vm2961, 1, 0
      %v2978 = vsel %vm2962, 1, 0
      %v2979 = vsel %vm2963, 1, 0
      %v2980 = vsel %vm2964, 1, 0
      %v2981 = vsel %vm2965, 1, 0
      %v2982 = vsel %vm2966, 1, 0
      %v2983 = vsel %vm2967, 1, 0
      %v2984 = vsel %vm2968, 1, 0
      %v2985 = vsel %vm2969, 1, 0
      %v2986 = vsel %vm2970, 1, 0
      %v2987 = vsel %vm2971, 1, 0
      %v2988 = vsel %vm2972, 1, 0
      %v2989 = vsel %vm2973, 1, 0
      %v2990 = vcvt.s32.f32 %v2974
      %v2991 = vcvt.s32.f32 %v2975
      %v2992 = vcvt.s32.f32 %v2976
      %v2993 = vcvt.s32.f32 %v2977
      %v2994 = vcvt.s32.f32 %v2978
      %v2995 = vcvt.s32.f32 %v2979
      %v2996 = vcvt.s32.f32 %v2980
      %v2997 = vcvt.s32.f32 %v2981
      %v2998 = vcvt.s32.f32 %v2982
      %v2999 = vcvt.s32.f32 %v2983
      %v3000 = vcvt.s32.f32 %v2984
      %v3001 = vcvt.s32.f32 %v2985
      %v3002 = vcvt.s32.f32 %v2986
      %v3003 = vcvt.s32.f32 %v2987
      %v3004 = vcvt.s32.f32 %v2988
      %v3005 = vcvt.s32.f32 %v2989
      %v3006 = vadd.f32 %v2852, %v2990
      %v3007 = vadd.f32 %v2853, %v2991
      %v3008 = vadd.f32 %v2854, %v2992
      %v3009 = vadd.f32 %v2855, %v2993
      %v3010 = vadd.f32 %v2856, %v2994
      %v3011 = vadd.f32 %v2857, %v2995
      %v3012 = vadd.f32 %v2858, %v2996
      %v3013 = vadd.f32 %v2859, %v2997
      %v3014 = vadd.f32 %v2860, %v2998
      %v3015 = vadd.f32 %v2861, %v2999
      %v3016 = vadd.f32 %v2862, %v3000
      %v3017 = vadd.f32 %v2863, %v3001
      %v3018 = vadd.f32 %v2864, %v3002
      %v3019 = vadd.f32 %v2865, %v3003
      %v3020 = vadd.f32 %v2866, %v3004
      %v3021 = vadd.f32 %v2867, %v3005
      %v3022 = vsel %vm2958, 1e+30, %v2868
      %v3023 = vsel %vm2959, 1e+30, %v2869
      %v3024 = vsel %vm2960, 1e+30, %v2870
      %v3025 = vsel %vm2961, 1e+30, %v2871
      %v3026 = vsel %vm2962, 1e+30, %v2872
      %v3027 = vsel %vm2963, 1e+30, %v2873
      %v3028 = vsel %vm2964, 1e+30, %v2874
      %v3029 = vsel %vm2965, 1e+30, %v2875
      %v3030 = vsel %vm2966, 1e+30, %v2876
      %v3031 = vsel %vm2967, 1e+30, %v2877
      %v3032 = vsel %vm2968, 1e+30, %v2878
      %v3033 = vsel %vm2969, 1e+30, %v2879
      %v3034 = vsel %vm2970, 1e+30, %v2880
      %v3035 = vsel %vm2971, 1e+30, %v2881
      %v3036 = vsel %vm2972, 1e+30, %v2882
      %v3037 = vsel %vm2973, 1e+30, %v2883
      %v3038 = vmin.f32 %v3022, %v3026
      %v3039 = vmin.f32 %v3023, %v3027
      %v3040 = vmin.f32 %v3024, %v3028
      %v3041 = vmin.f32 %v3025, %v3029
      %v3042 = vmin.f32 %v3038, %v3030
      %v3043 = vmin.f32 %v3039, %v3031
      %v3044 = vmin.f32 %v3040, %v3032
      %v3045 = vmin.f32 %v3041, %v3033
      %v3046 = vmin.f32 %v3042, %v3034
      %v3047 = vmin.f32 %v3043, %v3035
      %v3048 = vmin.f32 %v3044, %v3036
      %v3049 = vmin.f32 %v3045, %v3037
      %v3050 = vmin.f32 %v3046, %v3047
      %v3051 = vmin.f32 %v3048, %v3049
      %v3052 = vmin.f32 %v3050, %v3051
      %v3053 = vrot.slane %v3052, 4
      %v3054 = vmin.f32 %v3052, %v3053
      %v3055 = vrot.slane %v3054, 2
      %v3056 = vmin.f32 %v3054, %v3055
      %v3057 = vrot.slane %v3056, 1
      %v3058 = vmin.f32 %v3056, %v3057
      %vm3059 = vcmp.eq.f32.partialorder %v3022, %v3058
      %vm3060 = vcmp.eq.f32.partialorder %v3023, %v3058
      %vm3061 = vcmp.eq.f32.partialorder %v3024, %v3058
      %vm3062 = vcmp.eq.f32.partialorder %v3025, %v3058
      %vm3063 = vcmp.eq.f32.partialorder %v3026, %v3058
      %vm3064 = vcmp.eq.f32.partialorder %v3027, %v3058
      %vm3065 = vcmp.eq.f32.partialorder %v3028, %v3058
      %vm3066 = vcmp.eq.f32.partialorder %v3029, %v3058
      %vm3067 = vcmp.eq.f32.partialorder %v3030, %v3058
      %vm3068 = vcmp.eq.f32.partialorder %v3031, %v3058
      %vm3069 = vcmp.eq.f32.partialorder %v3032, %v3058
      %vm3070 = vcmp.eq.f32.partialorder %v3033, %v3058
      %vm3071 = vcmp.eq.f32.partialorder %v3034, %v3058
      %vm3072 = vcmp.eq.f32.partialorder %v3035, %v3058
      %vm3073 = vcmp.eq.f32.partialorder %v3036, %v3058
      %vm3074 = vcmp.eq.f32.partialorder %v3037, %v3058
      %v3075 = vsel %vm3059, %v177, 128.0
      %v3076 = vsel %vm3060, %v178, 128.0
      %v3077 = vsel %vm3061, %v179, 128.0
      %v3078 = vsel %vm3062, %v180, 128.0
      %v3079 = vsel %vm3063, %v181, 128.0
      %v3080 = vsel %vm3064, %v182, 128.0
      %v3081 = vsel %vm3065, %v183, 128.0
      %v3082 = vsel %vm3066, %v184, 128.0
      %v3083 = vsel %vm3067, %v185, 128.0
      %v3084 = vsel %vm3068, %v186, 128.0
      %v3085 = vsel %vm3069, %v187, 128.0
      %v3086 = vsel %vm3070, %v188, 128.0
      %v3087 = vsel %vm3071, %v189, 128.0
      %v3088 = vsel %vm3072, %v190, 128.0
      %v3089 = vsel %vm3073, %v191, 128.0
      %v3090 = vsel %vm3074, %v192, 128.0
      %v3091 = vmin.f32 %v3075, %v3079
      %v3092 = vmin.f32 %v3076, %v3080
      %v3093 = vmin.f32 %v3077, %v3081
      %v3094 = vmin.f32 %v3078, %v3082
      %v3095 = vmin.f32 %v3091, %v3083
      %v3096 = vmin.f32 %v3092, %v3084
      %v3097 = vmin.f32 %v3093, %v3085
      %v3098 = vmin.f32 %v3094, %v3086
      %v3099 = vmin.f32 %v3095, %v3087
      %v3100 = vmin.f32 %v3096, %v3088
      %v3101 = vmin.f32 %v3097, %v3089
      %v3102 = vmin.f32 %v3098, %v3090
      %v3103 = vmin.f32 %v3099, %v3100
      %v3104 = vmin.f32 %v3101, %v3102
      %v3105 = vmin.f32 %v3103, %v3104
      %v3106 = vrot.slane %v3105, 4
      %v3107 = vmin.f32 %v3105, %v3106
      %v3108 = vrot.slane %v3107, 2
      %v3109 = vmin.f32 %v3107, %v3108
      %v3110 = vrot.slane %v3109, 1
      %v3111 = vmin.f32 %v3109, %v3110
      %vm3112 = vcmp.eq.f32.partialorder %v177, %v3111
      %vm3113 = vcmp.eq.f32.partialorder %v178, %v3111
      %vm3114 = vcmp.eq.f32.partialorder %v179, %v3111
      %vm3115 = vcmp.eq.f32.partialorder %v180, %v3111
      %vm3116 = vcmp.eq.f32.partialorder %v181, %v3111
      %vm3117 = vcmp.eq.f32.partialorder %v182, %v3111
      %vm3118 = vcmp.eq.f32.partialorder %v183, %v3111
      %vm3119 = vcmp.eq.f32.partialorder %v184, %v3111
      %vm3120 = vcmp.eq.f32.partialorder %v185, %v3111
      %vm3121 = vcmp.eq.f32.partialorder %v186, %v3111
      %vm3122 = vcmp.eq.f32.partialorder %v187, %v3111
      %vm3123 = vcmp.eq.f32.partialorder %v188, %v3111
      %vm3124 = vcmp.eq.f32.partialorder %v189, %v3111
      %vm3125 = vcmp.eq.f32.partialorder %v190, %v3111
      %vm3126 = vcmp.eq.f32.partialorder %v191, %v3111
      %vm3127 = vcmp.eq.f32.partialorder %v192, %v3111
      %v3128 = vsel %vm3112, 1, 0
      %v3129 = vsel %vm3113, 1, 0
      %v3130 = vsel %vm3114, 1, 0
      %v3131 = vsel %vm3115, 1, 0
      %v3132 = vsel %vm3116, 1, 0
      %v3133 = vsel %vm3117, 1, 0
      %v3134 = vsel %vm3118, 1, 0
      %v3135 = vsel %vm3119, 1, 0
      %v3136 = vsel %vm3120, 1, 0
      %v3137 = vsel %vm3121, 1, 0
      %v3138 = vsel %vm3122, 1, 0
      %v3139 = vsel %vm3123, 1, 0
      %v3140 = vsel %vm3124, 1, 0
      %v3141 = vsel %vm3125, 1, 0
      %v3142 = vsel %vm3126, 1, 0
      %v3143 = vsel %vm3127, 1, 0
      %v3144 = vcvt.s32.f32 %v3128
      %v3145 = vcvt.s32.f32 %v3129
      %v3146 = vcvt.s32.f32 %v3130
      %v3147 = vcvt.s32.f32 %v3131
      %v3148 = vcvt.s32.f32 %v3132
      %v3149 = vcvt.s32.f32 %v3133
      %v3150 = vcvt.s32.f32 %v3134
      %v3151 = vcvt.s32.f32 %v3135
      %v3152 = vcvt.s32.f32 %v3136
      %v3153 = vcvt.s32.f32 %v3137
      %v3154 = vcvt.s32.f32 %v3138
      %v3155 = vcvt.s32.f32 %v3139
      %v3156 = vcvt.s32.f32 %v3140
      %v3157 = vcvt.s32.f32 %v3141
      %v3158 = vcvt.s32.f32 %v3142
      %v3159 = vcvt.s32.f32 %v3143
      %v3160 = vadd.f32 %v3006, %v3144
      %v3161 = vadd.f32 %v3007, %v3145
      %v3162 = vadd.f32 %v3008, %v3146
      %v3163 = vadd.f32 %v3009, %v3147
      %v3164 = vadd.f32 %v3010, %v3148
      %v3165 = vadd.f32 %v3011, %v3149
      %v3166 = vadd.f32 %v3012, %v3150
      %v3167 = vadd.f32 %v3013, %v3151
      %v3168 = vadd.f32 %v3014, %v3152
      %v3169 = vadd.f32 %v3015, %v3153
      %v3170 = vadd.f32 %v3016, %v3154
      %v3171 = vadd.f32 %v3017, %v3155
      %v3172 = vadd.f32 %v3018, %v3156
      %v3173 = vadd.f32 %v3019, %v3157
      %v3174 = vadd.f32 %v3020, %v3158
      %v3175 = vadd.f32 %v3021, %v3159
      %v3176 = vsel %vm3112, 1e+30, %v3022
      %v3177 = vsel %vm3113, 1e+30, %v3023
      %v3178 = vsel %vm3114, 1e+30, %v3024
      %v3179 = vsel %vm3115, 1e+30, %v3025
      %v3180 = vsel %vm3116, 1e+30, %v3026
      %v3181 = vsel %vm3117, 1e+30, %v3027
      %v3182 = vsel %vm3118, 1e+30, %v3028
      %v3183 = vsel %vm3119, 1e+30, %v3029
      %v3184 = vsel %vm3120, 1e+30, %v3030
      %v3185 = vsel %vm3121, 1e+30, %v3031
      %v3186 = vsel %vm3122, 1e+30, %v3032
      %v3187 = vsel %vm3123, 1e+30, %v3033
      %v3188 = vsel %vm3124, 1e+30, %v3034
      %v3189 = vsel %vm3125, 1e+30, %v3035
      %v3190 = vsel %vm3126, 1e+30, %v3036
      %v3191 = vsel %vm3127, 1e+30, %v3037
      %v3192 = vmin.f32 %v3176, %v3180
      %v3193 = vmin.f32 %v3177, %v3181
      %v3194 = vmin.f32 %v3178, %v3182
      %v3195 = vmin.f32 %v3179, %v3183
      %v3196 = vmin.f32 %v3192, %v3184
      %v3197 = vmin.f32 %v3193, %v3185
      %v3198 = vmin.f32 %v3194, %v3186
      %v3199 = vmin.f32 %v3195, %v3187
      %v3200 = vmin.f32 %v3196, %v3188
      %v3201 = vmin.f32 %v3197, %v3189
      %v3202 = vmin.f32 %v3198, %v3190
      %v3203 = vmin.f32 %v3199, %v3191
      %v3204 = vmin.f32 %v3200, %v3201
      %v3205 = vmin.f32 %v3202, %v3203
      %v3206 = vmin.f32 %v3204, %v3205
      %v3207 = vrot.slane %v3206, 4
      %v3208 = vmin.f32 %v3206, %v3207
      %v3209 = vrot.slane %v3208, 2
      %v3210 = vmin.f32 %v3208, %v3209
      %v3211 = vrot.slane %v3210, 1
      %v3212 = vmin.f32 %v3210, %v3211
      %vm3213 = vcmp.eq.f32.partialorder %v3176, %v3212
      %vm3214 = vcmp.eq.f32.partialorder %v3177, %v3212
      %vm3215 = vcmp.eq.f32.partialorder %v3178, %v3212
      %vm3216 = vcmp.eq.f32.partialorder %v3179, %v3212
      %vm3217 = vcmp.eq.f32.partialorder %v3180, %v3212
      %vm3218 = vcmp.eq.f32.partialorder %v3181, %v3212
      %vm3219 = vcmp.eq.f32.partialorder %v3182, %v3212
      %vm3220 = vcmp.eq.f32.partialorder %v3183, %v3212
      %vm3221 = vcmp.eq.f32.partialorder %v3184, %v3212
      %vm3222 = vcmp.eq.f32.partialorder %v3185, %v3212
      %vm3223 = vcmp.eq.f32.partialorder %v3186, %v3212
      %vm3224 = vcmp.eq.f32.partialorder %v3187, %v3212
      %vm3225 = vcmp.eq.f32.partialorder %v3188, %v3212
      %vm3226 = vcmp.eq.f32.partialorder %v3189, %v3212
      %vm3227 = vcmp.eq.f32.partialorder %v3190, %v3212
      %vm3228 = vcmp.eq.f32.partialorder %v3191, %v3212
      %v3229 = vsel %vm3213, %v177, 128.0
      %v3230 = vsel %vm3214, %v178, 128.0
      %v3231 = vsel %vm3215, %v179, 128.0
      %v3232 = vsel %vm3216, %v180, 128.0
      %v3233 = vsel %vm3217, %v181, 128.0
      %v3234 = vsel %vm3218, %v182, 128.0
      %v3235 = vsel %vm3219, %v183, 128.0
      %v3236 = vsel %vm3220, %v184, 128.0
      %v3237 = vsel %vm3221, %v185, 128.0
      %v3238 = vsel %vm3222, %v186, 128.0
      %v3239 = vsel %vm3223, %v187, 128.0
      %v3240 = vsel %vm3224, %v188, 128.0
      %v3241 = vsel %vm3225, %v189, 128.0
      %v3242 = vsel %vm3226, %v190, 128.0
      %v3243 = vsel %vm3227, %v191, 128.0
      %v3244 = vsel %vm3228, %v192, 128.0
      %v3245 = vmin.f32 %v3229, %v3233
      %v3246 = vmin.f32 %v3230, %v3234
      %v3247 = vmin.f32 %v3231, %v3235
      %v3248 = vmin.f32 %v3232, %v3236
      %v3249 = vmin.f32 %v3245, %v3237
      %v3250 = vmin.f32 %v3246, %v3238
      %v3251 = vmin.f32 %v3247, %v3239
      %v3252 = vmin.f32 %v3248, %v3240
      %v3253 = vmin.f32 %v3249, %v3241
      %v3254 = vmin.f32 %v3250, %v3242
      %v3255 = vmin.f32 %v3251, %v3243
      %v3256 = vmin.f32 %v3252, %v3244
      %v3257 = vmin.f32 %v3253, %v3254
      %v3258 = vmin.f32 %v3255, %v3256
      %v3259 = vmin.f32 %v3257, %v3258
      %v3260 = vrot.slane %v3259, 4
      %v3261 = vmin.f32 %v3259, %v3260
      %v3262 = vrot.slane %v3261, 2
      %v3263 = vmin.f32 %v3261, %v3262
      %v3264 = vrot.slane %v3263, 1
      %v3265 = vmin.f32 %v3263, %v3264
      %vm3266 = vcmp.eq.f32.partialorder %v177, %v3265
      %vm3267 = vcmp.eq.f32.partialorder %v178, %v3265
      %vm3268 = vcmp.eq.f32.partialorder %v179, %v3265
      %vm3269 = vcmp.eq.f32.partialorder %v180, %v3265
      %vm3270 = vcmp.eq.f32.partialorder %v181, %v3265
      %vm3271 = vcmp.eq.f32.partialorder %v182, %v3265
      %vm3272 = vcmp.eq.f32.partialorder %v183, %v3265
      %vm3273 = vcmp.eq.f32.partialorder %v184, %v3265
      %vm3274 = vcmp.eq.f32.partialorder %v185, %v3265
      %vm3275 = vcmp.eq.f32.partialorder %v186, %v3265
      %vm3276 = vcmp.eq.f32.partialorder %v187, %v3265
      %vm3277 = vcmp.eq.f32.partialorder %v188, %v3265
      %vm3278 = vcmp.eq.f32.partialorder %v189, %v3265
      %vm3279 = vcmp.eq.f32.partialorder %v190, %v3265
      %vm3280 = vcmp.eq.f32.partialorder %v191, %v3265
      %vm3281 = vcmp.eq.f32.partialorder %v192, %v3265
      %v3282 = vsel %vm3266, 1, 0
      %v3283 = vsel %vm3267, 1, 0
      %v3284 = vsel %vm3268, 1, 0
      %v3285 = vsel %vm3269, 1, 0
      %v3286 = vsel %vm3270, 1, 0
      %v3287 = vsel %vm3271, 1, 0
      %v3288 = vsel %vm3272, 1, 0
      %v3289 = vsel %vm3273, 1, 0
      %v3290 = vsel %vm3274, 1, 0
      %v3291 = vsel %vm3275, 1, 0
      %v3292 = vsel %vm3276, 1, 0
      %v3293 = vsel %vm3277, 1, 0
      %v3294 = vsel %vm3278, 1, 0
      %v3295 = vsel %vm3279, 1, 0
      %v3296 = vsel %vm3280, 1, 0
      %v3297 = vsel %vm3281, 1, 0
      %v3298 = vcvt.s32.f32 %v3282
      %v3299 = vcvt.s32.f32 %v3283
      %v3300 = vcvt.s32.f32 %v3284
      %v3301 = vcvt.s32.f32 %v3285
      %v3302 = vcvt.s32.f32 %v3286
      %v3303 = vcvt.s32.f32 %v3287
      %v3304 = vcvt.s32.f32 %v3288
      %v3305 = vcvt.s32.f32 %v3289
      %v3306 = vcvt.s32.f32 %v3290
      %v3307 = vcvt.s32.f32 %v3291
      %v3308 = vcvt.s32.f32 %v3292
      %v3309 = vcvt.s32.f32 %v3293
      %v3310 = vcvt.s32.f32 %v3294
      %v3311 = vcvt.s32.f32 %v3295
      %v3312 = vcvt.s32.f32 %v3296
      %v3313 = vcvt.s32.f32 %v3297
      %v3314 = vadd.f32 %v3160, %v3298
      %v3315 = vadd.f32 %v3161, %v3299
      %v3316 = vadd.f32 %v3162, %v3300
      %v3317 = vadd.f32 %v3163, %v3301
      %v3318 = vadd.f32 %v3164, %v3302
      %v3319 = vadd.f32 %v3165, %v3303
      %v3320 = vadd.f32 %v3166, %v3304
      %v3321 = vadd.f32 %v3167, %v3305
      %v3322 = vadd.f32 %v3168, %v3306
      %v3323 = vadd.f32 %v3169, %v3307
      %v3324 = vadd.f32 %v3170, %v3308
      %v3325 = vadd.f32 %v3171, %v3309
      %v3326 = vadd.f32 %v3172, %v3310
      %v3327 = vadd.f32 %v3173, %v3311
      %v3328 = vadd.f32 %v3174, %v3312
      %v3329 = vadd.f32 %v3175, %v3313
      %v3330 = vsel %vm3266, 1e+30, %v3176
      %v3331 = vsel %vm3267, 1e+30, %v3177
      %v3332 = vsel %vm3268, 1e+30, %v3178
      %v3333 = vsel %vm3269, 1e+30, %v3179
      %v3334 = vsel %vm3270, 1e+30, %v3180
      %v3335 = vsel %vm3271, 1e+30, %v3181
      %v3336 = vsel %vm3272, 1e+30, %v3182
      %v3337 = vsel %vm3273, 1e+30, %v3183
      %v3338 = vsel %vm3274, 1e+30, %v3184
      %v3339 = vsel %vm3275, 1e+30, %v3185
      %v3340 = vsel %vm3276, 1e+30, %v3186
      %v3341 = vsel %vm3277, 1e+30, %v3187
      %v3342 = vsel %vm3278, 1e+30, %v3188
      %v3343 = vsel %vm3279, 1e+30, %v3189
      %v3344 = vsel %vm3280, 1e+30, %v3190
      %v3345 = vsel %vm3281, 1e+30, %v3191
      %v3346 = vmin.f32 %v3330, %v3334
      %v3347 = vmin.f32 %v3331, %v3335
      %v3348 = vmin.f32 %v3332, %v3336
      %v3349 = vmin.f32 %v3333, %v3337
      %v3350 = vmin.f32 %v3346, %v3338
      %v3351 = vmin.f32 %v3347, %v3339
      %v3352 = vmin.f32 %v3348, %v3340
      %v3353 = vmin.f32 %v3349, %v3341
      %v3354 = vmin.f32 %v3350, %v3342
      %v3355 = vmin.f32 %v3351, %v3343
      %v3356 = vmin.f32 %v3352, %v3344
      %v3357 = vmin.f32 %v3353, %v3345
      %v3358 = vmin.f32 %v3354, %v3355
      %v3359 = vmin.f32 %v3356, %v3357
      %v3360 = vmin.f32 %v3358, %v3359
      %v3361 = vrot.slane %v3360, 4
      %v3362 = vmin.f32 %v3360, %v3361
      %v3363 = vrot.slane %v3362, 2
      %v3364 = vmin.f32 %v3362, %v3363
      %v3365 = vrot.slane %v3364, 1
      %v3366 = vmin.f32 %v3364, %v3365
      %vm3367 = vcmp.eq.f32.partialorder %v3330, %v3366
      %vm3368 = vcmp.eq.f32.partialorder %v3331, %v3366
      %vm3369 = vcmp.eq.f32.partialorder %v3332, %v3366
      %vm3370 = vcmp.eq.f32.partialorder %v3333, %v3366
      %vm3371 = vcmp.eq.f32.partialorder %v3334, %v3366
      %vm3372 = vcmp.eq.f32.partialorder %v3335, %v3366
      %vm3373 = vcmp.eq.f32.partialorder %v3336, %v3366
      %vm3374 = vcmp.eq.f32.partialorder %v3337, %v3366
      %vm3375 = vcmp.eq.f32.partialorder %v3338, %v3366
      %vm3376 = vcmp.eq.f32.partialorder %v3339, %v3366
      %vm3377 = vcmp.eq.f32.partialorder %v3340, %v3366
      %vm3378 = vcmp.eq.f32.partialorder %v3341, %v3366
      %vm3379 = vcmp.eq.f32.partialorder %v3342, %v3366
      %vm3380 = vcmp.eq.f32.partialorder %v3343, %v3366
      %vm3381 = vcmp.eq.f32.partialorder %v3344, %v3366
      %vm3382 = vcmp.eq.f32.partialorder %v3345, %v3366
      %v3383 = vsel %vm3367, %v177, 128.0
      %v3384 = vsel %vm3368, %v178, 128.0
      %v3385 = vsel %vm3369, %v179, 128.0
      %v3386 = vsel %vm3370, %v180, 128.0
      %v3387 = vsel %vm3371, %v181, 128.0
      %v3388 = vsel %vm3372, %v182, 128.0
      %v3389 = vsel %vm3373, %v183, 128.0
      %v3390 = vsel %vm3374, %v184, 128.0
      %v3391 = vsel %vm3375, %v185, 128.0
      %v3392 = vsel %vm3376, %v186, 128.0
      %v3393 = vsel %vm3377, %v187, 128.0
      %v3394 = vsel %vm3378, %v188, 128.0
      %v3395 = vsel %vm3379, %v189, 128.0
      %v3396 = vsel %vm3380, %v190, 128.0
      %v3397 = vsel %vm3381, %v191, 128.0
      %v3398 = vsel %vm3382, %v192, 128.0
      %v3399 = vmin.f32 %v3383, %v3387
      %v3400 = vmin.f32 %v3384, %v3388
      %v3401 = vmin.f32 %v3385, %v3389
      %v3402 = vmin.f32 %v3386, %v3390
      %v3403 = vmin.f32 %v3399, %v3391
      %v3404 = vmin.f32 %v3400, %v3392
      %v3405 = vmin.f32 %v3401, %v3393
      %v3406 = vmin.f32 %v3402, %v3394
      %v3407 = vmin.f32 %v3403, %v3395
      %v3408 = vmin.f32 %v3404, %v3396
      %v3409 = vmin.f32 %v3405, %v3397
      %v3410 = vmin.f32 %v3406, %v3398
      %v3411 = vmin.f32 %v3407, %v3408
      %v3412 = vmin.f32 %v3409, %v3410
      %v3413 = vmin.f32 %v3411, %v3412
      %v3414 = vrot.slane %v3413, 4
      %v3415 = vmin.f32 %v3413, %v3414
      %v3416 = vrot.slane %v3415, 2
      %v3417 = vmin.f32 %v3415, %v3416
      %v3418 = vrot.slane %v3417, 1
      %v3419 = vmin.f32 %v3417, %v3418
      %vm3420 = vcmp.eq.f32.partialorder %v177, %v3419
      %vm3421 = vcmp.eq.f32.partialorder %v178, %v3419
      %vm3422 = vcmp.eq.f32.partialorder %v179, %v3419
      %vm3423 = vcmp.eq.f32.partialorder %v180, %v3419
      %vm3424 = vcmp.eq.f32.partialorder %v181, %v3419
      %vm3425 = vcmp.eq.f32.partialorder %v182, %v3419
      %vm3426 = vcmp.eq.f32.partialorder %v183, %v3419
      %vm3427 = vcmp.eq.f32.partialorder %v184, %v3419
      %vm3428 = vcmp.eq.f32.partialorder %v185, %v3419
      %vm3429 = vcmp.eq.f32.partialorder %v186, %v3419
      %vm3430 = vcmp.eq.f32.partialorder %v187, %v3419
      %vm3431 = vcmp.eq.f32.partialorder %v188, %v3419
      %vm3432 = vcmp.eq.f32.partialorder %v189, %v3419
      %vm3433 = vcmp.eq.f32.partialorder %v190, %v3419
      %vm3434 = vcmp.eq.f32.partialorder %v191, %v3419
      %vm3435 = vcmp.eq.f32.partialorder %v192, %v3419
      %v3436 = vsel %vm3420, 1, 0
      %v3437 = vsel %vm3421, 1, 0
      %v3438 = vsel %vm3422, 1, 0
      %v3439 = vsel %vm3423, 1, 0
      %v3440 = vsel %vm3424, 1, 0
      %v3441 = vsel %vm3425, 1, 0
      %v3442 = vsel %vm3426, 1, 0
      %v3443 = vsel %vm3427, 1, 0
      %v3444 = vsel %vm3428, 1, 0
      %v3445 = vsel %vm3429, 1, 0
      %v3446 = vsel %vm3430, 1, 0
      %v3447 = vsel %vm3431, 1, 0
      %v3448 = vsel %vm3432, 1, 0
      %v3449 = vsel %vm3433, 1, 0
      %v3450 = vsel %vm3434, 1, 0
      %v3451 = vsel %vm3435, 1, 0
      %v3452 = vcvt.s32.f32 %v3436
      %v3453 = vcvt.s32.f32 %v3437
      %v3454 = vcvt.s32.f32 %v3438
      %v3455 = vcvt.s32.f32 %v3439
      %v3456 = vcvt.s32.f32 %v3440
      %v3457 = vcvt.s32.f32 %v3441
      %v3458 = vcvt.s32.f32 %v3442
      %v3459 = vcvt.s32.f32 %v3443
      %v3460 = vcvt.s32.f32 %v3444
      %v3461 = vcvt.s32.f32 %v3445
      %v3462 = vcvt.s32.f32 %v3446
      %v3463 = vcvt.s32.f32 %v3447
      %v3464 = vcvt.s32.f32 %v3448
      %v3465 = vcvt.s32.f32 %v3449
      %v3466 = vcvt.s32.f32 %v3450
      %v3467 = vcvt.s32.f32 %v3451
      %v3468 = vadd.f32 %v3314, %v3452
      %v3469 = vadd.f32 %v3315, %v3453
      %v3470 = vadd.f32 %v3316, %v3454
      %v3471 = vadd.f32 %v3317, %v3455
      %v3472 = vadd.f32 %v3318, %v3456
      %v3473 = vadd.f32 %v3319, %v3457
      %v3474 = vadd.f32 %v3320, %v3458
      %v3475 = vadd.f32 %v3321, %v3459
      %v3476 = vadd.f32 %v3322, %v3460
      %v3477 = vadd.f32 %v3323, %v3461
      %v3478 = vadd.f32 %v3324, %v3462
      %v3479 = vadd.f32 %v3325, %v3463
      %v3480 = vadd.f32 %v3326, %v3464
      %v3481 = vadd.f32 %v3327, %v3465
      %v3482 = vadd.f32 %v3328, %v3466
      %v3483 = vadd.f32 %v3329, %v3467
      %v3484 = vsel %vm3420, 1e+30, %v3330
      %v3485 = vsel %vm3421, 1e+30, %v3331
      %v3486 = vsel %vm3422, 1e+30, %v3332
      %v3487 = vsel %vm3423, 1e+30, %v3333
      %v3488 = vsel %vm3424, 1e+30, %v3334
      %v3489 = vsel %vm3425, 1e+30, %v3335
      %v3490 = vsel %vm3426, 1e+30, %v3336
      %v3491 = vsel %vm3427, 1e+30, %v3337
      %v3492 = vsel %vm3428, 1e+30, %v3338
      %v3493 = vsel %vm3429, 1e+30, %v3339
      %v3494 = vsel %vm3430, 1e+30, %v3340
      %v3495 = vsel %vm3431, 1e+30, %v3341
      %v3496 = vsel %vm3432, 1e+30, %v3342
      %v3497 = vsel %vm3433, 1e+30, %v3343
      %v3498 = vsel %vm3434, 1e+30, %v3344
      %v3499 = vsel %vm3435, 1e+30, %v3345
      %v3500 = vmin.f32 %v3484, %v3488
      %v3501 = vmin.f32 %v3485, %v3489
      %v3502 = vmin.f32 %v3486, %v3490
      %v3503 = vmin.f32 %v3487, %v3491
      %v3504 = vmin.f32 %v3500, %v3492
      %v3505 = vmin.f32 %v3501, %v3493
      %v3506 = vmin.f32 %v3502, %v3494
      %v3507 = vmin.f32 %v3503, %v3495
      %v3508 = vmin.f32 %v3504, %v3496
      %v3509 = vmin.f32 %v3505, %v3497
      %v3510 = vmin.f32 %v3506, %v3498
      %v3511 = vmin.f32 %v3507, %v3499
      %v3512 = vmin.f32 %v3508, %v3509
      %v3513 = vmin.f32 %v3510, %v3511
      %v3514 = vmin.f32 %v3512, %v3513
      %v3515 = vrot.slane %v3514, 4
      %v3516 = vmin.f32 %v3514, %v3515
      %v3517 = vrot.slane %v3516, 2
      %v3518 = vmin.f32 %v3516, %v3517
      %v3519 = vrot.slane %v3518, 1
      %v3520 = vmin.f32 %v3518, %v3519
      %vm3521 = vcmp.eq.f32.partialorder %v3484, %v3520
      %vm3522 = vcmp.eq.f32.partialorder %v3485, %v3520
      %vm3523 = vcmp.eq.f32.partialorder %v3486, %v3520
      %vm3524 = vcmp.eq.f32.partialorder %v3487, %v3520
      %vm3525 = vcmp.eq.f32.partialorder %v3488, %v3520
      %vm3526 = vcmp.eq.f32.partialorder %v3489, %v3520
      %vm3527 = vcmp.eq.f32.partialorder %v3490, %v3520
      %vm3528 = vcmp.eq.f32.partialorder %v3491, %v3520
      %vm3529 = vcmp.eq.f32.partialorder %v3492, %v3520
      %vm3530 = vcmp.eq.f32.partialorder %v3493, %v3520
      %vm3531 = vcmp.eq.f32.partialorder %v3494, %v3520
      %vm3532 = vcmp.eq.f32.partialorder %v3495, %v3520
      %vm3533 = vcmp.eq.f32.partialorder %v3496, %v3520
      %vm3534 = vcmp.eq.f32.partialorder %v3497, %v3520
      %vm3535 = vcmp.eq.f32.partialorder %v3498, %v3520
      %vm3536 = vcmp.eq.f32.partialorder %v3499, %v3520
      %v3537 = vsel %vm3521, %v177, 128.0
      %v3538 = vsel %vm3522, %v178, 128.0
      %v3539 = vsel %vm3523, %v179, 128.0
      %v3540 = vsel %vm3524, %v180, 128.0
      %v3541 = vsel %vm3525, %v181, 128.0
      %v3542 = vsel %vm3526, %v182, 128.0
      %v3543 = vsel %vm3527, %v183, 128.0
      %v3544 = vsel %vm3528, %v184, 128.0
      %v3545 = vsel %vm3529, %v185, 128.0
      %v3546 = vsel %vm3530, %v186, 128.0
      %v3547 = vsel %vm3531, %v187, 128.0
      %v3548 = vsel %vm3532, %v188, 128.0
      %v3549 = vsel %vm3533, %v189, 128.0
      %v3550 = vsel %vm3534, %v190, 128.0
      %v3551 = vsel %vm3535, %v191, 128.0
      %v3552 = vsel %vm3536, %v192, 128.0
      %v3553 = vmin.f32 %v3537, %v3541
      %v3554 = vmin.f32 %v3538, %v3542
      %v3555 = vmin.f32 %v3539, %v3543
      %v3556 = vmin.f32 %v3540, %v3544
      %v3557 = vmin.f32 %v3553, %v3545
      %v3558 = vmin.f32 %v3554, %v3546
      %v3559 = vmin.f32 %v3555, %v3547
      %v3560 = vmin.f32 %v3556, %v3548
      %v3561 = vmin.f32 %v3557, %v3549
      %v3562 = vmin.f32 %v3558, %v3550
      %v3563 = vmin.f32 %v3559, %v3551
      %v3564 = vmin.f32 %v3560, %v3552
      %v3565 = vmin.f32 %v3561, %v3562
      %v3566 = vmin.f32 %v3563, %v3564
      %v3567 = vmin.f32 %v3565, %v3566
      %v3568 = vrot.slane %v3567, 4
      %v3569 = vmin.f32 %v3567, %v3568
      %v3570 = vrot.slane %v3569, 2
      %v3571 = vmin.f32 %v3569, %v3570
      %v3572 = vrot.slane %v3571, 1
      %v3573 = vmin.f32 %v3571, %v3572
      %vm3574 = vcmp.eq.f32.partialorder %v177, %v3573
      %vm3575 = vcmp.eq.f32.partialorder %v178, %v3573
      %vm3576 = vcmp.eq.f32.partialorder %v179, %v3573
      %vm3577 = vcmp.eq.f32.partialorder %v180, %v3573
      %vm3578 = vcmp.eq.f32.partialorder %v181, %v3573
      %vm3579 = vcmp.eq.f32.partialorder %v182, %v3573
      %vm3580 = vcmp.eq.f32.partialorder %v183, %v3573
      %vm3581 = vcmp.eq.f32.partialorder %v184, %v3573
      %vm3582 = vcmp.eq.f32.partialorder %v185, %v3573
      %vm3583 = vcmp.eq.f32.partialorder %v186, %v3573
      %vm3584 = vcmp.eq.f32.partialorder %v187, %v3573
      %vm3585 = vcmp.eq.f32.partialorder %v188, %v3573
      %vm3586 = vcmp.eq.f32.partialorder %v189, %v3573
      %vm3587 = vcmp.eq.f32.partialorder %v190, %v3573
      %vm3588 = vcmp.eq.f32.partialorder %v191, %v3573
      %vm3589 = vcmp.eq.f32.partialorder %v192, %v3573
      %v3590 = vsel %vm3574, 1, 0
      %v3591 = vsel %vm3575, 1, 0
      %v3592 = vsel %vm3576, 1, 0
      %v3593 = vsel %vm3577, 1, 0
      %v3594 = vsel %vm3578, 1, 0
      %v3595 = vsel %vm3579, 1, 0
      %v3596 = vsel %vm3580, 1, 0
      %v3597 = vsel %vm3581, 1, 0
      %v3598 = vsel %vm3582, 1, 0
      %v3599 = vsel %vm3583, 1, 0
      %v3600 = vsel %vm3584, 1, 0
      %v3601 = vsel %vm3585, 1, 0
      %v3602 = vsel %vm3586, 1, 0
      %v3603 = vsel %vm3587, 1, 0
      %v3604 = vsel %vm3588, 1, 0
      %v3605 = vsel %vm3589, 1, 0
      %v3606 = vcvt.s32.f32 %v3590
      %v3607 = vcvt.s32.f32 %v3591
      %v3608 = vcvt.s32.f32 %v3592
      %v3609 = vcvt.s32.f32 %v3593
      %v3610 = vcvt.s32.f32 %v3594
      %v3611 = vcvt.s32.f32 %v3595
      %v3612 = vcvt.s32.f32 %v3596
      %v3613 = vcvt.s32.f32 %v3597
      %v3614 = vcvt.s32.f32 %v3598
      %v3615 = vcvt.s32.f32 %v3599
      %v3616 = vcvt.s32.f32 %v3600
      %v3617 = vcvt.s32.f32 %v3601
      %v3618 = vcvt.s32.f32 %v3602
      %v3619 = vcvt.s32.f32 %v3603
      %v3620 = vcvt.s32.f32 %v3604
      %v3621 = vcvt.s32.f32 %v3605
      %v3622 = vadd.f32 %v3468, %v3606
      %v3623 = vadd.f32 %v3469, %v3607
      %v3624 = vadd.f32 %v3470, %v3608
      %v3625 = vadd.f32 %v3471, %v3609
      %v3626 = vadd.f32 %v3472, %v3610
      %v3627 = vadd.f32 %v3473, %v3611
      %v3628 = vadd.f32 %v3474, %v3612
      %v3629 = vadd.f32 %v3475, %v3613
      %v3630 = vadd.f32 %v3476, %v3614
      %v3631 = vadd.f32 %v3477, %v3615
      %v3632 = vadd.f32 %v3478, %v3616
      %v3633 = vadd.f32 %v3479, %v3617
      %v3634 = vadd.f32 %v3480, %v3618
      %v3635 = vadd.f32 %v3481, %v3619
      %v3636 = vadd.f32 %v3482, %v3620
      %v3637 = vadd.f32 %v3483, %v3621
      %v3638 = vmul.f32 %v209, %v209
      %v3640 = vrot.slane %v209, 1
      %v3642 = vmul.f32 %v209, %v3640
      %v3643 = vrot.slane %v209, 2
      %v3645 = vmul.f32 %v209, %v3643
      %v3647 = vrot.slane %v3638, 5
      %v3650 = vrot.slane %v3642, 2
      %v3653 = vrot.slane %v3645, 1
      %v3655 = vrot.slane %v3642, 1
      %vm3657 = vcmask 1042432
      %v3658 = vsel %vm3657, %v209, %v3647
      %vm3659 = vcmask 1043456
      %v3660 = vsel %vm3659, %v3658, %v3647
      %vm3661 = vcmask 1044480
      %v3662 = vsel %vm3661, %v3660, %v3647
      %vm3663 = vcmask 1045504
      %v3664 = vsel %vm3663, %v3662, %v3650
      %vm3665 = vcmask 1046528
      %v3666 = vsel %vm3665, %v3664, %v3653
      %vm3667 = vcmask 1040384
      %v3668 = vsel %vm3667, %v3655, 0.0
      %vm3669 = vcmask 1041408
      %v3670 = vsel %vm3669, %v3668, 0.0
      %v3671 = vsel %vm3657, %v3670, 0.0
      %v3672 = vsel %vm3659, %v3671, 0.0
      %v3673 = vsel %vm3661, %v3672, 0.0
      %v3674 = vsel %vm3663, %v3673, 0.0
      %v3675 = vsel %vm3665, %v3674, 0.0
      %3676 = vmatprep.subr.mxu0 0.0
      %3677 = vmatpush1.msra.mxu0 %v3637
      %3678 = vmatprep.subr.mxu0 0.0
      %3679 = vmatpush1.msra.mxu0 %v3636
      %3680 = vmatprep.subr.mxu0 0.0
      %3681 = vmatpush1.msra.mxu0 %v3635
      %3682 = vmatprep.subr.mxu0 0.0
      %3683 = vmatpush1.msra.mxu0 %v3634
      %3684 = vmatprep.subr.mxu0 0.0
      %3685 = vmatpush1.msra.mxu0 %v3633
      %3686 = vmatprep.subr.mxu0 0.0
      %3687 = vmatpush1.msra.mxu0 %v3632
      %3688 = vmatprep.subr.mxu0 0.0
      %3689 = vmatpush1.msra.mxu0 %v3631
      %3690 = vmatprep.subr.mxu0 0.0
      %3691 = vmatpush1.msra.mxu0 %v3630
      %3692 = vmatprep.subr.mxu0 0.0
      %3693 = vmatpush1.msra.mxu0 %v3629
      %3694 = vmatprep.subr.mxu0 0.0
      %3695 = vmatpush1.msra.mxu0 %v3628
      %3696 = vmatprep.subr.mxu0 0.0
      %3697 = vmatpush1.msra.mxu0 %v3627
      %3698 = vmatprep.subr.mxu0 0.0
      %3699 = vmatpush1.msra.mxu0 %v3626
      %3700 = vmatprep.subr.mxu0 0.0
      %3701 = vmatpush1.msra.mxu0 %v3625
      %3702 = vmatprep.subr.mxu0 0.0
      %3703 = vmatpush1.msra.mxu0 %v3624
      %3704 = vmatprep.subr.mxu0 0.0
      %3705 = vmatpush1.msra.mxu0 %v3623
      %3706 = vmatprep.subr.mxu0 0.0
      %3707 = vmatpush1.msra.mxu0 %v3622
      %3708 = vmatprep.subr.mxu0 0.0
      %3709 = vmatpush2.msra.mxu0 0.0
      %3710 = vmatprep.subr.mxu0 0.0
      %3711 = vmatpush2.msra.mxu0 0.0
      %3712 = vmatprep.subr.mxu0 0.0
      %3713 = vmatpush2.msra.mxu0 0.0
      %3714 = vmatprep.subr.mxu0 0.0
      %3715 = vmatpush2.msra.mxu0 0.0
      %3716 = vmatprep.subr.mxu0 0.0
      %3717 = vmatpush2.msra.mxu0 0.0
      %3718 = vmatprep.subr.mxu0 0.0
      %3719 = vmatpush2.msra.mxu0 0.0
      %3720 = vmatprep.subr.mxu0 0.0
      %3721 = vmatpush2.msra.mxu0 0.0
      %3722 = vmatprep.subr.mxu0 0.0
      %3723 = vmatpush2.msra.mxu0 0.0
      %3724 = vmatprep.subr.mxu0 0.0
      %3725 = vmatpush2.msra.mxu0 0.0
      %3726 = vmatprep.subr.mxu0 0.0
      %3727 = vmatpush2.msra.mxu0 0.0
      %3728 = vmatprep.subr.mxu0 0.0
      %3729 = vmatpush2.msra.mxu0 0.0
      %3730 = vmatprep.subr.mxu0 0.0
      %3731 = vmatpush2.msra.mxu0 0.0
      %3732 = vmatprep.subr.mxu0 0.0
      %3733 = vmatpush2.msra.mxu0 0.0
      %3734 = vmatprep.subr.mxu0 0.0
      %3735 = vmatpush2.msra.mxu0 0.0
      %3736 = vmatprep.subr.mxu0 0.0
      %3737 = vmatpush2.msra.mxu0 0.0
      %3738 = vmatprep.subr.mxu0 0.0
      %3739 = vmatpush2.msra.mxu0 0.0
      %3740 = vmatprep.mubr.f32.mxu0 0.0
      %3741 = vmatmul.mubr.f32.gmra.mxu0 %v3666
      %v3742 = vpop.f32.mrf.mxu0
      %v3743 = vadd.f32 0.0, %v3742
      %v3744 = vpop.f32.mrf.mxu0
      %3745 = vmatprep.mubr.f32.mxu0 0.0
      %3746 = vmatmul.mubr.f32.gmra.mxu0 %v3675
      %v3747 = vpop.f32.mrf.mxu0
      %v3748 = vadd.f32 0.0, %v3747
      %v3749 = vpop.f32.mrf.mxu0
      %3750 = vdwg.mxu0
      %s3751 = scalar_lea.vmem %s151, 128
      %v3752 = vld [vmem:[%s3751] sm:$0xff]
      %v3753 = vld [vmem:[%s3751 + $0x8] sm:$0xff]
      %v3754 = vld [vmem:[%s3751 + $0x10] sm:$0xff]
      %v3755 = vld [vmem:[%s3751 + $0x18] sm:$0xff]
      %v3756 = vld [vmem:[%s3751 + $0x20] sm:$0xff]
      %v3757 = vld [vmem:[%s3751 + $0x28] sm:$0xff]
      %v3758 = vld [vmem:[%s3751 + $0x30] sm:$0xff]
      %v3759 = vld [vmem:[%s3751 + $0x38] sm:$0xff]
      %v3760 = vld [vmem:[%s3751 + $0x40] sm:$0xff]
      %v3761 = vld [vmem:[%s3751 + $0x48] sm:$0xff]
      %v3762 = vld [vmem:[%s3751 + $0x50] sm:$0xff]
      %v3763 = vld [vmem:[%s3751 + $0x58] sm:$0xff]
      %v3764 = vld [vmem:[%s3751 + $0x60] sm:$0xff]
      %v3765 = vld [vmem:[%s3751 + $0x68] sm:$0xff]
      %v3766 = vld [vmem:[%s3751 + $0x70] sm:$0xff]
      %v3767 = vld [vmem:[%s3751 + $0x78] sm:$0xff]
      %s3768 = scalar_lea.vmem %s156, 4
      %v3769 = vld [vmem:[%s3768] sm:$0x7]
      %3771 = vset.pattern.permute.xlu0 0
      %3772 = vperm.xlu0 %3771, %v3752
      %v3773 = vpop.permute.xlu0 %3772
      %3776 = vset.pattern.permute.xlu0 0
      %3777 = vperm.xlu0 %3776, %v3753
      %v3778 = vpop.permute.xlu0 %3777
      %3781 = vset.pattern.permute.xlu0 0
      %3782 = vperm.xlu0 %3781, %v3754
      %v3783 = vpop.permute.xlu0 %3782
      %3786 = vset.pattern.permute.xlu0 0
      %3787 = vperm.xlu0 %3786, %v3755
      %v3788 = vpop.permute.xlu0 %3787
      %3791 = vset.pattern.permute.xlu0 0
      %3792 = vperm.xlu0 %3791, %v3756
      %v3793 = vpop.permute.xlu0 %3792
      %3796 = vset.pattern.permute.xlu0 0
      %3797 = vperm.xlu0 %3796, %v3757
      %v3798 = vpop.permute.xlu0 %3797
      %3801 = vset.pattern.permute.xlu0 0
      %3802 = vperm.xlu0 %3801, %v3758
      %v3803 = vpop.permute.xlu0 %3802
      %3806 = vset.pattern.permute.xlu0 0
      %3807 = vperm.xlu0 %3806, %v3759
      %v3808 = vpop.permute.xlu0 %3807
      %3811 = vset.pattern.permute.xlu0 0
      %3812 = vperm.xlu0 %3811, %v3760
      %v3813 = vpop.permute.xlu0 %3812
      %3816 = vset.pattern.permute.xlu0 0
      %3817 = vperm.xlu0 %3816, %v3761
      %v3818 = vpop.permute.xlu0 %3817
      %3821 = vset.pattern.permute.xlu0 0
      %3822 = vperm.xlu0 %3821, %v3762
      %v3823 = vpop.permute.xlu0 %3822
      %3826 = vset.pattern.permute.xlu0 0
      %3827 = vperm.xlu0 %3826, %v3763
      %v3828 = vpop.permute.xlu0 %3827
      %3831 = vset.pattern.permute.xlu0 0
      %3832 = vperm.xlu0 %3831, %v3764
      %v3833 = vpop.permute.xlu0 %3832
      %3836 = vset.pattern.permute.xlu0 0
      %3837 = vperm.xlu0 %3836, %v3765
      %v3838 = vpop.permute.xlu0 %3837
      %3841 = vset.pattern.permute.xlu0 0
      %3842 = vperm.xlu0 %3841, %v3766
      %v3843 = vpop.permute.xlu0 %3842
      %3846 = vset.pattern.permute.xlu0 0
      %3847 = vperm.xlu0 %3846, %v3767
      %v3848 = vpop.permute.xlu0 %3847
      %v3850 = vlaneseq
      %v3851 = vshrl.u32 %v3850, 7
      %v3852 = vsub.s32 0, %v3851
      %v3853 = vrot.slane %v3769, %v3852
      %v3854 = vsub.f32 %v3773, %v3853
      %v3855 = vsub.f32 %v3778, %v3853
      %v3856 = vsub.f32 %v3783, %v3853
      %v3857 = vsub.f32 %v3788, %v3853
      %v3858 = vsub.f32 %v3793, %v3853
      %v3859 = vsub.f32 %v3798, %v3853
      %v3860 = vsub.f32 %v3803, %v3853
      %v3861 = vsub.f32 %v3808, %v3853
      %v3862 = vsub.f32 %v3813, %v3853
      %v3863 = vsub.f32 %v3818, %v3853
      %v3864 = vsub.f32 %v3823, %v3853
      %v3865 = vsub.f32 %v3828, %v3853
      %v3866 = vsub.f32 %v3833, %v3853
      %v3867 = vsub.f32 %v3838, %v3853
      %v3868 = vsub.f32 %v3843, %v3853
      %v3869 = vsub.f32 %v3848, %v3853
      %v3870 = vmul.f32 %v3854, %v3854
      %v3871 = vmul.f32 %v3855, %v3855
      %v3872 = vmul.f32 %v3856, %v3856
      %v3873 = vmul.f32 %v3857, %v3857
      %v3874 = vmul.f32 %v3858, %v3858
      %v3875 = vmul.f32 %v3859, %v3859
      %v3876 = vmul.f32 %v3860, %v3860
      %v3877 = vmul.f32 %v3861, %v3861
      %v3878 = vmul.f32 %v3862, %v3862
      %v3879 = vmul.f32 %v3863, %v3863
      %v3880 = vmul.f32 %v3864, %v3864
      %v3881 = vmul.f32 %v3865, %v3865
      %v3882 = vmul.f32 %v3866, %v3866
      %v3883 = vmul.f32 %v3867, %v3867
      %v3884 = vmul.f32 %v3868, %v3868
      %v3885 = vmul.f32 %v3869, %v3869
      %v3886 = vadd.f32 %v3870, 0.0
      %v3887 = vadd.f32 %v3871, 0.0
      %v3888 = vadd.f32 %v3872, 0.0
      %v3889 = vadd.f32 %v3873, 0.0
      %v3890 = vadd.f32 %v3874, 0.0
      %v3891 = vadd.f32 %v3875, 0.0
      %v3892 = vadd.f32 %v3876, 0.0
      %v3893 = vadd.f32 %v3877, 0.0
      %v3894 = vadd.f32 %v3878, 0.0
      %v3895 = vadd.f32 %v3879, 0.0
      %v3896 = vadd.f32 %v3880, 0.0
      %v3897 = vadd.f32 %v3881, 0.0
      %v3898 = vadd.f32 %v3882, 0.0
      %v3899 = vadd.f32 %v3883, 0.0
      %v3900 = vadd.f32 %v3884, 0.0
      %v3901 = vadd.f32 %v3885, 0.0
      %3902 = vset.pattern.permute.xlu0 1
      %3903 = vperm.xlu0 %3902, %v3752
      %v3904 = vpop.permute.xlu0 %3903
      %3906 = vset.pattern.permute.xlu0 1
      %3907 = vperm.xlu0 %3906, %v3753
      %v3908 = vpop.permute.xlu0 %3907
      %3910 = vset.pattern.permute.xlu0 1
      %3911 = vperm.xlu0 %3910, %v3754
      %v3912 = vpop.permute.xlu0 %3911
      %3914 = vset.pattern.permute.xlu0 1
      %3915 = vperm.xlu0 %3914, %v3755
      %v3916 = vpop.permute.xlu0 %3915
      %3918 = vset.pattern.permute.xlu0 1
      %3919 = vperm.xlu0 %3918, %v3756
      %v3920 = vpop.permute.xlu0 %3919
      %3922 = vset.pattern.permute.xlu0 1
      %3923 = vperm.xlu0 %3922, %v3757
      %v3924 = vpop.permute.xlu0 %3923
      %3926 = vset.pattern.permute.xlu0 1
      %3927 = vperm.xlu0 %3926, %v3758
      %v3928 = vpop.permute.xlu0 %3927
      %3930 = vset.pattern.permute.xlu0 1
      %3931 = vperm.xlu0 %3930, %v3759
      %v3932 = vpop.permute.xlu0 %3931
      %3934 = vset.pattern.permute.xlu0 1
      %3935 = vperm.xlu0 %3934, %v3760
      %v3936 = vpop.permute.xlu0 %3935
      %3938 = vset.pattern.permute.xlu0 1
      %3939 = vperm.xlu0 %3938, %v3761
      %v3940 = vpop.permute.xlu0 %3939
      %3942 = vset.pattern.permute.xlu0 1
      %3943 = vperm.xlu0 %3942, %v3762
      %v3944 = vpop.permute.xlu0 %3943
      %3946 = vset.pattern.permute.xlu0 1
      %3947 = vperm.xlu0 %3946, %v3763
      %v3948 = vpop.permute.xlu0 %3947
      %3950 = vset.pattern.permute.xlu0 1
      %3951 = vperm.xlu0 %3950, %v3764
      %v3952 = vpop.permute.xlu0 %3951
      %3954 = vset.pattern.permute.xlu0 1
      %3955 = vperm.xlu0 %3954, %v3765
      %v3956 = vpop.permute.xlu0 %3955
      %3958 = vset.pattern.permute.xlu0 1
      %3959 = vperm.xlu0 %3958, %v3766
      %v3960 = vpop.permute.xlu0 %3959
      %3962 = vset.pattern.permute.xlu0 1
      %3963 = vperm.xlu0 %3962, %v3767
      %v3964 = vpop.permute.xlu0 %3963
      %v3966 = vlaneseq
      %v3967 = vshrl.u32 %v3966, 7
      %v3968 = vsub.s32 1, %v3967
      %v3969 = vrot.slane %v3769, %v3968
      %v3970 = vsub.f32 %v3904, %v3969
      %v3971 = vsub.f32 %v3908, %v3969
      %v3972 = vsub.f32 %v3912, %v3969
      %v3973 = vsub.f32 %v3916, %v3969
      %v3974 = vsub.f32 %v3920, %v3969
      %v3975 = vsub.f32 %v3924, %v3969
      %v3976 = vsub.f32 %v3928, %v3969
      %v3977 = vsub.f32 %v3932, %v3969
      %v3978 = vsub.f32 %v3936, %v3969
      %v3979 = vsub.f32 %v3940, %v3969
      %v3980 = vsub.f32 %v3944, %v3969
      %v3981 = vsub.f32 %v3948, %v3969
      %v3982 = vsub.f32 %v3952, %v3969
      %v3983 = vsub.f32 %v3956, %v3969
      %v3984 = vsub.f32 %v3960, %v3969
      %v3985 = vsub.f32 %v3964, %v3969
      %v3986 = vmul.f32 %v3970, %v3970
      %v3987 = vmul.f32 %v3971, %v3971
      %v3988 = vmul.f32 %v3972, %v3972
      %v3989 = vmul.f32 %v3973, %v3973
      %v3990 = vmul.f32 %v3974, %v3974
      %v3991 = vmul.f32 %v3975, %v3975
      %v3992 = vmul.f32 %v3976, %v3976
      %v3993 = vmul.f32 %v3977, %v3977
      %v3994 = vmul.f32 %v3978, %v3978
      %v3995 = vmul.f32 %v3979, %v3979
      %v3996 = vmul.f32 %v3980, %v3980
      %v3997 = vmul.f32 %v3981, %v3981
      %v3998 = vmul.f32 %v3982, %v3982
      %v3999 = vmul.f32 %v3983, %v3983
      %v4000 = vmul.f32 %v3984, %v3984
      %v4001 = vmul.f32 %v3985, %v3985
      %v4002 = vadd.f32 %v3886, %v3986
      %v4003 = vadd.f32 %v3887, %v3987
      %v4004 = vadd.f32 %v3888, %v3988
      %v4005 = vadd.f32 %v3889, %v3989
      %v4006 = vadd.f32 %v3890, %v3990
      %v4007 = vadd.f32 %v3891, %v3991
      %v4008 = vadd.f32 %v3892, %v3992
      %v4009 = vadd.f32 %v3893, %v3993
      %v4010 = vadd.f32 %v3894, %v3994
      %v4011 = vadd.f32 %v3895, %v3995
      %v4012 = vadd.f32 %v3896, %v3996
      %v4013 = vadd.f32 %v3897, %v3997
      %v4014 = vadd.f32 %v3898, %v3998
      %v4015 = vadd.f32 %v3899, %v3999
      %v4016 = vadd.f32 %v3900, %v4000
      %v4017 = vadd.f32 %v3901, %v4001
      %4018 = vset.pattern.permute.xlu0 2
      %4019 = vperm.xlu0 %4018, %v3752
      %v4020 = vpop.permute.xlu0 %4019
      %4022 = vset.pattern.permute.xlu0 2
      %4023 = vperm.xlu0 %4022, %v3753
      %v4024 = vpop.permute.xlu0 %4023
      %4026 = vset.pattern.permute.xlu0 2
      %4027 = vperm.xlu0 %4026, %v3754
      %v4028 = vpop.permute.xlu0 %4027
      %4030 = vset.pattern.permute.xlu0 2
      %4031 = vperm.xlu0 %4030, %v3755
      %v4032 = vpop.permute.xlu0 %4031
      %4034 = vset.pattern.permute.xlu0 2
      %4035 = vperm.xlu0 %4034, %v3756
      %v4036 = vpop.permute.xlu0 %4035
      %4038 = vset.pattern.permute.xlu0 2
      %4039 = vperm.xlu0 %4038, %v3757
      %v4040 = vpop.permute.xlu0 %4039
      %4042 = vset.pattern.permute.xlu0 2
      %4043 = vperm.xlu0 %4042, %v3758
      %v4044 = vpop.permute.xlu0 %4043
      %4046 = vset.pattern.permute.xlu0 2
      %4047 = vperm.xlu0 %4046, %v3759
      %v4048 = vpop.permute.xlu0 %4047
      %4050 = vset.pattern.permute.xlu0 2
      %4051 = vperm.xlu0 %4050, %v3760
      %v4052 = vpop.permute.xlu0 %4051
      %4054 = vset.pattern.permute.xlu0 2
      %4055 = vperm.xlu0 %4054, %v3761
      %v4056 = vpop.permute.xlu0 %4055
      %4058 = vset.pattern.permute.xlu0 2
      %4059 = vperm.xlu0 %4058, %v3762
      %v4060 = vpop.permute.xlu0 %4059
      %4062 = vset.pattern.permute.xlu0 2
      %4063 = vperm.xlu0 %4062, %v3763
      %v4064 = vpop.permute.xlu0 %4063
      %4066 = vset.pattern.permute.xlu0 2
      %4067 = vperm.xlu0 %4066, %v3764
      %v4068 = vpop.permute.xlu0 %4067
      %4070 = vset.pattern.permute.xlu0 2
      %4071 = vperm.xlu0 %4070, %v3765
      %v4072 = vpop.permute.xlu0 %4071
      %4074 = vset.pattern.permute.xlu0 2
      %4075 = vperm.xlu0 %4074, %v3766
      %v4076 = vpop.permute.xlu0 %4075
      %4078 = vset.pattern.permute.xlu0 2
      %4079 = vperm.xlu0 %4078, %v3767
      %v4080 = vpop.permute.xlu0 %4079
      %v4082 = vlaneseq
      %v4083 = vshrl.u32 %v4082, 7
      %v4084 = vsub.s32 2, %v4083
      %v4085 = vrot.slane %v3769, %v4084
      %v4086 = vsub.f32 %v4020, %v4085
      %v4087 = vsub.f32 %v4024, %v4085
      %v4088 = vsub.f32 %v4028, %v4085
      %v4089 = vsub.f32 %v4032, %v4085
      %v4090 = vsub.f32 %v4036, %v4085
      %v4091 = vsub.f32 %v4040, %v4085
      %v4092 = vsub.f32 %v4044, %v4085
      %v4093 = vsub.f32 %v4048, %v4085
      %v4094 = vsub.f32 %v4052, %v4085
      %v4095 = vsub.f32 %v4056, %v4085
      %v4096 = vsub.f32 %v4060, %v4085
      %v4097 = vsub.f32 %v4064, %v4085
      %v4098 = vsub.f32 %v4068, %v4085
      %v4099 = vsub.f32 %v4072, %v4085
      %v4100 = vsub.f32 %v4076, %v4085
      %v4101 = vsub.f32 %v4080, %v4085
      %v4102 = vmul.f32 %v4086, %v4086
      %v4103 = vmul.f32 %v4087, %v4087
      %v4104 = vmul.f32 %v4088, %v4088
      %v4105 = vmul.f32 %v4089, %v4089
      %v4106 = vmul.f32 %v4090, %v4090
      %v4107 = vmul.f32 %v4091, %v4091
      %v4108 = vmul.f32 %v4092, %v4092
      %v4109 = vmul.f32 %v4093, %v4093
      %v4110 = vmul.f32 %v4094, %v4094
      %v4111 = vmul.f32 %v4095, %v4095
      %v4112 = vmul.f32 %v4096, %v4096
      %v4113 = vmul.f32 %v4097, %v4097
      %v4114 = vmul.f32 %v4098, %v4098
      %v4115 = vmul.f32 %v4099, %v4099
      %v4116 = vmul.f32 %v4100, %v4100
      %v4117 = vmul.f32 %v4101, %v4101
      %v4118 = vadd.f32 %v4002, %v4102
      %v4119 = vadd.f32 %v4003, %v4103
      %v4120 = vadd.f32 %v4004, %v4104
      %v4121 = vadd.f32 %v4005, %v4105
      %v4122 = vadd.f32 %v4006, %v4106
      %v4123 = vadd.f32 %v4007, %v4107
      %v4124 = vadd.f32 %v4008, %v4108
      %v4125 = vadd.f32 %v4009, %v4109
      %v4126 = vadd.f32 %v4010, %v4110
      %v4127 = vadd.f32 %v4011, %v4111
      %v4128 = vadd.f32 %v4012, %v4112
      %v4129 = vadd.f32 %v4013, %v4113
      %v4130 = vadd.f32 %v4014, %v4114
      %v4131 = vadd.f32 %v4015, %v4115
      %v4132 = vadd.f32 %v4016, %v4116
      %v4133 = vadd.f32 %v4017, %v4117
      %v4134 = vmin.f32 %v4118, %v4122
      %v4135 = vmin.f32 %v4119, %v4123
      %v4136 = vmin.f32 %v4120, %v4124
      %v4137 = vmin.f32 %v4121, %v4125
      %v4138 = vmin.f32 %v4134, %v4126
      %v4139 = vmin.f32 %v4135, %v4127
      %v4140 = vmin.f32 %v4136, %v4128
      %v4141 = vmin.f32 %v4137, %v4129
      %v4142 = vmin.f32 %v4138, %v4130
      %v4143 = vmin.f32 %v4139, %v4131
      %v4144 = vmin.f32 %v4140, %v4132
      %v4145 = vmin.f32 %v4141, %v4133
      %v4146 = vmin.f32 %v4142, %v4143
      %v4147 = vmin.f32 %v4144, %v4145
      %v4148 = vmin.f32 %v4146, %v4147
      %v4149 = vrot.slane %v4148, 4
      %v4150 = vmin.f32 %v4148, %v4149
      %v4151 = vrot.slane %v4150, 2
      %v4152 = vmin.f32 %v4150, %v4151
      %v4153 = vrot.slane %v4152, 1
      %v4154 = vmin.f32 %v4152, %v4153
      %vm4155 = vcmp.eq.f32.partialorder %v4118, %v4154
      %vm4156 = vcmp.eq.f32.partialorder %v4119, %v4154
      %vm4157 = vcmp.eq.f32.partialorder %v4120, %v4154
      %vm4158 = vcmp.eq.f32.partialorder %v4121, %v4154
      %vm4159 = vcmp.eq.f32.partialorder %v4122, %v4154
      %vm4160 = vcmp.eq.f32.partialorder %v4123, %v4154
      %vm4161 = vcmp.eq.f32.partialorder %v4124, %v4154
      %vm4162 = vcmp.eq.f32.partialorder %v4125, %v4154
      %vm4163 = vcmp.eq.f32.partialorder %v4126, %v4154
      %vm4164 = vcmp.eq.f32.partialorder %v4127, %v4154
      %vm4165 = vcmp.eq.f32.partialorder %v4128, %v4154
      %vm4166 = vcmp.eq.f32.partialorder %v4129, %v4154
      %vm4167 = vcmp.eq.f32.partialorder %v4130, %v4154
      %vm4168 = vcmp.eq.f32.partialorder %v4131, %v4154
      %vm4169 = vcmp.eq.f32.partialorder %v4132, %v4154
      %vm4170 = vcmp.eq.f32.partialorder %v4133, %v4154
      %v4171 = vsel %vm4155, %v177, 128.0
      %v4172 = vsel %vm4156, %v178, 128.0
      %v4173 = vsel %vm4157, %v179, 128.0
      %v4174 = vsel %vm4158, %v180, 128.0
      %v4175 = vsel %vm4159, %v181, 128.0
      %v4176 = vsel %vm4160, %v182, 128.0
      %v4177 = vsel %vm4161, %v183, 128.0
      %v4178 = vsel %vm4162, %v184, 128.0
      %v4179 = vsel %vm4163, %v185, 128.0
      %v4180 = vsel %vm4164, %v186, 128.0
      %v4181 = vsel %vm4165, %v187, 128.0
      %v4182 = vsel %vm4166, %v188, 128.0
      %v4183 = vsel %vm4167, %v189, 128.0
      %v4184 = vsel %vm4168, %v190, 128.0
      %v4185 = vsel %vm4169, %v191, 128.0
      %v4186 = vsel %vm4170, %v192, 128.0
      %v4187 = vmin.f32 %v4171, %v4175
      %v4188 = vmin.f32 %v4172, %v4176
      %v4189 = vmin.f32 %v4173, %v4177
      %v4190 = vmin.f32 %v4174, %v4178
      %v4191 = vmin.f32 %v4187, %v4179
      %v4192 = vmin.f32 %v4188, %v4180
      %v4193 = vmin.f32 %v4189, %v4181
      %v4194 = vmin.f32 %v4190, %v4182
      %v4195 = vmin.f32 %v4191, %v4183
      %v4196 = vmin.f32 %v4192, %v4184
      %v4197 = vmin.f32 %v4193, %v4185
      %v4198 = vmin.f32 %v4194, %v4186
      %v4199 = vmin.f32 %v4195, %v4196
      %v4200 = vmin.f32 %v4197, %v4198
      %v4201 = vmin.f32 %v4199, %v4200
      %v4202 = vrot.slane %v4201, 4
      %v4203 = vmin.f32 %v4201, %v4202
      %v4204 = vrot.slane %v4203, 2
      %v4205 = vmin.f32 %v4203, %v4204
      %v4206 = vrot.slane %v4205, 1
      %v4207 = vmin.f32 %v4205, %v4206
      %vm4208 = vcmp.eq.f32.partialorder %v177, %v4207
      %vm4209 = vcmp.eq.f32.partialorder %v178, %v4207
      %vm4210 = vcmp.eq.f32.partialorder %v179, %v4207
      %vm4211 = vcmp.eq.f32.partialorder %v180, %v4207
      %vm4212 = vcmp.eq.f32.partialorder %v181, %v4207
      %vm4213 = vcmp.eq.f32.partialorder %v182, %v4207
      %vm4214 = vcmp.eq.f32.partialorder %v183, %v4207
      %vm4215 = vcmp.eq.f32.partialorder %v184, %v4207
      %vm4216 = vcmp.eq.f32.partialorder %v185, %v4207
      %vm4217 = vcmp.eq.f32.partialorder %v186, %v4207
      %vm4218 = vcmp.eq.f32.partialorder %v187, %v4207
      %vm4219 = vcmp.eq.f32.partialorder %v188, %v4207
      %vm4220 = vcmp.eq.f32.partialorder %v189, %v4207
      %vm4221 = vcmp.eq.f32.partialorder %v190, %v4207
      %vm4222 = vcmp.eq.f32.partialorder %v191, %v4207
      %vm4223 = vcmp.eq.f32.partialorder %v192, %v4207
      %v4224 = vsel %vm4208, 1, 0
      %v4225 = vsel %vm4209, 1, 0
      %v4226 = vsel %vm4210, 1, 0
      %v4227 = vsel %vm4211, 1, 0
      %v4228 = vsel %vm4212, 1, 0
      %v4229 = vsel %vm4213, 1, 0
      %v4230 = vsel %vm4214, 1, 0
      %v4231 = vsel %vm4215, 1, 0
      %v4232 = vsel %vm4216, 1, 0
      %v4233 = vsel %vm4217, 1, 0
      %v4234 = vsel %vm4218, 1, 0
      %v4235 = vsel %vm4219, 1, 0
      %v4236 = vsel %vm4220, 1, 0
      %v4237 = vsel %vm4221, 1, 0
      %v4238 = vsel %vm4222, 1, 0
      %v4239 = vsel %vm4223, 1, 0
      %v4240 = vcvt.s32.f32 %v4224
      %v4241 = vcvt.s32.f32 %v4225
      %v4242 = vcvt.s32.f32 %v4226
      %v4243 = vcvt.s32.f32 %v4227
      %v4244 = vcvt.s32.f32 %v4228
      %v4245 = vcvt.s32.f32 %v4229
      %v4246 = vcvt.s32.f32 %v4230
      %v4247 = vcvt.s32.f32 %v4231
      %v4248 = vcvt.s32.f32 %v4232
      %v4249 = vcvt.s32.f32 %v4233
      %v4250 = vcvt.s32.f32 %v4234
      %v4251 = vcvt.s32.f32 %v4235
      %v4252 = vcvt.s32.f32 %v4236
      %v4253 = vcvt.s32.f32 %v4237
      %v4254 = vcvt.s32.f32 %v4238
      %v4255 = vcvt.s32.f32 %v4239
      %v4256 = vadd.f32 %v4240, 0.0
      %v4257 = vadd.f32 %v4241, 0.0
      %v4258 = vadd.f32 %v4242, 0.0
      %v4259 = vadd.f32 %v4243, 0.0
      %v4260 = vadd.f32 %v4244, 0.0
      %v4261 = vadd.f32 %v4245, 0.0
      %v4262 = vadd.f32 %v4246, 0.0
      %v4263 = vadd.f32 %v4247, 0.0
      %v4264 = vadd.f32 %v4248, 0.0
      %v4265 = vadd.f32 %v4249, 0.0
      %v4266 = vadd.f32 %v4250, 0.0
      %v4267 = vadd.f32 %v4251, 0.0
      %v4268 = vadd.f32 %v4252, 0.0
      %v4269 = vadd.f32 %v4253, 0.0
      %v4270 = vadd.f32 %v4254, 0.0
      %v4271 = vadd.f32 %v4255, 0.0
      %v4272 = vsel %vm4208, 1e+30, %v4118
      %v4273 = vsel %vm4209, 1e+30, %v4119
      %v4274 = vsel %vm4210, 1e+30, %v4120
      %v4275 = vsel %vm4211, 1e+30, %v4121
      %v4276 = vsel %vm4212, 1e+30, %v4122
      %v4277 = vsel %vm4213, 1e+30, %v4123
      %v4278 = vsel %vm4214, 1e+30, %v4124
      %v4279 = vsel %vm4215, 1e+30, %v4125
      %v4280 = vsel %vm4216, 1e+30, %v4126
      %v4281 = vsel %vm4217, 1e+30, %v4127
      %v4282 = vsel %vm4218, 1e+30, %v4128
      %v4283 = vsel %vm4219, 1e+30, %v4129
      %v4284 = vsel %vm4220, 1e+30, %v4130
      %v4285 = vsel %vm4221, 1e+30, %v4131
      %v4286 = vsel %vm4222, 1e+30, %v4132
      %v4287 = vsel %vm4223, 1e+30, %v4133
      %v4288 = vmin.f32 %v4272, %v4276
      %v4289 = vmin.f32 %v4273, %v4277
      %v4290 = vmin.f32 %v4274, %v4278
      %v4291 = vmin.f32 %v4275, %v4279
      %v4292 = vmin.f32 %v4288, %v4280
      %v4293 = vmin.f32 %v4289, %v4281
      %v4294 = vmin.f32 %v4290, %v4282
      %v4295 = vmin.f32 %v4291, %v4283
      %v4296 = vmin.f32 %v4292, %v4284
      %v4297 = vmin.f32 %v4293, %v4285
      %v4298 = vmin.f32 %v4294, %v4286
      %v4299 = vmin.f32 %v4295, %v4287
      %v4300 = vmin.f32 %v4296, %v4297
      %v4301 = vmin.f32 %v4298, %v4299
      %v4302 = vmin.f32 %v4300, %v4301
      %v4303 = vrot.slane %v4302, 4
      %v4304 = vmin.f32 %v4302, %v4303
      %v4305 = vrot.slane %v4304, 2
      %v4306 = vmin.f32 %v4304, %v4305
      %v4307 = vrot.slane %v4306, 1
      %v4308 = vmin.f32 %v4306, %v4307
      %vm4309 = vcmp.eq.f32.partialorder %v4272, %v4308
      %vm4310 = vcmp.eq.f32.partialorder %v4273, %v4308
      %vm4311 = vcmp.eq.f32.partialorder %v4274, %v4308
      %vm4312 = vcmp.eq.f32.partialorder %v4275, %v4308
      %vm4313 = vcmp.eq.f32.partialorder %v4276, %v4308
      %vm4314 = vcmp.eq.f32.partialorder %v4277, %v4308
      %vm4315 = vcmp.eq.f32.partialorder %v4278, %v4308
      %vm4316 = vcmp.eq.f32.partialorder %v4279, %v4308
      %vm4317 = vcmp.eq.f32.partialorder %v4280, %v4308
      %vm4318 = vcmp.eq.f32.partialorder %v4281, %v4308
      %vm4319 = vcmp.eq.f32.partialorder %v4282, %v4308
      %vm4320 = vcmp.eq.f32.partialorder %v4283, %v4308
      %vm4321 = vcmp.eq.f32.partialorder %v4284, %v4308
      %vm4322 = vcmp.eq.f32.partialorder %v4285, %v4308
      %vm4323 = vcmp.eq.f32.partialorder %v4286, %v4308
      %vm4324 = vcmp.eq.f32.partialorder %v4287, %v4308
      %v4325 = vsel %vm4309, %v177, 128.0
      %v4326 = vsel %vm4310, %v178, 128.0
      %v4327 = vsel %vm4311, %v179, 128.0
      %v4328 = vsel %vm4312, %v180, 128.0
      %v4329 = vsel %vm4313, %v181, 128.0
      %v4330 = vsel %vm4314, %v182, 128.0
      %v4331 = vsel %vm4315, %v183, 128.0
      %v4332 = vsel %vm4316, %v184, 128.0
      %v4333 = vsel %vm4317, %v185, 128.0
      %v4334 = vsel %vm4318, %v186, 128.0
      %v4335 = vsel %vm4319, %v187, 128.0
      %v4336 = vsel %vm4320, %v188, 128.0
      %v4337 = vsel %vm4321, %v189, 128.0
      %v4338 = vsel %vm4322, %v190, 128.0
      %v4339 = vsel %vm4323, %v191, 128.0
      %v4340 = vsel %vm4324, %v192, 128.0
      %v4341 = vmin.f32 %v4325, %v4329
      %v4342 = vmin.f32 %v4326, %v4330
      %v4343 = vmin.f32 %v4327, %v4331
      %v4344 = vmin.f32 %v4328, %v4332
      %v4345 = vmin.f32 %v4341, %v4333
      %v4346 = vmin.f32 %v4342, %v4334
      %v4347 = vmin.f32 %v4343, %v4335
      %v4348 = vmin.f32 %v4344, %v4336
      %v4349 = vmin.f32 %v4345, %v4337
      %v4350 = vmin.f32 %v4346, %v4338
      %v4351 = vmin.f32 %v4347, %v4339
      %v4352 = vmin.f32 %v4348, %v4340
      %v4353 = vmin.f32 %v4349, %v4350
      %v4354 = vmin.f32 %v4351, %v4352
      %v4355 = vmin.f32 %v4353, %v4354
      %v4356 = vrot.slane %v4355, 4
      %v4357 = vmin.f32 %v4355, %v4356
      %v4358 = vrot.slane %v4357, 2
      %v4359 = vmin.f32 %v4357, %v4358
      %v4360 = vrot.slane %v4359, 1
      %v4361 = vmin.f32 %v4359, %v4360
      %vm4362 = vcmp.eq.f32.partialorder %v177, %v4361
      %vm4363 = vcmp.eq.f32.partialorder %v178, %v4361
      %vm4364 = vcmp.eq.f32.partialorder %v179, %v4361
      %vm4365 = vcmp.eq.f32.partialorder %v180, %v4361
      %vm4366 = vcmp.eq.f32.partialorder %v181, %v4361
      %vm4367 = vcmp.eq.f32.partialorder %v182, %v4361
      %vm4368 = vcmp.eq.f32.partialorder %v183, %v4361
      %vm4369 = vcmp.eq.f32.partialorder %v184, %v4361
      %vm4370 = vcmp.eq.f32.partialorder %v185, %v4361
      %vm4371 = vcmp.eq.f32.partialorder %v186, %v4361
      %vm4372 = vcmp.eq.f32.partialorder %v187, %v4361
      %vm4373 = vcmp.eq.f32.partialorder %v188, %v4361
      %vm4374 = vcmp.eq.f32.partialorder %v189, %v4361
      %vm4375 = vcmp.eq.f32.partialorder %v190, %v4361
      %vm4376 = vcmp.eq.f32.partialorder %v191, %v4361
      %vm4377 = vcmp.eq.f32.partialorder %v192, %v4361
      %v4378 = vsel %vm4362, 1, 0
      %v4379 = vsel %vm4363, 1, 0
      %v4380 = vsel %vm4364, 1, 0
      %v4381 = vsel %vm4365, 1, 0
      %v4382 = vsel %vm4366, 1, 0
      %v4383 = vsel %vm4367, 1, 0
      %v4384 = vsel %vm4368, 1, 0
      %v4385 = vsel %vm4369, 1, 0
      %v4386 = vsel %vm4370, 1, 0
      %v4387 = vsel %vm4371, 1, 0
      %v4388 = vsel %vm4372, 1, 0
      %v4389 = vsel %vm4373, 1, 0
      %v4390 = vsel %vm4374, 1, 0
      %v4391 = vsel %vm4375, 1, 0
      %v4392 = vsel %vm4376, 1, 0
      %v4393 = vsel %vm4377, 1, 0
      %v4394 = vcvt.s32.f32 %v4378
      %v4395 = vcvt.s32.f32 %v4379
      %v4396 = vcvt.s32.f32 %v4380
      %v4397 = vcvt.s32.f32 %v4381
      %v4398 = vcvt.s32.f32 %v4382
      %v4399 = vcvt.s32.f32 %v4383
      %v4400 = vcvt.s32.f32 %v4384
      %v4401 = vcvt.s32.f32 %v4385
      %v4402 = vcvt.s32.f32 %v4386
      %v4403 = vcvt.s32.f32 %v4387
      %v4404 = vcvt.s32.f32 %v4388
      %v4405 = vcvt.s32.f32 %v4389
      %v4406 = vcvt.s32.f32 %v4390
      %v4407 = vcvt.s32.f32 %v4391
      %v4408 = vcvt.s32.f32 %v4392
      %v4409 = vcvt.s32.f32 %v4393
      %v4410 = vadd.f32 %v4256, %v4394
      %v4411 = vadd.f32 %v4257, %v4395
      %v4412 = vadd.f32 %v4258, %v4396
      %v4413 = vadd.f32 %v4259, %v4397
      %v4414 = vadd.f32 %v4260, %v4398
      %v4415 = vadd.f32 %v4261, %v4399
      %v4416 = vadd.f32 %v4262, %v4400
      %v4417 = vadd.f32 %v4263, %v4401
      %v4418 = vadd.f32 %v4264, %v4402
      %v4419 = vadd.f32 %v4265, %v4403
      %v4420 = vadd.f32 %v4266, %v4404
      %v4421 = vadd.f32 %v4267, %v4405
      %v4422 = vadd.f32 %v4268, %v4406
      %v4423 = vadd.f32 %v4269, %v4407
      %v4424 = vadd.f32 %v4270, %v4408
      %v4425 = vadd.f32 %v4271, %v4409
      %v4426 = vsel %vm4362, 1e+30, %v4272
      %v4427 = vsel %vm4363, 1e+30, %v4273
      %v4428 = vsel %vm4364, 1e+30, %v4274
      %v4429 = vsel %vm4365, 1e+30, %v4275
      %v4430 = vsel %vm4366, 1e+30, %v4276
      %v4431 = vsel %vm4367, 1e+30, %v4277
      %v4432 = vsel %vm4368, 1e+30, %v4278
      %v4433 = vsel %vm4369, 1e+30, %v4279
      %v4434 = vsel %vm4370, 1e+30, %v4280
      %v4435 = vsel %vm4371, 1e+30, %v4281
      %v4436 = vsel %vm4372, 1e+30, %v4282
      %v4437 = vsel %vm4373, 1e+30, %v4283
      %v4438 = vsel %vm4374, 1e+30, %v4284
      %v4439 = vsel %vm4375, 1e+30, %v4285
      %v4440 = vsel %vm4376, 1e+30, %v4286
      %v4441 = vsel %vm4377, 1e+30, %v4287
      %v4442 = vmin.f32 %v4426, %v4430
      %v4443 = vmin.f32 %v4427, %v4431
      %v4444 = vmin.f32 %v4428, %v4432
      %v4445 = vmin.f32 %v4429, %v4433
      %v4446 = vmin.f32 %v4442, %v4434
      %v4447 = vmin.f32 %v4443, %v4435
      %v4448 = vmin.f32 %v4444, %v4436
      %v4449 = vmin.f32 %v4445, %v4437
      %v4450 = vmin.f32 %v4446, %v4438
      %v4451 = vmin.f32 %v4447, %v4439
      %v4452 = vmin.f32 %v4448, %v4440
      %v4453 = vmin.f32 %v4449, %v4441
      %v4454 = vmin.f32 %v4450, %v4451
      %v4455 = vmin.f32 %v4452, %v4453
      %v4456 = vmin.f32 %v4454, %v4455
      %v4457 = vrot.slane %v4456, 4
      %v4458 = vmin.f32 %v4456, %v4457
      %v4459 = vrot.slane %v4458, 2
      %v4460 = vmin.f32 %v4458, %v4459
      %v4461 = vrot.slane %v4460, 1
      %v4462 = vmin.f32 %v4460, %v4461
      %vm4463 = vcmp.eq.f32.partialorder %v4426, %v4462
      %vm4464 = vcmp.eq.f32.partialorder %v4427, %v4462
      %vm4465 = vcmp.eq.f32.partialorder %v4428, %v4462
      %vm4466 = vcmp.eq.f32.partialorder %v4429, %v4462
      %vm4467 = vcmp.eq.f32.partialorder %v4430, %v4462
      %vm4468 = vcmp.eq.f32.partialorder %v4431, %v4462
      %vm4469 = vcmp.eq.f32.partialorder %v4432, %v4462
      %vm4470 = vcmp.eq.f32.partialorder %v4433, %v4462
      %vm4471 = vcmp.eq.f32.partialorder %v4434, %v4462
      %vm4472 = vcmp.eq.f32.partialorder %v4435, %v4462
      %vm4473 = vcmp.eq.f32.partialorder %v4436, %v4462
      %vm4474 = vcmp.eq.f32.partialorder %v4437, %v4462
      %vm4475 = vcmp.eq.f32.partialorder %v4438, %v4462
      %vm4476 = vcmp.eq.f32.partialorder %v4439, %v4462
      %vm4477 = vcmp.eq.f32.partialorder %v4440, %v4462
      %vm4478 = vcmp.eq.f32.partialorder %v4441, %v4462
      %v4479 = vsel %vm4463, %v177, 128.0
      %v4480 = vsel %vm4464, %v178, 128.0
      %v4481 = vsel %vm4465, %v179, 128.0
      %v4482 = vsel %vm4466, %v180, 128.0
      %v4483 = vsel %vm4467, %v181, 128.0
      %v4484 = vsel %vm4468, %v182, 128.0
      %v4485 = vsel %vm4469, %v183, 128.0
      %v4486 = vsel %vm4470, %v184, 128.0
      %v4487 = vsel %vm4471, %v185, 128.0
      %v4488 = vsel %vm4472, %v186, 128.0
      %v4489 = vsel %vm4473, %v187, 128.0
      %v4490 = vsel %vm4474, %v188, 128.0
      %v4491 = vsel %vm4475, %v189, 128.0
      %v4492 = vsel %vm4476, %v190, 128.0
      %v4493 = vsel %vm4477, %v191, 128.0
      %v4494 = vsel %vm4478, %v192, 128.0
      %v4495 = vmin.f32 %v4479, %v4483
      %v4496 = vmin.f32 %v4480, %v4484
      %v4497 = vmin.f32 %v4481, %v4485
      %v4498 = vmin.f32 %v4482, %v4486
      %v4499 = vmin.f32 %v4495, %v4487
      %v4500 = vmin.f32 %v4496, %v4488
      %v4501 = vmin.f32 %v4497, %v4489
      %v4502 = vmin.f32 %v4498, %v4490
      %v4503 = vmin.f32 %v4499, %v4491
      %v4504 = vmin.f32 %v4500, %v4492
      %v4505 = vmin.f32 %v4501, %v4493
      %v4506 = vmin.f32 %v4502, %v4494
      %v4507 = vmin.f32 %v4503, %v4504
      %v4508 = vmin.f32 %v4505, %v4506
      %v4509 = vmin.f32 %v4507, %v4508
      %v4510 = vrot.slane %v4509, 4
      %v4511 = vmin.f32 %v4509, %v4510
      %v4512 = vrot.slane %v4511, 2
      %v4513 = vmin.f32 %v4511, %v4512
      %v4514 = vrot.slane %v4513, 1
      %v4515 = vmin.f32 %v4513, %v4514
      %vm4516 = vcmp.eq.f32.partialorder %v177, %v4515
      %vm4517 = vcmp.eq.f32.partialorder %v178, %v4515
      %vm4518 = vcmp.eq.f32.partialorder %v179, %v4515
      %vm4519 = vcmp.eq.f32.partialorder %v180, %v4515
      %vm4520 = vcmp.eq.f32.partialorder %v181, %v4515
      %vm4521 = vcmp.eq.f32.partialorder %v182, %v4515
      %vm4522 = vcmp.eq.f32.partialorder %v183, %v4515
      %vm4523 = vcmp.eq.f32.partialorder %v184, %v4515
      %vm4524 = vcmp.eq.f32.partialorder %v185, %v4515
      %vm4525 = vcmp.eq.f32.partialorder %v186, %v4515
      %vm4526 = vcmp.eq.f32.partialorder %v187, %v4515
      %vm4527 = vcmp.eq.f32.partialorder %v188, %v4515
      %vm4528 = vcmp.eq.f32.partialorder %v189, %v4515
      %vm4529 = vcmp.eq.f32.partialorder %v190, %v4515
      %vm4530 = vcmp.eq.f32.partialorder %v191, %v4515
      %vm4531 = vcmp.eq.f32.partialorder %v192, %v4515
      %v4532 = vsel %vm4516, 1, 0
      %v4533 = vsel %vm4517, 1, 0
      %v4534 = vsel %vm4518, 1, 0
      %v4535 = vsel %vm4519, 1, 0
      %v4536 = vsel %vm4520, 1, 0
      %v4537 = vsel %vm4521, 1, 0
      %v4538 = vsel %vm4522, 1, 0
      %v4539 = vsel %vm4523, 1, 0
      %v4540 = vsel %vm4524, 1, 0
      %v4541 = vsel %vm4525, 1, 0
      %v4542 = vsel %vm4526, 1, 0
      %v4543 = vsel %vm4527, 1, 0
      %v4544 = vsel %vm4528, 1, 0
      %v4545 = vsel %vm4529, 1, 0
      %v4546 = vsel %vm4530, 1, 0
      %v4547 = vsel %vm4531, 1, 0
      %v4548 = vcvt.s32.f32 %v4532
      %v4549 = vcvt.s32.f32 %v4533
      %v4550 = vcvt.s32.f32 %v4534
      %v4551 = vcvt.s32.f32 %v4535
      %v4552 = vcvt.s32.f32 %v4536
      %v4553 = vcvt.s32.f32 %v4537
      %v4554 = vcvt.s32.f32 %v4538
      %v4555 = vcvt.s32.f32 %v4539
      %v4556 = vcvt.s32.f32 %v4540
      %v4557 = vcvt.s32.f32 %v4541
      %v4558 = vcvt.s32.f32 %v4542
      %v4559 = vcvt.s32.f32 %v4543
      %v4560 = vcvt.s32.f32 %v4544
      %v4561 = vcvt.s32.f32 %v4545
      %v4562 = vcvt.s32.f32 %v4546
      %v4563 = vcvt.s32.f32 %v4547
      %v4564 = vadd.f32 %v4410, %v4548
      %v4565 = vadd.f32 %v4411, %v4549
      %v4566 = vadd.f32 %v4412, %v4550
      %v4567 = vadd.f32 %v4413, %v4551
      %v4568 = vadd.f32 %v4414, %v4552
      %v4569 = vadd.f32 %v4415, %v4553
      %v4570 = vadd.f32 %v4416, %v4554
      %v4571 = vadd.f32 %v4417, %v4555
      %v4572 = vadd.f32 %v4418, %v4556
      %v4573 = vadd.f32 %v4419, %v4557
      %v4574 = vadd.f32 %v4420, %v4558
      %v4575 = vadd.f32 %v4421, %v4559
      %v4576 = vadd.f32 %v4422, %v4560
      %v4577 = vadd.f32 %v4423, %v4561
      %v4578 = vadd.f32 %v4424, %v4562
      %v4579 = vadd.f32 %v4425, %v4563
      %v4580 = vsel %vm4516, 1e+30, %v4426
      %v4581 = vsel %vm4517, 1e+30, %v4427
      %v4582 = vsel %vm4518, 1e+30, %v4428
      %v4583 = vsel %vm4519, 1e+30, %v4429
      %v4584 = vsel %vm4520, 1e+30, %v4430
      %v4585 = vsel %vm4521, 1e+30, %v4431
      %v4586 = vsel %vm4522, 1e+30, %v4432
      %v4587 = vsel %vm4523, 1e+30, %v4433
      %v4588 = vsel %vm4524, 1e+30, %v4434
      %v4589 = vsel %vm4525, 1e+30, %v4435
      %v4590 = vsel %vm4526, 1e+30, %v4436
      %v4591 = vsel %vm4527, 1e+30, %v4437
      %v4592 = vsel %vm4528, 1e+30, %v4438
      %v4593 = vsel %vm4529, 1e+30, %v4439
      %v4594 = vsel %vm4530, 1e+30, %v4440
      %v4595 = vsel %vm4531, 1e+30, %v4441
      %v4596 = vmin.f32 %v4580, %v4584
      %v4597 = vmin.f32 %v4581, %v4585
      %v4598 = vmin.f32 %v4582, %v4586
      %v4599 = vmin.f32 %v4583, %v4587
      %v4600 = vmin.f32 %v4596, %v4588
      %v4601 = vmin.f32 %v4597, %v4589
      %v4602 = vmin.f32 %v4598, %v4590
      %v4603 = vmin.f32 %v4599, %v4591
      %v4604 = vmin.f32 %v4600, %v4592
      %v4605 = vmin.f32 %v4601, %v4593
      %v4606 = vmin.f32 %v4602, %v4594
      %v4607 = vmin.f32 %v4603, %v4595
      %v4608 = vmin.f32 %v4604, %v4605
      %v4609 = vmin.f32 %v4606, %v4607
      %v4610 = vmin.f32 %v4608, %v4609
      %v4611 = vrot.slane %v4610, 4
      %v4612 = vmin.f32 %v4610, %v4611
      %v4613 = vrot.slane %v4612, 2
      %v4614 = vmin.f32 %v4612, %v4613
      %v4615 = vrot.slane %v4614, 1
      %v4616 = vmin.f32 %v4614, %v4615
      %vm4617 = vcmp.eq.f32.partialorder %v4580, %v4616
      %vm4618 = vcmp.eq.f32.partialorder %v4581, %v4616
      %vm4619 = vcmp.eq.f32.partialorder %v4582, %v4616
      %vm4620 = vcmp.eq.f32.partialorder %v4583, %v4616
      %vm4621 = vcmp.eq.f32.partialorder %v4584, %v4616
      %vm4622 = vcmp.eq.f32.partialorder %v4585, %v4616
      %vm4623 = vcmp.eq.f32.partialorder %v4586, %v4616
      %vm4624 = vcmp.eq.f32.partialorder %v4587, %v4616
      %vm4625 = vcmp.eq.f32.partialorder %v4588, %v4616
      %vm4626 = vcmp.eq.f32.partialorder %v4589, %v4616
      %vm4627 = vcmp.eq.f32.partialorder %v4590, %v4616
      %vm4628 = vcmp.eq.f32.partialorder %v4591, %v4616
      %vm4629 = vcmp.eq.f32.partialorder %v4592, %v4616
      %vm4630 = vcmp.eq.f32.partialorder %v4593, %v4616
      %vm4631 = vcmp.eq.f32.partialorder %v4594, %v4616
      %vm4632 = vcmp.eq.f32.partialorder %v4595, %v4616
      %v4633 = vsel %vm4617, %v177, 128.0
      %v4634 = vsel %vm4618, %v178, 128.0
      %v4635 = vsel %vm4619, %v179, 128.0
      %v4636 = vsel %vm4620, %v180, 128.0
      %v4637 = vsel %vm4621, %v181, 128.0
      %v4638 = vsel %vm4622, %v182, 128.0
      %v4639 = vsel %vm4623, %v183, 128.0
      %v4640 = vsel %vm4624, %v184, 128.0
      %v4641 = vsel %vm4625, %v185, 128.0
      %v4642 = vsel %vm4626, %v186, 128.0
      %v4643 = vsel %vm4627, %v187, 128.0
      %v4644 = vsel %vm4628, %v188, 128.0
      %v4645 = vsel %vm4629, %v189, 128.0
      %v4646 = vsel %vm4630, %v190, 128.0
      %v4647 = vsel %vm4631, %v191, 128.0
      %v4648 = vsel %vm4632, %v192, 128.0
      %v4649 = vmin.f32 %v4633, %v4637
      %v4650 = vmin.f32 %v4634, %v4638
      %v4651 = vmin.f32 %v4635, %v4639
      %v4652 = vmin.f32 %v4636, %v4640
      %v4653 = vmin.f32 %v4649, %v4641
      %v4654 = vmin.f32 %v4650, %v4642
      %v4655 = vmin.f32 %v4651, %v4643
      %v4656 = vmin.f32 %v4652, %v4644
      %v4657 = vmin.f32 %v4653, %v4645
      %v4658 = vmin.f32 %v4654, %v4646
      %v4659 = vmin.f32 %v4655, %v4647
      %v4660 = vmin.f32 %v4656, %v4648
      %v4661 = vmin.f32 %v4657, %v4658
      %v4662 = vmin.f32 %v4659, %v4660
      %v4663 = vmin.f32 %v4661, %v4662
      %v4664 = vrot.slane %v4663, 4
      %v4665 = vmin.f32 %v4663, %v4664
      %v4666 = vrot.slane %v4665, 2
      %v4667 = vmin.f32 %v4665, %v4666
      %v4668 = vrot.slane %v4667, 1
      %v4669 = vmin.f32 %v4667, %v4668
      %vm4670 = vcmp.eq.f32.partialorder %v177, %v4669
      %vm4671 = vcmp.eq.f32.partialorder %v178, %v4669
      %vm4672 = vcmp.eq.f32.partialorder %v179, %v4669
      %vm4673 = vcmp.eq.f32.partialorder %v180, %v4669
      %vm4674 = vcmp.eq.f32.partialorder %v181, %v4669
      %vm4675 = vcmp.eq.f32.partialorder %v182, %v4669
      %vm4676 = vcmp.eq.f32.partialorder %v183, %v4669
      %vm4677 = vcmp.eq.f32.partialorder %v184, %v4669
      %vm4678 = vcmp.eq.f32.partialorder %v185, %v4669
      %vm4679 = vcmp.eq.f32.partialorder %v186, %v4669
      %vm4680 = vcmp.eq.f32.partialorder %v187, %v4669
      %vm4681 = vcmp.eq.f32.partialorder %v188, %v4669
      %vm4682 = vcmp.eq.f32.partialorder %v189, %v4669
      %vm4683 = vcmp.eq.f32.partialorder %v190, %v4669
      %vm4684 = vcmp.eq.f32.partialorder %v191, %v4669
      %vm4685 = vcmp.eq.f32.partialorder %v192, %v4669
      %v4686 = vsel %vm4670, 1, 0
      %v4687 = vsel %vm4671, 1, 0
      %v4688 = vsel %vm4672, 1, 0
      %v4689 = vsel %vm4673, 1, 0
      %v4690 = vsel %vm4674, 1, 0
      %v4691 = vsel %vm4675, 1, 0
      %v4692 = vsel %vm4676, 1, 0
      %v4693 = vsel %vm4677, 1, 0
      %v4694 = vsel %vm4678, 1, 0
      %v4695 = vsel %vm4679, 1, 0
      %v4696 = vsel %vm4680, 1, 0
      %v4697 = vsel %vm4681, 1, 0
      %v4698 = vsel %vm4682, 1, 0
      %v4699 = vsel %vm4683, 1, 0
      %v4700 = vsel %vm4684, 1, 0
      %v4701 = vsel %vm4685, 1, 0
      %v4702 = vcvt.s32.f32 %v4686
      %v4703 = vcvt.s32.f32 %v4687
      %v4704 = vcvt.s32.f32 %v4688
      %v4705 = vcvt.s32.f32 %v4689
      %v4706 = vcvt.s32.f32 %v4690
      %v4707 = vcvt.s32.f32 %v4691
      %v4708 = vcvt.s32.f32 %v4692
      %v4709 = vcvt.s32.f32 %v4693
      %v4710 = vcvt.s32.f32 %v4694
      %v4711 = vcvt.s32.f32 %v4695
      %v4712 = vcvt.s32.f32 %v4696
      %v4713 = vcvt.s32.f32 %v4697
      %v4714 = vcvt.s32.f32 %v4698
      %v4715 = vcvt.s32.f32 %v4699
      %v4716 = vcvt.s32.f32 %v4700
      %v4717 = vcvt.s32.f32 %v4701
      %v4718 = vadd.f32 %v4564, %v4702
      %v4719 = vadd.f32 %v4565, %v4703
      %v4720 = vadd.f32 %v4566, %v4704
      %v4721 = vadd.f32 %v4567, %v4705
      %v4722 = vadd.f32 %v4568, %v4706
      %v4723 = vadd.f32 %v4569, %v4707
      %v4724 = vadd.f32 %v4570, %v4708
      %v4725 = vadd.f32 %v4571, %v4709
      %v4726 = vadd.f32 %v4572, %v4710
      %v4727 = vadd.f32 %v4573, %v4711
      %v4728 = vadd.f32 %v4574, %v4712
      %v4729 = vadd.f32 %v4575, %v4713
      %v4730 = vadd.f32 %v4576, %v4714
      %v4731 = vadd.f32 %v4577, %v4715
      %v4732 = vadd.f32 %v4578, %v4716
      %v4733 = vadd.f32 %v4579, %v4717
      %v4734 = vsel %vm4670, 1e+30, %v4580
      %v4735 = vsel %vm4671, 1e+30, %v4581
      %v4736 = vsel %vm4672, 1e+30, %v4582
      %v4737 = vsel %vm4673, 1e+30, %v4583
      %v4738 = vsel %vm4674, 1e+30, %v4584
      %v4739 = vsel %vm4675, 1e+30, %v4585
      %v4740 = vsel %vm4676, 1e+30, %v4586
      %v4741 = vsel %vm4677, 1e+30, %v4587
      %v4742 = vsel %vm4678, 1e+30, %v4588
      %v4743 = vsel %vm4679, 1e+30, %v4589
      %v4744 = vsel %vm4680, 1e+30, %v4590
      %v4745 = vsel %vm4681, 1e+30, %v4591
      %v4746 = vsel %vm4682, 1e+30, %v4592
      %v4747 = vsel %vm4683, 1e+30, %v4593
      %v4748 = vsel %vm4684, 1e+30, %v4594
      %v4749 = vsel %vm4685, 1e+30, %v4595
      %v4750 = vmin.f32 %v4734, %v4738
      %v4751 = vmin.f32 %v4735, %v4739
      %v4752 = vmin.f32 %v4736, %v4740
      %v4753 = vmin.f32 %v4737, %v4741
      %v4754 = vmin.f32 %v4750, %v4742
      %v4755 = vmin.f32 %v4751, %v4743
      %v4756 = vmin.f32 %v4752, %v4744
      %v4757 = vmin.f32 %v4753, %v4745
      %v4758 = vmin.f32 %v4754, %v4746
      %v4759 = vmin.f32 %v4755, %v4747
      %v4760 = vmin.f32 %v4756, %v4748
      %v4761 = vmin.f32 %v4757, %v4749
      %v4762 = vmin.f32 %v4758, %v4759
      %v4763 = vmin.f32 %v4760, %v4761
      %v4764 = vmin.f32 %v4762, %v4763
      %v4765 = vrot.slane %v4764, 4
      %v4766 = vmin.f32 %v4764, %v4765
      %v4767 = vrot.slane %v4766, 2
      %v4768 = vmin.f32 %v4766, %v4767
      %v4769 = vrot.slane %v4768, 1
      %v4770 = vmin.f32 %v4768, %v4769
      %vm4771 = vcmp.eq.f32.partialorder %v4734, %v4770
      %vm4772 = vcmp.eq.f32.partialorder %v4735, %v4770
      %vm4773 = vcmp.eq.f32.partialorder %v4736, %v4770
      %vm4774 = vcmp.eq.f32.partialorder %v4737, %v4770
      %vm4775 = vcmp.eq.f32.partialorder %v4738, %v4770
      %vm4776 = vcmp.eq.f32.partialorder %v4739, %v4770
      %vm4777 = vcmp.eq.f32.partialorder %v4740, %v4770
      %vm4778 = vcmp.eq.f32.partialorder %v4741, %v4770
      %vm4779 = vcmp.eq.f32.partialorder %v4742, %v4770
      %vm4780 = vcmp.eq.f32.partialorder %v4743, %v4770
      %vm4781 = vcmp.eq.f32.partialorder %v4744, %v4770
      %vm4782 = vcmp.eq.f32.partialorder %v4745, %v4770
      %vm4783 = vcmp.eq.f32.partialorder %v4746, %v4770
      %vm4784 = vcmp.eq.f32.partialorder %v4747, %v4770
      %vm4785 = vcmp.eq.f32.partialorder %v4748, %v4770
      %vm4786 = vcmp.eq.f32.partialorder %v4749, %v4770
      %v4787 = vsel %vm4771, %v177, 128.0
      %v4788 = vsel %vm4772, %v178, 128.0
      %v4789 = vsel %vm4773, %v179, 128.0
      %v4790 = vsel %vm4774, %v180, 128.0
      %v4791 = vsel %vm4775, %v181, 128.0
      %v4792 = vsel %vm4776, %v182, 128.0
      %v4793 = vsel %vm4777, %v183, 128.0
      %v4794 = vsel %vm4778, %v184, 128.0
      %v4795 = vsel %vm4779, %v185, 128.0
      %v4796 = vsel %vm4780, %v186, 128.0
      %v4797 = vsel %vm4781, %v187, 128.0
      %v4798 = vsel %vm4782, %v188, 128.0
      %v4799 = vsel %vm4783, %v189, 128.0
      %v4800 = vsel %vm4784, %v190, 128.0
      %v4801 = vsel %vm4785, %v191, 128.0
      %v4802 = vsel %vm4786, %v192, 128.0
      %v4803 = vmin.f32 %v4787, %v4791
      %v4804 = vmin.f32 %v4788, %v4792
      %v4805 = vmin.f32 %v4789, %v4793
      %v4806 = vmin.f32 %v4790, %v4794
      %v4807 = vmin.f32 %v4803, %v4795
      %v4808 = vmin.f32 %v4804, %v4796
      %v4809 = vmin.f32 %v4805, %v4797
      %v4810 = vmin.f32 %v4806, %v4798
      %v4811 = vmin.f32 %v4807, %v4799
      %v4812 = vmin.f32 %v4808, %v4800
      %v4813 = vmin.f32 %v4809, %v4801
      %v4814 = vmin.f32 %v4810, %v4802
      %v4815 = vmin.f32 %v4811, %v4812
      %v4816 = vmin.f32 %v4813, %v4814
      %v4817 = vmin.f32 %v4815, %v4816
      %v4818 = vrot.slane %v4817, 4
      %v4819 = vmin.f32 %v4817, %v4818
      %v4820 = vrot.slane %v4819, 2
      %v4821 = vmin.f32 %v4819, %v4820
      %v4822 = vrot.slane %v4821, 1
      %v4823 = vmin.f32 %v4821, %v4822
      %vm4824 = vcmp.eq.f32.partialorder %v177, %v4823
      %vm4825 = vcmp.eq.f32.partialorder %v178, %v4823
      %vm4826 = vcmp.eq.f32.partialorder %v179, %v4823
      %vm4827 = vcmp.eq.f32.partialorder %v180, %v4823
      %vm4828 = vcmp.eq.f32.partialorder %v181, %v4823
      %vm4829 = vcmp.eq.f32.partialorder %v182, %v4823
      %vm4830 = vcmp.eq.f32.partialorder %v183, %v4823
      %vm4831 = vcmp.eq.f32.partialorder %v184, %v4823
      %vm4832 = vcmp.eq.f32.partialorder %v185, %v4823
      %vm4833 = vcmp.eq.f32.partialorder %v186, %v4823
      %vm4834 = vcmp.eq.f32.partialorder %v187, %v4823
      %vm4835 = vcmp.eq.f32.partialorder %v188, %v4823
      %vm4836 = vcmp.eq.f32.partialorder %v189, %v4823
      %vm4837 = vcmp.eq.f32.partialorder %v190, %v4823
      %vm4838 = vcmp.eq.f32.partialorder %v191, %v4823
      %vm4839 = vcmp.eq.f32.partialorder %v192, %v4823
      %v4840 = vsel %vm4824, 1, 0
      %v4841 = vsel %vm4825, 1, 0
      %v4842 = vsel %vm4826, 1, 0
      %v4843 = vsel %vm4827, 1, 0
      %v4844 = vsel %vm4828, 1, 0
      %v4845 = vsel %vm4829, 1, 0
      %v4846 = vsel %vm4830, 1, 0
      %v4847 = vsel %vm4831, 1, 0
      %v4848 = vsel %vm4832, 1, 0
      %v4849 = vsel %vm4833, 1, 0
      %v4850 = vsel %vm4834, 1, 0
      %v4851 = vsel %vm4835, 1, 0
      %v4852 = vsel %vm4836, 1, 0
      %v4853 = vsel %vm4837, 1, 0
      %v4854 = vsel %vm4838, 1, 0
      %v4855 = vsel %vm4839, 1, 0
      %v4856 = vcvt.s32.f32 %v4840
      %v4857 = vcvt.s32.f32 %v4841
      %v4858 = vcvt.s32.f32 %v4842
      %v4859 = vcvt.s32.f32 %v4843
      %v4860 = vcvt.s32.f32 %v4844
      %v4861 = vcvt.s32.f32 %v4845
      %v4862 = vcvt.s32.f32 %v4846
      %v4863 = vcvt.s32.f32 %v4847
      %v4864 = vcvt.s32.f32 %v4848
      %v4865 = vcvt.s32.f32 %v4849
      %v4866 = vcvt.s32.f32 %v4850
      %v4867 = vcvt.s32.f32 %v4851
      %v4868 = vcvt.s32.f32 %v4852
      %v4869 = vcvt.s32.f32 %v4853
      %v4870 = vcvt.s32.f32 %v4854
      %v4871 = vcvt.s32.f32 %v4855
      %v4872 = vadd.f32 %v4718, %v4856
      %v4873 = vadd.f32 %v4719, %v4857
      %v4874 = vadd.f32 %v4720, %v4858
      %v4875 = vadd.f32 %v4721, %v4859
      %v4876 = vadd.f32 %v4722, %v4860
      %v4877 = vadd.f32 %v4723, %v4861
      %v4878 = vadd.f32 %v4724, %v4862
      %v4879 = vadd.f32 %v4725, %v4863
      %v4880 = vadd.f32 %v4726, %v4864
      %v4881 = vadd.f32 %v4727, %v4865
      %v4882 = vadd.f32 %v4728, %v4866
      %v4883 = vadd.f32 %v4729, %v4867
      %v4884 = vadd.f32 %v4730, %v4868
      %v4885 = vadd.f32 %v4731, %v4869
      %v4886 = vadd.f32 %v4732, %v4870
      %v4887 = vadd.f32 %v4733, %v4871
      %v4888 = vsel %vm4824, 1e+30, %v4734
      %v4889 = vsel %vm4825, 1e+30, %v4735
      %v4890 = vsel %vm4826, 1e+30, %v4736
      %v4891 = vsel %vm4827, 1e+30, %v4737
      %v4892 = vsel %vm4828, 1e+30, %v4738
      %v4893 = vsel %vm4829, 1e+30, %v4739
      %v4894 = vsel %vm4830, 1e+30, %v4740
      %v4895 = vsel %vm4831, 1e+30, %v4741
      %v4896 = vsel %vm4832, 1e+30, %v4742
      %v4897 = vsel %vm4833, 1e+30, %v4743
      %v4898 = vsel %vm4834, 1e+30, %v4744
      %v4899 = vsel %vm4835, 1e+30, %v4745
      %v4900 = vsel %vm4836, 1e+30, %v4746
      %v4901 = vsel %vm4837, 1e+30, %v4747
      %v4902 = vsel %vm4838, 1e+30, %v4748
      %v4903 = vsel %vm4839, 1e+30, %v4749
      %v4904 = vmin.f32 %v4888, %v4892
      %v4905 = vmin.f32 %v4889, %v4893
      %v4906 = vmin.f32 %v4890, %v4894
      %v4907 = vmin.f32 %v4891, %v4895
      %v4908 = vmin.f32 %v4904, %v4896
      %v4909 = vmin.f32 %v4905, %v4897
      %v4910 = vmin.f32 %v4906, %v4898
      %v4911 = vmin.f32 %v4907, %v4899
      %v4912 = vmin.f32 %v4908, %v4900
      %v4913 = vmin.f32 %v4909, %v4901
      %v4914 = vmin.f32 %v4910, %v4902
      %v4915 = vmin.f32 %v4911, %v4903
      %v4916 = vmin.f32 %v4912, %v4913
      %v4917 = vmin.f32 %v4914, %v4915
      %v4918 = vmin.f32 %v4916, %v4917
      %v4919 = vrot.slane %v4918, 4
      %v4920 = vmin.f32 %v4918, %v4919
      %v4921 = vrot.slane %v4920, 2
      %v4922 = vmin.f32 %v4920, %v4921
      %v4923 = vrot.slane %v4922, 1
      %v4924 = vmin.f32 %v4922, %v4923
      %vm4925 = vcmp.eq.f32.partialorder %v4888, %v4924
      %vm4926 = vcmp.eq.f32.partialorder %v4889, %v4924
      %vm4927 = vcmp.eq.f32.partialorder %v4890, %v4924
      %vm4928 = vcmp.eq.f32.partialorder %v4891, %v4924
      %vm4929 = vcmp.eq.f32.partialorder %v4892, %v4924
      %vm4930 = vcmp.eq.f32.partialorder %v4893, %v4924
      %vm4931 = vcmp.eq.f32.partialorder %v4894, %v4924
      %vm4932 = vcmp.eq.f32.partialorder %v4895, %v4924
      %vm4933 = vcmp.eq.f32.partialorder %v4896, %v4924
      %vm4934 = vcmp.eq.f32.partialorder %v4897, %v4924
      %vm4935 = vcmp.eq.f32.partialorder %v4898, %v4924
      %vm4936 = vcmp.eq.f32.partialorder %v4899, %v4924
      %vm4937 = vcmp.eq.f32.partialorder %v4900, %v4924
      %vm4938 = vcmp.eq.f32.partialorder %v4901, %v4924
      %vm4939 = vcmp.eq.f32.partialorder %v4902, %v4924
      %vm4940 = vcmp.eq.f32.partialorder %v4903, %v4924
      %v4941 = vsel %vm4925, %v177, 128.0
      %v4942 = vsel %vm4926, %v178, 128.0
      %v4943 = vsel %vm4927, %v179, 128.0
      %v4944 = vsel %vm4928, %v180, 128.0
      %v4945 = vsel %vm4929, %v181, 128.0
      %v4946 = vsel %vm4930, %v182, 128.0
      %v4947 = vsel %vm4931, %v183, 128.0
      %v4948 = vsel %vm4932, %v184, 128.0
      %v4949 = vsel %vm4933, %v185, 128.0
      %v4950 = vsel %vm4934, %v186, 128.0
      %v4951 = vsel %vm4935, %v187, 128.0
      %v4952 = vsel %vm4936, %v188, 128.0
      %v4953 = vsel %vm4937, %v189, 128.0
      %v4954 = vsel %vm4938, %v190, 128.0
      %v4955 = vsel %vm4939, %v191, 128.0
      %v4956 = vsel %vm4940, %v192, 128.0
      %v4957 = vmin.f32 %v4941, %v4945
      %v4958 = vmin.f32 %v4942, %v4946
      %v4959 = vmin.f32 %v4943, %v4947
      %v4960 = vmin.f32 %v4944, %v4948
      %v4961 = vmin.f32 %v4957, %v4949
      %v4962 = vmin.f32 %v4958, %v4950
      %v4963 = vmin.f32 %v4959, %v4951
      %v4964 = vmin.f32 %v4960, %v4952
      %v4965 = vmin.f32 %v4961, %v4953
      %v4966 = vmin.f32 %v4962, %v4954
      %v4967 = vmin.f32 %v4963, %v4955
      %v4968 = vmin.f32 %v4964, %v4956
      %v4969 = vmin.f32 %v4965, %v4966
      %v4970 = vmin.f32 %v4967, %v4968
      %v4971 = vmin.f32 %v4969, %v4970
      %v4972 = vrot.slane %v4971, 4
      %v4973 = vmin.f32 %v4971, %v4972
      %v4974 = vrot.slane %v4973, 2
      %v4975 = vmin.f32 %v4973, %v4974
      %v4976 = vrot.slane %v4975, 1
      %v4977 = vmin.f32 %v4975, %v4976
      %vm4978 = vcmp.eq.f32.partialorder %v177, %v4977
      %vm4979 = vcmp.eq.f32.partialorder %v178, %v4977
      %vm4980 = vcmp.eq.f32.partialorder %v179, %v4977
      %vm4981 = vcmp.eq.f32.partialorder %v180, %v4977
      %vm4982 = vcmp.eq.f32.partialorder %v181, %v4977
      %vm4983 = vcmp.eq.f32.partialorder %v182, %v4977
      %vm4984 = vcmp.eq.f32.partialorder %v183, %v4977
      %vm4985 = vcmp.eq.f32.partialorder %v184, %v4977
      %vm4986 = vcmp.eq.f32.partialorder %v185, %v4977
      %vm4987 = vcmp.eq.f32.partialorder %v186, %v4977
      %vm4988 = vcmp.eq.f32.partialorder %v187, %v4977
      %vm4989 = vcmp.eq.f32.partialorder %v188, %v4977
      %vm4990 = vcmp.eq.f32.partialorder %v189, %v4977
      %vm4991 = vcmp.eq.f32.partialorder %v190, %v4977
      %vm4992 = vcmp.eq.f32.partialorder %v191, %v4977
      %vm4993 = vcmp.eq.f32.partialorder %v192, %v4977
      %v4994 = vsel %vm4978, 1, 0
      %v4995 = vsel %vm4979, 1, 0
      %v4996 = vsel %vm4980, 1, 0
      %v4997 = vsel %vm4981, 1, 0
      %v4998 = vsel %vm4982, 1, 0
      %v4999 = vsel %vm4983, 1, 0
      %v5000 = vsel %vm4984, 1, 0
      %v5001 = vsel %vm4985, 1, 0
      %v5002 = vsel %vm4986, 1, 0
      %v5003 = vsel %vm4987, 1, 0
      %v5004 = vsel %vm4988, 1, 0
      %v5005 = vsel %vm4989, 1, 0
      %v5006 = vsel %vm4990, 1, 0
      %v5007 = vsel %vm4991, 1, 0
      %v5008 = vsel %vm4992, 1, 0
      %v5009 = vsel %vm4993, 1, 0
      %v5010 = vcvt.s32.f32 %v4994
      %v5011 = vcvt.s32.f32 %v4995
      %v5012 = vcvt.s32.f32 %v4996
      %v5013 = vcvt.s32.f32 %v4997
      %v5014 = vcvt.s32.f32 %v4998
      %v5015 = vcvt.s32.f32 %v4999
      %v5016 = vcvt.s32.f32 %v5000
      %v5017 = vcvt.s32.f32 %v5001
      %v5018 = vcvt.s32.f32 %v5002
      %v5019 = vcvt.s32.f32 %v5003
      %v5020 = vcvt.s32.f32 %v5004
      %v5021 = vcvt.s32.f32 %v5005
      %v5022 = vcvt.s32.f32 %v5006
      %v5023 = vcvt.s32.f32 %v5007
      %v5024 = vcvt.s32.f32 %v5008
      %v5025 = vcvt.s32.f32 %v5009
      %v5026 = vadd.f32 %v4872, %v5010
      %v5027 = vadd.f32 %v4873, %v5011
      %v5028 = vadd.f32 %v4874, %v5012
      %v5029 = vadd.f32 %v4875, %v5013
      %v5030 = vadd.f32 %v4876, %v5014
      %v5031 = vadd.f32 %v4877, %v5015
      %v5032 = vadd.f32 %v4878, %v5016
      %v5033 = vadd.f32 %v4879, %v5017
      %v5034 = vadd.f32 %v4880, %v5018
      %v5035 = vadd.f32 %v4881, %v5019
      %v5036 = vadd.f32 %v4882, %v5020
      %v5037 = vadd.f32 %v4883, %v5021
      %v5038 = vadd.f32 %v4884, %v5022
      %v5039 = vadd.f32 %v4885, %v5023
      %v5040 = vadd.f32 %v4886, %v5024
      %v5041 = vadd.f32 %v4887, %v5025
      %v5042 = vsel %vm4978, 1e+30, %v4888
      %v5043 = vsel %vm4979, 1e+30, %v4889
      %v5044 = vsel %vm4980, 1e+30, %v4890
      %v5045 = vsel %vm4981, 1e+30, %v4891
      %v5046 = vsel %vm4982, 1e+30, %v4892
      %v5047 = vsel %vm4983, 1e+30, %v4893
      %v5048 = vsel %vm4984, 1e+30, %v4894
      %v5049 = vsel %vm4985, 1e+30, %v4895
      %v5050 = vsel %vm4986, 1e+30, %v4896
      %v5051 = vsel %vm4987, 1e+30, %v4897
      %v5052 = vsel %vm4988, 1e+30, %v4898
      %v5053 = vsel %vm4989, 1e+30, %v4899
      %v5054 = vsel %vm4990, 1e+30, %v4900
      %v5055 = vsel %vm4991, 1e+30, %v4901
      %v5056 = vsel %vm4992, 1e+30, %v4902
      %v5057 = vsel %vm4993, 1e+30, %v4903
      %v5058 = vmin.f32 %v5042, %v5046
      %v5059 = vmin.f32 %v5043, %v5047
      %v5060 = vmin.f32 %v5044, %v5048
      %v5061 = vmin.f32 %v5045, %v5049
      %v5062 = vmin.f32 %v5058, %v5050
      %v5063 = vmin.f32 %v5059, %v5051
      %v5064 = vmin.f32 %v5060, %v5052
      %v5065 = vmin.f32 %v5061, %v5053
      %v5066 = vmin.f32 %v5062, %v5054
      %v5067 = vmin.f32 %v5063, %v5055
      %v5068 = vmin.f32 %v5064, %v5056
      %v5069 = vmin.f32 %v5065, %v5057
      %v5070 = vmin.f32 %v5066, %v5067
      %v5071 = vmin.f32 %v5068, %v5069
      %v5072 = vmin.f32 %v5070, %v5071
      %v5073 = vrot.slane %v5072, 4
      %v5074 = vmin.f32 %v5072, %v5073
      %v5075 = vrot.slane %v5074, 2
      %v5076 = vmin.f32 %v5074, %v5075
      %v5077 = vrot.slane %v5076, 1
      %v5078 = vmin.f32 %v5076, %v5077
      %vm5079 = vcmp.eq.f32.partialorder %v5042, %v5078
      %vm5080 = vcmp.eq.f32.partialorder %v5043, %v5078
      %vm5081 = vcmp.eq.f32.partialorder %v5044, %v5078
      %vm5082 = vcmp.eq.f32.partialorder %v5045, %v5078
      %vm5083 = vcmp.eq.f32.partialorder %v5046, %v5078
      %vm5084 = vcmp.eq.f32.partialorder %v5047, %v5078
      %vm5085 = vcmp.eq.f32.partialorder %v5048, %v5078
      %vm5086 = vcmp.eq.f32.partialorder %v5049, %v5078
      %vm5087 = vcmp.eq.f32.partialorder %v5050, %v5078
      %vm5088 = vcmp.eq.f32.partialorder %v5051, %v5078
      %vm5089 = vcmp.eq.f32.partialorder %v5052, %v5078
      %vm5090 = vcmp.eq.f32.partialorder %v5053, %v5078
      %vm5091 = vcmp.eq.f32.partialorder %v5054, %v5078
      %vm5092 = vcmp.eq.f32.partialorder %v5055, %v5078
      %vm5093 = vcmp.eq.f32.partialorder %v5056, %v5078
      %vm5094 = vcmp.eq.f32.partialorder %v5057, %v5078
      %v5095 = vsel %vm5079, %v177, 128.0
      %v5096 = vsel %vm5080, %v178, 128.0
      %v5097 = vsel %vm5081, %v179, 128.0
      %v5098 = vsel %vm5082, %v180, 128.0
      %v5099 = vsel %vm5083, %v181, 128.0
      %v5100 = vsel %vm5084, %v182, 128.0
      %v5101 = vsel %vm5085, %v183, 128.0
      %v5102 = vsel %vm5086, %v184, 128.0
      %v5103 = vsel %vm5087, %v185, 128.0
      %v5104 = vsel %vm5088, %v186, 128.0
      %v5105 = vsel %vm5089, %v187, 128.0
      %v5106 = vsel %vm5090, %v188, 128.0
      %v5107 = vsel %vm5091, %v189, 128.0
      %v5108 = vsel %vm5092, %v190, 128.0
      %v5109 = vsel %vm5093, %v191, 128.0
      %v5110 = vsel %vm5094, %v192, 128.0
      %v5111 = vmin.f32 %v5095, %v5099
      %v5112 = vmin.f32 %v5096, %v5100
      %v5113 = vmin.f32 %v5097, %v5101
      %v5114 = vmin.f32 %v5098, %v5102
      %v5115 = vmin.f32 %v5111, %v5103
      %v5116 = vmin.f32 %v5112, %v5104
      %v5117 = vmin.f32 %v5113, %v5105
      %v5118 = vmin.f32 %v5114, %v5106
      %v5119 = vmin.f32 %v5115, %v5107
      %v5120 = vmin.f32 %v5116, %v5108
      %v5121 = vmin.f32 %v5117, %v5109
      %v5122 = vmin.f32 %v5118, %v5110
      %v5123 = vmin.f32 %v5119, %v5120
      %v5124 = vmin.f32 %v5121, %v5122
      %v5125 = vmin.f32 %v5123, %v5124
      %v5126 = vrot.slane %v5125, 4
      %v5127 = vmin.f32 %v5125, %v5126
      %v5128 = vrot.slane %v5127, 2
      %v5129 = vmin.f32 %v5127, %v5128
      %v5130 = vrot.slane %v5129, 1
      %v5131 = vmin.f32 %v5129, %v5130
      %vm5132 = vcmp.eq.f32.partialorder %v177, %v5131
      %vm5133 = vcmp.eq.f32.partialorder %v178, %v5131
      %vm5134 = vcmp.eq.f32.partialorder %v179, %v5131
      %vm5135 = vcmp.eq.f32.partialorder %v180, %v5131
      %vm5136 = vcmp.eq.f32.partialorder %v181, %v5131
      %vm5137 = vcmp.eq.f32.partialorder %v182, %v5131
      %vm5138 = vcmp.eq.f32.partialorder %v183, %v5131
      %vm5139 = vcmp.eq.f32.partialorder %v184, %v5131
      %vm5140 = vcmp.eq.f32.partialorder %v185, %v5131
      %vm5141 = vcmp.eq.f32.partialorder %v186, %v5131
      %vm5142 = vcmp.eq.f32.partialorder %v187, %v5131
      %vm5143 = vcmp.eq.f32.partialorder %v188, %v5131
      %vm5144 = vcmp.eq.f32.partialorder %v189, %v5131
      %vm5145 = vcmp.eq.f32.partialorder %v190, %v5131
      %vm5146 = vcmp.eq.f32.partialorder %v191, %v5131
      %vm5147 = vcmp.eq.f32.partialorder %v192, %v5131
      %v5148 = vsel %vm5132, 1, 0
      %v5149 = vsel %vm5133, 1, 0
      %v5150 = vsel %vm5134, 1, 0
      %v5151 = vsel %vm5135, 1, 0
      %v5152 = vsel %vm5136, 1, 0
      %v5153 = vsel %vm5137, 1, 0
      %v5154 = vsel %vm5138, 1, 0
      %v5155 = vsel %vm5139, 1, 0
      %v5156 = vsel %vm5140, 1, 0
      %v5157 = vsel %vm5141, 1, 0
      %v5158 = vsel %vm5142, 1, 0
      %v5159 = vsel %vm5143, 1, 0
      %v5160 = vsel %vm5144, 1, 0
      %v5161 = vsel %vm5145, 1, 0
      %v5162 = vsel %vm5146, 1, 0
      %v5163 = vsel %vm5147, 1, 0
      %v5164 = vcvt.s32.f32 %v5148
      %v5165 = vcvt.s32.f32 %v5149
      %v5166 = vcvt.s32.f32 %v5150
      %v5167 = vcvt.s32.f32 %v5151
      %v5168 = vcvt.s32.f32 %v5152
      %v5169 = vcvt.s32.f32 %v5153
      %v5170 = vcvt.s32.f32 %v5154
      %v5171 = vcvt.s32.f32 %v5155
      %v5172 = vcvt.s32.f32 %v5156
      %v5173 = vcvt.s32.f32 %v5157
      %v5174 = vcvt.s32.f32 %v5158
      %v5175 = vcvt.s32.f32 %v5159
      %v5176 = vcvt.s32.f32 %v5160
      %v5177 = vcvt.s32.f32 %v5161
      %v5178 = vcvt.s32.f32 %v5162
      %v5179 = vcvt.s32.f32 %v5163
      %v5180 = vadd.f32 %v5026, %v5164
      %v5181 = vadd.f32 %v5027, %v5165
      %v5182 = vadd.f32 %v5028, %v5166
      %v5183 = vadd.f32 %v5029, %v5167
      %v5184 = vadd.f32 %v5030, %v5168
      %v5185 = vadd.f32 %v5031, %v5169
      %v5186 = vadd.f32 %v5032, %v5170
      %v5187 = vadd.f32 %v5033, %v5171
      %v5188 = vadd.f32 %v5034, %v5172
      %v5189 = vadd.f32 %v5035, %v5173
      %v5190 = vadd.f32 %v5036, %v5174
      %v5191 = vadd.f32 %v5037, %v5175
      %v5192 = vadd.f32 %v5038, %v5176
      %v5193 = vadd.f32 %v5039, %v5177
      %v5194 = vadd.f32 %v5040, %v5178
      %v5195 = vadd.f32 %v5041, %v5179
      %v5196 = vsel %vm5132, 1e+30, %v5042
      %v5197 = vsel %vm5133, 1e+30, %v5043
      %v5198 = vsel %vm5134, 1e+30, %v5044
      %v5199 = vsel %vm5135, 1e+30, %v5045
      %v5200 = vsel %vm5136, 1e+30, %v5046
      %v5201 = vsel %vm5137, 1e+30, %v5047
      %v5202 = vsel %vm5138, 1e+30, %v5048
      %v5203 = vsel %vm5139, 1e+30, %v5049
      %v5204 = vsel %vm5140, 1e+30, %v5050
      %v5205 = vsel %vm5141, 1e+30, %v5051
      %v5206 = vsel %vm5142, 1e+30, %v5052
      %v5207 = vsel %vm5143, 1e+30, %v5053
      %v5208 = vsel %vm5144, 1e+30, %v5054
      %v5209 = vsel %vm5145, 1e+30, %v5055
      %v5210 = vsel %vm5146, 1e+30, %v5056
      %v5211 = vsel %vm5147, 1e+30, %v5057
      %v5212 = vmin.f32 %v5196, %v5200
      %v5213 = vmin.f32 %v5197, %v5201
      %v5214 = vmin.f32 %v5198, %v5202
      %v5215 = vmin.f32 %v5199, %v5203
      %v5216 = vmin.f32 %v5212, %v5204
      %v5217 = vmin.f32 %v5213, %v5205
      %v5218 = vmin.f32 %v5214, %v5206
      %v5219 = vmin.f32 %v5215, %v5207
      %v5220 = vmin.f32 %v5216, %v5208
      %v5221 = vmin.f32 %v5217, %v5209
      %v5222 = vmin.f32 %v5218, %v5210
      %v5223 = vmin.f32 %v5219, %v5211
      %v5224 = vmin.f32 %v5220, %v5221
      %v5225 = vmin.f32 %v5222, %v5223
      %v5226 = vmin.f32 %v5224, %v5225
      %v5227 = vrot.slane %v5226, 4
      %v5228 = vmin.f32 %v5226, %v5227
      %v5229 = vrot.slane %v5228, 2
      %v5230 = vmin.f32 %v5228, %v5229
      %v5231 = vrot.slane %v5230, 1
      %v5232 = vmin.f32 %v5230, %v5231
      %vm5233 = vcmp.eq.f32.partialorder %v5196, %v5232
      %vm5234 = vcmp.eq.f32.partialorder %v5197, %v5232
      %vm5235 = vcmp.eq.f32.partialorder %v5198, %v5232
      %vm5236 = vcmp.eq.f32.partialorder %v5199, %v5232
      %vm5237 = vcmp.eq.f32.partialorder %v5200, %v5232
      %vm5238 = vcmp.eq.f32.partialorder %v5201, %v5232
      %vm5239 = vcmp.eq.f32.partialorder %v5202, %v5232
      %vm5240 = vcmp.eq.f32.partialorder %v5203, %v5232
      %vm5241 = vcmp.eq.f32.partialorder %v5204, %v5232
      %vm5242 = vcmp.eq.f32.partialorder %v5205, %v5232
      %vm5243 = vcmp.eq.f32.partialorder %v5206, %v5232
      %vm5244 = vcmp.eq.f32.partialorder %v5207, %v5232
      %vm5245 = vcmp.eq.f32.partialorder %v5208, %v5232
      %vm5246 = vcmp.eq.f32.partialorder %v5209, %v5232
      %vm5247 = vcmp.eq.f32.partialorder %v5210, %v5232
      %vm5248 = vcmp.eq.f32.partialorder %v5211, %v5232
      %v5249 = vsel %vm5233, %v177, 128.0
      %v5250 = vsel %vm5234, %v178, 128.0
      %v5251 = vsel %vm5235, %v179, 128.0
      %v5252 = vsel %vm5236, %v180, 128.0
      %v5253 = vsel %vm5237, %v181, 128.0
      %v5254 = vsel %vm5238, %v182, 128.0
      %v5255 = vsel %vm5239, %v183, 128.0
      %v5256 = vsel %vm5240, %v184, 128.0
      %v5257 = vsel %vm5241, %v185, 128.0
      %v5258 = vsel %vm5242, %v186, 128.0
      %v5259 = vsel %vm5243, %v187, 128.0
      %v5260 = vsel %vm5244, %v188, 128.0
      %v5261 = vsel %vm5245, %v189, 128.0
      %v5262 = vsel %vm5246, %v190, 128.0
      %v5263 = vsel %vm5247, %v191, 128.0
      %v5264 = vsel %vm5248, %v192, 128.0
      %v5265 = vmin.f32 %v5249, %v5253
      %v5266 = vmin.f32 %v5250, %v5254
      %v5267 = vmin.f32 %v5251, %v5255
      %v5268 = vmin.f32 %v5252, %v5256
      %v5269 = vmin.f32 %v5265, %v5257
      %v5270 = vmin.f32 %v5266, %v5258
      %v5271 = vmin.f32 %v5267, %v5259
      %v5272 = vmin.f32 %v5268, %v5260
      %v5273 = vmin.f32 %v5269, %v5261
      %v5274 = vmin.f32 %v5270, %v5262
      %v5275 = vmin.f32 %v5271, %v5263
      %v5276 = vmin.f32 %v5272, %v5264
      %v5277 = vmin.f32 %v5273, %v5274
      %v5278 = vmin.f32 %v5275, %v5276
      %v5279 = vmin.f32 %v5277, %v5278
      %v5280 = vrot.slane %v5279, 4
      %v5281 = vmin.f32 %v5279, %v5280
      %v5282 = vrot.slane %v5281, 2
      %v5283 = vmin.f32 %v5281, %v5282
      %v5284 = vrot.slane %v5283, 1
      %v5285 = vmin.f32 %v5283, %v5284
      %vm5286 = vcmp.eq.f32.partialorder %v177, %v5285
      %vm5287 = vcmp.eq.f32.partialorder %v178, %v5285
      %vm5288 = vcmp.eq.f32.partialorder %v179, %v5285
      %vm5289 = vcmp.eq.f32.partialorder %v180, %v5285
      %vm5290 = vcmp.eq.f32.partialorder %v181, %v5285
      %vm5291 = vcmp.eq.f32.partialorder %v182, %v5285
      %vm5292 = vcmp.eq.f32.partialorder %v183, %v5285
      %vm5293 = vcmp.eq.f32.partialorder %v184, %v5285
      %vm5294 = vcmp.eq.f32.partialorder %v185, %v5285
      %vm5295 = vcmp.eq.f32.partialorder %v186, %v5285
      %vm5296 = vcmp.eq.f32.partialorder %v187, %v5285
      %vm5297 = vcmp.eq.f32.partialorder %v188, %v5285
      %vm5298 = vcmp.eq.f32.partialorder %v189, %v5285
      %vm5299 = vcmp.eq.f32.partialorder %v190, %v5285
      %vm5300 = vcmp.eq.f32.partialorder %v191, %v5285
      %vm5301 = vcmp.eq.f32.partialorder %v192, %v5285
      %v5302 = vsel %vm5286, 1, 0
      %v5303 = vsel %vm5287, 1, 0
      %v5304 = vsel %vm5288, 1, 0
      %v5305 = vsel %vm5289, 1, 0
      %v5306 = vsel %vm5290, 1, 0
      %v5307 = vsel %vm5291, 1, 0
      %v5308 = vsel %vm5292, 1, 0
      %v5309 = vsel %vm5293, 1, 0
      %v5310 = vsel %vm5294, 1, 0
      %v5311 = vsel %vm5295, 1, 0
      %v5312 = vsel %vm5296, 1, 0
      %v5313 = vsel %vm5297, 1, 0
      %v5314 = vsel %vm5298, 1, 0
      %v5315 = vsel %vm5299, 1, 0
      %v5316 = vsel %vm5300, 1, 0
      %v5317 = vsel %vm5301, 1, 0
      %v5318 = vcvt.s32.f32 %v5302
      %v5319 = vcvt.s32.f32 %v5303
      %v5320 = vcvt.s32.f32 %v5304
      %v5321 = vcvt.s32.f32 %v5305
      %v5322 = vcvt.s32.f32 %v5306
      %v5323 = vcvt.s32.f32 %v5307
      %v5324 = vcvt.s32.f32 %v5308
      %v5325 = vcvt.s32.f32 %v5309
      %v5326 = vcvt.s32.f32 %v5310
      %v5327 = vcvt.s32.f32 %v5311
      %v5328 = vcvt.s32.f32 %v5312
      %v5329 = vcvt.s32.f32 %v5313
      %v5330 = vcvt.s32.f32 %v5314
      %v5331 = vcvt.s32.f32 %v5315
      %v5332 = vcvt.s32.f32 %v5316
      %v5333 = vcvt.s32.f32 %v5317
      %v5334 = vadd.f32 %v5180, %v5318
      %v5335 = vadd.f32 %v5181, %v5319
      %v5336 = vadd.f32 %v5182, %v5320
      %v5337 = vadd.f32 %v5183, %v5321
      %v5338 = vadd.f32 %v5184, %v5322
      %v5339 = vadd.f32 %v5185, %v5323
      %v5340 = vadd.f32 %v5186, %v5324
      %v5341 = vadd.f32 %v5187, %v5325
      %v5342 = vadd.f32 %v5188, %v5326
      %v5343 = vadd.f32 %v5189, %v5327
      %v5344 = vadd.f32 %v5190, %v5328
      %v5345 = vadd.f32 %v5191, %v5329
      %v5346 = vadd.f32 %v5192, %v5330
      %v5347 = vadd.f32 %v5193, %v5331
      %v5348 = vadd.f32 %v5194, %v5332
      %v5349 = vadd.f32 %v5195, %v5333
      %v5350 = vsel %vm5286, 1e+30, %v5196
      %v5351 = vsel %vm5287, 1e+30, %v5197
      %v5352 = vsel %vm5288, 1e+30, %v5198
      %v5353 = vsel %vm5289, 1e+30, %v5199
      %v5354 = vsel %vm5290, 1e+30, %v5200
      %v5355 = vsel %vm5291, 1e+30, %v5201
      %v5356 = vsel %vm5292, 1e+30, %v5202
      %v5357 = vsel %vm5293, 1e+30, %v5203
      %v5358 = vsel %vm5294, 1e+30, %v5204
      %v5359 = vsel %vm5295, 1e+30, %v5205
      %v5360 = vsel %vm5296, 1e+30, %v5206
      %v5361 = vsel %vm5297, 1e+30, %v5207
      %v5362 = vsel %vm5298, 1e+30, %v5208
      %v5363 = vsel %vm5299, 1e+30, %v5209
      %v5364 = vsel %vm5300, 1e+30, %v5210
      %v5365 = vsel %vm5301, 1e+30, %v5211
      %v5366 = vmin.f32 %v5350, %v5354
      %v5367 = vmin.f32 %v5351, %v5355
      %v5368 = vmin.f32 %v5352, %v5356
      %v5369 = vmin.f32 %v5353, %v5357
      %v5370 = vmin.f32 %v5366, %v5358
      %v5371 = vmin.f32 %v5367, %v5359
      %v5372 = vmin.f32 %v5368, %v5360
      %v5373 = vmin.f32 %v5369, %v5361
      %v5374 = vmin.f32 %v5370, %v5362
      %v5375 = vmin.f32 %v5371, %v5363
      %v5376 = vmin.f32 %v5372, %v5364
      %v5377 = vmin.f32 %v5373, %v5365
      %v5378 = vmin.f32 %v5374, %v5375
      %v5379 = vmin.f32 %v5376, %v5377
      %v5380 = vmin.f32 %v5378, %v5379
      %v5381 = vrot.slane %v5380, 4
      %v5382 = vmin.f32 %v5380, %v5381
      %v5383 = vrot.slane %v5382, 2
      %v5384 = vmin.f32 %v5382, %v5383
      %v5385 = vrot.slane %v5384, 1
      %v5386 = vmin.f32 %v5384, %v5385
      %vm5387 = vcmp.eq.f32.partialorder %v5350, %v5386
      %vm5388 = vcmp.eq.f32.partialorder %v5351, %v5386
      %vm5389 = vcmp.eq.f32.partialorder %v5352, %v5386
      %vm5390 = vcmp.eq.f32.partialorder %v5353, %v5386
      %vm5391 = vcmp.eq.f32.partialorder %v5354, %v5386
      %vm5392 = vcmp.eq.f32.partialorder %v5355, %v5386
      %vm5393 = vcmp.eq.f32.partialorder %v5356, %v5386
      %vm5394 = vcmp.eq.f32.partialorder %v5357, %v5386
      %vm5395 = vcmp.eq.f32.partialorder %v5358, %v5386
      %vm5396 = vcmp.eq.f32.partialorder %v5359, %v5386
      %vm5397 = vcmp.eq.f32.partialorder %v5360, %v5386
      %vm5398 = vcmp.eq.f32.partialorder %v5361, %v5386
      %vm5399 = vcmp.eq.f32.partialorder %v5362, %v5386
      %vm5400 = vcmp.eq.f32.partialorder %v5363, %v5386
      %vm5401 = vcmp.eq.f32.partialorder %v5364, %v5386
      %vm5402 = vcmp.eq.f32.partialorder %v5365, %v5386
      %v5403 = vsel %vm5387, %v177, 128.0
      %v5404 = vsel %vm5388, %v178, 128.0
      %v5405 = vsel %vm5389, %v179, 128.0
      %v5406 = vsel %vm5390, %v180, 128.0
      %v5407 = vsel %vm5391, %v181, 128.0
      %v5408 = vsel %vm5392, %v182, 128.0
      %v5409 = vsel %vm5393, %v183, 128.0
      %v5410 = vsel %vm5394, %v184, 128.0
      %v5411 = vsel %vm5395, %v185, 128.0
      %v5412 = vsel %vm5396, %v186, 128.0
      %v5413 = vsel %vm5397, %v187, 128.0
      %v5414 = vsel %vm5398, %v188, 128.0
      %v5415 = vsel %vm5399, %v189, 128.0
      %v5416 = vsel %vm5400, %v190, 128.0
      %v5417 = vsel %vm5401, %v191, 128.0
      %v5418 = vsel %vm5402, %v192, 128.0
      %v5419 = vmin.f32 %v5403, %v5407
      %v5420 = vmin.f32 %v5404, %v5408
      %v5421 = vmin.f32 %v5405, %v5409
      %v5422 = vmin.f32 %v5406, %v5410
      %v5423 = vmin.f32 %v5419, %v5411
      %v5424 = vmin.f32 %v5420, %v5412
      %v5425 = vmin.f32 %v5421, %v5413
      %v5426 = vmin.f32 %v5422, %v5414
      %v5427 = vmin.f32 %v5423, %v5415
      %v5428 = vmin.f32 %v5424, %v5416
      %v5429 = vmin.f32 %v5425, %v5417
      %v5430 = vmin.f32 %v5426, %v5418
      %v5431 = vmin.f32 %v5427, %v5428
      %v5432 = vmin.f32 %v5429, %v5430
      %v5433 = vmin.f32 %v5431, %v5432
      %v5434 = vrot.slane %v5433, 4
      %v5435 = vmin.f32 %v5433, %v5434
      %v5436 = vrot.slane %v5435, 2
      %v5437 = vmin.f32 %v5435, %v5436
      %v5438 = vrot.slane %v5437, 1
      %v5439 = vmin.f32 %v5437, %v5438
      %vm5440 = vcmp.eq.f32.partialorder %v177, %v5439
      %vm5441 = vcmp.eq.f32.partialorder %v178, %v5439
      %vm5442 = vcmp.eq.f32.partialorder %v179, %v5439
      %vm5443 = vcmp.eq.f32.partialorder %v180, %v5439
      %vm5444 = vcmp.eq.f32.partialorder %v181, %v5439
      %vm5445 = vcmp.eq.f32.partialorder %v182, %v5439
      %vm5446 = vcmp.eq.f32.partialorder %v183, %v5439
      %vm5447 = vcmp.eq.f32.partialorder %v184, %v5439
      %vm5448 = vcmp.eq.f32.partialorder %v185, %v5439
      %vm5449 = vcmp.eq.f32.partialorder %v186, %v5439
      %vm5450 = vcmp.eq.f32.partialorder %v187, %v5439
      %vm5451 = vcmp.eq.f32.partialorder %v188, %v5439
      %vm5452 = vcmp.eq.f32.partialorder %v189, %v5439
      %vm5453 = vcmp.eq.f32.partialorder %v190, %v5439
      %vm5454 = vcmp.eq.f32.partialorder %v191, %v5439
      %vm5455 = vcmp.eq.f32.partialorder %v192, %v5439
      %v5456 = vsel %vm5440, 1, 0
      %v5457 = vsel %vm5441, 1, 0
      %v5458 = vsel %vm5442, 1, 0
      %v5459 = vsel %vm5443, 1, 0
      %v5460 = vsel %vm5444, 1, 0
      %v5461 = vsel %vm5445, 1, 0
      %v5462 = vsel %vm5446, 1, 0
      %v5463 = vsel %vm5447, 1, 0
      %v5464 = vsel %vm5448, 1, 0
      %v5465 = vsel %vm5449, 1, 0
      %v5466 = vsel %vm5450, 1, 0
      %v5467 = vsel %vm5451, 1, 0
      %v5468 = vsel %vm5452, 1, 0
      %v5469 = vsel %vm5453, 1, 0
      %v5470 = vsel %vm5454, 1, 0
      %v5471 = vsel %vm5455, 1, 0
      %v5472 = vcvt.s32.f32 %v5456
      %v5473 = vcvt.s32.f32 %v5457
      %v5474 = vcvt.s32.f32 %v5458
      %v5475 = vcvt.s32.f32 %v5459
      %v5476 = vcvt.s32.f32 %v5460
      %v5477 = vcvt.s32.f32 %v5461
      %v5478 = vcvt.s32.f32 %v5462
      %v5479 = vcvt.s32.f32 %v5463
      %v5480 = vcvt.s32.f32 %v5464
      %v5481 = vcvt.s32.f32 %v5465
      %v5482 = vcvt.s32.f32 %v5466
      %v5483 = vcvt.s32.f32 %v5467
      %v5484 = vcvt.s32.f32 %v5468
      %v5485 = vcvt.s32.f32 %v5469
      %v5486 = vcvt.s32.f32 %v5470
      %v5487 = vcvt.s32.f32 %v5471
      %v5488 = vadd.f32 %v5334, %v5472
      %v5489 = vadd.f32 %v5335, %v5473
      %v5490 = vadd.f32 %v5336, %v5474
      %v5491 = vadd.f32 %v5337, %v5475
      %v5492 = vadd.f32 %v5338, %v5476
      %v5493 = vadd.f32 %v5339, %v5477
      %v5494 = vadd.f32 %v5340, %v5478
      %v5495 = vadd.f32 %v5341, %v5479
      %v5496 = vadd.f32 %v5342, %v5480
      %v5497 = vadd.f32 %v5343, %v5481
      %v5498 = vadd.f32 %v5344, %v5482
      %v5499 = vadd.f32 %v5345, %v5483
      %v5500 = vadd.f32 %v5346, %v5484
      %v5501 = vadd.f32 %v5347, %v5485
      %v5502 = vadd.f32 %v5348, %v5486
      %v5503 = vadd.f32 %v5349, %v5487
      %v5504 = vsel %vm5440, 1e+30, %v5350
      %v5505 = vsel %vm5441, 1e+30, %v5351
      %v5506 = vsel %vm5442, 1e+30, %v5352
      %v5507 = vsel %vm5443, 1e+30, %v5353
      %v5508 = vsel %vm5444, 1e+30, %v5354
      %v5509 = vsel %vm5445, 1e+30, %v5355
      %v5510 = vsel %vm5446, 1e+30, %v5356
      %v5511 = vsel %vm5447, 1e+30, %v5357
      %v5512 = vsel %vm5448, 1e+30, %v5358
      %v5513 = vsel %vm5449, 1e+30, %v5359
      %v5514 = vsel %vm5450, 1e+30, %v5360
      %v5515 = vsel %vm5451, 1e+30, %v5361
      %v5516 = vsel %vm5452, 1e+30, %v5362
      %v5517 = vsel %vm5453, 1e+30, %v5363
      %v5518 = vsel %vm5454, 1e+30, %v5364
      %v5519 = vsel %vm5455, 1e+30, %v5365
      %v5520 = vmin.f32 %v5504, %v5508
      %v5521 = vmin.f32 %v5505, %v5509
      %v5522 = vmin.f32 %v5506, %v5510
      %v5523 = vmin.f32 %v5507, %v5511
      %v5524 = vmin.f32 %v5520, %v5512
      %v5525 = vmin.f32 %v5521, %v5513
      %v5526 = vmin.f32 %v5522, %v5514
      %v5527 = vmin.f32 %v5523, %v5515
      %v5528 = vmin.f32 %v5524, %v5516
      %v5529 = vmin.f32 %v5525, %v5517
      %v5530 = vmin.f32 %v5526, %v5518
      %v5531 = vmin.f32 %v5527, %v5519
      %v5532 = vmin.f32 %v5528, %v5529
      %v5533 = vmin.f32 %v5530, %v5531
      %v5534 = vmin.f32 %v5532, %v5533
      %v5535 = vrot.slane %v5534, 4
      %v5536 = vmin.f32 %v5534, %v5535
      %v5537 = vrot.slane %v5536, 2
      %v5538 = vmin.f32 %v5536, %v5537
      %v5539 = vrot.slane %v5538, 1
      %v5540 = vmin.f32 %v5538, %v5539
      %vm5541 = vcmp.eq.f32.partialorder %v5504, %v5540
      %vm5542 = vcmp.eq.f32.partialorder %v5505, %v5540
      %vm5543 = vcmp.eq.f32.partialorder %v5506, %v5540
      %vm5544 = vcmp.eq.f32.partialorder %v5507, %v5540
      %vm5545 = vcmp.eq.f32.partialorder %v5508, %v5540
      %vm5546 = vcmp.eq.f32.partialorder %v5509, %v5540
      %vm5547 = vcmp.eq.f32.partialorder %v5510, %v5540
      %vm5548 = vcmp.eq.f32.partialorder %v5511, %v5540
      %vm5549 = vcmp.eq.f32.partialorder %v5512, %v5540
      %vm5550 = vcmp.eq.f32.partialorder %v5513, %v5540
      %vm5551 = vcmp.eq.f32.partialorder %v5514, %v5540
      %vm5552 = vcmp.eq.f32.partialorder %v5515, %v5540
      %vm5553 = vcmp.eq.f32.partialorder %v5516, %v5540
      %vm5554 = vcmp.eq.f32.partialorder %v5517, %v5540
      %vm5555 = vcmp.eq.f32.partialorder %v5518, %v5540
      %vm5556 = vcmp.eq.f32.partialorder %v5519, %v5540
      %v5557 = vsel %vm5541, %v177, 128.0
      %v5558 = vsel %vm5542, %v178, 128.0
      %v5559 = vsel %vm5543, %v179, 128.0
      %v5560 = vsel %vm5544, %v180, 128.0
      %v5561 = vsel %vm5545, %v181, 128.0
      %v5562 = vsel %vm5546, %v182, 128.0
      %v5563 = vsel %vm5547, %v183, 128.0
      %v5564 = vsel %vm5548, %v184, 128.0
      %v5565 = vsel %vm5549, %v185, 128.0
      %v5566 = vsel %vm5550, %v186, 128.0
      %v5567 = vsel %vm5551, %v187, 128.0
      %v5568 = vsel %vm5552, %v188, 128.0
      %v5569 = vsel %vm5553, %v189, 128.0
      %v5570 = vsel %vm5554, %v190, 128.0
      %v5571 = vsel %vm5555, %v191, 128.0
      %v5572 = vsel %vm5556, %v192, 128.0
      %v5573 = vmin.f32 %v5557, %v5561
      %v5574 = vmin.f32 %v5558, %v5562
      %v5575 = vmin.f32 %v5559, %v5563
      %v5576 = vmin.f32 %v5560, %v5564
      %v5577 = vmin.f32 %v5573, %v5565
      %v5578 = vmin.f32 %v5574, %v5566
      %v5579 = vmin.f32 %v5575, %v5567
      %v5580 = vmin.f32 %v5576, %v5568
      %v5581 = vmin.f32 %v5577, %v5569
      %v5582 = vmin.f32 %v5578, %v5570
      %v5583 = vmin.f32 %v5579, %v5571
      %v5584 = vmin.f32 %v5580, %v5572
      %v5585 = vmin.f32 %v5581, %v5582
      %v5586 = vmin.f32 %v5583, %v5584
      %v5587 = vmin.f32 %v5585, %v5586
      %v5588 = vrot.slane %v5587, 4
      %v5589 = vmin.f32 %v5587, %v5588
      %v5590 = vrot.slane %v5589, 2
      %v5591 = vmin.f32 %v5589, %v5590
      %v5592 = vrot.slane %v5591, 1
      %v5593 = vmin.f32 %v5591, %v5592
      %vm5594 = vcmp.eq.f32.partialorder %v177, %v5593
      %vm5595 = vcmp.eq.f32.partialorder %v178, %v5593
      %vm5596 = vcmp.eq.f32.partialorder %v179, %v5593
      %vm5597 = vcmp.eq.f32.partialorder %v180, %v5593
      %vm5598 = vcmp.eq.f32.partialorder %v181, %v5593
      %vm5599 = vcmp.eq.f32.partialorder %v182, %v5593
      %vm5600 = vcmp.eq.f32.partialorder %v183, %v5593
      %vm5601 = vcmp.eq.f32.partialorder %v184, %v5593
      %vm5602 = vcmp.eq.f32.partialorder %v185, %v5593
      %vm5603 = vcmp.eq.f32.partialorder %v186, %v5593
      %vm5604 = vcmp.eq.f32.partialorder %v187, %v5593
      %vm5605 = vcmp.eq.f32.partialorder %v188, %v5593
      %vm5606 = vcmp.eq.f32.partialorder %v189, %v5593
      %vm5607 = vcmp.eq.f32.partialorder %v190, %v5593
      %vm5608 = vcmp.eq.f32.partialorder %v191, %v5593
      %vm5609 = vcmp.eq.f32.partialorder %v192, %v5593
      %v5610 = vsel %vm5594, 1, 0
      %v5611 = vsel %vm5595, 1, 0
      %v5612 = vsel %vm5596, 1, 0
      %v5613 = vsel %vm5597, 1, 0
      %v5614 = vsel %vm5598, 1, 0
      %v5615 = vsel %vm5599, 1, 0
      %v5616 = vsel %vm5600, 1, 0
      %v5617 = vsel %vm5601, 1, 0
      %v5618 = vsel %vm5602, 1, 0
      %v5619 = vsel %vm5603, 1, 0
      %v5620 = vsel %vm5604, 1, 0
      %v5621 = vsel %vm5605, 1, 0
      %v5622 = vsel %vm5606, 1, 0
      %v5623 = vsel %vm5607, 1, 0
      %v5624 = vsel %vm5608, 1, 0
      %v5625 = vsel %vm5609, 1, 0
      %v5626 = vcvt.s32.f32 %v5610
      %v5627 = vcvt.s32.f32 %v5611
      %v5628 = vcvt.s32.f32 %v5612
      %v5629 = vcvt.s32.f32 %v5613
      %v5630 = vcvt.s32.f32 %v5614
      %v5631 = vcvt.s32.f32 %v5615
      %v5632 = vcvt.s32.f32 %v5616
      %v5633 = vcvt.s32.f32 %v5617
      %v5634 = vcvt.s32.f32 %v5618
      %v5635 = vcvt.s32.f32 %v5619
      %v5636 = vcvt.s32.f32 %v5620
      %v5637 = vcvt.s32.f32 %v5621
      %v5638 = vcvt.s32.f32 %v5622
      %v5639 = vcvt.s32.f32 %v5623
      %v5640 = vcvt.s32.f32 %v5624
      %v5641 = vcvt.s32.f32 %v5625
      %v5642 = vadd.f32 %v5488, %v5626
      %v5643 = vadd.f32 %v5489, %v5627
      %v5644 = vadd.f32 %v5490, %v5628
      %v5645 = vadd.f32 %v5491, %v5629
      %v5646 = vadd.f32 %v5492, %v5630
      %v5647 = vadd.f32 %v5493, %v5631
      %v5648 = vadd.f32 %v5494, %v5632
      %v5649 = vadd.f32 %v5495, %v5633
      %v5650 = vadd.f32 %v5496, %v5634
      %v5651 = vadd.f32 %v5497, %v5635
      %v5652 = vadd.f32 %v5498, %v5636
      %v5653 = vadd.f32 %v5499, %v5637
      %v5654 = vadd.f32 %v5500, %v5638
      %v5655 = vadd.f32 %v5501, %v5639
      %v5656 = vadd.f32 %v5502, %v5640
      %v5657 = vadd.f32 %v5503, %v5641
      %v5658 = vsel %vm5594, 1e+30, %v5504
      %v5659 = vsel %vm5595, 1e+30, %v5505
      %v5660 = vsel %vm5596, 1e+30, %v5506
      %v5661 = vsel %vm5597, 1e+30, %v5507
      %v5662 = vsel %vm5598, 1e+30, %v5508
      %v5663 = vsel %vm5599, 1e+30, %v5509
      %v5664 = vsel %vm5600, 1e+30, %v5510
      %v5665 = vsel %vm5601, 1e+30, %v5511
      %v5666 = vsel %vm5602, 1e+30, %v5512
      %v5667 = vsel %vm5603, 1e+30, %v5513
      %v5668 = vsel %vm5604, 1e+30, %v5514
      %v5669 = vsel %vm5605, 1e+30, %v5515
      %v5670 = vsel %vm5606, 1e+30, %v5516
      %v5671 = vsel %vm5607, 1e+30, %v5517
      %v5672 = vsel %vm5608, 1e+30, %v5518
      %v5673 = vsel %vm5609, 1e+30, %v5519
      %v5674 = vmin.f32 %v5658, %v5662
      %v5675 = vmin.f32 %v5659, %v5663
      %v5676 = vmin.f32 %v5660, %v5664
      %v5677 = vmin.f32 %v5661, %v5665
      %v5678 = vmin.f32 %v5674, %v5666
      %v5679 = vmin.f32 %v5675, %v5667
      %v5680 = vmin.f32 %v5676, %v5668
      %v5681 = vmin.f32 %v5677, %v5669
      %v5682 = vmin.f32 %v5678, %v5670
      %v5683 = vmin.f32 %v5679, %v5671
      %v5684 = vmin.f32 %v5680, %v5672
      %v5685 = vmin.f32 %v5681, %v5673
      %v5686 = vmin.f32 %v5682, %v5683
      %v5687 = vmin.f32 %v5684, %v5685
      %v5688 = vmin.f32 %v5686, %v5687
      %v5689 = vrot.slane %v5688, 4
      %v5690 = vmin.f32 %v5688, %v5689
      %v5691 = vrot.slane %v5690, 2
      %v5692 = vmin.f32 %v5690, %v5691
      %v5693 = vrot.slane %v5692, 1
      %v5694 = vmin.f32 %v5692, %v5693
      %vm5695 = vcmp.eq.f32.partialorder %v5658, %v5694
      %vm5696 = vcmp.eq.f32.partialorder %v5659, %v5694
      %vm5697 = vcmp.eq.f32.partialorder %v5660, %v5694
      %vm5698 = vcmp.eq.f32.partialorder %v5661, %v5694
      %vm5699 = vcmp.eq.f32.partialorder %v5662, %v5694
      %vm5700 = vcmp.eq.f32.partialorder %v5663, %v5694
      %vm5701 = vcmp.eq.f32.partialorder %v5664, %v5694
      %vm5702 = vcmp.eq.f32.partialorder %v5665, %v5694
      %vm5703 = vcmp.eq.f32.partialorder %v5666, %v5694
      %vm5704 = vcmp.eq.f32.partialorder %v5667, %v5694
      %vm5705 = vcmp.eq.f32.partialorder %v5668, %v5694
      %vm5706 = vcmp.eq.f32.partialorder %v5669, %v5694
      %vm5707 = vcmp.eq.f32.partialorder %v5670, %v5694
      %vm5708 = vcmp.eq.f32.partialorder %v5671, %v5694
      %vm5709 = vcmp.eq.f32.partialorder %v5672, %v5694
      %vm5710 = vcmp.eq.f32.partialorder %v5673, %v5694
      %v5711 = vsel %vm5695, %v177, 128.0
      %v5712 = vsel %vm5696, %v178, 128.0
      %v5713 = vsel %vm5697, %v179, 128.0
      %v5714 = vsel %vm5698, %v180, 128.0
      %v5715 = vsel %vm5699, %v181, 128.0
      %v5716 = vsel %vm5700, %v182, 128.0
      %v5717 = vsel %vm5701, %v183, 128.0
      %v5718 = vsel %vm5702, %v184, 128.0
      %v5719 = vsel %vm5703, %v185, 128.0
      %v5720 = vsel %vm5704, %v186, 128.0
      %v5721 = vsel %vm5705, %v187, 128.0
      %v5722 = vsel %vm5706, %v188, 128.0
      %v5723 = vsel %vm5707, %v189, 128.0
      %v5724 = vsel %vm5708, %v190, 128.0
      %v5725 = vsel %vm5709, %v191, 128.0
      %v5726 = vsel %vm5710, %v192, 128.0
      %v5727 = vmin.f32 %v5711, %v5715
      %v5728 = vmin.f32 %v5712, %v5716
      %v5729 = vmin.f32 %v5713, %v5717
      %v5730 = vmin.f32 %v5714, %v5718
      %v5731 = vmin.f32 %v5727, %v5719
      %v5732 = vmin.f32 %v5728, %v5720
      %v5733 = vmin.f32 %v5729, %v5721
      %v5734 = vmin.f32 %v5730, %v5722
      %v5735 = vmin.f32 %v5731, %v5723
      %v5736 = vmin.f32 %v5732, %v5724
      %v5737 = vmin.f32 %v5733, %v5725
      %v5738 = vmin.f32 %v5734, %v5726
      %v5739 = vmin.f32 %v5735, %v5736
      %v5740 = vmin.f32 %v5737, %v5738
      %v5741 = vmin.f32 %v5739, %v5740
      %v5742 = vrot.slane %v5741, 4
      %v5743 = vmin.f32 %v5741, %v5742
      %v5744 = vrot.slane %v5743, 2
      %v5745 = vmin.f32 %v5743, %v5744
      %v5746 = vrot.slane %v5745, 1
      %v5747 = vmin.f32 %v5745, %v5746
      %vm5748 = vcmp.eq.f32.partialorder %v177, %v5747
      %vm5749 = vcmp.eq.f32.partialorder %v178, %v5747
      %vm5750 = vcmp.eq.f32.partialorder %v179, %v5747
      %vm5751 = vcmp.eq.f32.partialorder %v180, %v5747
      %vm5752 = vcmp.eq.f32.partialorder %v181, %v5747
      %vm5753 = vcmp.eq.f32.partialorder %v182, %v5747
      %vm5754 = vcmp.eq.f32.partialorder %v183, %v5747
      %vm5755 = vcmp.eq.f32.partialorder %v184, %v5747
      %vm5756 = vcmp.eq.f32.partialorder %v185, %v5747
      %vm5757 = vcmp.eq.f32.partialorder %v186, %v5747
      %vm5758 = vcmp.eq.f32.partialorder %v187, %v5747
      %vm5759 = vcmp.eq.f32.partialorder %v188, %v5747
      %vm5760 = vcmp.eq.f32.partialorder %v189, %v5747
      %vm5761 = vcmp.eq.f32.partialorder %v190, %v5747
      %vm5762 = vcmp.eq.f32.partialorder %v191, %v5747
      %vm5763 = vcmp.eq.f32.partialorder %v192, %v5747
      %v5764 = vsel %vm5748, 1, 0
      %v5765 = vsel %vm5749, 1, 0
      %v5766 = vsel %vm5750, 1, 0
      %v5767 = vsel %vm5751, 1, 0
      %v5768 = vsel %vm5752, 1, 0
      %v5769 = vsel %vm5753, 1, 0
      %v5770 = vsel %vm5754, 1, 0
      %v5771 = vsel %vm5755, 1, 0
      %v5772 = vsel %vm5756, 1, 0
      %v5773 = vsel %vm5757, 1, 0
      %v5774 = vsel %vm5758, 1, 0
      %v5775 = vsel %vm5759, 1, 0
      %v5776 = vsel %vm5760, 1, 0
      %v5777 = vsel %vm5761, 1, 0
      %v5778 = vsel %vm5762, 1, 0
      %v5779 = vsel %vm5763, 1, 0
      %v5780 = vcvt.s32.f32 %v5764
      %v5781 = vcvt.s32.f32 %v5765
      %v5782 = vcvt.s32.f32 %v5766
      %v5783 = vcvt.s32.f32 %v5767
      %v5784 = vcvt.s32.f32 %v5768
      %v5785 = vcvt.s32.f32 %v5769
      %v5786 = vcvt.s32.f32 %v5770
      %v5787 = vcvt.s32.f32 %v5771
      %v5788 = vcvt.s32.f32 %v5772
      %v5789 = vcvt.s32.f32 %v5773
      %v5790 = vcvt.s32.f32 %v5774
      %v5791 = vcvt.s32.f32 %v5775
      %v5792 = vcvt.s32.f32 %v5776
      %v5793 = vcvt.s32.f32 %v5777
      %v5794 = vcvt.s32.f32 %v5778
      %v5795 = vcvt.s32.f32 %v5779
      %v5796 = vadd.f32 %v5642, %v5780
      %v5797 = vadd.f32 %v5643, %v5781
      %v5798 = vadd.f32 %v5644, %v5782
      %v5799 = vadd.f32 %v5645, %v5783
      %v5800 = vadd.f32 %v5646, %v5784
      %v5801 = vadd.f32 %v5647, %v5785
      %v5802 = vadd.f32 %v5648, %v5786
      %v5803 = vadd.f32 %v5649, %v5787
      %v5804 = vadd.f32 %v5650, %v5788
      %v5805 = vadd.f32 %v5651, %v5789
      %v5806 = vadd.f32 %v5652, %v5790
      %v5807 = vadd.f32 %v5653, %v5791
      %v5808 = vadd.f32 %v5654, %v5792
      %v5809 = vadd.f32 %v5655, %v5793
      %v5810 = vadd.f32 %v5656, %v5794
      %v5811 = vadd.f32 %v5657, %v5795
      %v5812 = vsel %vm5748, 1e+30, %v5658
      %v5813 = vsel %vm5749, 1e+30, %v5659
      %v5814 = vsel %vm5750, 1e+30, %v5660
      %v5815 = vsel %vm5751, 1e+30, %v5661
      %v5816 = vsel %vm5752, 1e+30, %v5662
      %v5817 = vsel %vm5753, 1e+30, %v5663
      %v5818 = vsel %vm5754, 1e+30, %v5664
      %v5819 = vsel %vm5755, 1e+30, %v5665
      %v5820 = vsel %vm5756, 1e+30, %v5666
      %v5821 = vsel %vm5757, 1e+30, %v5667
      %v5822 = vsel %vm5758, 1e+30, %v5668
      %v5823 = vsel %vm5759, 1e+30, %v5669
      %v5824 = vsel %vm5760, 1e+30, %v5670
      %v5825 = vsel %vm5761, 1e+30, %v5671
      %v5826 = vsel %vm5762, 1e+30, %v5672
      %v5827 = vsel %vm5763, 1e+30, %v5673
      %v5828 = vmin.f32 %v5812, %v5816
      %v5829 = vmin.f32 %v5813, %v5817
      %v5830 = vmin.f32 %v5814, %v5818
      %v5831 = vmin.f32 %v5815, %v5819
      %v5832 = vmin.f32 %v5828, %v5820
      %v5833 = vmin.f32 %v5829, %v5821
      %v5834 = vmin.f32 %v5830, %v5822
      %v5835 = vmin.f32 %v5831, %v5823
      %v5836 = vmin.f32 %v5832, %v5824
      %v5837 = vmin.f32 %v5833, %v5825
      %v5838 = vmin.f32 %v5834, %v5826
      %v5839 = vmin.f32 %v5835, %v5827
      %v5840 = vmin.f32 %v5836, %v5837
      %v5841 = vmin.f32 %v5838, %v5839
      %v5842 = vmin.f32 %v5840, %v5841
      %v5843 = vrot.slane %v5842, 4
      %v5844 = vmin.f32 %v5842, %v5843
      %v5845 = vrot.slane %v5844, 2
      %v5846 = vmin.f32 %v5844, %v5845
      %v5847 = vrot.slane %v5846, 1
      %v5848 = vmin.f32 %v5846, %v5847
      %vm5849 = vcmp.eq.f32.partialorder %v5812, %v5848
      %vm5850 = vcmp.eq.f32.partialorder %v5813, %v5848
      %vm5851 = vcmp.eq.f32.partialorder %v5814, %v5848
      %vm5852 = vcmp.eq.f32.partialorder %v5815, %v5848
      %vm5853 = vcmp.eq.f32.partialorder %v5816, %v5848
      %vm5854 = vcmp.eq.f32.partialorder %v5817, %v5848
      %vm5855 = vcmp.eq.f32.partialorder %v5818, %v5848
      %vm5856 = vcmp.eq.f32.partialorder %v5819, %v5848
      %vm5857 = vcmp.eq.f32.partialorder %v5820, %v5848
      %vm5858 = vcmp.eq.f32.partialorder %v5821, %v5848
      %vm5859 = vcmp.eq.f32.partialorder %v5822, %v5848
      %vm5860 = vcmp.eq.f32.partialorder %v5823, %v5848
      %vm5861 = vcmp.eq.f32.partialorder %v5824, %v5848
      %vm5862 = vcmp.eq.f32.partialorder %v5825, %v5848
      %vm5863 = vcmp.eq.f32.partialorder %v5826, %v5848
      %vm5864 = vcmp.eq.f32.partialorder %v5827, %v5848
      %v5865 = vsel %vm5849, %v177, 128.0
      %v5866 = vsel %vm5850, %v178, 128.0
      %v5867 = vsel %vm5851, %v179, 128.0
      %v5868 = vsel %vm5852, %v180, 128.0
      %v5869 = vsel %vm5853, %v181, 128.0
      %v5870 = vsel %vm5854, %v182, 128.0
      %v5871 = vsel %vm5855, %v183, 128.0
      %v5872 = vsel %vm5856, %v184, 128.0
      %v5873 = vsel %vm5857, %v185, 128.0
      %v5874 = vsel %vm5858, %v186, 128.0
      %v5875 = vsel %vm5859, %v187, 128.0
      %v5876 = vsel %vm5860, %v188, 128.0
      %v5877 = vsel %vm5861, %v189, 128.0
      %v5878 = vsel %vm5862, %v190, 128.0
      %v5879 = vsel %vm5863, %v191, 128.0
      %v5880 = vsel %vm5864, %v192, 128.0
      %v5881 = vmin.f32 %v5865, %v5869
      %v5882 = vmin.f32 %v5866, %v5870
      %v5883 = vmin.f32 %v5867, %v5871
      %v5884 = vmin.f32 %v5868, %v5872
      %v5885 = vmin.f32 %v5881, %v5873
      %v5886 = vmin.f32 %v5882, %v5874
      %v5887 = vmin.f32 %v5883, %v5875
      %v5888 = vmin.f32 %v5884, %v5876
      %v5889 = vmin.f32 %v5885, %v5877
      %v5890 = vmin.f32 %v5886, %v5878
      %v5891 = vmin.f32 %v5887, %v5879
      %v5892 = vmin.f32 %v5888, %v5880
      %v5893 = vmin.f32 %v5889, %v5890
      %v5894 = vmin.f32 %v5891, %v5892
      %v5895 = vmin.f32 %v5893, %v5894
      %v5896 = vrot.slane %v5895, 4
      %v5897 = vmin.f32 %v5895, %v5896
      %v5898 = vrot.slane %v5897, 2
      %v5899 = vmin.f32 %v5897, %v5898
      %v5900 = vrot.slane %v5899, 1
      %v5901 = vmin.f32 %v5899, %v5900
      %vm5902 = vcmp.eq.f32.partialorder %v177, %v5901
      %vm5903 = vcmp.eq.f32.partialorder %v178, %v5901
      %vm5904 = vcmp.eq.f32.partialorder %v179, %v5901
      %vm5905 = vcmp.eq.f32.partialorder %v180, %v5901
      %vm5906 = vcmp.eq.f32.partialorder %v181, %v5901
      %vm5907 = vcmp.eq.f32.partialorder %v182, %v5901
      %vm5908 = vcmp.eq.f32.partialorder %v183, %v5901
      %vm5909 = vcmp.eq.f32.partialorder %v184, %v5901
      %vm5910 = vcmp.eq.f32.partialorder %v185, %v5901
      %vm5911 = vcmp.eq.f32.partialorder %v186, %v5901
      %vm5912 = vcmp.eq.f32.partialorder %v187, %v5901
      %vm5913 = vcmp.eq.f32.partialorder %v188, %v5901
      %vm5914 = vcmp.eq.f32.partialorder %v189, %v5901
      %vm5915 = vcmp.eq.f32.partialorder %v190, %v5901
      %vm5916 = vcmp.eq.f32.partialorder %v191, %v5901
      %vm5917 = vcmp.eq.f32.partialorder %v192, %v5901
      %v5918 = vsel %vm5902, 1, 0
      %v5919 = vsel %vm5903, 1, 0
      %v5920 = vsel %vm5904, 1, 0
      %v5921 = vsel %vm5905, 1, 0
      %v5922 = vsel %vm5906, 1, 0
      %v5923 = vsel %vm5907, 1, 0
      %v5924 = vsel %vm5908, 1, 0
      %v5925 = vsel %vm5909, 1, 0
      %v5926 = vsel %vm5910, 1, 0
      %v5927 = vsel %vm5911, 1, 0
      %v5928 = vsel %vm5912, 1, 0
      %v5929 = vsel %vm5913, 1, 0
      %v5930 = vsel %vm5914, 1, 0
      %v5931 = vsel %vm5915, 1, 0
      %v5932 = vsel %vm5916, 1, 0
      %v5933 = vsel %vm5917, 1, 0
      %v5934 = vcvt.s32.f32 %v5918
      %v5935 = vcvt.s32.f32 %v5919
      %v5936 = vcvt.s32.f32 %v5920
      %v5937 = vcvt.s32.f32 %v5921
      %v5938 = vcvt.s32.f32 %v5922
      %v5939 = vcvt.s32.f32 %v5923
      %v5940 = vcvt.s32.f32 %v5924
      %v5941 = vcvt.s32.f32 %v5925
      %v5942 = vcvt.s32.f32 %v5926
      %v5943 = vcvt.s32.f32 %v5927
      %v5944 = vcvt.s32.f32 %v5928
      %v5945 = vcvt.s32.f32 %v5929
      %v5946 = vcvt.s32.f32 %v5930
      %v5947 = vcvt.s32.f32 %v5931
      %v5948 = vcvt.s32.f32 %v5932
      %v5949 = vcvt.s32.f32 %v5933
      %v5950 = vadd.f32 %v5796, %v5934
      %v5951 = vadd.f32 %v5797, %v5935
      %v5952 = vadd.f32 %v5798, %v5936
      %v5953 = vadd.f32 %v5799, %v5937
      %v5954 = vadd.f32 %v5800, %v5938
      %v5955 = vadd.f32 %v5801, %v5939
      %v5956 = vadd.f32 %v5802, %v5940
      %v5957 = vadd.f32 %v5803, %v5941
      %v5958 = vadd.f32 %v5804, %v5942
      %v5959 = vadd.f32 %v5805, %v5943
      %v5960 = vadd.f32 %v5806, %v5944
      %v5961 = vadd.f32 %v5807, %v5945
      %v5962 = vadd.f32 %v5808, %v5946
      %v5963 = vadd.f32 %v5809, %v5947
      %v5964 = vadd.f32 %v5810, %v5948
      %v5965 = vadd.f32 %v5811, %v5949
      %v5966 = vsel %vm5902, 1e+30, %v5812
      %v5967 = vsel %vm5903, 1e+30, %v5813
      %v5968 = vsel %vm5904, 1e+30, %v5814
      %v5969 = vsel %vm5905, 1e+30, %v5815
      %v5970 = vsel %vm5906, 1e+30, %v5816
      %v5971 = vsel %vm5907, 1e+30, %v5817
      %v5972 = vsel %vm5908, 1e+30, %v5818
      %v5973 = vsel %vm5909, 1e+30, %v5819
      %v5974 = vsel %vm5910, 1e+30, %v5820
      %v5975 = vsel %vm5911, 1e+30, %v5821
      %v5976 = vsel %vm5912, 1e+30, %v5822
      %v5977 = vsel %vm5913, 1e+30, %v5823
      %v5978 = vsel %vm5914, 1e+30, %v5824
      %v5979 = vsel %vm5915, 1e+30, %v5825
      %v5980 = vsel %vm5916, 1e+30, %v5826
      %v5981 = vsel %vm5917, 1e+30, %v5827
      %v5982 = vmin.f32 %v5966, %v5970
      %v5983 = vmin.f32 %v5967, %v5971
      %v5984 = vmin.f32 %v5968, %v5972
      %v5985 = vmin.f32 %v5969, %v5973
      %v5986 = vmin.f32 %v5982, %v5974
      %v5987 = vmin.f32 %v5983, %v5975
      %v5988 = vmin.f32 %v5984, %v5976
      %v5989 = vmin.f32 %v5985, %v5977
      %v5990 = vmin.f32 %v5986, %v5978
      %v5991 = vmin.f32 %v5987, %v5979
      %v5992 = vmin.f32 %v5988, %v5980
      %v5993 = vmin.f32 %v5989, %v5981
      %v5994 = vmin.f32 %v5990, %v5991
      %v5995 = vmin.f32 %v5992, %v5993
      %v5996 = vmin.f32 %v5994, %v5995
      %v5997 = vrot.slane %v5996, 4
      %v5998 = vmin.f32 %v5996, %v5997
      %v5999 = vrot.slane %v5998, 2
      %v6000 = vmin.f32 %v5998, %v5999
      %v6001 = vrot.slane %v6000, 1
      %v6002 = vmin.f32 %v6000, %v6001
      %vm6003 = vcmp.eq.f32.partialorder %v5966, %v6002
      %vm6004 = vcmp.eq.f32.partialorder %v5967, %v6002
      %vm6005 = vcmp.eq.f32.partialorder %v5968, %v6002
      %vm6006 = vcmp.eq.f32.partialorder %v5969, %v6002
      %vm6007 = vcmp.eq.f32.partialorder %v5970, %v6002
      %vm6008 = vcmp.eq.f32.partialorder %v5971, %v6002
      %vm6009 = vcmp.eq.f32.partialorder %v5972, %v6002
      %vm6010 = vcmp.eq.f32.partialorder %v5973, %v6002
      %vm6011 = vcmp.eq.f32.partialorder %v5974, %v6002
      %vm6012 = vcmp.eq.f32.partialorder %v5975, %v6002
      %vm6013 = vcmp.eq.f32.partialorder %v5976, %v6002
      %vm6014 = vcmp.eq.f32.partialorder %v5977, %v6002
      %vm6015 = vcmp.eq.f32.partialorder %v5978, %v6002
      %vm6016 = vcmp.eq.f32.partialorder %v5979, %v6002
      %vm6017 = vcmp.eq.f32.partialorder %v5980, %v6002
      %vm6018 = vcmp.eq.f32.partialorder %v5981, %v6002
      %v6019 = vsel %vm6003, %v177, 128.0
      %v6020 = vsel %vm6004, %v178, 128.0
      %v6021 = vsel %vm6005, %v179, 128.0
      %v6022 = vsel %vm6006, %v180, 128.0
      %v6023 = vsel %vm6007, %v181, 128.0
      %v6024 = vsel %vm6008, %v182, 128.0
      %v6025 = vsel %vm6009, %v183, 128.0
      %v6026 = vsel %vm6010, %v184, 128.0
      %v6027 = vsel %vm6011, %v185, 128.0
      %v6028 = vsel %vm6012, %v186, 128.0
      %v6029 = vsel %vm6013, %v187, 128.0
      %v6030 = vsel %vm6014, %v188, 128.0
      %v6031 = vsel %vm6015, %v189, 128.0
      %v6032 = vsel %vm6016, %v190, 128.0
      %v6033 = vsel %vm6017, %v191, 128.0
      %v6034 = vsel %vm6018, %v192, 128.0
      %v6035 = vmin.f32 %v6019, %v6023
      %v6036 = vmin.f32 %v6020, %v6024
      %v6037 = vmin.f32 %v6021, %v6025
      %v6038 = vmin.f32 %v6022, %v6026
      %v6039 = vmin.f32 %v6035, %v6027
      %v6040 = vmin.f32 %v6036, %v6028
      %v6041 = vmin.f32 %v6037, %v6029
      %v6042 = vmin.f32 %v6038, %v6030
      %v6043 = vmin.f32 %v6039, %v6031
      %v6044 = vmin.f32 %v6040, %v6032
      %v6045 = vmin.f32 %v6041, %v6033
      %v6046 = vmin.f32 %v6042, %v6034
      %v6047 = vmin.f32 %v6043, %v6044
      %v6048 = vmin.f32 %v6045, %v6046
      %v6049 = vmin.f32 %v6047, %v6048
      %v6050 = vrot.slane %v6049, 4
      %v6051 = vmin.f32 %v6049, %v6050
      %v6052 = vrot.slane %v6051, 2
      %v6053 = vmin.f32 %v6051, %v6052
      %v6054 = vrot.slane %v6053, 1
      %v6055 = vmin.f32 %v6053, %v6054
      %vm6056 = vcmp.eq.f32.partialorder %v177, %v6055
      %vm6057 = vcmp.eq.f32.partialorder %v178, %v6055
      %vm6058 = vcmp.eq.f32.partialorder %v179, %v6055
      %vm6059 = vcmp.eq.f32.partialorder %v180, %v6055
      %vm6060 = vcmp.eq.f32.partialorder %v181, %v6055
      %vm6061 = vcmp.eq.f32.partialorder %v182, %v6055
      %vm6062 = vcmp.eq.f32.partialorder %v183, %v6055
      %vm6063 = vcmp.eq.f32.partialorder %v184, %v6055
      %vm6064 = vcmp.eq.f32.partialorder %v185, %v6055
      %vm6065 = vcmp.eq.f32.partialorder %v186, %v6055
      %vm6066 = vcmp.eq.f32.partialorder %v187, %v6055
      %vm6067 = vcmp.eq.f32.partialorder %v188, %v6055
      %vm6068 = vcmp.eq.f32.partialorder %v189, %v6055
      %vm6069 = vcmp.eq.f32.partialorder %v190, %v6055
      %vm6070 = vcmp.eq.f32.partialorder %v191, %v6055
      %vm6071 = vcmp.eq.f32.partialorder %v192, %v6055
      %v6072 = vsel %vm6056, 1, 0
      %v6073 = vsel %vm6057, 1, 0
      %v6074 = vsel %vm6058, 1, 0
      %v6075 = vsel %vm6059, 1, 0
      %v6076 = vsel %vm6060, 1, 0
      %v6077 = vsel %vm6061, 1, 0
      %v6078 = vsel %vm6062, 1, 0
      %v6079 = vsel %vm6063, 1, 0
      %v6080 = vsel %vm6064, 1, 0
      %v6081 = vsel %vm6065, 1, 0
      %v6082 = vsel %vm6066, 1, 0
      %v6083 = vsel %vm6067, 1, 0
      %v6084 = vsel %vm6068, 1, 0
      %v6085 = vsel %vm6069, 1, 0
      %v6086 = vsel %vm6070, 1, 0
      %v6087 = vsel %vm6071, 1, 0
      %v6088 = vcvt.s32.f32 %v6072
      %v6089 = vcvt.s32.f32 %v6073
      %v6090 = vcvt.s32.f32 %v6074
      %v6091 = vcvt.s32.f32 %v6075
      %v6092 = vcvt.s32.f32 %v6076
      %v6093 = vcvt.s32.f32 %v6077
      %v6094 = vcvt.s32.f32 %v6078
      %v6095 = vcvt.s32.f32 %v6079
      %v6096 = vcvt.s32.f32 %v6080
      %v6097 = vcvt.s32.f32 %v6081
      %v6098 = vcvt.s32.f32 %v6082
      %v6099 = vcvt.s32.f32 %v6083
      %v6100 = vcvt.s32.f32 %v6084
      %v6101 = vcvt.s32.f32 %v6085
      %v6102 = vcvt.s32.f32 %v6086
      %v6103 = vcvt.s32.f32 %v6087
      %v6104 = vadd.f32 %v5950, %v6088
      %v6105 = vadd.f32 %v5951, %v6089
      %v6106 = vadd.f32 %v5952, %v6090
      %v6107 = vadd.f32 %v5953, %v6091
      %v6108 = vadd.f32 %v5954, %v6092
      %v6109 = vadd.f32 %v5955, %v6093
      %v6110 = vadd.f32 %v5956, %v6094
      %v6111 = vadd.f32 %v5957, %v6095
      %v6112 = vadd.f32 %v5958, %v6096
      %v6113 = vadd.f32 %v5959, %v6097
      %v6114 = vadd.f32 %v5960, %v6098
      %v6115 = vadd.f32 %v5961, %v6099
      %v6116 = vadd.f32 %v5962, %v6100
      %v6117 = vadd.f32 %v5963, %v6101
      %v6118 = vadd.f32 %v5964, %v6102
      %v6119 = vadd.f32 %v5965, %v6103
      %v6120 = vsel %vm6056, 1e+30, %v5966
      %v6121 = vsel %vm6057, 1e+30, %v5967
      %v6122 = vsel %vm6058, 1e+30, %v5968
      %v6123 = vsel %vm6059, 1e+30, %v5969
      %v6124 = vsel %vm6060, 1e+30, %v5970
      %v6125 = vsel %vm6061, 1e+30, %v5971
      %v6126 = vsel %vm6062, 1e+30, %v5972
      %v6127 = vsel %vm6063, 1e+30, %v5973
      %v6128 = vsel %vm6064, 1e+30, %v5974
      %v6129 = vsel %vm6065, 1e+30, %v5975
      %v6130 = vsel %vm6066, 1e+30, %v5976
      %v6131 = vsel %vm6067, 1e+30, %v5977
      %v6132 = vsel %vm6068, 1e+30, %v5978
      %v6133 = vsel %vm6069, 1e+30, %v5979
      %v6134 = vsel %vm6070, 1e+30, %v5980
      %v6135 = vsel %vm6071, 1e+30, %v5981
      %v6136 = vmin.f32 %v6120, %v6124
      %v6137 = vmin.f32 %v6121, %v6125
      %v6138 = vmin.f32 %v6122, %v6126
      %v6139 = vmin.f32 %v6123, %v6127
      %v6140 = vmin.f32 %v6136, %v6128
      %v6141 = vmin.f32 %v6137, %v6129
      %v6142 = vmin.f32 %v6138, %v6130
      %v6143 = vmin.f32 %v6139, %v6131
      %v6144 = vmin.f32 %v6140, %v6132
      %v6145 = vmin.f32 %v6141, %v6133
      %v6146 = vmin.f32 %v6142, %v6134
      %v6147 = vmin.f32 %v6143, %v6135
      %v6148 = vmin.f32 %v6144, %v6145
      %v6149 = vmin.f32 %v6146, %v6147
      %v6150 = vmin.f32 %v6148, %v6149
      %v6151 = vrot.slane %v6150, 4
      %v6152 = vmin.f32 %v6150, %v6151
      %v6153 = vrot.slane %v6152, 2
      %v6154 = vmin.f32 %v6152, %v6153
      %v6155 = vrot.slane %v6154, 1
      %v6156 = vmin.f32 %v6154, %v6155
      %vm6157 = vcmp.eq.f32.partialorder %v6120, %v6156
      %vm6158 = vcmp.eq.f32.partialorder %v6121, %v6156
      %vm6159 = vcmp.eq.f32.partialorder %v6122, %v6156
      %vm6160 = vcmp.eq.f32.partialorder %v6123, %v6156
      %vm6161 = vcmp.eq.f32.partialorder %v6124, %v6156
      %vm6162 = vcmp.eq.f32.partialorder %v6125, %v6156
      %vm6163 = vcmp.eq.f32.partialorder %v6126, %v6156
      %vm6164 = vcmp.eq.f32.partialorder %v6127, %v6156
      %vm6165 = vcmp.eq.f32.partialorder %v6128, %v6156
      %vm6166 = vcmp.eq.f32.partialorder %v6129, %v6156
      %vm6167 = vcmp.eq.f32.partialorder %v6130, %v6156
      %vm6168 = vcmp.eq.f32.partialorder %v6131, %v6156
      %vm6169 = vcmp.eq.f32.partialorder %v6132, %v6156
      %vm6170 = vcmp.eq.f32.partialorder %v6133, %v6156
      %vm6171 = vcmp.eq.f32.partialorder %v6134, %v6156
      %vm6172 = vcmp.eq.f32.partialorder %v6135, %v6156
      %v6173 = vsel %vm6157, %v177, 128.0
      %v6174 = vsel %vm6158, %v178, 128.0
      %v6175 = vsel %vm6159, %v179, 128.0
      %v6176 = vsel %vm6160, %v180, 128.0
      %v6177 = vsel %vm6161, %v181, 128.0
      %v6178 = vsel %vm6162, %v182, 128.0
      %v6179 = vsel %vm6163, %v183, 128.0
      %v6180 = vsel %vm6164, %v184, 128.0
      %v6181 = vsel %vm6165, %v185, 128.0
      %v6182 = vsel %vm6166, %v186, 128.0
      %v6183 = vsel %vm6167, %v187, 128.0
      %v6184 = vsel %vm6168, %v188, 128.0
      %v6185 = vsel %vm6169, %v189, 128.0
      %v6186 = vsel %vm6170, %v190, 128.0
      %v6187 = vsel %vm6171, %v191, 128.0
      %v6188 = vsel %vm6172, %v192, 128.0
      %v6189 = vmin.f32 %v6173, %v6177
      %v6190 = vmin.f32 %v6174, %v6178
      %v6191 = vmin.f32 %v6175, %v6179
      %v6192 = vmin.f32 %v6176, %v6180
      %v6193 = vmin.f32 %v6189, %v6181
      %v6194 = vmin.f32 %v6190, %v6182
      %v6195 = vmin.f32 %v6191, %v6183
      %v6196 = vmin.f32 %v6192, %v6184
      %v6197 = vmin.f32 %v6193, %v6185
      %v6198 = vmin.f32 %v6194, %v6186
      %v6199 = vmin.f32 %v6195, %v6187
      %v6200 = vmin.f32 %v6196, %v6188
      %v6201 = vmin.f32 %v6197, %v6198
      %v6202 = vmin.f32 %v6199, %v6200
      %v6203 = vmin.f32 %v6201, %v6202
      %v6204 = vrot.slane %v6203, 4
      %v6205 = vmin.f32 %v6203, %v6204
      %v6206 = vrot.slane %v6205, 2
      %v6207 = vmin.f32 %v6205, %v6206
      %v6208 = vrot.slane %v6207, 1
      %v6209 = vmin.f32 %v6207, %v6208
      %vm6210 = vcmp.eq.f32.partialorder %v177, %v6209
      %vm6211 = vcmp.eq.f32.partialorder %v178, %v6209
      %vm6212 = vcmp.eq.f32.partialorder %v179, %v6209
      %vm6213 = vcmp.eq.f32.partialorder %v180, %v6209
      %vm6214 = vcmp.eq.f32.partialorder %v181, %v6209
      %vm6215 = vcmp.eq.f32.partialorder %v182, %v6209
      %vm6216 = vcmp.eq.f32.partialorder %v183, %v6209
      %vm6217 = vcmp.eq.f32.partialorder %v184, %v6209
      %vm6218 = vcmp.eq.f32.partialorder %v185, %v6209
      %vm6219 = vcmp.eq.f32.partialorder %v186, %v6209
      %vm6220 = vcmp.eq.f32.partialorder %v187, %v6209
      %vm6221 = vcmp.eq.f32.partialorder %v188, %v6209
      %vm6222 = vcmp.eq.f32.partialorder %v189, %v6209
      %vm6223 = vcmp.eq.f32.partialorder %v190, %v6209
      %vm6224 = vcmp.eq.f32.partialorder %v191, %v6209
      %vm6225 = vcmp.eq.f32.partialorder %v192, %v6209
      %v6226 = vsel %vm6210, 1, 0
      %v6227 = vsel %vm6211, 1, 0
      %v6228 = vsel %vm6212, 1, 0
      %v6229 = vsel %vm6213, 1, 0
      %v6230 = vsel %vm6214, 1, 0
      %v6231 = vsel %vm6215, 1, 0
      %v6232 = vsel %vm6216, 1, 0
      %v6233 = vsel %vm6217, 1, 0
      %v6234 = vsel %vm6218, 1, 0
      %v6235 = vsel %vm6219, 1, 0
      %v6236 = vsel %vm6220, 1, 0
      %v6237 = vsel %vm6221, 1, 0
      %v6238 = vsel %vm6222, 1, 0
      %v6239 = vsel %vm6223, 1, 0
      %v6240 = vsel %vm6224, 1, 0
      %v6241 = vsel %vm6225, 1, 0
      %v6242 = vcvt.s32.f32 %v6226
      %v6243 = vcvt.s32.f32 %v6227
      %v6244 = vcvt.s32.f32 %v6228
      %v6245 = vcvt.s32.f32 %v6229
      %v6246 = vcvt.s32.f32 %v6230
      %v6247 = vcvt.s32.f32 %v6231
      %v6248 = vcvt.s32.f32 %v6232
      %v6249 = vcvt.s32.f32 %v6233
      %v6250 = vcvt.s32.f32 %v6234
      %v6251 = vcvt.s32.f32 %v6235
      %v6252 = vcvt.s32.f32 %v6236
      %v6253 = vcvt.s32.f32 %v6237
      %v6254 = vcvt.s32.f32 %v6238
      %v6255 = vcvt.s32.f32 %v6239
      %v6256 = vcvt.s32.f32 %v6240
      %v6257 = vcvt.s32.f32 %v6241
      %v6258 = vadd.f32 %v6104, %v6242
      %v6259 = vadd.f32 %v6105, %v6243
      %v6260 = vadd.f32 %v6106, %v6244
      %v6261 = vadd.f32 %v6107, %v6245
      %v6262 = vadd.f32 %v6108, %v6246
      %v6263 = vadd.f32 %v6109, %v6247
      %v6264 = vadd.f32 %v6110, %v6248
      %v6265 = vadd.f32 %v6111, %v6249
      %v6266 = vadd.f32 %v6112, %v6250
      %v6267 = vadd.f32 %v6113, %v6251
      %v6268 = vadd.f32 %v6114, %v6252
      %v6269 = vadd.f32 %v6115, %v6253
      %v6270 = vadd.f32 %v6116, %v6254
      %v6271 = vadd.f32 %v6117, %v6255
      %v6272 = vadd.f32 %v6118, %v6256
      %v6273 = vadd.f32 %v6119, %v6257
      %v6274 = vsel %vm6210, 1e+30, %v6120
      %v6275 = vsel %vm6211, 1e+30, %v6121
      %v6276 = vsel %vm6212, 1e+30, %v6122
      %v6277 = vsel %vm6213, 1e+30, %v6123
      %v6278 = vsel %vm6214, 1e+30, %v6124
      %v6279 = vsel %vm6215, 1e+30, %v6125
      %v6280 = vsel %vm6216, 1e+30, %v6126
      %v6281 = vsel %vm6217, 1e+30, %v6127
      %v6282 = vsel %vm6218, 1e+30, %v6128
      %v6283 = vsel %vm6219, 1e+30, %v6129
      %v6284 = vsel %vm6220, 1e+30, %v6130
      %v6285 = vsel %vm6221, 1e+30, %v6131
      %v6286 = vsel %vm6222, 1e+30, %v6132
      %v6287 = vsel %vm6223, 1e+30, %v6133
      %v6288 = vsel %vm6224, 1e+30, %v6134
      %v6289 = vsel %vm6225, 1e+30, %v6135
      %v6290 = vmin.f32 %v6274, %v6278
      %v6291 = vmin.f32 %v6275, %v6279
      %v6292 = vmin.f32 %v6276, %v6280
      %v6293 = vmin.f32 %v6277, %v6281
      %v6294 = vmin.f32 %v6290, %v6282
      %v6295 = vmin.f32 %v6291, %v6283
      %v6296 = vmin.f32 %v6292, %v6284
      %v6297 = vmin.f32 %v6293, %v6285
      %v6298 = vmin.f32 %v6294, %v6286
      %v6299 = vmin.f32 %v6295, %v6287
      %v6300 = vmin.f32 %v6296, %v6288
      %v6301 = vmin.f32 %v6297, %v6289
      %v6302 = vmin.f32 %v6298, %v6299
      %v6303 = vmin.f32 %v6300, %v6301
      %v6304 = vmin.f32 %v6302, %v6303
      %v6305 = vrot.slane %v6304, 4
      %v6306 = vmin.f32 %v6304, %v6305
      %v6307 = vrot.slane %v6306, 2
      %v6308 = vmin.f32 %v6306, %v6307
      %v6309 = vrot.slane %v6308, 1
      %v6310 = vmin.f32 %v6308, %v6309
      %vm6311 = vcmp.eq.f32.partialorder %v6274, %v6310
      %vm6312 = vcmp.eq.f32.partialorder %v6275, %v6310
      %vm6313 = vcmp.eq.f32.partialorder %v6276, %v6310
      %vm6314 = vcmp.eq.f32.partialorder %v6277, %v6310
      %vm6315 = vcmp.eq.f32.partialorder %v6278, %v6310
      %vm6316 = vcmp.eq.f32.partialorder %v6279, %v6310
      %vm6317 = vcmp.eq.f32.partialorder %v6280, %v6310
      %vm6318 = vcmp.eq.f32.partialorder %v6281, %v6310
      %vm6319 = vcmp.eq.f32.partialorder %v6282, %v6310
      %vm6320 = vcmp.eq.f32.partialorder %v6283, %v6310
      %vm6321 = vcmp.eq.f32.partialorder %v6284, %v6310
      %vm6322 = vcmp.eq.f32.partialorder %v6285, %v6310
      %vm6323 = vcmp.eq.f32.partialorder %v6286, %v6310
      %vm6324 = vcmp.eq.f32.partialorder %v6287, %v6310
      %vm6325 = vcmp.eq.f32.partialorder %v6288, %v6310
      %vm6326 = vcmp.eq.f32.partialorder %v6289, %v6310
      %v6327 = vsel %vm6311, %v177, 128.0
      %v6328 = vsel %vm6312, %v178, 128.0
      %v6329 = vsel %vm6313, %v179, 128.0
      %v6330 = vsel %vm6314, %v180, 128.0
      %v6331 = vsel %vm6315, %v181, 128.0
      %v6332 = vsel %vm6316, %v182, 128.0
      %v6333 = vsel %vm6317, %v183, 128.0
      %v6334 = vsel %vm6318, %v184, 128.0
      %v6335 = vsel %vm6319, %v185, 128.0
      %v6336 = vsel %vm6320, %v186, 128.0
      %v6337 = vsel %vm6321, %v187, 128.0
      %v6338 = vsel %vm6322, %v188, 128.0
      %v6339 = vsel %vm6323, %v189, 128.0
      %v6340 = vsel %vm6324, %v190, 128.0
      %v6341 = vsel %vm6325, %v191, 128.0
      %v6342 = vsel %vm6326, %v192, 128.0
      %v6343 = vmin.f32 %v6327, %v6331
      %v6344 = vmin.f32 %v6328, %v6332
      %v6345 = vmin.f32 %v6329, %v6333
      %v6346 = vmin.f32 %v6330, %v6334
      %v6347 = vmin.f32 %v6343, %v6335
      %v6348 = vmin.f32 %v6344, %v6336
      %v6349 = vmin.f32 %v6345, %v6337
      %v6350 = vmin.f32 %v6346, %v6338
      %v6351 = vmin.f32 %v6347, %v6339
      %v6352 = vmin.f32 %v6348, %v6340
      %v6353 = vmin.f32 %v6349, %v6341
      %v6354 = vmin.f32 %v6350, %v6342
      %v6355 = vmin.f32 %v6351, %v6352
      %v6356 = vmin.f32 %v6353, %v6354
      %v6357 = vmin.f32 %v6355, %v6356
      %v6358 = vrot.slane %v6357, 4
      %v6359 = vmin.f32 %v6357, %v6358
      %v6360 = vrot.slane %v6359, 2
      %v6361 = vmin.f32 %v6359, %v6360
      %v6362 = vrot.slane %v6361, 1
      %v6363 = vmin.f32 %v6361, %v6362
      %vm6364 = vcmp.eq.f32.partialorder %v177, %v6363
      %vm6365 = vcmp.eq.f32.partialorder %v178, %v6363
      %vm6366 = vcmp.eq.f32.partialorder %v179, %v6363
      %vm6367 = vcmp.eq.f32.partialorder %v180, %v6363
      %vm6368 = vcmp.eq.f32.partialorder %v181, %v6363
      %vm6369 = vcmp.eq.f32.partialorder %v182, %v6363
      %vm6370 = vcmp.eq.f32.partialorder %v183, %v6363
      %vm6371 = vcmp.eq.f32.partialorder %v184, %v6363
      %vm6372 = vcmp.eq.f32.partialorder %v185, %v6363
      %vm6373 = vcmp.eq.f32.partialorder %v186, %v6363
      %vm6374 = vcmp.eq.f32.partialorder %v187, %v6363
      %vm6375 = vcmp.eq.f32.partialorder %v188, %v6363
      %vm6376 = vcmp.eq.f32.partialorder %v189, %v6363
      %vm6377 = vcmp.eq.f32.partialorder %v190, %v6363
      %vm6378 = vcmp.eq.f32.partialorder %v191, %v6363
      %vm6379 = vcmp.eq.f32.partialorder %v192, %v6363
      %v6380 = vsel %vm6364, 1, 0
      %v6381 = vsel %vm6365, 1, 0
      %v6382 = vsel %vm6366, 1, 0
      %v6383 = vsel %vm6367, 1, 0
      %v6384 = vsel %vm6368, 1, 0
      %v6385 = vsel %vm6369, 1, 0
      %v6386 = vsel %vm6370, 1, 0
      %v6387 = vsel %vm6371, 1, 0
      %v6388 = vsel %vm6372, 1, 0
      %v6389 = vsel %vm6373, 1, 0
      %v6390 = vsel %vm6374, 1, 0
      %v6391 = vsel %vm6375, 1, 0
      %v6392 = vsel %vm6376, 1, 0
      %v6393 = vsel %vm6377, 1, 0
      %v6394 = vsel %vm6378, 1, 0
      %v6395 = vsel %vm6379, 1, 0
      %v6396 = vcvt.s32.f32 %v6380
      %v6397 = vcvt.s32.f32 %v6381
      %v6398 = vcvt.s32.f32 %v6382
      %v6399 = vcvt.s32.f32 %v6383
      %v6400 = vcvt.s32.f32 %v6384
      %v6401 = vcvt.s32.f32 %v6385
      %v6402 = vcvt.s32.f32 %v6386
      %v6403 = vcvt.s32.f32 %v6387
      %v6404 = vcvt.s32.f32 %v6388
      %v6405 = vcvt.s32.f32 %v6389
      %v6406 = vcvt.s32.f32 %v6390
      %v6407 = vcvt.s32.f32 %v6391
      %v6408 = vcvt.s32.f32 %v6392
      %v6409 = vcvt.s32.f32 %v6393
      %v6410 = vcvt.s32.f32 %v6394
      %v6411 = vcvt.s32.f32 %v6395
      %v6412 = vadd.f32 %v6258, %v6396
      %v6413 = vadd.f32 %v6259, %v6397
      %v6414 = vadd.f32 %v6260, %v6398
      %v6415 = vadd.f32 %v6261, %v6399
      %v6416 = vadd.f32 %v6262, %v6400
      %v6417 = vadd.f32 %v6263, %v6401
      %v6418 = vadd.f32 %v6264, %v6402
      %v6419 = vadd.f32 %v6265, %v6403
      %v6420 = vadd.f32 %v6266, %v6404
      %v6421 = vadd.f32 %v6267, %v6405
      %v6422 = vadd.f32 %v6268, %v6406
      %v6423 = vadd.f32 %v6269, %v6407
      %v6424 = vadd.f32 %v6270, %v6408
      %v6425 = vadd.f32 %v6271, %v6409
      %v6426 = vadd.f32 %v6272, %v6410
      %v6427 = vadd.f32 %v6273, %v6411
      %v6428 = vsel %vm6364, 1e+30, %v6274
      %v6429 = vsel %vm6365, 1e+30, %v6275
      %v6430 = vsel %vm6366, 1e+30, %v6276
      %v6431 = vsel %vm6367, 1e+30, %v6277
      %v6432 = vsel %vm6368, 1e+30, %v6278
      %v6433 = vsel %vm6369, 1e+30, %v6279
      %v6434 = vsel %vm6370, 1e+30, %v6280
      %v6435 = vsel %vm6371, 1e+30, %v6281
      %v6436 = vsel %vm6372, 1e+30, %v6282
      %v6437 = vsel %vm6373, 1e+30, %v6283
      %v6438 = vsel %vm6374, 1e+30, %v6284
      %v6439 = vsel %vm6375, 1e+30, %v6285
      %v6440 = vsel %vm6376, 1e+30, %v6286
      %v6441 = vsel %vm6377, 1e+30, %v6287
      %v6442 = vsel %vm6378, 1e+30, %v6288
      %v6443 = vsel %vm6379, 1e+30, %v6289
      %v6444 = vmin.f32 %v6428, %v6432
      %v6445 = vmin.f32 %v6429, %v6433
      %v6446 = vmin.f32 %v6430, %v6434
      %v6447 = vmin.f32 %v6431, %v6435
      %v6448 = vmin.f32 %v6444, %v6436
      %v6449 = vmin.f32 %v6445, %v6437
      %v6450 = vmin.f32 %v6446, %v6438
      %v6451 = vmin.f32 %v6447, %v6439
      %v6452 = vmin.f32 %v6448, %v6440
      %v6453 = vmin.f32 %v6449, %v6441
      %v6454 = vmin.f32 %v6450, %v6442
      %v6455 = vmin.f32 %v6451, %v6443
      %v6456 = vmin.f32 %v6452, %v6453
      %v6457 = vmin.f32 %v6454, %v6455
      %v6458 = vmin.f32 %v6456, %v6457
      %v6459 = vrot.slane %v6458, 4
      %v6460 = vmin.f32 %v6458, %v6459
      %v6461 = vrot.slane %v6460, 2
      %v6462 = vmin.f32 %v6460, %v6461
      %v6463 = vrot.slane %v6462, 1
      %v6464 = vmin.f32 %v6462, %v6463
      %vm6465 = vcmp.eq.f32.partialorder %v6428, %v6464
      %vm6466 = vcmp.eq.f32.partialorder %v6429, %v6464
      %vm6467 = vcmp.eq.f32.partialorder %v6430, %v6464
      %vm6468 = vcmp.eq.f32.partialorder %v6431, %v6464
      %vm6469 = vcmp.eq.f32.partialorder %v6432, %v6464
      %vm6470 = vcmp.eq.f32.partialorder %v6433, %v6464
      %vm6471 = vcmp.eq.f32.partialorder %v6434, %v6464
      %vm6472 = vcmp.eq.f32.partialorder %v6435, %v6464
      %vm6473 = vcmp.eq.f32.partialorder %v6436, %v6464
      %vm6474 = vcmp.eq.f32.partialorder %v6437, %v6464
      %vm6475 = vcmp.eq.f32.partialorder %v6438, %v6464
      %vm6476 = vcmp.eq.f32.partialorder %v6439, %v6464
      %vm6477 = vcmp.eq.f32.partialorder %v6440, %v6464
      %vm6478 = vcmp.eq.f32.partialorder %v6441, %v6464
      %vm6479 = vcmp.eq.f32.partialorder %v6442, %v6464
      %vm6480 = vcmp.eq.f32.partialorder %v6443, %v6464
      %v6481 = vsel %vm6465, %v177, 128.0
      %v6482 = vsel %vm6466, %v178, 128.0
      %v6483 = vsel %vm6467, %v179, 128.0
      %v6484 = vsel %vm6468, %v180, 128.0
      %v6485 = vsel %vm6469, %v181, 128.0
      %v6486 = vsel %vm6470, %v182, 128.0
      %v6487 = vsel %vm6471, %v183, 128.0
      %v6488 = vsel %vm6472, %v184, 128.0
      %v6489 = vsel %vm6473, %v185, 128.0
      %v6490 = vsel %vm6474, %v186, 128.0
      %v6491 = vsel %vm6475, %v187, 128.0
      %v6492 = vsel %vm6476, %v188, 128.0
      %v6493 = vsel %vm6477, %v189, 128.0
      %v6494 = vsel %vm6478, %v190, 128.0
      %v6495 = vsel %vm6479, %v191, 128.0
      %v6496 = vsel %vm6480, %v192, 128.0
      %v6497 = vmin.f32 %v6481, %v6485
      %v6498 = vmin.f32 %v6482, %v6486
      %v6499 = vmin.f32 %v6483, %v6487
      %v6500 = vmin.f32 %v6484, %v6488
      %v6501 = vmin.f32 %v6497, %v6489
      %v6502 = vmin.f32 %v6498, %v6490
      %v6503 = vmin.f32 %v6499, %v6491
      %v6504 = vmin.f32 %v6500, %v6492
      %v6505 = vmin.f32 %v6501, %v6493
      %v6506 = vmin.f32 %v6502, %v6494
      %v6507 = vmin.f32 %v6503, %v6495
      %v6508 = vmin.f32 %v6504, %v6496
      %v6509 = vmin.f32 %v6505, %v6506
      %v6510 = vmin.f32 %v6507, %v6508
      %v6511 = vmin.f32 %v6509, %v6510
      %v6512 = vrot.slane %v6511, 4
      %v6513 = vmin.f32 %v6511, %v6512
      %v6514 = vrot.slane %v6513, 2
      %v6515 = vmin.f32 %v6513, %v6514
      %v6516 = vrot.slane %v6515, 1
      %v6517 = vmin.f32 %v6515, %v6516
      %vm6518 = vcmp.eq.f32.partialorder %v177, %v6517
      %vm6519 = vcmp.eq.f32.partialorder %v178, %v6517
      %vm6520 = vcmp.eq.f32.partialorder %v179, %v6517
      %vm6521 = vcmp.eq.f32.partialorder %v180, %v6517
      %vm6522 = vcmp.eq.f32.partialorder %v181, %v6517
      %vm6523 = vcmp.eq.f32.partialorder %v182, %v6517
      %vm6524 = vcmp.eq.f32.partialorder %v183, %v6517
      %vm6525 = vcmp.eq.f32.partialorder %v184, %v6517
      %vm6526 = vcmp.eq.f32.partialorder %v185, %v6517
      %vm6527 = vcmp.eq.f32.partialorder %v186, %v6517
      %vm6528 = vcmp.eq.f32.partialorder %v187, %v6517
      %vm6529 = vcmp.eq.f32.partialorder %v188, %v6517
      %vm6530 = vcmp.eq.f32.partialorder %v189, %v6517
      %vm6531 = vcmp.eq.f32.partialorder %v190, %v6517
      %vm6532 = vcmp.eq.f32.partialorder %v191, %v6517
      %vm6533 = vcmp.eq.f32.partialorder %v192, %v6517
      %v6534 = vsel %vm6518, 1, 0
      %v6535 = vsel %vm6519, 1, 0
      %v6536 = vsel %vm6520, 1, 0
      %v6537 = vsel %vm6521, 1, 0
      %v6538 = vsel %vm6522, 1, 0
      %v6539 = vsel %vm6523, 1, 0
      %v6540 = vsel %vm6524, 1, 0
      %v6541 = vsel %vm6525, 1, 0
      %v6542 = vsel %vm6526, 1, 0
      %v6543 = vsel %vm6527, 1, 0
      %v6544 = vsel %vm6528, 1, 0
      %v6545 = vsel %vm6529, 1, 0
      %v6546 = vsel %vm6530, 1, 0
      %v6547 = vsel %vm6531, 1, 0
      %v6548 = vsel %vm6532, 1, 0
      %v6549 = vsel %vm6533, 1, 0
      %v6550 = vcvt.s32.f32 %v6534
      %v6551 = vcvt.s32.f32 %v6535
      %v6552 = vcvt.s32.f32 %v6536
      %v6553 = vcvt.s32.f32 %v6537
      %v6554 = vcvt.s32.f32 %v6538
      %v6555 = vcvt.s32.f32 %v6539
      %v6556 = vcvt.s32.f32 %v6540
      %v6557 = vcvt.s32.f32 %v6541
      %v6558 = vcvt.s32.f32 %v6542
      %v6559 = vcvt.s32.f32 %v6543
      %v6560 = vcvt.s32.f32 %v6544
      %v6561 = vcvt.s32.f32 %v6545
      %v6562 = vcvt.s32.f32 %v6546
      %v6563 = vcvt.s32.f32 %v6547
      %v6564 = vcvt.s32.f32 %v6548
      %v6565 = vcvt.s32.f32 %v6549
      %v6566 = vadd.f32 %v6412, %v6550
      %v6567 = vadd.f32 %v6413, %v6551
      %v6568 = vadd.f32 %v6414, %v6552
      %v6569 = vadd.f32 %v6415, %v6553
      %v6570 = vadd.f32 %v6416, %v6554
      %v6571 = vadd.f32 %v6417, %v6555
      %v6572 = vadd.f32 %v6418, %v6556
      %v6573 = vadd.f32 %v6419, %v6557
      %v6574 = vadd.f32 %v6420, %v6558
      %v6575 = vadd.f32 %v6421, %v6559
      %v6576 = vadd.f32 %v6422, %v6560
      %v6577 = vadd.f32 %v6423, %v6561
      %v6578 = vadd.f32 %v6424, %v6562
      %v6579 = vadd.f32 %v6425, %v6563
      %v6580 = vadd.f32 %v6426, %v6564
      %v6581 = vadd.f32 %v6427, %v6565
      %v6582 = vsel %vm6518, 1e+30, %v6428
      %v6583 = vsel %vm6519, 1e+30, %v6429
      %v6584 = vsel %vm6520, 1e+30, %v6430
      %v6585 = vsel %vm6521, 1e+30, %v6431
      %v6586 = vsel %vm6522, 1e+30, %v6432
      %v6587 = vsel %vm6523, 1e+30, %v6433
      %v6588 = vsel %vm6524, 1e+30, %v6434
      %v6589 = vsel %vm6525, 1e+30, %v6435
      %v6590 = vsel %vm6526, 1e+30, %v6436
      %v6591 = vsel %vm6527, 1e+30, %v6437
      %v6592 = vsel %vm6528, 1e+30, %v6438
      %v6593 = vsel %vm6529, 1e+30, %v6439
      %v6594 = vsel %vm6530, 1e+30, %v6440
      %v6595 = vsel %vm6531, 1e+30, %v6441
      %v6596 = vsel %vm6532, 1e+30, %v6442
      %v6597 = vsel %vm6533, 1e+30, %v6443
      %v6598 = vmin.f32 %v6582, %v6586
      %v6599 = vmin.f32 %v6583, %v6587
      %v6600 = vmin.f32 %v6584, %v6588
      %v6601 = vmin.f32 %v6585, %v6589
      %v6602 = vmin.f32 %v6598, %v6590
      %v6603 = vmin.f32 %v6599, %v6591
      %v6604 = vmin.f32 %v6600, %v6592
      %v6605 = vmin.f32 %v6601, %v6593
      %v6606 = vmin.f32 %v6602, %v6594
      %v6607 = vmin.f32 %v6603, %v6595
      %v6608 = vmin.f32 %v6604, %v6596
      %v6609 = vmin.f32 %v6605, %v6597
      %v6610 = vmin.f32 %v6606, %v6607
      %v6611 = vmin.f32 %v6608, %v6609
      %v6612 = vmin.f32 %v6610, %v6611
      %v6613 = vrot.slane %v6612, 4
      %v6614 = vmin.f32 %v6612, %v6613
      %v6615 = vrot.slane %v6614, 2
      %v6616 = vmin.f32 %v6614, %v6615
      %v6617 = vrot.slane %v6616, 1
      %v6618 = vmin.f32 %v6616, %v6617
      %vm6619 = vcmp.eq.f32.partialorder %v6582, %v6618
      %vm6620 = vcmp.eq.f32.partialorder %v6583, %v6618
      %vm6621 = vcmp.eq.f32.partialorder %v6584, %v6618
      %vm6622 = vcmp.eq.f32.partialorder %v6585, %v6618
      %vm6623 = vcmp.eq.f32.partialorder %v6586, %v6618
      %vm6624 = vcmp.eq.f32.partialorder %v6587, %v6618
      %vm6625 = vcmp.eq.f32.partialorder %v6588, %v6618
      %vm6626 = vcmp.eq.f32.partialorder %v6589, %v6618
      %vm6627 = vcmp.eq.f32.partialorder %v6590, %v6618
      %vm6628 = vcmp.eq.f32.partialorder %v6591, %v6618
      %vm6629 = vcmp.eq.f32.partialorder %v6592, %v6618
      %vm6630 = vcmp.eq.f32.partialorder %v6593, %v6618
      %vm6631 = vcmp.eq.f32.partialorder %v6594, %v6618
      %vm6632 = vcmp.eq.f32.partialorder %v6595, %v6618
      %vm6633 = vcmp.eq.f32.partialorder %v6596, %v6618
      %vm6634 = vcmp.eq.f32.partialorder %v6597, %v6618
      %v6635 = vsel %vm6619, %v177, 128.0
      %v6636 = vsel %vm6620, %v178, 128.0
      %v6637 = vsel %vm6621, %v179, 128.0
      %v6638 = vsel %vm6622, %v180, 128.0
      %v6639 = vsel %vm6623, %v181, 128.0
      %v6640 = vsel %vm6624, %v182, 128.0
      %v6641 = vsel %vm6625, %v183, 128.0
      %v6642 = vsel %vm6626, %v184, 128.0
      %v6643 = vsel %vm6627, %v185, 128.0
      %v6644 = vsel %vm6628, %v186, 128.0
      %v6645 = vsel %vm6629, %v187, 128.0
      %v6646 = vsel %vm6630, %v188, 128.0
      %v6647 = vsel %vm6631, %v189, 128.0
      %v6648 = vsel %vm6632, %v190, 128.0
      %v6649 = vsel %vm6633, %v191, 128.0
      %v6650 = vsel %vm6634, %v192, 128.0
      %v6651 = vmin.f32 %v6635, %v6639
      %v6652 = vmin.f32 %v6636, %v6640
      %v6653 = vmin.f32 %v6637, %v6641
      %v6654 = vmin.f32 %v6638, %v6642
      %v6655 = vmin.f32 %v6651, %v6643
      %v6656 = vmin.f32 %v6652, %v6644
      %v6657 = vmin.f32 %v6653, %v6645
      %v6658 = vmin.f32 %v6654, %v6646
      %v6659 = vmin.f32 %v6655, %v6647
      %v6660 = vmin.f32 %v6656, %v6648
      %v6661 = vmin.f32 %v6657, %v6649
      %v6662 = vmin.f32 %v6658, %v6650
      %v6663 = vmin.f32 %v6659, %v6660
      %v6664 = vmin.f32 %v6661, %v6662
      %v6665 = vmin.f32 %v6663, %v6664
      %v6666 = vrot.slane %v6665, 4
      %v6667 = vmin.f32 %v6665, %v6666
      %v6668 = vrot.slane %v6667, 2
      %v6669 = vmin.f32 %v6667, %v6668
      %v6670 = vrot.slane %v6669, 1
      %v6671 = vmin.f32 %v6669, %v6670
      %vm6672 = vcmp.eq.f32.partialorder %v177, %v6671
      %vm6673 = vcmp.eq.f32.partialorder %v178, %v6671
      %vm6674 = vcmp.eq.f32.partialorder %v179, %v6671
      %vm6675 = vcmp.eq.f32.partialorder %v180, %v6671
      %vm6676 = vcmp.eq.f32.partialorder %v181, %v6671
      %vm6677 = vcmp.eq.f32.partialorder %v182, %v6671
      %vm6678 = vcmp.eq.f32.partialorder %v183, %v6671
      %vm6679 = vcmp.eq.f32.partialorder %v184, %v6671
      %vm6680 = vcmp.eq.f32.partialorder %v185, %v6671
      %vm6681 = vcmp.eq.f32.partialorder %v186, %v6671
      %vm6682 = vcmp.eq.f32.partialorder %v187, %v6671
      %vm6683 = vcmp.eq.f32.partialorder %v188, %v6671
      %vm6684 = vcmp.eq.f32.partialorder %v189, %v6671
      %vm6685 = vcmp.eq.f32.partialorder %v190, %v6671
      %vm6686 = vcmp.eq.f32.partialorder %v191, %v6671
      %vm6687 = vcmp.eq.f32.partialorder %v192, %v6671
      %v6688 = vsel %vm6672, 1, 0
      %v6689 = vsel %vm6673, 1, 0
      %v6690 = vsel %vm6674, 1, 0
      %v6691 = vsel %vm6675, 1, 0
      %v6692 = vsel %vm6676, 1, 0
      %v6693 = vsel %vm6677, 1, 0
      %v6694 = vsel %vm6678, 1, 0
      %v6695 = vsel %vm6679, 1, 0
      %v6696 = vsel %vm6680, 1, 0
      %v6697 = vsel %vm6681, 1, 0
      %v6698 = vsel %vm6682, 1, 0
      %v6699 = vsel %vm6683, 1, 0
      %v6700 = vsel %vm6684, 1, 0
      %v6701 = vsel %vm6685, 1, 0
      %v6702 = vsel %vm6686, 1, 0
      %v6703 = vsel %vm6687, 1, 0
      %v6704 = vcvt.s32.f32 %v6688
      %v6705 = vcvt.s32.f32 %v6689
      %v6706 = vcvt.s32.f32 %v6690
      %v6707 = vcvt.s32.f32 %v6691
      %v6708 = vcvt.s32.f32 %v6692
      %v6709 = vcvt.s32.f32 %v6693
      %v6710 = vcvt.s32.f32 %v6694
      %v6711 = vcvt.s32.f32 %v6695
      %v6712 = vcvt.s32.f32 %v6696
      %v6713 = vcvt.s32.f32 %v6697
      %v6714 = vcvt.s32.f32 %v6698
      %v6715 = vcvt.s32.f32 %v6699
      %v6716 = vcvt.s32.f32 %v6700
      %v6717 = vcvt.s32.f32 %v6701
      %v6718 = vcvt.s32.f32 %v6702
      %v6719 = vcvt.s32.f32 %v6703
      %v6720 = vadd.f32 %v6566, %v6704
      %v6721 = vadd.f32 %v6567, %v6705
      %v6722 = vadd.f32 %v6568, %v6706
      %v6723 = vadd.f32 %v6569, %v6707
      %v6724 = vadd.f32 %v6570, %v6708
      %v6725 = vadd.f32 %v6571, %v6709
      %v6726 = vadd.f32 %v6572, %v6710
      %v6727 = vadd.f32 %v6573, %v6711
      %v6728 = vadd.f32 %v6574, %v6712
      %v6729 = vadd.f32 %v6575, %v6713
      %v6730 = vadd.f32 %v6576, %v6714
      %v6731 = vadd.f32 %v6577, %v6715
      %v6732 = vadd.f32 %v6578, %v6716
      %v6733 = vadd.f32 %v6579, %v6717
      %v6734 = vadd.f32 %v6580, %v6718
      %v6735 = vadd.f32 %v6581, %v6719
      %v6736 = vsel %vm6672, 1e+30, %v6582
      %v6737 = vsel %vm6673, 1e+30, %v6583
      %v6738 = vsel %vm6674, 1e+30, %v6584
      %v6739 = vsel %vm6675, 1e+30, %v6585
      %v6740 = vsel %vm6676, 1e+30, %v6586
      %v6741 = vsel %vm6677, 1e+30, %v6587
      %v6742 = vsel %vm6678, 1e+30, %v6588
      %v6743 = vsel %vm6679, 1e+30, %v6589
      %v6744 = vsel %vm6680, 1e+30, %v6590
      %v6745 = vsel %vm6681, 1e+30, %v6591
      %v6746 = vsel %vm6682, 1e+30, %v6592
      %v6747 = vsel %vm6683, 1e+30, %v6593
      %v6748 = vsel %vm6684, 1e+30, %v6594
      %v6749 = vsel %vm6685, 1e+30, %v6595
      %v6750 = vsel %vm6686, 1e+30, %v6596
      %v6751 = vsel %vm6687, 1e+30, %v6597
      %v6752 = vmin.f32 %v6736, %v6740
      %v6753 = vmin.f32 %v6737, %v6741
      %v6754 = vmin.f32 %v6738, %v6742
      %v6755 = vmin.f32 %v6739, %v6743
      %v6756 = vmin.f32 %v6752, %v6744
      %v6757 = vmin.f32 %v6753, %v6745
      %v6758 = vmin.f32 %v6754, %v6746
      %v6759 = vmin.f32 %v6755, %v6747
      %v6760 = vmin.f32 %v6756, %v6748
      %v6761 = vmin.f32 %v6757, %v6749
      %v6762 = vmin.f32 %v6758, %v6750
      %v6763 = vmin.f32 %v6759, %v6751
      %v6764 = vmin.f32 %v6760, %v6761
      %v6765 = vmin.f32 %v6762, %v6763
      %v6766 = vmin.f32 %v6764, %v6765
      %v6767 = vrot.slane %v6766, 4
      %v6768 = vmin.f32 %v6766, %v6767
      %v6769 = vrot.slane %v6768, 2
      %v6770 = vmin.f32 %v6768, %v6769
      %v6771 = vrot.slane %v6770, 1
      %v6772 = vmin.f32 %v6770, %v6771
      %vm6773 = vcmp.eq.f32.partialorder %v6736, %v6772
      %vm6774 = vcmp.eq.f32.partialorder %v6737, %v6772
      %vm6775 = vcmp.eq.f32.partialorder %v6738, %v6772
      %vm6776 = vcmp.eq.f32.partialorder %v6739, %v6772
      %vm6777 = vcmp.eq.f32.partialorder %v6740, %v6772
      %vm6778 = vcmp.eq.f32.partialorder %v6741, %v6772
      %vm6779 = vcmp.eq.f32.partialorder %v6742, %v6772
      %vm6780 = vcmp.eq.f32.partialorder %v6743, %v6772
      %vm6781 = vcmp.eq.f32.partialorder %v6744, %v6772
      %vm6782 = vcmp.eq.f32.partialorder %v6745, %v6772
      %vm6783 = vcmp.eq.f32.partialorder %v6746, %v6772
      %vm6784 = vcmp.eq.f32.partialorder %v6747, %v6772
      %vm6785 = vcmp.eq.f32.partialorder %v6748, %v6772
      %vm6786 = vcmp.eq.f32.partialorder %v6749, %v6772
      %vm6787 = vcmp.eq.f32.partialorder %v6750, %v6772
      %vm6788 = vcmp.eq.f32.partialorder %v6751, %v6772
      %v6789 = vsel %vm6773, %v177, 128.0
      %v6790 = vsel %vm6774, %v178, 128.0
      %v6791 = vsel %vm6775, %v179, 128.0
      %v6792 = vsel %vm6776, %v180, 128.0
      %v6793 = vsel %vm6777, %v181, 128.0
      %v6794 = vsel %vm6778, %v182, 128.0
      %v6795 = vsel %vm6779, %v183, 128.0
      %v6796 = vsel %vm6780, %v184, 128.0
      %v6797 = vsel %vm6781, %v185, 128.0
      %v6798 = vsel %vm6782, %v186, 128.0
      %v6799 = vsel %vm6783, %v187, 128.0
      %v6800 = vsel %vm6784, %v188, 128.0
      %v6801 = vsel %vm6785, %v189, 128.0
      %v6802 = vsel %vm6786, %v190, 128.0
      %v6803 = vsel %vm6787, %v191, 128.0
      %v6804 = vsel %vm6788, %v192, 128.0
      %v6805 = vmin.f32 %v6789, %v6793
      %v6806 = vmin.f32 %v6790, %v6794
      %v6807 = vmin.f32 %v6791, %v6795
      %v6808 = vmin.f32 %v6792, %v6796
      %v6809 = vmin.f32 %v6805, %v6797
      %v6810 = vmin.f32 %v6806, %v6798
      %v6811 = vmin.f32 %v6807, %v6799
      %v6812 = vmin.f32 %v6808, %v6800
      %v6813 = vmin.f32 %v6809, %v6801
      %v6814 = vmin.f32 %v6810, %v6802
      %v6815 = vmin.f32 %v6811, %v6803
      %v6816 = vmin.f32 %v6812, %v6804
      %v6817 = vmin.f32 %v6813, %v6814
      %v6818 = vmin.f32 %v6815, %v6816
      %v6819 = vmin.f32 %v6817, %v6818
      %v6820 = vrot.slane %v6819, 4
      %v6821 = vmin.f32 %v6819, %v6820
      %v6822 = vrot.slane %v6821, 2
      %v6823 = vmin.f32 %v6821, %v6822
      %v6824 = vrot.slane %v6823, 1
      %v6825 = vmin.f32 %v6823, %v6824
      %vm6826 = vcmp.eq.f32.partialorder %v177, %v6825
      %vm6827 = vcmp.eq.f32.partialorder %v178, %v6825
      %vm6828 = vcmp.eq.f32.partialorder %v179, %v6825
      %vm6829 = vcmp.eq.f32.partialorder %v180, %v6825
      %vm6830 = vcmp.eq.f32.partialorder %v181, %v6825
      %vm6831 = vcmp.eq.f32.partialorder %v182, %v6825
      %vm6832 = vcmp.eq.f32.partialorder %v183, %v6825
      %vm6833 = vcmp.eq.f32.partialorder %v184, %v6825
      %vm6834 = vcmp.eq.f32.partialorder %v185, %v6825
      %vm6835 = vcmp.eq.f32.partialorder %v186, %v6825
      %vm6836 = vcmp.eq.f32.partialorder %v187, %v6825
      %vm6837 = vcmp.eq.f32.partialorder %v188, %v6825
      %vm6838 = vcmp.eq.f32.partialorder %v189, %v6825
      %vm6839 = vcmp.eq.f32.partialorder %v190, %v6825
      %vm6840 = vcmp.eq.f32.partialorder %v191, %v6825
      %vm6841 = vcmp.eq.f32.partialorder %v192, %v6825
      %v6842 = vsel %vm6826, 1, 0
      %v6843 = vsel %vm6827, 1, 0
      %v6844 = vsel %vm6828, 1, 0
      %v6845 = vsel %vm6829, 1, 0
      %v6846 = vsel %vm6830, 1, 0
      %v6847 = vsel %vm6831, 1, 0
      %v6848 = vsel %vm6832, 1, 0
      %v6849 = vsel %vm6833, 1, 0
      %v6850 = vsel %vm6834, 1, 0
      %v6851 = vsel %vm6835, 1, 0
      %v6852 = vsel %vm6836, 1, 0
      %v6853 = vsel %vm6837, 1, 0
      %v6854 = vsel %vm6838, 1, 0
      %v6855 = vsel %vm6839, 1, 0
      %v6856 = vsel %vm6840, 1, 0
      %v6857 = vsel %vm6841, 1, 0
      %v6858 = vcvt.s32.f32 %v6842
      %v6859 = vcvt.s32.f32 %v6843
      %v6860 = vcvt.s32.f32 %v6844
      %v6861 = vcvt.s32.f32 %v6845
      %v6862 = vcvt.s32.f32 %v6846
      %v6863 = vcvt.s32.f32 %v6847
      %v6864 = vcvt.s32.f32 %v6848
      %v6865 = vcvt.s32.f32 %v6849
      %v6866 = vcvt.s32.f32 %v6850
      %v6867 = vcvt.s32.f32 %v6851
      %v6868 = vcvt.s32.f32 %v6852
      %v6869 = vcvt.s32.f32 %v6853
      %v6870 = vcvt.s32.f32 %v6854
      %v6871 = vcvt.s32.f32 %v6855
      %v6872 = vcvt.s32.f32 %v6856
      %v6873 = vcvt.s32.f32 %v6857
      %v6874 = vadd.f32 %v6720, %v6858
      %v6875 = vadd.f32 %v6721, %v6859
      %v6876 = vadd.f32 %v6722, %v6860
      %v6877 = vadd.f32 %v6723, %v6861
      %v6878 = vadd.f32 %v6724, %v6862
      %v6879 = vadd.f32 %v6725, %v6863
      %v6880 = vadd.f32 %v6726, %v6864
      %v6881 = vadd.f32 %v6727, %v6865
      %v6882 = vadd.f32 %v6728, %v6866
      %v6883 = vadd.f32 %v6729, %v6867
      %v6884 = vadd.f32 %v6730, %v6868
      %v6885 = vadd.f32 %v6731, %v6869
      %v6886 = vadd.f32 %v6732, %v6870
      %v6887 = vadd.f32 %v6733, %v6871
      %v6888 = vadd.f32 %v6734, %v6872
      %v6889 = vadd.f32 %v6735, %v6873
      %v6890 = vsel %vm6826, 1e+30, %v6736
      %v6891 = vsel %vm6827, 1e+30, %v6737
      %v6892 = vsel %vm6828, 1e+30, %v6738
      %v6893 = vsel %vm6829, 1e+30, %v6739
      %v6894 = vsel %vm6830, 1e+30, %v6740
      %v6895 = vsel %vm6831, 1e+30, %v6741
      %v6896 = vsel %vm6832, 1e+30, %v6742
      %v6897 = vsel %vm6833, 1e+30, %v6743
      %v6898 = vsel %vm6834, 1e+30, %v6744
      %v6899 = vsel %vm6835, 1e+30, %v6745
      %v6900 = vsel %vm6836, 1e+30, %v6746
      %v6901 = vsel %vm6837, 1e+30, %v6747
      %v6902 = vsel %vm6838, 1e+30, %v6748
      %v6903 = vsel %vm6839, 1e+30, %v6749
      %v6904 = vsel %vm6840, 1e+30, %v6750
      %v6905 = vsel %vm6841, 1e+30, %v6751
      %v6906 = vmin.f32 %v6890, %v6894
      %v6907 = vmin.f32 %v6891, %v6895
      %v6908 = vmin.f32 %v6892, %v6896
      %v6909 = vmin.f32 %v6893, %v6897
      %v6910 = vmin.f32 %v6906, %v6898
      %v6911 = vmin.f32 %v6907, %v6899
      %v6912 = vmin.f32 %v6908, %v6900
      %v6913 = vmin.f32 %v6909, %v6901
      %v6914 = vmin.f32 %v6910, %v6902
      %v6915 = vmin.f32 %v6911, %v6903
      %v6916 = vmin.f32 %v6912, %v6904
      %v6917 = vmin.f32 %v6913, %v6905
      %v6918 = vmin.f32 %v6914, %v6915
      %v6919 = vmin.f32 %v6916, %v6917
      %v6920 = vmin.f32 %v6918, %v6919
      %v6921 = vrot.slane %v6920, 4
      %v6922 = vmin.f32 %v6920, %v6921
      %v6923 = vrot.slane %v6922, 2
      %v6924 = vmin.f32 %v6922, %v6923
      %v6925 = vrot.slane %v6924, 1
      %v6926 = vmin.f32 %v6924, %v6925
      %vm6927 = vcmp.eq.f32.partialorder %v6890, %v6926
      %vm6928 = vcmp.eq.f32.partialorder %v6891, %v6926
      %vm6929 = vcmp.eq.f32.partialorder %v6892, %v6926
      %vm6930 = vcmp.eq.f32.partialorder %v6893, %v6926
      %vm6931 = vcmp.eq.f32.partialorder %v6894, %v6926
      %vm6932 = vcmp.eq.f32.partialorder %v6895, %v6926
      %vm6933 = vcmp.eq.f32.partialorder %v6896, %v6926
      %vm6934 = vcmp.eq.f32.partialorder %v6897, %v6926
      %vm6935 = vcmp.eq.f32.partialorder %v6898, %v6926
      %vm6936 = vcmp.eq.f32.partialorder %v6899, %v6926
      %vm6937 = vcmp.eq.f32.partialorder %v6900, %v6926
      %vm6938 = vcmp.eq.f32.partialorder %v6901, %v6926
      %vm6939 = vcmp.eq.f32.partialorder %v6902, %v6926
      %vm6940 = vcmp.eq.f32.partialorder %v6903, %v6926
      %vm6941 = vcmp.eq.f32.partialorder %v6904, %v6926
      %vm6942 = vcmp.eq.f32.partialorder %v6905, %v6926
      %v6943 = vsel %vm6927, %v177, 128.0
      %v6944 = vsel %vm6928, %v178, 128.0
      %v6945 = vsel %vm6929, %v179, 128.0
      %v6946 = vsel %vm6930, %v180, 128.0
      %v6947 = vsel %vm6931, %v181, 128.0
      %v6948 = vsel %vm6932, %v182, 128.0
      %v6949 = vsel %vm6933, %v183, 128.0
      %v6950 = vsel %vm6934, %v184, 128.0
      %v6951 = vsel %vm6935, %v185, 128.0
      %v6952 = vsel %vm6936, %v186, 128.0
      %v6953 = vsel %vm6937, %v187, 128.0
      %v6954 = vsel %vm6938, %v188, 128.0
      %v6955 = vsel %vm6939, %v189, 128.0
      %v6956 = vsel %vm6940, %v190, 128.0
      %v6957 = vsel %vm6941, %v191, 128.0
      %v6958 = vsel %vm6942, %v192, 128.0
      %v6959 = vmin.f32 %v6943, %v6947
      %v6960 = vmin.f32 %v6944, %v6948
      %v6961 = vmin.f32 %v6945, %v6949
      %v6962 = vmin.f32 %v6946, %v6950
      %v6963 = vmin.f32 %v6959, %v6951
      %v6964 = vmin.f32 %v6960, %v6952
      %v6965 = vmin.f32 %v6961, %v6953
      %v6966 = vmin.f32 %v6962, %v6954
      %v6967 = vmin.f32 %v6963, %v6955
      %v6968 = vmin.f32 %v6964, %v6956
      %v6969 = vmin.f32 %v6965, %v6957
      %v6970 = vmin.f32 %v6966, %v6958
      %v6971 = vmin.f32 %v6967, %v6968
      %v6972 = vmin.f32 %v6969, %v6970
      %v6973 = vmin.f32 %v6971, %v6972
      %v6974 = vrot.slane %v6973, 4
      %v6975 = vmin.f32 %v6973, %v6974
      %v6976 = vrot.slane %v6975, 2
      %v6977 = vmin.f32 %v6975, %v6976
      %v6978 = vrot.slane %v6977, 1
      %v6979 = vmin.f32 %v6977, %v6978
      %vm6980 = vcmp.eq.f32.partialorder %v177, %v6979
      %vm6981 = vcmp.eq.f32.partialorder %v178, %v6979
      %vm6982 = vcmp.eq.f32.partialorder %v179, %v6979
      %vm6983 = vcmp.eq.f32.partialorder %v180, %v6979
      %vm6984 = vcmp.eq.f32.partialorder %v181, %v6979
      %vm6985 = vcmp.eq.f32.partialorder %v182, %v6979
      %vm6986 = vcmp.eq.f32.partialorder %v183, %v6979
      %vm6987 = vcmp.eq.f32.partialorder %v184, %v6979
      %vm6988 = vcmp.eq.f32.partialorder %v185, %v6979
      %vm6989 = vcmp.eq.f32.partialorder %v186, %v6979
      %vm6990 = vcmp.eq.f32.partialorder %v187, %v6979
      %vm6991 = vcmp.eq.f32.partialorder %v188, %v6979
      %vm6992 = vcmp.eq.f32.partialorder %v189, %v6979
      %vm6993 = vcmp.eq.f32.partialorder %v190, %v6979
      %vm6994 = vcmp.eq.f32.partialorder %v191, %v6979
      %vm6995 = vcmp.eq.f32.partialorder %v192, %v6979
      %v6996 = vsel %vm6980, 1, 0
      %v6997 = vsel %vm6981, 1, 0
      %v6998 = vsel %vm6982, 1, 0
      %v6999 = vsel %vm6983, 1, 0
      %v7000 = vsel %vm6984, 1, 0
      %v7001 = vsel %vm6985, 1, 0
      %v7002 = vsel %vm6986, 1, 0
      %v7003 = vsel %vm6987, 1, 0
      %v7004 = vsel %vm6988, 1, 0
      %v7005 = vsel %vm6989, 1, 0
      %v7006 = vsel %vm6990, 1, 0
      %v7007 = vsel %vm6991, 1, 0
      %v7008 = vsel %vm6992, 1, 0
      %v7009 = vsel %vm6993, 1, 0
      %v7010 = vsel %vm6994, 1, 0
      %v7011 = vsel %vm6995, 1, 0
      %v7012 = vcvt.s32.f32 %v6996
      %v7013 = vcvt.s32.f32 %v6997
      %v7014 = vcvt.s32.f32 %v6998
      %v7015 = vcvt.s32.f32 %v6999
      %v7016 = vcvt.s32.f32 %v7000
      %v7017 = vcvt.s32.f32 %v7001
      %v7018 = vcvt.s32.f32 %v7002
      %v7019 = vcvt.s32.f32 %v7003
      %v7020 = vcvt.s32.f32 %v7004
      %v7021 = vcvt.s32.f32 %v7005
      %v7022 = vcvt.s32.f32 %v7006
      %v7023 = vcvt.s32.f32 %v7007
      %v7024 = vcvt.s32.f32 %v7008
      %v7025 = vcvt.s32.f32 %v7009
      %v7026 = vcvt.s32.f32 %v7010
      %v7027 = vcvt.s32.f32 %v7011
      %v7028 = vadd.f32 %v6874, %v7012
      %v7029 = vadd.f32 %v6875, %v7013
      %v7030 = vadd.f32 %v6876, %v7014
      %v7031 = vadd.f32 %v6877, %v7015
      %v7032 = vadd.f32 %v6878, %v7016
      %v7033 = vadd.f32 %v6879, %v7017
      %v7034 = vadd.f32 %v6880, %v7018
      %v7035 = vadd.f32 %v6881, %v7019
      %v7036 = vadd.f32 %v6882, %v7020
      %v7037 = vadd.f32 %v6883, %v7021
      %v7038 = vadd.f32 %v6884, %v7022
      %v7039 = vadd.f32 %v6885, %v7023
      %v7040 = vadd.f32 %v6886, %v7024
      %v7041 = vadd.f32 %v6887, %v7025
      %v7042 = vadd.f32 %v6888, %v7026
      %v7043 = vadd.f32 %v6889, %v7027
      %v7044 = vsel %vm6980, 1e+30, %v6890
      %v7045 = vsel %vm6981, 1e+30, %v6891
      %v7046 = vsel %vm6982, 1e+30, %v6892
      %v7047 = vsel %vm6983, 1e+30, %v6893
      %v7048 = vsel %vm6984, 1e+30, %v6894
      %v7049 = vsel %vm6985, 1e+30, %v6895
      %v7050 = vsel %vm6986, 1e+30, %v6896
      %v7051 = vsel %vm6987, 1e+30, %v6897
      %v7052 = vsel %vm6988, 1e+30, %v6898
      %v7053 = vsel %vm6989, 1e+30, %v6899
      %v7054 = vsel %vm6990, 1e+30, %v6900
      %v7055 = vsel %vm6991, 1e+30, %v6901
      %v7056 = vsel %vm6992, 1e+30, %v6902
      %v7057 = vsel %vm6993, 1e+30, %v6903
      %v7058 = vsel %vm6994, 1e+30, %v6904
      %v7059 = vsel %vm6995, 1e+30, %v6905
      %v7060 = vmin.f32 %v7044, %v7048
      %v7061 = vmin.f32 %v7045, %v7049
      %v7062 = vmin.f32 %v7046, %v7050
      %v7063 = vmin.f32 %v7047, %v7051
      %v7064 = vmin.f32 %v7060, %v7052
      %v7065 = vmin.f32 %v7061, %v7053
      %v7066 = vmin.f32 %v7062, %v7054
      %v7067 = vmin.f32 %v7063, %v7055
      %v7068 = vmin.f32 %v7064, %v7056
      %v7069 = vmin.f32 %v7065, %v7057
      %v7070 = vmin.f32 %v7066, %v7058
      %v7071 = vmin.f32 %v7067, %v7059
      %v7072 = vmin.f32 %v7068, %v7069
      %v7073 = vmin.f32 %v7070, %v7071
      %v7074 = vmin.f32 %v7072, %v7073
      %v7075 = vrot.slane %v7074, 4
      %v7076 = vmin.f32 %v7074, %v7075
      %v7077 = vrot.slane %v7076, 2
      %v7078 = vmin.f32 %v7076, %v7077
      %v7079 = vrot.slane %v7078, 1
      %v7080 = vmin.f32 %v7078, %v7079
      %vm7081 = vcmp.eq.f32.partialorder %v7044, %v7080
      %vm7082 = vcmp.eq.f32.partialorder %v7045, %v7080
      %vm7083 = vcmp.eq.f32.partialorder %v7046, %v7080
      %vm7084 = vcmp.eq.f32.partialorder %v7047, %v7080
      %vm7085 = vcmp.eq.f32.partialorder %v7048, %v7080
      %vm7086 = vcmp.eq.f32.partialorder %v7049, %v7080
      %vm7087 = vcmp.eq.f32.partialorder %v7050, %v7080
      %vm7088 = vcmp.eq.f32.partialorder %v7051, %v7080
      %vm7089 = vcmp.eq.f32.partialorder %v7052, %v7080
      %vm7090 = vcmp.eq.f32.partialorder %v7053, %v7080
      %vm7091 = vcmp.eq.f32.partialorder %v7054, %v7080
      %vm7092 = vcmp.eq.f32.partialorder %v7055, %v7080
      %vm7093 = vcmp.eq.f32.partialorder %v7056, %v7080
      %vm7094 = vcmp.eq.f32.partialorder %v7057, %v7080
      %vm7095 = vcmp.eq.f32.partialorder %v7058, %v7080
      %vm7096 = vcmp.eq.f32.partialorder %v7059, %v7080
      %v7097 = vsel %vm7081, %v177, 128.0
      %v7098 = vsel %vm7082, %v178, 128.0
      %v7099 = vsel %vm7083, %v179, 128.0
      %v7100 = vsel %vm7084, %v180, 128.0
      %v7101 = vsel %vm7085, %v181, 128.0
      %v7102 = vsel %vm7086, %v182, 128.0
      %v7103 = vsel %vm7087, %v183, 128.0
      %v7104 = vsel %vm7088, %v184, 128.0
      %v7105 = vsel %vm7089, %v185, 128.0
      %v7106 = vsel %vm7090, %v186, 128.0
      %v7107 = vsel %vm7091, %v187, 128.0
      %v7108 = vsel %vm7092, %v188, 128.0
      %v7109 = vsel %vm7093, %v189, 128.0
      %v7110 = vsel %vm7094, %v190, 128.0
      %v7111 = vsel %vm7095, %v191, 128.0
      %v7112 = vsel %vm7096, %v192, 128.0
      %v7113 = vmin.f32 %v7097, %v7101
      %v7114 = vmin.f32 %v7098, %v7102
      %v7115 = vmin.f32 %v7099, %v7103
      %v7116 = vmin.f32 %v7100, %v7104
      %v7117 = vmin.f32 %v7113, %v7105
      %v7118 = vmin.f32 %v7114, %v7106
      %v7119 = vmin.f32 %v7115, %v7107
      %v7120 = vmin.f32 %v7116, %v7108
      %v7121 = vmin.f32 %v7117, %v7109
      %v7122 = vmin.f32 %v7118, %v7110
      %v7123 = vmin.f32 %v7119, %v7111
      %v7124 = vmin.f32 %v7120, %v7112
      %v7125 = vmin.f32 %v7121, %v7122
      %v7126 = vmin.f32 %v7123, %v7124
      %v7127 = vmin.f32 %v7125, %v7126
      %v7128 = vrot.slane %v7127, 4
      %v7129 = vmin.f32 %v7127, %v7128
      %v7130 = vrot.slane %v7129, 2
      %v7131 = vmin.f32 %v7129, %v7130
      %v7132 = vrot.slane %v7131, 1
      %v7133 = vmin.f32 %v7131, %v7132
      %vm7134 = vcmp.eq.f32.partialorder %v177, %v7133
      %vm7135 = vcmp.eq.f32.partialorder %v178, %v7133
      %vm7136 = vcmp.eq.f32.partialorder %v179, %v7133
      %vm7137 = vcmp.eq.f32.partialorder %v180, %v7133
      %vm7138 = vcmp.eq.f32.partialorder %v181, %v7133
      %vm7139 = vcmp.eq.f32.partialorder %v182, %v7133
      %vm7140 = vcmp.eq.f32.partialorder %v183, %v7133
      %vm7141 = vcmp.eq.f32.partialorder %v184, %v7133
      %vm7142 = vcmp.eq.f32.partialorder %v185, %v7133
      %vm7143 = vcmp.eq.f32.partialorder %v186, %v7133
      %vm7144 = vcmp.eq.f32.partialorder %v187, %v7133
      %vm7145 = vcmp.eq.f32.partialorder %v188, %v7133
      %vm7146 = vcmp.eq.f32.partialorder %v189, %v7133
      %vm7147 = vcmp.eq.f32.partialorder %v190, %v7133
      %vm7148 = vcmp.eq.f32.partialorder %v191, %v7133
      %vm7149 = vcmp.eq.f32.partialorder %v192, %v7133
      %v7150 = vsel %vm7134, 1, 0
      %v7151 = vsel %vm7135, 1, 0
      %v7152 = vsel %vm7136, 1, 0
      %v7153 = vsel %vm7137, 1, 0
      %v7154 = vsel %vm7138, 1, 0
      %v7155 = vsel %vm7139, 1, 0
      %v7156 = vsel %vm7140, 1, 0
      %v7157 = vsel %vm7141, 1, 0
      %v7158 = vsel %vm7142, 1, 0
      %v7159 = vsel %vm7143, 1, 0
      %v7160 = vsel %vm7144, 1, 0
      %v7161 = vsel %vm7145, 1, 0
      %v7162 = vsel %vm7146, 1, 0
      %v7163 = vsel %vm7147, 1, 0
      %v7164 = vsel %vm7148, 1, 0
      %v7165 = vsel %vm7149, 1, 0
      %v7166 = vcvt.s32.f32 %v7150
      %v7167 = vcvt.s32.f32 %v7151
      %v7168 = vcvt.s32.f32 %v7152
      %v7169 = vcvt.s32.f32 %v7153
      %v7170 = vcvt.s32.f32 %v7154
      %v7171 = vcvt.s32.f32 %v7155
      %v7172 = vcvt.s32.f32 %v7156
      %v7173 = vcvt.s32.f32 %v7157
      %v7174 = vcvt.s32.f32 %v7158
      %v7175 = vcvt.s32.f32 %v7159
      %v7176 = vcvt.s32.f32 %v7160
      %v7177 = vcvt.s32.f32 %v7161
      %v7178 = vcvt.s32.f32 %v7162
      %v7179 = vcvt.s32.f32 %v7163
      %v7180 = vcvt.s32.f32 %v7164
      %v7181 = vcvt.s32.f32 %v7165
      %v7182 = vadd.f32 %v7028, %v7166
      %v7183 = vadd.f32 %v7029, %v7167
      %v7184 = vadd.f32 %v7030, %v7168
      %v7185 = vadd.f32 %v7031, %v7169
      %v7186 = vadd.f32 %v7032, %v7170
      %v7187 = vadd.f32 %v7033, %v7171
      %v7188 = vadd.f32 %v7034, %v7172
      %v7189 = vadd.f32 %v7035, %v7173
      %v7190 = vadd.f32 %v7036, %v7174
      %v7191 = vadd.f32 %v7037, %v7175
      %v7192 = vadd.f32 %v7038, %v7176
      %v7193 = vadd.f32 %v7039, %v7177
      %v7194 = vadd.f32 %v7040, %v7178
      %v7195 = vadd.f32 %v7041, %v7179
      %v7196 = vadd.f32 %v7042, %v7180
      %v7197 = vadd.f32 %v7043, %v7181
      %v7198 = vmul.f32 %v3769, %v3769
      %v7200 = vrot.slane %v3769, 1
      %v7202 = vmul.f32 %v3769, %v7200
      %v7203 = vrot.slane %v3769, 2
      %v7205 = vmul.f32 %v3769, %v7203
      %v7207 = vrot.slane %v7198, 5
      %v7210 = vrot.slane %v7202, 2
      %v7213 = vrot.slane %v7205, 1
      %v7215 = vrot.slane %v7202, 1
      %v7217 = vsel %vm3657, %v3769, %v7207
      %v7218 = vsel %vm3659, %v7217, %v7207
      %v7219 = vsel %vm3661, %v7218, %v7207
      %v7220 = vsel %vm3663, %v7219, %v7210
      %v7221 = vsel %vm3665, %v7220, %v7213
      %v7222 = vsel %vm3667, %v7215, 0.0
      %v7223 = vsel %vm3669, %v7222, 0.0
      %v7224 = vsel %vm3657, %v7223, 0.0
      %v7225 = vsel %vm3659, %v7224, 0.0
      %v7226 = vsel %vm3661, %v7225, 0.0
      %v7227 = vsel %vm3663, %v7226, 0.0
      %v7228 = vsel %vm3665, %v7227, 0.0
      %7229 = vmatprep.subr.mxu0 0.0
      %7230 = vmatpush1.msra.mxu0 %v7197
      %7231 = vmatprep.subr.mxu0 0.0
      %7232 = vmatpush1.msra.mxu0 %v7196
      %7233 = vmatprep.subr.mxu0 0.0
      %7234 = vmatpush1.msra.mxu0 %v7195
      %7235 = vmatprep.subr.mxu0 0.0
      %7236 = vmatpush1.msra.mxu0 %v7194
      %7237 = vmatprep.subr.mxu0 0.0
      %7238 = vmatpush1.msra.mxu0 %v7193
      %7239 = vmatprep.subr.mxu0 0.0
      %7240 = vmatpush1.msra.mxu0 %v7192
      %7241 = vmatprep.subr.mxu0 0.0
      %7242 = vmatpush1.msra.mxu0 %v7191
      %7243 = vmatprep.subr.mxu0 0.0
      %7244 = vmatpush1.msra.mxu0 %v7190
      %7245 = vmatprep.subr.mxu0 0.0
      %7246 = vmatpush1.msra.mxu0 %v7189
      %7247 = vmatprep.subr.mxu0 0.0
      %7248 = vmatpush1.msra.mxu0 %v7188
      %7249 = vmatprep.subr.mxu0 0.0
      %7250 = vmatpush1.msra.mxu0 %v7187
      %7251 = vmatprep.subr.mxu0 0.0
      %7252 = vmatpush1.msra.mxu0 %v7186
      %7253 = vmatprep.subr.mxu0 0.0
      %7254 = vmatpush1.msra.mxu0 %v7185
      %7255 = vmatprep.subr.mxu0 0.0
      %7256 = vmatpush1.msra.mxu0 %v7184
      %7257 = vmatprep.subr.mxu0 0.0
      %7258 = vmatpush1.msra.mxu0 %v7183
      %7259 = vmatprep.subr.mxu0 0.0
      %7260 = vmatpush1.msra.mxu0 %v7182
      %7261 = vmatprep.subr.mxu0 0.0
      %7262 = vmatpush2.msra.mxu0 0.0
      %7263 = vmatprep.subr.mxu0 0.0
      %7264 = vmatpush2.msra.mxu0 0.0
      %7265 = vmatprep.subr.mxu0 0.0
      %7266 = vmatpush2.msra.mxu0 0.0
      %7267 = vmatprep.subr.mxu0 0.0
      %7268 = vmatpush2.msra.mxu0 0.0
      %7269 = vmatprep.subr.mxu0 0.0
      %7270 = vmatpush2.msra.mxu0 0.0
      %7271 = vmatprep.subr.mxu0 0.0
      %7272 = vmatpush2.msra.mxu0 0.0
      %7273 = vmatprep.subr.mxu0 0.0
      %7274 = vmatpush2.msra.mxu0 0.0
      %7275 = vmatprep.subr.mxu0 0.0
      %7276 = vmatpush2.msra.mxu0 0.0
      %7277 = vmatprep.subr.mxu0 0.0
      %7278 = vmatpush2.msra.mxu0 0.0
      %7279 = vmatprep.subr.mxu0 0.0
      %7280 = vmatpush2.msra.mxu0 0.0
      %7281 = vmatprep.subr.mxu0 0.0
      %7282 = vmatpush2.msra.mxu0 0.0
      %7283 = vmatprep.subr.mxu0 0.0
      %7284 = vmatpush2.msra.mxu0 0.0
      %7285 = vmatprep.subr.mxu0 0.0
      %7286 = vmatpush2.msra.mxu0 0.0
      %7287 = vmatprep.subr.mxu0 0.0
      %7288 = vmatpush2.msra.mxu0 0.0
      %7289 = vmatprep.subr.mxu0 0.0
      %7290 = vmatpush2.msra.mxu0 0.0
      %7291 = vmatprep.subr.mxu0 0.0
      %7292 = vmatpush2.msra.mxu0 0.0
      %7293 = vmatprep.mubr.f32.mxu0 0.0
      %7294 = vmatmul.mubr.f32.gmra.mxu0 %v7221
      %v7295 = vpop.f32.mrf.mxu0
      %v7296 = vadd.f32 0.0, %v7295
      %v7297 = vpop.f32.mrf.mxu0
      %7298 = vmatprep.mubr.f32.mxu0 0.0
      %7299 = vmatmul.mubr.f32.gmra.mxu0 %v7228
      %v7300 = vpop.f32.mrf.mxu0
      %v7301 = vadd.f32 0.0, %v7300
      %v7302 = vpop.f32.mrf.mxu0
      %7303 = vdwg.mxu0
      %v7305 = vrot.slane %v7296, 7
      %v7307 = vsel %vm3667, %v3743, %v7305
      %v7308 = vmul.f32 %v7307, 0.05
      %v7310 = vrot.slane %v3743, 1
      %v7312 = vsel %vm3667, %v7310, %v7296
      %v7313 = vmul.f32 %v7312, 0.05
      %v7314 = vrot.slane %v3743, 2
      %v7316 = vrot.slane %v7296, 1
      %v7318 = vsel %vm3667, %v7314, %v7316
      %v7319 = vmul.f32 %v7318, 0.05
      %v7320 = vrot.slane %v3743, 3
      %v7322 = vrot.slane %v7296, 2
      %v7324 = vsel %vm3667, %v7320, %v7322
      %v7325 = vmul.f32 %v7324, 0.05
      %v7326 = vmul.f32 %v7308, %v7308
      %v7327 = vsub.f32 %v7325, %v7326
      %v7328 = vrot.slane %v3743, 4
      %v7330 = vrot.slane %v7296, 3
      %v7332 = vsel %vm3667, %v7328, %v7330
      %v7333 = vmul.f32 %v7332, 0.05
      %v7334 = vmul.f32 %v7313, %v7313
      %v7335 = vsub.f32 %v7333, %v7334
      %v7336 = vrot.slane %v3743, 5
      %v7338 = vrot.slane %v7296, 4
      %v7340 = vsel %vm3667, %v7336, %v7338
      %v7341 = vmul.f32 %v7340, 0.05
      %v7342 = vmul.f32 %v7319, %v7319
      %v7343 = vsub.f32 %v7341, %v7342
      %v7344 = vrot.slane %v3743, 6
      %v7346 = vrot.slane %v7296, 5
      %v7348 = vsel %vm3667, %v7344, %v7346
      %v7349 = vmul.f32 %v7348, 0.05
      %v7350 = vmul.f32 %v7308, %v7313
      %v7351 = vsub.f32 %v7349, %v7350
      %v7352 = vrot.slane %v3743, 7
      %v7354 = vrot.slane %v7296, 6
      %v7356 = vsel %vm3667, %v7352, %v7354
      %v7357 = vmul.f32 %v7356, 0.05
      %v7358 = vmul.f32 %v7308, %v7319
      %v7359 = vsub.f32 %v7357, %v7358
      %v7361 = vrot.slane %v7301, 7
      %v7363 = vsel %vm3667, %v3748, %v7361
      %v7364 = vmul.f32 %v7363, 0.05
      %v7365 = vmul.f32 %v7313, %v7319
      %v7366 = vsub.f32 %v7364, %v7365
      %v7367 = vadd.f32 %v7327, %v7335
      %v7368 = vadd.f32 %v7367, %v7343
      %v7369 = vmul.f32 %v7327, %v7335
      %v7370 = vmul.f32 %v7327, %v7343
      %v7371 = vadd.f32 %v7369, %v7370
      %v7372 = vmul.f32 %v7335, %v7343
      %v7373 = vadd.f32 %v7371, %v7372
      %v7374 = vmul.f32 %v7351, %v7351
      %v7375 = vsub.f32 %v7373, %v7374
      %v7376 = vmul.f32 %v7359, %v7359
      %v7377 = vsub.f32 %v7375, %v7376
      %v7378 = vmul.f32 %v7366, %v7366
      %v7379 = vsub.f32 %v7377, %v7378
      %v7380 = vsub.f32 %v7372, %v7378
      %v7381 = vmul.f32 %v7327, %v7380
      %v7382 = vmul.f32 %v7351, %v7343
      %v7383 = vmul.f32 %v7366, %v7359
      %v7384 = vsub.f32 %v7382, %v7383
      %v7385 = vmul.f32 %v7351, %v7384
      %v7386 = vsub.f32 %v7381, %v7385
      %v7387 = vmul.f32 %v7351, %v7366
      %v7388 = vmul.f32 %v7335, %v7359
      %v7389 = vsub.f32 %v7387, %v7388
      %v7390 = vmul.f32 %v7359, %v7389
      %v7391 = vadd.f32 %v7386, %v7390
      %v7392 = vmul.f32 %v7368, 0.33333334
      %vm7393 = vcmp.gt.f32.partialorder %v7392, 1e-30
      %v7394 = vsel %vm7393, %v7392, 1.0
      %v7395 = vrcp.pop %v7394
      %v7396 = vmul.f32 1.0, %v7395
      %v7397 = vmul.f32 %v7379, %v7396
      %v7398 = vmul.f32 %v7397, %v7396
      %v7399 = vmul.f32 %v7391, %v7396
      %v7400 = vmul.f32 %v7399, %v7396
      %v7401 = vmul.f32 %v7400, %v7396
      %v7402 = vmul.f32 %v7398, 0.0
      %v7403 = vsub.f32 %v7402, %v7401
      %v7404 = vand.u32 2147483647, %v7398
      %vm7405 = vcmp.gt.f32.partialorder %v7404, 1e-12
      %vm7406 = vcmp.ge.f32.partialorder %v7398, 0.0
      %v7407 = vsel %vm7406, 1e-12, -1e-12
      %v7408 = vsel %vm7405, %v7398, %v7407
      %v7409 = vrcp.pop %v7408
      %v7410 = vmul.f32 %v7403, %v7409
      %v7411 = vsub.f32 0.0, %v7410
      %v7412 = vmax.f32 %v7411, 0.0
      %v7413 = vmin.f32 %v7412, 1.0
      %v7414 = vsub.f32 %v7413, 3.0
      %v7415 = vmul.f32 %v7414, %v7413
      %v7416 = vadd.f32 %v7415, %v7398
      %v7417 = vmul.f32 %v7416, %v7413
      %v7418 = vsub.f32 %v7417, %v7401
      %v7419 = vmul.f32 %v7413, 3.0
      %v7420 = vsub.f32 %v7419, 6.0
      %v7421 = vmul.f32 %v7420, %v7413
      %v7422 = vadd.f32 %v7421, %v7398
      %v7423 = vand.u32 2147483647, %v7422
      %vm7424 = vcmp.gt.f32.partialorder %v7423, 1e-12
      %vm7425 = vcmp.ge.f32.partialorder %v7422, 0.0
      %v7426 = vsel %vm7425, 1e-12, -1e-12
      %v7427 = vsel %vm7424, %v7422, %v7426
      %v7428 = vrcp.pop %v7427
      %v7429 = vmul.f32 %v7418, %v7428
      %v7430 = vsub.f32 %v7413, %v7429
      %v7431 = vmax.f32 %v7430, 0.0
      %v7432 = vmin.f32 %v7431, 1.0
      %v7433 = vsub.f32 %v7432, 3.0
      %v7434 = vmul.f32 %v7433, %v7432
      %v7435 = vadd.f32 %v7434, %v7398
      %v7436 = vmul.f32 %v7435, %v7432
      %v7437 = vsub.f32 %v7436, %v7401
      %v7438 = vmul.f32 %v7432, 3.0
      %v7439 = vsub.f32 %v7438, 6.0
      %v7440 = vmul.f32 %v7439, %v7432
      %v7441 = vadd.f32 %v7440, %v7398
      %v7442 = vand.u32 2147483647, %v7441
      %vm7443 = vcmp.gt.f32.partialorder %v7442, 1e-12
      %vm7444 = vcmp.ge.f32.partialorder %v7441, 0.0
      %v7445 = vsel %vm7444, 1e-12, -1e-12
      %v7446 = vsel %vm7443, %v7441, %v7445
      %v7447 = vrcp.pop %v7446
      %v7448 = vmul.f32 %v7437, %v7447
      %v7449 = vsub.f32 %v7432, %v7448
      %v7450 = vmax.f32 %v7449, 0.0
      %v7451 = vmin.f32 %v7450, 1.0
      %v7452 = vsub.f32 %v7451, 3.0
      %v7453 = vmul.f32 %v7452, %v7451
      %v7454 = vadd.f32 %v7453, %v7398
      %v7455 = vmul.f32 %v7454, %v7451
      %v7456 = vsub.f32 %v7455, %v7401
      %v7457 = vmul.f32 %v7451, 3.0
      %v7458 = vsub.f32 %v7457, 6.0
      %v7459 = vmul.f32 %v7458, %v7451
      %v7460 = vadd.f32 %v7459, %v7398
      %v7461 = vand.u32 2147483647, %v7460
      %vm7462 = vcmp.gt.f32.partialorder %v7461, 1e-12
      %vm7463 = vcmp.ge.f32.partialorder %v7460, 0.0
      %v7464 = vsel %vm7463, 1e-12, -1e-12
      %v7465 = vsel %vm7462, %v7460, %v7464
      %v7466 = vrcp.pop %v7465
      %v7467 = vmul.f32 %v7456, %v7466
      %v7468 = vsub.f32 %v7451, %v7467
      %v7469 = vmax.f32 %v7468, 0.0
      %v7470 = vmin.f32 %v7469, 1.0
      %v7471 = vsub.f32 %v7470, 3.0
      %v7472 = vmul.f32 %v7471, %v7470
      %v7473 = vadd.f32 %v7472, %v7398
      %v7474 = vmul.f32 %v7473, %v7470
      %v7475 = vsub.f32 %v7474, %v7401
      %v7476 = vmul.f32 %v7470, 3.0
      %v7477 = vsub.f32 %v7476, 6.0
      %v7478 = vmul.f32 %v7477, %v7470
      %v7479 = vadd.f32 %v7478, %v7398
      %v7480 = vand.u32 2147483647, %v7479
      %vm7481 = vcmp.gt.f32.partialorder %v7480, 1e-12
      %vm7482 = vcmp.ge.f32.partialorder %v7479, 0.0
      %v7483 = vsel %vm7482, 1e-12, -1e-12
      %v7484 = vsel %vm7481, %v7479, %v7483
      %v7485 = vrcp.pop %v7484
      %v7486 = vmul.f32 %v7475, %v7485
      %v7487 = vsub.f32 %v7470, %v7486
      %v7488 = vmax.f32 %v7487, 0.0
      %v7489 = vmin.f32 %v7488, 1.0
      %v7490 = vsub.f32 %v7489, 3.0
      %v7491 = vmul.f32 %v7490, %v7489
      %v7492 = vadd.f32 %v7491, %v7398
      %v7493 = vmul.f32 %v7492, %v7489
      %v7494 = vsub.f32 %v7493, %v7401
      %v7495 = vmul.f32 %v7489, 3.0
      %v7496 = vsub.f32 %v7495, 6.0
      %v7497 = vmul.f32 %v7496, %v7489
      %v7498 = vadd.f32 %v7497, %v7398
      %v7499 = vand.u32 2147483647, %v7498
      %vm7500 = vcmp.gt.f32.partialorder %v7499, 1e-12
      %vm7501 = vcmp.ge.f32.partialorder %v7498, 0.0
      %v7502 = vsel %vm7501, 1e-12, -1e-12
      %v7503 = vsel %vm7500, %v7498, %v7502
      %v7504 = vrcp.pop %v7503
      %v7505 = vmul.f32 %v7494, %v7504
      %v7506 = vsub.f32 %v7489, %v7505
      %v7507 = vmax.f32 %v7506, 0.0
      %v7508 = vmin.f32 %v7507, 1.0
      %v7509 = vsub.f32 %v7508, 3.0
      %v7510 = vmul.f32 %v7509, %v7508
      %v7511 = vadd.f32 %v7510, %v7398
      %v7512 = vmul.f32 %v7511, %v7508
      %v7513 = vsub.f32 %v7512, %v7401
      %v7514 = vmul.f32 %v7508, 3.0
      %v7515 = vsub.f32 %v7514, 6.0
      %v7516 = vmul.f32 %v7515, %v7508
      %v7517 = vadd.f32 %v7516, %v7398
      %v7518 = vand.u32 2147483647, %v7517
      %vm7519 = vcmp.gt.f32.partialorder %v7518, 1e-12
      %vm7520 = vcmp.ge.f32.partialorder %v7517, 0.0
      %v7521 = vsel %vm7520, 1e-12, -1e-12
      %v7522 = vsel %vm7519, %v7517, %v7521
      %v7523 = vrcp.pop %v7522
      %v7524 = vmul.f32 %v7513, %v7523
      %v7525 = vsub.f32 %v7508, %v7524
      %v7526 = vmax.f32 %v7525, 0.0
      %v7527 = vmin.f32 %v7526, 1.0
      %v7528 = vsub.f32 %v7527, 3.0
      %v7529 = vmul.f32 %v7528, %v7527
      %v7530 = vadd.f32 %v7529, %v7398
      %v7531 = vmul.f32 %v7530, %v7527
      %v7532 = vsub.f32 %v7531, %v7401
      %v7533 = vmul.f32 %v7527, 3.0
      %v7534 = vsub.f32 %v7533, 6.0
      %v7535 = vmul.f32 %v7534, %v7527
      %v7536 = vadd.f32 %v7535, %v7398
      %v7537 = vand.u32 2147483647, %v7536
      %vm7538 = vcmp.gt.f32.partialorder %v7537, 1e-12
      %vm7539 = vcmp.ge.f32.partialorder %v7536, 0.0
      %v7540 = vsel %vm7539, 1e-12, -1e-12
      %v7541 = vsel %vm7538, %v7536, %v7540
      %v7542 = vrcp.pop %v7541
      %v7543 = vmul.f32 %v7532, %v7542
      %v7544 = vsub.f32 %v7527, %v7543
      %v7545 = vmax.f32 %v7544, 0.0
      %v7546 = vmin.f32 %v7545, 1.0
      %v7547 = vsub.f32 %v7546, 3.0
      %v7548 = vmul.f32 %v7547, %v7546
      %v7549 = vadd.f32 %v7548, %v7398
      %v7550 = vmul.f32 %v7549, %v7546
      %v7551 = vsub.f32 %v7550, %v7401
      %v7552 = vmul.f32 %v7546, 3.0
      %v7553 = vsub.f32 %v7552, 6.0
      %v7554 = vmul.f32 %v7553, %v7546
      %v7555 = vadd.f32 %v7554, %v7398
      %v7556 = vand.u32 2147483647, %v7555
      %vm7557 = vcmp.gt.f32.partialorder %v7556, 1e-12
      %vm7558 = vcmp.ge.f32.partialorder %v7555, 0.0
      %v7559 = vsel %vm7558, 1e-12, -1e-12
      %v7560 = vsel %vm7557, %v7555, %v7559
      %v7561 = vrcp.pop %v7560
      %v7562 = vmul.f32 %v7551, %v7561
      %v7563 = vsub.f32 %v7546, %v7562
      %v7564 = vmax.f32 %v7563, 0.0
      %v7565 = vmin.f32 %v7564, 1.0
      %v7566 = vsub.f32 %v7565, 3.0
      %v7567 = vmul.f32 %v7566, %v7565
      %v7568 = vadd.f32 %v7567, %v7398
      %v7569 = vmul.f32 %v7568, %v7565
      %v7570 = vsub.f32 %v7569, %v7401
      %v7571 = vmul.f32 %v7565, 3.0
      %v7572 = vsub.f32 %v7571, 6.0
      %v7573 = vmul.f32 %v7572, %v7565
      %v7574 = vadd.f32 %v7573, %v7398
      %v7575 = vand.u32 2147483647, %v7574
      %vm7576 = vcmp.gt.f32.partialorder %v7575, 1e-12
      %vm7577 = vcmp.ge.f32.partialorder %v7574, 0.0
      %v7578 = vsel %vm7577, 1e-12, -1e-12
      %v7579 = vsel %vm7576, %v7574, %v7578
      %v7580 = vrcp.pop %v7579
      %v7581 = vmul.f32 %v7570, %v7580
      %v7582 = vsub.f32 %v7565, %v7581
      %v7583 = vmax.f32 %v7582, 0.0
      %v7584 = vmin.f32 %v7583, 1.0
      %v7585 = vsub.f32 %v7584, 3.0
      %v7586 = vmul.f32 %v7585, %v7584
      %v7587 = vadd.f32 %v7586, %v7398
      %v7588 = vmul.f32 %v7587, %v7584
      %v7589 = vsub.f32 %v7588, %v7401
      %v7590 = vmul.f32 %v7584, 3.0
      %v7591 = vsub.f32 %v7590, 6.0
      %v7592 = vmul.f32 %v7591, %v7584
      %v7593 = vadd.f32 %v7592, %v7398
      %v7594 = vand.u32 2147483647, %v7593
      %vm7595 = vcmp.gt.f32.partialorder %v7594, 1e-12
      %vm7596 = vcmp.ge.f32.partialorder %v7593, 0.0
      %v7597 = vsel %vm7596, 1e-12, -1e-12
      %v7598 = vsel %vm7595, %v7593, %v7597
      %v7599 = vrcp.pop %v7598
      %v7600 = vmul.f32 %v7589, %v7599
      %v7601 = vsub.f32 %v7584, %v7600
      %v7602 = vmax.f32 %v7601, 0.0
      %v7603 = vmin.f32 %v7602, 1.0
      %v7604 = vsub.f32 %v7603, 3.0
      %v7605 = vmul.f32 %v7604, %v7603
      %v7606 = vadd.f32 %v7605, %v7398
      %v7607 = vmul.f32 %v7606, %v7603
      %v7608 = vsub.f32 %v7607, %v7401
      %v7609 = vmul.f32 %v7603, 3.0
      %v7610 = vsub.f32 %v7609, 6.0
      %v7611 = vmul.f32 %v7610, %v7603
      %v7612 = vadd.f32 %v7611, %v7398
      %v7613 = vand.u32 2147483647, %v7612
      %vm7614 = vcmp.gt.f32.partialorder %v7613, 1e-12
      %vm7615 = vcmp.ge.f32.partialorder %v7612, 0.0
      %v7616 = vsel %vm7615, 1e-12, -1e-12
      %v7617 = vsel %vm7614, %v7612, %v7616
      %v7618 = vrcp.pop %v7617
      %v7619 = vmul.f32 %v7608, %v7618
      %v7620 = vsub.f32 %v7603, %v7619
      %v7621 = vmax.f32 %v7620, 0.0
      %v7622 = vmin.f32 %v7621, 1.0
      %v7623 = vsub.f32 3.0, %v7622
      %v7624 = vmul.f32 %v7622, %v7623
      %v7625 = vsub.f32 %v7398, %v7624
      %v7626 = vmul.f32 %v7625, %v7394
      %v7627 = vmul.f32 %v7626, %v7394
      %v7628 = vsel %vm7393, %v7627, 0.0
      %v7630 = vrot.slane %v7628, 1
      %v7632 = vsub.f32 %v7628, %v7630
      %v7633 = vmul.f32 %v7632, %v7632
      %v7634 = vsel %vm3667, %v7633, 0.0
      %7635 = vadd.xlane.f32.xlu0 %v7634
      %v7636 = vpop.xlane.xlu0 %7635
      %s7637 = vtos %v7636
      %v7638 = vstv %s7637
      %vm7639 = vcmask 0
      %7640 = vst.msk [vmem:[%s159] sm:$0x1] %vm7639, %v7638
      %p7641 = scmp.lt.s32.totalorder %s13, 1
      %s7642 = scalar_select %p7641, %s13, 1
      %s7643 = scalar_lea.vmem %s2, %s7642
      // Predicated region
      $region29: #{curvature_distance.1} parent=27 // pred_check
        %p7644 = pneg %p83
      $region30: #{curvature_distance.1} parent=27 // pred_check_branch
        %7646 = sbr.rel (%p7644) target = $region32
      $region31: #{curvature_distance.1} parent=27 // pred_region
        _
      $region32: #{curvature_distance.1} parent=27 // pred_fallthru
        _
    $region28: #{curvature_distance.1} parent=5 // pred_fallthru
      _
    %p7647 = scmp.le.s32.totalorder 2, %s8
    // Predicated region
    $region33: #{curvature_distance.1} parent=5 // pred_check
      %p7648 = pneg %p7647
    $region34: #{curvature_distance.1} parent=5 // pred_check_branch
      %7650 = sbr.rel (%p7648) target = $region36
    $region35: #{curvature_distance.1} parent=5 // pred_region
      %s7651 = ssub.s32 %s8, 2
      // Predicated region
      $region37: #{curvature_distance.1} parent=35 // pred_check
        %p7652 = pneg %p89
      $region38: #{curvature_distance.1} parent=35 // pred_check_branch
        %7654 = sbr.rel (%p7652) target = $region40
      $region39: #{curvature_distance.1} parent=35 // pred_region
        %p7655 = scmp.lt.s32.totalorder %s14, 1
        %s7656 = scalar_select %p7655, %s14, 1
        %s7657 = scalar_lea.vmem %s2, %s7656
      $region40: #{curvature_distance.1} parent=35 // pred_fallthru
        _
    $region36: #{curvature_distance.1} parent=5 // pred_fallthru
      _
  $region6: #{curvature_distance.1} parent=0 // loop_footer
    %s12 = sadd.s32 1, %s8
  $region7: #{curvature_distance.1} parent=0 // loop_footer_branch
    %7 = sbr.rel target = $region3
  $region8: #{curvature_distance.1} parent=0 // loop_exit
    _

</llo_original>
